<compile_context>
chip_gen: v5e
topology: v5e:2x2
jax: 0.10.0
libtpu: 0.0.40
codegen_flags: <defaults>
</compile_context>

<pallas_src>
import functools

import jax
import jax.numpy as jnp
from jax import lax
from jax.experimental import pallas as pl
from jax.experimental.pallas import tpu as pltpu

LANES = 128


def _vmem_spec():
    return pl.BlockSpec(memory_space=pltpu.MemorySpace.VMEM)


# ----------------------------------------------------------------------------
# Kernel 1: conv1 (im2col GEMM) + bias + ReLU + 2x2 max-pool.
#   cols_ref : (4, M1, 32)  one im2col matrix per pooling phase, M1 = Bp*14*14
#   w_ref    : (32, 128)    conv1 weights, rows (ki,kj), cols = out channels (6 real)
#   b_ref    : (1, 128)
#   o_ref    : (M1, 128)    pooled + ReLU'd conv1 features (lane-dense)
# ----------------------------------------------------------------------------
def _conv1_pool_kernel(cols_ref, w_ref, b_ref, o_ref):
    w = w_ref[...]
    b = b_ref[...]
    acc = None
    for phase in range(4):
        g = jnp.dot(cols_ref[phase], w, preferred_element_type=jnp.float32) + b
        acc = g if acc is None else jnp.maximum(acc, g)
    o_ref[...] = jnp.maximum(acc, 0.0)  # relu(max) == max(relu)


# ----------------------------------------------------------------------------
# Kernel 2: conv2 GEMM + bias + ReLU + 2x2 max-pool + fc1 + ReLU + fc2 + ReLU + fc3.
#   cols_ref : (4, 25*Bp, 160)  conv2 im2col per pooling phase, rows ordered (pos, b)
#   w2_ref   : (160, 128), b2_ref: (1, 128)
#   wf1_ref  : (400, 128)  fc1 weights, rows ordered (pos = i*5+j, cin<16)
#   bf1_ref  : (1, 128)
#   wf2_ref  : (128, 128), bf2_ref: (1, 128)
#   wf3_ref  : (128, 128), bf3_ref: (1, 128)
#   o_ref    : (Bp, 128)   logits live in lanes [0, 10)
#   pooled_ref (VMEM scratch): (25*Bp, 128)  pooled conv2 features, lanes [0,16) real
# ----------------------------------------------------------------------------
def _conv2_fc_kernel(cols_ref, w2_ref, b2_ref, wf1_ref, bf1_ref,
                     wf2_ref, bf2_ref, wf3_ref, bf3_ref,
                     o_ref, pooled_ref, *, bp):
    w2 = w2_ref[...]
    b2 = b2_ref[...]
    acc = None
    for phase in range(4):
        g = jnp.dot(cols_ref[phase], w2, preferred_element_type=jnp.float32) + b2
        acc = g if acc is None else jnp.maximum(acc, g)
    pooled_ref[...] = jnp.maximum(acc, 0.0)

    # fc1 as a sum of 25 per-spatial-position GEMMs (no in-kernel reshape needed).
    h = None
    for p in range(25):
        xs = pooled_ref[p * bp:(p + 1) * bp, 0:16]   # (Bp, 16)
        ws = wf1_ref[p * 16:(p + 1) * 16, :]         # (16, 128)
        d = jnp.dot(xs, ws, preferred_element_type=jnp.float32)
        h = d if h is None else h + d
    h = jnp.maximum(h + bf1_ref[...], 0.0)           # (Bp, 128), 120 real lanes

    h = jnp.dot(h, wf2_ref[...], preferred_element_type=jnp.float32) + bf2_ref[...]
    h = jnp.maximum(h, 0.0)                          # 84 real lanes
    o_ref[...] = jnp.dot(h, wf3_ref[...], preferred_element_type=jnp.float32) + bf3_ref[...]


# ----------------------------------------------------------------------------
# pallas_call wrappers (no grid: everything is whole-array resident in VMEM)
# ----------------------------------------------------------------------------
def _conv1_pool(cols1, w1, b1):
    m1 = cols1.shape[1]
    return pl.pallas_call(
        _conv1_pool_kernel,
        out_shape=jax.ShapeDtypeStruct((m1, LANES), jnp.float32),
        in_specs=[_vmem_spec() for _ in range(3)],
        out_specs=_vmem_spec(),
    )(cols1, w1, b1)


def _conv2_fc(cols2, prep, bp):
    return pl.pallas_call(
        functools.partial(_conv2_fc_kernel, bp=bp),
        out_shape=jax.ShapeDtypeStruct((bp, LANES), jnp.float32),
        in_specs=[_vmem_spec() for _ in range(9)],
        out_specs=_vmem_spec(),
        scratch_shapes=[pltpu.VMEM((25 * bp, LANES), jnp.float32)],
    )(cols2, prep["w2"], prep["b2"], prep["wf1"], prep["bf1"],
      prep["wf2"], prep["bf2"], prep["wf3"], prep["bf3"])


# ----------------------------------------------------------------------------
# One-time weight packing into padded, kernel-ready layouts.
# ----------------------------------------------------------------------------
def prepare_params(params):
    f32 = jnp.float32
    # conv1: (6,1,5,5) -> (25, 6) rows ordered (ki,kj); pad K 25->32, N 6->128.
    w1 = jnp.transpose(params["conv1_w"], (2, 3, 1, 0)).reshape(25, 6)
    w1 = jnp.pad(w1, ((0, 7), (0, LANES - 6))).astype(f32)
    b1 = jnp.pad(params["conv1_b"], (0, LANES - 6)).reshape(1, LANES).astype(f32)

    # conv2: (16,6,5,5) -> (150, 16) rows ordered ((ki,kj), cin); pad to (160, 128).
    w2 = jnp.transpose(params["conv2_w"], (2, 3, 1, 0)).reshape(150, 16)
    w2 = jnp.pad(w2, ((0, 10), (0, LANES - 16))).astype(f32)
    b2 = jnp.pad(params["conv2_b"], (0, LANES - 16)).reshape(1, LANES).astype(f32)

    # fc1: (120, 400); PyTorch flatten feature index = cin*25 + (i*5+j).
    # Repack rows as (pos = i*5+j, cin) -> the NCHW flatten permutation is
    # absorbed into the weights, so no runtime transpose of activations.
    wf1 = params["fc1_w"].T.reshape(16, 25, 120)             # (cin, pos, n)
    wf1 = jnp.transpose(wf1, (1, 0, 2)).reshape(400, 120)    # rows = pos*16 + cin
    wf1 = jnp.pad(wf1, ((0, 0), (0, LANES - 120))).astype(f32)
    bf1 = jnp.pad(params["fc1_b"], (0, LANES - 120)).reshape(1, LANES).astype(f32)

    wf2 = jnp.pad(params["fc2_w"].T, ((0, LANES - 120), (0, LANES - 84))).astype(f32)
    bf2 = jnp.pad(params["fc2_b"], (0, LANES - 84)).reshape(1, LANES).astype(f32)

    wf3 = jnp.pad(params["fc3_w"].T, ((0, LANES - 84), (0, LANES - 10))).astype(f32)
    bf3 = jnp.pad(params["fc3_b"], (0, LANES - 10)).reshape(1, LANES).astype(f32)

    return {"w1": w1, "b1": b1, "w2": w2, "b2": b2,
            "wf1": wf1, "bf1": bf1, "wf2": wf2, "bf2": bf2,
            "wf3": wf3, "bf3": bf3}


# ----------------------------------------------------------------------------
# Forward pass (jitted).  Glue (padding, im2col window extraction) is XLA-fused.
# ----------------------------------------------------------------------------
def _lenet_forward(x, prep):
    if x.ndim == 3:
        x = x[:, None, :, :]
    b = x.shape[0]
    bp = ((b + 7) // 8) * 8                                   # pad batch to sublane multiple
    x = jnp.transpose(x, (0, 2, 3, 1)).astype(jnp.float32)    # NHWC (B,28,28,1)
    x = jnp.pad(x, ((0, bp - b), (0, 0), (0, 0), (0, 0)))
    img = jnp.pad(x[..., 0], ((0, 0), (2, 2), (2, 2)))        # (Bp, 32, 32), conv1 pad=2

    # conv1 im2col, one matrix per 2x2 pooling phase (pooled grid 14x14), rows (b,i,j).
    phase_mats = []
    for di in range(2):
        for dj in range(2):
            patches = [img[:, di + ki:di + ki + 28:2, dj + kj:dj + kj + 28:2]
                       for ki in range(5) for kj in range(5)]
            c = jnp.stack(patches, axis=-1)                   # (Bp,14,14,25)
            phase_mats.append(c.reshape(bp * 196, 25))
    cols1 = jnp.pad(jnp.stack(phase_mats, axis=0), ((0, 0), (0, 0), (0, 7)))  # K 25->32

    feat1 = _conv1_pool(cols1, prep["w1"], prep["b1"])        # (Bp*196, 128)
    feat1 = feat1[:, :6].reshape(bp, 14, 14, 6)               # pooled conv1 map

    # conv2 im2col per pooling phase (pooled grid 5x5), rows ordered (pos, b).
    phase_mats = []
    for di in range(2):
        for dj in range(2):
            patches = [feat1[:, di + ki:di + ki + 10:2, dj + kj:dj + kj + 10:2, :]
                       for ki in range(5) for kj in range(5)]
            c = jnp.stack(patches, axis=3)                    # (Bp,5,5,25,6)
            c = jnp.transpose(c, (1, 2, 0, 3, 4))             # (5,5,Bp,25,6)
            phase_mats.append(c.reshape(25 * bp, 150))
    cols2 = jnp.pad(jnp.stack(phase_mats, axis=0), ((0, 0), (0, 0), (0, 10)))  # K 150->160

    logits = _conv2_fc(cols2, prep, bp)                       # (Bp, 128)
    return logits[:b, :10]


lenet_forward = jax.jit(_lenet_forward)


# ----------------------------------------------------------------------------
# Pure-JAX reference (correctness check only)
# ----------------------------------------------------------------------------
def lenet_reference(x, params):
    if x.ndim == 3:
        x = x[:, None, :, :]
    b = x.shape[0]
    x = jnp.transpose(x, (0, 2, 3, 1)).astype(jnp.float32)    # NHWC

    def conv(x, w_pt, bias, pad):
        w = jnp.transpose(w_pt, (2, 3, 1, 0))                 # HWIO
        y = lax.conv_general_dilated(
            x, w, window_strides=(1, 1), padding=[(pad, pad), (pad, pad)],
            dimension_numbers=("NHWC", "HWIO", "NHWC"))
        return y + bias[None, None, None, :]

    def pool(x):
        return lax.reduce_window(x, -jnp.inf, lax.max,
                                 (1, 2, 2, 1), (1, 2, 2, 1), "VALID")

    y = pool(jax.nn.relu(conv(x, params["conv1_w"], params["conv1_b"], 2)))
    y = pool(jax.nn.relu(conv(y, params["conv2_w"], params["conv2_b"], 0)))
    flat = jnp.transpose(y, (0, 3, 1, 2)).reshape(b, 400)
    y = jax.nn.relu(flat @ params["fc1_w"].T + params["fc1_b"])
    y = jax.nn.relu(y @ params["fc2_w"].T + params["fc2_b"])
    return y @ params["fc3_w"].T + params["fc3_b"]


# ----------------------------------------------------------------------------
# Deterministic parameter init (PyTorch default uniform(-1/sqrt(fan_in), ...))
# ----------------------------------------------------------------------------
def init_params(key):
    def uniform(k, shape, fan_in):
        bound = 1.0 / jnp.sqrt(jnp.float32(fan_in))
        return jax.random.uniform(k, shape, jnp.float32, -bound, bound)

    ks = jax.random.split(key, 10)
    return {
        "conv1_w": uniform(ks[0], (6, 1, 5, 5), 1 * 5 * 5),
        "conv1_b": uniform(ks[1], (6,), 1 * 5 * 5),
        "conv2_w": uniform(ks[2], (16, 6, 5, 5), 6 * 5 * 5),
        "conv2_b": uniform(ks[3], (16,), 6 * 5 * 5),
        "fc1_w":   uniform(ks[4], (120, 400), 400),
        "fc1_b":   uniform(ks[5], (120,), 400),
        "fc2_w":   uniform(ks[6], (84, 120), 120),
        "fc2_b":   uniform(ks[7], (84,), 120),
        "fc3_w":   uniform(ks[8], (10, 84), 84),
        "fc3_b":   uniform(ks[9], (10,), 84),
    }


if __name__ == "__main__":
    key = jax.random.PRNGKey(0)
    pkey, xkey = jax.random.split(key)
    params = init_params(pkey)
    prep = jax.tree_util.tree_map(jnp.asarray, prepare_params(params))

    # LeNet's FC sizes imply 28x28 input; small batch of 2 (NCHW like PyTorch).
    x = jax.random.normal(xkey, (2, 1, 28, 28), jnp.float32)

    out = jax.block_until_ready(lenet_forward(x, prep))
    ref = jax.block_until_ready(lenet_reference(x, params))

    assert out.shape == (2, 10), out.shape
    max_err = jnp.max(jnp.abs(out - ref))
    assert jnp.allclose(out, ref, rtol=1e-3, atol=1e-3), f"max abs err {max_err}"
    print("KERNEL_OK")
</pallas_src>

<mosaic_0001>
module attributes {stable_mosaic.version = 11 : i64} {
  func.func @_conv1_pool_kernel(%arg0: memref<4x1568x32xf32, #tpu.memory_space<vmem>>, %arg1: memref<32x128xf32, #tpu.memory_space<vmem>>, %arg2: memref<1x128xf32, #tpu.memory_space<vmem>>, %arg3: memref<1568x128xf32, #tpu.memory_space<vmem>>) attributes {dimension_semantics = [], scalar_prefetch = 0 : i64, scratch_operands = 0 : i64, tpu.core_type = #tpu.core_type<tc>} {
    %c0 = arith.constant 0 : index
    %c0_0 = arith.constant 0 : index
    %0 = vector.load %arg1[%c0, %c0_0] : memref<32x128xf32, #tpu.memory_space<vmem>>, vector<32x128xf32>
    %c0_1 = arith.constant 0 : index
    %c0_2 = arith.constant 0 : index
    %1 = vector.load %arg2[%c0_1, %c0_2] : memref<1x128xf32, #tpu.memory_space<vmem>>, vector<1x128xf32>
    %c0_3 = arith.constant 0 : index
    %c0_4 = arith.constant 0 : index
    %c0_5 = arith.constant 0 : index
    %2 = vector.load %arg0[%c0_3, %c0_4, %c0_5] : memref<4x1568x32xf32, #tpu.memory_space<vmem>>, vector<1x1568x32xf32>
    %3 = vector.shape_cast %2 : vector<1x1568x32xf32> to vector<1568x32xf32>
    %cst = arith.constant dense<0.000000e+00> : vector<1568x128xf32>
    %4 = tpu.matmul %3, %0, %cst {dimension_numbers = #tpu.dot_dimension_numbers<[1], [0], [0], [1], [0, 0, 1, 1], [], []>} : vector<1568x32xf32>, vector<32x128xf32>, vector<1568x128xf32> -> vector<1568x128xf32>
    %5 = vector.broadcast %1 : vector<1x128xf32> to vector<1568x128xf32>
    %6 = arith.addf %4, %5 : vector<1568x128xf32>
    %c1 = arith.constant 1 : index
    %c0_6 = arith.constant 0 : index
    %c0_7 = arith.constant 0 : index
    %7 = vector.load %arg0[%c1, %c0_6, %c0_7] : memref<4x1568x32xf32, #tpu.memory_space<vmem>>, vector<1x1568x32xf32>
    %8 = vector.shape_cast %7 : vector<1x1568x32xf32> to vector<1568x32xf32>
    %cst_8 = arith.constant dense<0.000000e+00> : vector<1568x128xf32>
    %9 = tpu.matmul %8, %0, %cst_8 {dimension_numbers = #tpu.dot_dimension_numbers<[1], [0], [0], [1], [0, 0, 1, 1], [], []>} : vector<1568x32xf32>, vector<32x128xf32>, vector<1568x128xf32> -> vector<1568x128xf32>
    %10 = vector.broadcast %1 : vector<1x128xf32> to vector<1568x128xf32>
    %11 = arith.addf %9, %10 : vector<1568x128xf32>
    %12 = arith.maximumf %6, %11 : vector<1568x128xf32>
    %c2 = arith.constant 2 : index
    %c0_9 = arith.constant 0 : index
    %c0_10 = arith.constant 0 : index
    %13 = vector.load %arg0[%c2, %c0_9, %c0_10] : memref<4x1568x32xf32, #tpu.memory_space<vmem>>, vector<1x1568x32xf32>
    %14 = vector.shape_cast %13 : vector<1x1568x32xf32> to vector<1568x32xf32>
    %cst_11 = arith.constant dense<0.000000e+00> : vector<1568x128xf32>
    %15 = tpu.matmul %14, %0, %cst_11 {dimension_numbers = #tpu.dot_dimension_numbers<[1], [0], [0], [1], [0, 0, 1, 1], [], []>} : vector<1568x32xf32>, vector<32x128xf32>, vector<1568x128xf32> -> vector<1568x128xf32>
    %16 = vector.broadcast %1 : vector<1x128xf32> to vector<1568x128xf32>
    %17 = arith.addf %15, %16 : vector<1568x128xf32>
    %18 = arith.maximumf %12, %17 : vector<1568x128xf32>
    %c3 = arith.constant 3 : index
    %c0_12 = arith.constant 0 : index
    %c0_13 = arith.constant 0 : index
    %19 = vector.load %arg0[%c3, %c0_12, %c0_13] : memref<4x1568x32xf32, #tpu.memory_space<vmem>>, vector<1x1568x32xf32>
    %20 = vector.shape_cast %19 : vector<1x1568x32xf32> to vector<1568x32xf32>
    %cst_14 = arith.constant dense<0.000000e+00> : vector<1568x128xf32>
    %21 = tpu.matmul %20, %0, %cst_14 {dimension_numbers = #tpu.dot_dimension_numbers<[1], [0], [0], [1], [0, 0, 1, 1], [], []>} : vector<1568x32xf32>, vector<32x128xf32>, vector<1568x128xf32> -> vector<1568x128xf32>
    %22 = vector.broadcast %1 : vector<1x128xf32> to vector<1568x128xf32>
    %23 = arith.addf %21, %22 : vector<1568x128xf32>
    %24 = arith.maximumf %18, %23 : vector<1568x128xf32>
    %cst_15 = arith.constant 0.000000e+00 : f32
    %25 = vector.broadcast %cst_15 : f32 to vector<1568x128xf32>
    %26 = arith.maximumf %24, %25 : vector<1568x128xf32>
    %c0_16 = arith.constant 0 : index
    %c0_17 = arith.constant 0 : index
    %27 = vector.load %arg3[%c0_16, %c0_17] : memref<1568x128xf32, #tpu.memory_space<vmem>>, vector<1568x128xf32>
    tpu.vector_store %arg3[%c0_16, %c0_17], %26 {strides = array<i32>} : memref<1568x128xf32, #tpu.memory_space<vmem>>, vector<1568x128xf32>,
    return
  }
}

module attributes {stable_mosaic.version = 11 : i64} {
  func.func @_conv2_fc_kernel(%arg0: memref<4x200x160xf32, #tpu.memory_space<vmem>>, %arg1: memref<160x128xf32, #tpu.memory_space<vmem>>, %arg2: memref<1x128xf32, #tpu.memory_space<vmem>>, %arg3: memref<400x128xf32, #tpu.memory_space<vmem>>, %arg4: memref<1x128xf32, #tpu.memory_space<vmem>>, %arg5: memref<128x128xf32, #tpu.memory_space<vmem>>, %arg6: memref<1x128xf32, #tpu.memory_space<vmem>>, %arg7: memref<128x128xf32, #tpu.memory_space<vmem>>, %arg8: memref<1x128xf32, #tpu.memory_space<vmem>>, %arg9: memref<8x128xf32, #tpu.memory_space<vmem>>, %arg10: memref<200x128xf32, #tpu.memory_space<vmem>>) attributes {dimension_semantics = [], scalar_prefetch = 0 : i64, scratch_operands = 1 : i64, tpu.core_type = #tpu.core_type<tc>} {
    %c0 = arith.constant 0 : index
    %c0_0 = arith.constant 0 : index
    %0 = vector.load %arg1[%c0, %c0_0] : memref<160x128xf32, #tpu.memory_space<vmem>>, vector<160x128xf32>
    %c0_1 = arith.constant 0 : index
    %c0_2 = arith.constant 0 : index
    %1 = vector.load %arg2[%c0_1, %c0_2] : memref<1x128xf32, #tpu.memory_space<vmem>>, vector<1x128xf32>
    %c0_3 = arith.constant 0 : index
    %c0_4 = arith.constant 0 : index
    %c0_5 = arith.constant 0 : index
    %2 = vector.load %arg0[%c0_3, %c0_4, %c0_5] : memref<4x200x160xf32, #tpu.memory_space<vmem>>, vector<1x200x160xf32>
    %3 = vector.shape_cast %2 : vector<1x200x160xf32> to vector<200x160xf32>
    %cst = arith.constant dense<0.000000e+00> : vector<200x128xf32>
    %4 = tpu.matmul %3, %0, %cst {dimension_numbers = #tpu.dot_dimension_numbers<[1], [0], [0], [1], [0, 0, 1, 1], [], []>} : vector<200x160xf32>, vector<160x128xf32>, vector<200x128xf32> -> vector<200x128xf32>
    %5 = vector.broadcast %1 : vector<1x128xf32> to vector<200x128xf32>
    %6 = arith.addf %4, %5 : vector<200x128xf32>
    %c1 = arith.constant 1 : index
    %c0_6 = arith.constant 0 : index
    %c0_7 = arith.constant 0 : index
    %7 = vector.load %arg0[%c1, %c0_6, %c0_7] : memref<4x200x160xf32, #tpu.memory_space<vmem>>, vector<1x200x160xf32>
    %8 = vector.shape_cast %7 : vector<1x200x160xf32> to vector<200x160xf32>
    %cst_8 = arith.constant dense<0.000000e+00> : vector<200x128xf32>
    %9 = tpu.matmul %8, %0, %cst_8 {dimension_numbers = #tpu.dot_dimension_numbers<[1], [0], [0], [1], [0, 0, 1, 1], [], []>} : vector<200x160xf32>, vector<160x128xf32>, vector<200x128xf32> -> vector<200x128xf32>
    %10 = vector.broadcast %1 : vector<1x128xf32> to vector<200x128xf32>
    %11 = arith.addf %9, %10 : vector<200x128xf32>
    %12 = arith.maximumf %6, %11 : vector<200x128xf32>
    %c2 = arith.constant 2 : index
    %c0_9 = arith.constant 0 : index
    %c0_10 = arith.constant 0 : index
    %13 = vector.load %arg0[%c2, %c0_9, %c0_10] : memref<4x200x160xf32, #tpu.memory_space<vmem>>, vector<1x200x160xf32>
    %14 = vector.shape_cast %13 : vector<1x200x160xf32> to vector<200x160xf32>
    %cst_11 = arith.constant dense<0.000000e+00> : vector<200x128xf32>
    %15 = tpu.matmul %14, %0, %cst_11 {dimension_numbers = #tpu.dot_dimension_numbers<[1], [0], [0], [1], [0, 0, 1, 1], [], []>} : vector<200x160xf32>, vector<160x128xf32>, vector<200x128xf32> -> vector<200x128xf32>
    %16 = vector.broadcast %1 : vector<1x128xf32> to vector<200x128xf32>
    %17 = arith.addf %15, %16 : vector<200x128xf32>
    %18 = arith.maximumf %12, %17 : vector<200x128xf32>
    %c3 = arith.constant 3 : index
    %c0_12 = arith.constant 0 : index
    %c0_13 = arith.constant 0 : index
    %19 = vector.load %arg0[%c3, %c0_12, %c0_13] : memref<4x200x160xf32, #tpu.memory_space<vmem>>, vector<1x200x160xf32>
    %20 = vector.shape_cast %19 : vector<1x200x160xf32> to vector<200x160xf32>
    %cst_14 = arith.constant dense<0.000000e+00> : vector<200x128xf32>
    %21 = tpu.matmul %20, %0, %cst_14 {dimension_numbers = #tpu.dot_dimension_numbers<[1], [0], [0], [1], [0, 0, 1, 1], [], []>} : vector<200x160xf32>, vector<160x128xf32>, vector<200x128xf32> -> vector<200x128xf32>
    %22 = vector.broadcast %1 : vector<1x128xf32> to vector<200x128xf32>
    %23 = arith.addf %21, %22 : vector<200x128xf32>
    %24 = arith.maximumf %18, %23 : vector<200x128xf32>
    %cst_15 = arith.constant 0.000000e+00 : f32
    %25 = vector.broadcast %cst_15 : f32 to vector<200x128xf32>
    %26 = arith.maximumf %24, %25 : vector<200x128xf32>
    %c0_16 = arith.constant 0 : index
    %c0_17 = arith.constant 0 : index
    %27 = vector.load %arg10[%c0_16, %c0_17] : memref<200x128xf32, #tpu.memory_space<vmem>>, vector<200x128xf32>
    tpu.vector_store %arg10[%c0_16, %c0_17], %26 {strides = array<i32>} : memref<200x128xf32, #tpu.memory_space<vmem>>, vector<200x128xf32>,
    %c0_18 = arith.constant 0 : index
    %c0_19 = arith.constant 0 : index
    %28 = vector.load %arg10[%c0_18, %c0_19] : memref<200x128xf32, #tpu.memory_space<vmem>>, vector<8x16xf32>
    %c0_20 = arith.constant 0 : index
    %c0_21 = arith.constant 0 : index
    %29 = vector.load %arg3[%c0_20, %c0_21] : memref<400x128xf32, #tpu.memory_space<vmem>>, vector<16x128xf32>
    %cst_22 = arith.constant dense<0.000000e+00> : vector<8x128xf32>
    %30 = tpu.matmul %28, %29, %cst_22 {dimension_numbers = #tpu.dot_dimension_numbers<[1], [0], [0], [1], [0, 0, 1, 1], [], []>} : vector<8x16xf32>, vector<16x128xf32>, vector<8x128xf32> -> vector<8x128xf32>
    %c8 = arith.constant 8 : index
    %c0_23 = arith.constant 0 : index
    %31 = vector.load %arg10[%c8, %c0_23] : memref<200x128xf32, #tpu.memory_space<vmem>>, vector<8x16xf32>
    %c16 = arith.constant 16 : index
    %c0_24 = arith.constant 0 : index
    %32 = vector.load %arg3[%c16, %c0_24] : memref<400x128xf32, #tpu.memory_space<vmem>>, vector<16x128xf32>
    %cst_25 = arith.constant dense<0.000000e+00> : vector<8x128xf32>
    %33 = tpu.matmul %31, %32, %cst_25 {dimension_numbers = #tpu.dot_dimension_numbers<[1], [0], [0], [1], [0, 0, 1, 1], [], []>} : vector<8x16xf32>, vector<16x128xf32>, vector<8x128xf32> -> vector<8x128xf32>
    %34 = arith.addf %30, %33 : vector<8x128xf32>
    %c16_26 = arith.constant 16 : index
    %c0_27 = arith.constant 0 : index
    %35 = vector.load %arg10[%c16_26, %c0_27] : memref<200x128xf32, #tpu.memory_space<vmem>>, vector<8x16xf32>
    %c32 = arith.constant 32 : index
    %c0_28 = arith.constant 0 : index
    %36 = vector.load %arg3[%c32, %c0_28] : memref<400x128xf32, #tpu.memory_space<vmem>>, vector<16x128xf32>
    %cst_29 = arith.constant dense<0.000000e+00> : vector<8x128xf32>
    %37 = tpu.matmul %35, %36, %cst_29 {dimension_numbers = #tpu.dot_dimension_numbers<[1], [0], [0], [1], [0, 0, 1, 1], [], []>} : vector<8x16xf32>, vector<16x128xf32>, vector<8x128xf32> -> vector<8x128xf32>
    %38 = arith.addf %34, %37 : vector<8x128xf32>
    %c24 = arith.constant 24 : index
    %c0_30 = arith.constant 0 : index
    %39 = vector.load %arg10[%c24, %c0_30] : memref<200x128xf32, #tpu.memory_space<vmem>>, vector<8x16xf32>
    %c48 = arith.constant 48 : index
    %c0_31 = arith.constant 0 : index
    %40 = vector.load %arg3[%c48, %c0_31] : memref<400x128xf32, #tpu.memory_space<vmem>>, vector<16x128xf32>
    %cst_32 = arith.constant dense<0.000000e+00> : vector<8x128xf32>
    %41 = tpu.matmul %39, %40, %cst_32 {dimension_numbers = #tpu.dot_dimension_numbers<[1], [0], [0], [1], [0, 0, 1, 1], [], []>} : vector<8x16xf32>, vector<16x128xf32>, vector<8x128xf32> -> vector<8x128xf32>
    %42 = arith.addf %38, %41 : vector<8x128xf32>
    %c32_33 = arith.constant 32 : index
    %c0_34 = arith.constant 0 : index
    %43 = vector.load %arg10[%c32_33, %c0_34] : memref<200x128xf32, #tpu.memory_space<vmem>>, vector<8x16xf32>
    %c64 = arith.constant 64 : index
    %c0_35 = arith.constant 0 : index
    %44 = vector.load %arg3[%c64, %c0_35] : memref<400x128xf32, #tpu.memory_space<vmem>>, vector<16x128xf32>
    %cst_36 = arith.constant dense<0.000000e+00> : vector<8x128xf32>
    %45 = tpu.matmul %43, %44, %cst_36 {dimension_numbers = #tpu.dot_dimension_numbers<[1], [0], [0], [1], [0, 0, 1, 1], [], []>} : vector<8x16xf32>, vector<16x128xf32>, vector<8x128xf32> -> vector<8x128xf32>
    %46 = arith.addf %42, %45 : vector<8x128xf32>
    %c40 = arith.constant 40 : index
    %c0_37 = arith.constant 0 : index
    %47 = vector.load %arg10[%c40, %c0_37] : memref<200x128xf32, #tpu.memory_space<vmem>>, vector<8x16xf32>
    %c80 = arith.constant 80 : index
    %c0_38 = arith.constant 0 : index
    %48 = vector.load %arg3[%c80, %c0_38] : memref<400x128xf32, #tpu.memory_space<vmem>>, vector<16x128xf32>
    %cst_39 = arith.constant dense<0.000000e+00> : vector<8x128xf32>
    %49 = tpu.matmul %47, %48, %cst_39 {dimension_numbers = #tpu.dot_dimension_numbers<[1], [0], [0], [1], [0, 0, 1, 1], [], []>} : vector<8x16xf32>, vector<16x128xf32>, vector<8x128xf32> -> vector<8x128xf32>
    %50 = arith.addf %46, %49 : vector<8x128xf32>
    %c48_40 = arith.constant 48 : index
    %c0_41 = arith.constant 0 : index
    %51 = vector.load %arg10[%c48_40, %c0_41] : memref<200x128xf32, #tpu.memory_space<vmem>>, vector<8x16xf32>
    %c96 = arith.constant 96 : index
    %c0_42 = arith.constant 0 : index
    %52 = vector.load %arg3[%c96, %c0_42] : memref<400x128xf32, #tpu.memory_space<vmem>>, vector<16x128xf32>
    %cst_43 = arith.constant dense<0.000000e+00> : vector<8x128xf32>
    %53 = tpu.matmul %51, %52, %cst_43 {dimension_numbers = #tpu.dot_dimension_numbers<[1], [0], [0], [1], [0, 0, 1, 1], [], []>} : vector<8x16xf32>, vector<16x128xf32>, vector<8x128xf32> -> vector<8x128xf32>
    %54 = arith.addf %50, %53 : vector<8x128xf32>
    %c56 = arith.constant 56 : index
    %c0_44 = arith.constant 0 : index
    %55 = vector.load %arg10[%c56, %c0_44] : memref<200x128xf32, #tpu.memory_space<vmem>>, vector<8x16xf32>
    %c112 = arith.constant 112 : index
    %c0_45 = arith.constant 0 : index
    %56 = vector.load %arg3[%c112, %c0_45] : memref<400x128xf32, #tpu.memory_space<vmem>>, vector<16x128xf32>
    %cst_46 = arith.constant dense<0.000000e+00> : vector<8x128xf32>
    %57 = tpu.matmul %55, %56, %cst_46 {dimension_numbers = #tpu.dot_dimension_numbers<[1], [0], [0], [1], [0, 0, 1, 1], [], []>} : vector<8x16xf32>, vector<16x128xf32>, vector<8x128xf32> -> vector<8x128xf32>
    %58 = arith.addf %54, %57 : vector<8x128xf32>
    %c64_47 = arith.constant 64 : index
    %c0_48 = arith.constant 0 : index
    %59 = vector.load %arg10[%c64_47, %c0_48] : memref<200x128xf32, #tpu.memory_space<vmem>>, vector<8x16xf32>
    %c128 = arith.constant 128 : index
    %c0_49 = arith.constant 0 : index
    %60 = vector.load %arg3[%c128, %c0_49] : memref<400x128xf32, #tpu.memory_space<vmem>>, vector<16x128xf32>
    %cst_50 = arith.constant dense<0.000000e+00> : vector<8x128xf32>
    %61 = tpu.matmul %59, %60, %cst_50 {dimension_numbers = #tpu.dot_dimension_numbers<[1], [0], [0], [1], [0, 0, 1, 1], [], []>} : vector<8x16xf32>, vector<16x128xf32>, vector<8x128xf32> -> vector<8x128xf32>
    %62 = arith.addf %58, %61 : vector<8x128xf32>
    %c72 = arith.constant 72 : index
    %c0_51 = arith.constant 0 : index
    %63 = vector.load %arg10[%c72, %c0_51] : memref<200x128xf32, #tpu.memory_space<vmem>>, vector<8x16xf32>
    %c144 = arith.constant 144 : index
    %c0_52 = arith.constant 0 : index
    %64 = vector.load %arg3[%c144, %c0_52] : memref<400x128xf32, #tpu.memory_space<vmem>>, vector<16x128xf32>
    %cst_53 = arith.constant dense<0.000000e+00> : vector<8x128xf32>
    %65 = tpu.matmul %63, %64, %cst_53 {dimension_numbers = #tpu.dot_dimension_numbers<[1], [0], [0], [1], [0, 0, 1, 1], [], []>} : vector<8x16xf32>, vector<16x128xf32>, vector<8x128xf32> -> vector<8x128xf32>
    %66 = arith.addf %62, %65 : vector<8x128xf32>
    %c80_54 = arith.constant 80 : index
    %c0_55 = arith.constant 0 : index
    %67 = vector.load %arg10[%c80_54, %c0_55] : memref<200x128xf32, #tpu.memory_space<vmem>>, vector<8x16xf32>
    %c160 = arith.constant 160 : index
    %c0_56 = arith.constant 0 : index
    %68 = vector.load %arg3[%c160, %c0_56] : memref<400x128xf32, #tpu.memory_space<vmem>>, vector<16x128xf32>
    %cst_57 = arith.constant dense<0.000000e+00> : vector<8x128xf32>
    %69 = tpu.matmul %67, %68, %cst_57 {dimension_numbers = #tpu.dot_dimension_numbers<[1], [0], [0], [1], [0, 0, 1, 1], [], []>} : vector<8x16xf32>, vector<16x128xf32>, vector<8x128xf32> -> vector<8x128xf32>
    %70 = arith.addf %66, %69 : vector<8x128xf32>
    %c88 = arith.constant 88 : index
    %c0_58 = arith.constant 0 : index
    %71 = vector.load %arg10[%c88, %c0_58] : memref<200x128xf32, #tpu.memory_space<vmem>>, vector<8x16xf32>
    %c176 = arith.constant 176 : index
    %c0_59 = arith.constant 0 : index
    %72 = vector.load %arg3[%c176, %c0_59] : memref<400x128xf32, #tpu.memory_space<vmem>>, vector<16x128xf32>
    %cst_60 = arith.constant dense<0.000000e+00> : vector<8x128xf32>
    %73 = tpu.matmul %71, %72, %cst_60 {dimension_numbers = #tpu.dot_dimension_numbers<[1], [0], [0], [1], [0, 0, 1, 1], [], []>} : vector<8x16xf32>, vector<16x128xf32>, vector<8x128xf32> -> vector<8x128xf32>
    %74 = arith.addf %70, %73 : vector<8x128xf32>
    %c96_61 = arith.constant 96 : index
    %c0_62 = arith.constant 0 : index
    %75 = vector.load %arg10[%c96_61, %c0_62] : memref<200x128xf32, #tpu.memory_space<vmem>>, vector<8x16xf32>
    %c192 = arith.constant 192 : index
    %c0_63 = arith.constant 0 : index
    %76 = vector.load %arg3[%c192, %c0_63] : memref<400x128xf32, #tpu.memory_space<vmem>>, vector<16x128xf32>
    %cst_64 = arith.constant dense<0.000000e+00> : vector<8x128xf32>
    %77 = tpu.matmul %75, %76, %cst_64 {dimension_numbers = #tpu.dot_dimension_numbers<[1], [0], [0], [1], [0, 0, 1, 1], [], []>} : vector<8x16xf32>, vector<16x128xf32>, vector<8x128xf32> -> vector<8x128xf32>
    %78 = arith.addf %74, %77 : vector<8x128xf32>
    %c104 = arith.constant 104 : index
    %c0_65 = arith.constant 0 : index
    %79 = vector.load %arg10[%c104, %c0_65] : memref<200x128xf32, #tpu.memory_space<vmem>>, vector<8x16xf32>
    %c208 = arith.constant 208 : index
    %c0_66 = arith.constant 0 : index
    %80 = vector.load %arg3[%c208, %c0_66] : memref<400x128xf32, #tpu.memory_space<vmem>>, vector<16x128xf32>
    %cst_67 = arith.constant dense<0.000000e+00> : vector<8x128xf32>
    %81 = tpu.matmul %79, %80, %cst_67 {dimension_numbers = #tpu.dot_dimension_numbers<[1], [0], [0], [1], [0, 0, 1, 1], [], []>} : vector<8x16xf32>, vector<16x128xf32>, vector<8x128xf32> -> vector<8x128xf32>
    %82 = arith.addf %78, %81 : vector<8x128xf32>
    %c112_68 = arith.constant 112 : index
    %c0_69 = arith.constant 0 : index
    %83 = vector.load %arg10[%c112_68, %c0_69] : memref<200x128xf32, #tpu.memory_space<vmem>>, vector<8x16xf32>
    %c224 = arith.constant 224 : index
    %c0_70 = arith.constant 0 : index
    %84 = vector.load %arg3[%c224, %c0_70] : memref<400x128xf32, #tpu.memory_space<vmem>>, vector<16x128xf32>
    %cst_71 = arith.constant dense<0.000000e+00> : vector<8x128xf32>
    %85 = tpu.matmul %83, %84, %cst_71 {dimension_numbers = #tpu.dot_dimension_numbers<[1], [0], [0], [1], [0, 0, 1, 1], [], []>} : vector<8x16xf32>, vector<16x128xf32>, vector<8x128xf32> -> vector<8x128xf32>
    %86 = arith.addf %82, %85 : vector<8x128xf32>
    %c120 = arith.constant 120 : index
    %c0_72 = arith.constant 0 : index
    %87 = vector.load %arg10[%c120, %c0_72] : memref<200x128xf32, #tpu.memory_space<vmem>>, vector<8x16xf32>
    %c240 = arith.constant 240 : index
    %c0_73 = arith.constant 0 : index
    %88 = vector.load %arg3[%c240, %c0_73] : memref<400x128xf32, #tpu.memory_space<vmem>>, vector<16x128xf32>
    %cst_74 = arith.constant dense<0.000000e+00> : vector<8x128xf32>
    %89 = tpu.matmul %87, %88, %cst_74 {dimension_numbers = #tpu.dot_dimension_numbers<[1], [0], [0], [1], [0, 0, 1, 1], [], []>} : vector<8x16xf32>, vector<16x128xf32>, vector<8x128xf32> -> vector<8x128xf32>
    %90 = arith.addf %86, %89 : vector<8x128xf32>
    %c128_75 = arith.constant 128 : index
    %c0_76 = arith.constant 0 : index
    %91 = vector.load %arg10[%c128_75, %c0_76] : memref<200x128xf32, #tpu.memory_space<vmem>>, vector<8x16xf32>
    %c256 = arith.constant 256 : index
    %c0_77 = arith.constant 0 : index
    %92 = vector.load %arg3[%c256, %c0_77] : memref<400x128xf32, #tpu.memory_space<vmem>>, vector<16x128xf32>
    %cst_78 = arith.constant dense<0.000000e+00> : vector<8x128xf32>
    %93 = tpu.matmul %91, %92, %cst_78 {dimension_numbers = #tpu.dot_dimension_numbers<[1], [0], [0], [1], [0, 0, 1, 1], [], []>} : vector<8x16xf32>, vector<16x128xf32>, vector<8x128xf32> -> vector<8x128xf32>
    %94 = arith.addf %90, %93 : vector<8x128xf32>
    %c136 = arith.constant 136 : index
    %c0_79 = arith.constant 0 : index
    %95 = vector.load %arg10[%c136, %c0_79] : memref<200x128xf32, #tpu.memory_space<vmem>>, vector<8x16xf32>
    %c272 = arith.constant 272 : index
    %c0_80 = arith.constant 0 : index
    %96 = vector.load %arg3[%c272, %c0_80] : memref<400x128xf32, #tpu.memory_space<vmem>>, vector<16x128xf32>
    %cst_81 = arith.constant dense<0.000000e+00> : vector<8x128xf32>
    %97 = tpu.matmul %95, %96, %cst_81 {dimension_numbers = #tpu.dot_dimension_numbers<[1], [0], [0], [1], [0, 0, 1, 1], [], []>} : vector<8x16xf32>, vector<16x128xf32>, vector<8x128xf32> -> vector<8x128xf32>
    %98 = arith.addf %94, %97 : vector<8x128xf32>
    %c144_82 = arith.constant 144 : index
    %c0_83 = arith.constant 0 : index
    %99 = vector.load %arg10[%c144_82, %c0_83] : memref<200x128xf32, #tpu.memory_space<vmem>>, vector<8x16xf32>
    %c288 = arith.constant 288 : index
    %c0_84 = arith.constant 0 : index
    %100 = vector.load %arg3[%c288, %c0_84] : memref<400x128xf32, #tpu.memory_space<vmem>>, vector<16x128xf32>
    %cst_85 = arith.constant dense<0.000000e+00> : vector<8x128xf32>
    %101 = tpu.matmul %99, %100, %cst_85 {dimension_numbers = #tpu.dot_dimension_numbers<[1], [0], [0], [1], [0, 0, 1, 1], [], []>} : vector<8x16xf32>, vector<16x128xf32>, vector<8x128xf32> -> vector<8x128xf32>
    %102 = arith.addf %98, %101 : vector<8x128xf32>
    %c152 = arith.constant 152 : index
    %c0_86 = arith.constant 0 : index
    %103 = vector.load %arg10[%c152, %c0_86] : memref<200x128xf32, #tpu.memory_space<vmem>>, vector<8x16xf32>
    %c304 = arith.constant 304 : index
    %c0_87 = arith.constant 0 : index
    %104 = vector.load %arg3[%c304, %c0_87] : memref<400x128xf32, #tpu.memory_space<vmem>>, vector<16x128xf32>
    %cst_88 = arith.constant dense<0.000000e+00> : vector<8x128xf32>
    %105 = tpu.matmul %103, %104, %cst_88 {dimension_numbers = #tpu.dot_dimension_numbers<[1], [0], [0], [1], [0, 0, 1, 1], [], []>} : vector<8x16xf32>, vector<16x128xf32>, vector<8x128xf32> -> vector<8x128xf32>
    %106 = arith.addf %102, %105 : vector<8x128xf32>
    %c160_89 = arith.constant 160 : index
    %c0_90 = arith.constant 0 : index
    %107 = vector.load %arg10[%c160_89, %c0_90] : memref<200x128xf32, #tpu.memory_space<vmem>>, vector<8x16xf32>
    %c320 = arith.constant 320 : index
    %c0_91 = arith.constant 0 : index
    %108 = vector.load %arg3[%c320, %c0_91] : memref<400x128xf32, #tpu.memory_space<vmem>>, vector<16x128xf32>
    %cst_92 = arith.constant dense<0.000000e+00> : vector<8x128xf32>
    %109 = tpu.matmul %107, %108, %cst_92 {dimension_numbers = #tpu.dot_dimension_numbers<[1], [0], [0], [1], [0, 0, 1, 1], [], []>} : vector<8x16xf32>, vector<16x128xf32>, vector<8x128xf32> -> vector<8x128xf32>
    %110 = arith.addf %106, %109 : vector<8x128xf32>
    %c168 = arith.constant 168 : index
    %c0_93 = arith.constant 0 : index
    %111 = vector.load %arg10[%c168, %c0_93] : memref<200x128xf32, #tpu.memory_space<vmem>>, vector<8x16xf32>
    %c336 = arith.constant 336 : index
    %c0_94 = arith.constant 0 : index
    %112 = vector.load %arg3[%c336, %c0_94] : memref<400x128xf32, #tpu.memory_space<vmem>>, vector<16x128xf32>
    %cst_95 = arith.constant dense<0.000000e+00> : vector<8x128xf32>
    %113 = tpu.matmul %111, %112, %cst_95 {dimension_numbers = #tpu.dot_dimension_numbers<[1], [0], [0], [1], [0, 0, 1, 1], [], []>} : vector<8x16xf32>, vector<16x128xf32>, vector<8x128xf32> -> vector<8x128xf32>
    %114 = arith.addf %110, %113 : vector<8x128xf32>
    %c176_96 = arith.constant 176 : index
    %c0_97 = arith.constant 0 : index
    %115 = vector.load %arg10[%c176_96, %c0_97] : memref<200x128xf32, #tpu.memory_space<vmem>>, vector<8x16xf32>
    %c352 = arith.constant 352 : index
    %c0_98 = arith.constant 0 : index
    %116 = vector.load %arg3[%c352, %c0_98] : memref<400x128xf32, #tpu.memory_space<vmem>>, vector<16x128xf32>
    %cst_99 = arith.constant dense<0.000000e+00> : vector<8x128xf32>
    %117 = tpu.matmul %115, %116, %cst_99 {dimension_numbers = #tpu.dot_dimension_numbers<[1], [0], [0], [1], [0, 0, 1, 1], [], []>} : vector<8x16xf32>, vector<16x128xf32>, vector<8x128xf32> -> vector<8x128xf32>
    %118 = arith.addf %114, %117 : vector<8x128xf32>
    %c184 = arith.constant 184 : index
    %c0_100 = arith.constant 0 : index
    %119 = vector.load %arg10[%c184, %c0_100] : memref<200x128xf32, #tpu.memory_space<vmem>>, vector<8x16xf32>
    %c368 = arith.constant 368 : index
    %c0_101 = arith.constant 0 : index
    %120 = vector.load %arg3[%c368, %c0_101] : memref<400x128xf32, #tpu.memory_space<vmem>>, vector<16x128xf32>
    %cst_102 = arith.constant dense<0.000000e+00> : vector<8x128xf32>
    %121 = tpu.matmul %119, %120, %cst_102 {dimension_numbers = #tpu.dot_dimension_numbers<[1], [0], [0], [1], [0, 0, 1, 1], [], []>} : vector<8x16xf32>, vector<16x128xf32>, vector<8x128xf32> -> vector<8x128xf32>
    %122 = arith.addf %118, %121 : vector<8x128xf32>
    %c192_103 = arith.constant 192 : index
    %c0_104 = arith.constant 0 : index
    %123 = vector.load %arg10[%c192_103, %c0_104] : memref<200x128xf32, #tpu.memory_space<vmem>>, vector<8x16xf32>
    %c384 = arith.constant 384 : index
    %c0_105 = arith.constant 0 : index
    %124 = vector.load %arg3[%c384, %c0_105] : memref<400x128xf32, #tpu.memory_space<vmem>>, vector<16x128xf32>
    %cst_106 = arith.constant dense<0.000000e+00> : vector<8x128xf32>
    %125 = tpu.matmul %123, %124, %cst_106 {dimension_numbers = #tpu.dot_dimension_numbers<[1], [0], [0], [1], [0, 0, 1, 1], [], []>} : vector<8x16xf32>, vector<16x128xf32>, vector<8x128xf32> -> vector<8x128xf32>
    %126 = arith.addf %122, %125 : vector<8x128xf32>
    %c0_107 = arith.constant 0 : index
    %c0_108 = arith.constant 0 : index
    %127 = vector.load %arg4[%c0_107, %c0_108] : memref<1x128xf32, #tpu.memory_space<vmem>>, vector<1x128xf32>
    %128 = vector.broadcast %127 : vector<1x128xf32> to vector<8x128xf32>
    %129 = arith.addf %126, %128 : vector<8x128xf32>
    %cst_109 = arith.constant 0.000000e+00 : f32
    %130 = vector.broadcast %cst_109 : f32 to vector<8x128xf32>
    %131 = arith.maximumf %129, %130 : vector<8x128xf32>
    %c0_110 = arith.constant 0 : index
    %c0_111 = arith.constant 0 : index
    %132 = vector.load %arg5[%c0_110, %c0_111] : memref<128x128xf32, #tpu.memory_space<vmem>>, vector<128x128xf32>
    %cst_112 = arith.constant dense<0.000000e+00> : vector<8x128xf32>
    %133 = tpu.matmul %131, %132, %cst_112 {dimension_numbers = #tpu.dot_dimension_numbers<[1], [0], [0], [1], [0, 0, 1, 1], [], []>} : vector<8x128xf32>, vector<128x128xf32>, vector<8x128xf32> -> vector<8x128xf32>
    %c0_113 = arith.constant 0 : index
    %c0_114 = arith.constant 0 : index
    %134 = vector.load %arg6[%c0_113, %c0_114] : memref<1x128xf32, #tpu.memory_space<vmem>>, vector<1x128xf32>
    %135 = vector.broadcast %134 : vector<1x128xf32> to vector<8x128xf32>
    %136 = arith.addf %133, %135 : vector<8x128xf32>
    %cst_115 = arith.constant 0.000000e+00 : f32
    %137 = vector.broadcast %cst_115 : f32 to vector<8x128xf32>
    %138 = arith.maximumf %136, %137 : vector<8x128xf32>
    %c0_116 = arith.constant 0 : index
    %c0_117 = arith.constant 0 : index
    %139 = vector.load %arg7[%c0_116, %c0_117] : memref<128x128xf32, #tpu.memory_space<vmem>>, vector<128x128xf32>
    %cst_118 = arith.constant dense<0.000000e+00> : vector<8x128xf32>
    %140 = tpu.matmul %138, %139, %cst_118 {dimension_numbers = #tpu.dot_dimension_numbers<[1], [0], [0], [1], [0, 0, 1, 1], [], []>} : vector<8x128xf32>, vector<128x128xf32>, vector<8x128xf32> -> vector<8x128xf32>
    %c0_119 = arith.constant 0 : index
    %c0_120 = arith.constant 0 : index
    %141 = vector.load %arg8[%c0_119, %c0_120] : memref<1x128xf32, #tpu.memory_space<vmem>>, vector<1x128xf32>
    %142 = vector.broadcast %141 : vector<1x128xf32> to vector<8x128xf32>
    %143 = arith.addf %140, %142 : vector<8x128xf32>
    %c0_121 = arith.constant 0 : index
    %c0_122 = arith.constant 0 : index
    %144 = vector.load %arg9[%c0_121, %c0_122] : memref<8x128xf32, #tpu.memory_space<vmem>>, vector<8x128xf32>
    tpu.vector_store %arg9[%c0_121, %c0_122], %143 {strides = array<i32>} : memref<8x128xf32, #tpu.memory_space<vmem>>, vector<8x128xf32>,
    return
  }
}

</mosaic_0001>

<llo_original>
// kernel: _lenet_forward.2
$region0: #{_lenet_forward.2}
  #allocation0 [shape = 'u32[]', space=smem, size = 0x4, offset = 0x4, fixed_abs, tag = 'smem constant byte address 0x4 - core index']
  #allocation1 [shape = 'u32[72,128]{1,0:T(1,128)}', space=vmem, size = 0x9000, scoped, tag = 'internal scratch']
  %s0 = inlined_call_operand.vmem [shape: f32[4,1568,32], index: 0, kind: input, shape index: {}]
  %s1 = inlined_call_operand.vmem [shape: f32[32,128], index: 1, kind: input, shape index: {}]
  %s2 = inlined_call_operand.vmem [shape: f32[1,128], index: 2, kind: input, shape index: {}]
  %s3 = inlined_call_operand.vmem [shape: f32[1568,128], index: 3, kind: output, shape index: {}]
  %s4 = sld [smem:[#allocation0]]
  $region22: #{_lenet_forward.2} parent=0
    _
  %s6 = ssub.s32 1, %s4
  %s7 = scalar_select 0, %s6, %s4
  // Predicated region
  $region2: #{_lenet_forward.2} parent=0 // pred_check
    _
  $region3: #{_lenet_forward.2} parent=0 // pred_check_branch
    %9 = sbr.rel (0) target = $region5
  $region4: #{_lenet_forward.2} parent=0 // pred_region
    _
  $region5: #{_lenet_forward.2} parent=0 // pred_fallthru
    _
  // Predicated region
  $region6: #{_lenet_forward.2} parent=0 // pred_check
    _
  $region7: #{_lenet_forward.2} parent=0 // pred_check_branch
    %11 = sbr.rel (0) target = $region9
  $region8: #{_lenet_forward.2} parent=0 // pred_region
    _
  $region9: #{_lenet_forward.2} parent=0 // pred_fallthru
    _
  // Predicated region
  $region10: #{_lenet_forward.2} parent=0 // pred_check
    _
  $region11: #{_lenet_forward.2} parent=0 // pred_check_branch
    %13 = sbr.rel (0) target = $region13
  $region12: #{_lenet_forward.2} parent=0 // pred_region
    _
  $region13: #{_lenet_forward.2} parent=0 // pred_fallthru
    _
  %v14 = vld [vmem:[%s1] sm:$0xff]
  %v15 = vld [vmem:[%s1 + $0x8] sm:$0xff]
  %v16 = vld [vmem:[%s1 + $0x10] sm:$0xff]
  %v17 = vld [vmem:[%s1 + $0x18] sm:$0xff]
  %v18 = vld [vmem:[%s2] sm:$0x1]
  %v19 = vld [vmem:[%s0] sm:$0xff]
  %v20 = vld [vmem:[%s0 + $0x8] sm:$0xff]
  %v21 = vld [vmem:[%s0 + $0x10] sm:$0xff]
  %v22 = vld [vmem:[%s0 + $0x18] sm:$0xff]
  %v23 = vld [vmem:[%s0 + $0x20] sm:$0xff]
  %v24 = vld [vmem:[%s0 + $0x28] sm:$0xff]
  %v25 = vld [vmem:[%s0 + $0x30] sm:$0xff]
  %v26 = vld [vmem:[%s0 + $0x38] sm:$0xff]
  %v27 = vld [vmem:[%s0 + $0x40] sm:$0xff]
  %v28 = vld [vmem:[%s0 + $0x48] sm:$0xff]
  %v29 = vld [vmem:[%s0 + $0x50] sm:$0xff]
  %v30 = vld [vmem:[%s0 + $0x58] sm:$0xff]
  %v31 = vld [vmem:[%s0 + $0x60] sm:$0xff]
  %v32 = vld [vmem:[%s0 + $0x68] sm:$0xff]
  %v33 = vld [vmem:[%s0 + $0x70] sm:$0xff]
  %v34 = vld [vmem:[%s0 + $0x78] sm:$0xff]
  %v35 = vld [vmem:[%s0 + $0x80] sm:$0xff]
  %v36 = vld [vmem:[%s0 + $0x88] sm:$0xff]
  %v37 = vld [vmem:[%s0 + $0x90] sm:$0xff]
  %v38 = vld [vmem:[%s0 + $0x98] sm:$0xff]
  %v39 = vld [vmem:[%s0 + $0xa0] sm:$0xff]
  %v40 = vld [vmem:[%s0 + $0xa8] sm:$0xff]
  %v41 = vld [vmem:[%s0 + $0xb0] sm:$0xff]
  %v42 = vld [vmem:[%s0 + $0xb8] sm:$0xff]
  %v43 = vld [vmem:[%s0 + $0xc0] sm:$0xff]
  %v44 = vld [vmem:[%s0 + $0xc8] sm:$0xff]
  %v45 = vld [vmem:[%s0 + $0xd0] sm:$0xff]
  %v46 = vld [vmem:[%s0 + $0xd8] sm:$0xff]
  %v47 = vld [vmem:[%s0 + $0xe0] sm:$0xff]
  %v48 = vld [vmem:[%s0 + $0xe8] sm:$0xff]
  %v49 = vld [vmem:[%s0 + $0xf0] sm:$0xff]
  %v50 = vld [vmem:[%s0 + $0xf8] sm:$0xff]
  %v51 = vld [vmem:[%s0 + $0x100] sm:$0xff]
  %v52 = vld [vmem:[%s0 + $0x108] sm:$0xff]
  %v53 = vld [vmem:[%s0 + $0x110] sm:$0xff]
  %v54 = vld [vmem:[%s0 + $0x118] sm:$0xff]
  %v55 = vld [vmem:[%s0 + $0x120] sm:$0xff]
  %v56 = vld [vmem:[%s0 + $0x128] sm:$0xff]
  %v57 = vld [vmem:[%s0 + $0x130] sm:$0xff]
  %v58 = vld [vmem:[%s0 + $0x138] sm:$0xff]
  %v59 = vld [vmem:[%s0 + $0x140] sm:$0xff]
  %v60 = vld [vmem:[%s0 + $0x148] sm:$0xff]
  %v61 = vld [vmem:[%s0 + $0x150] sm:$0xff]
  %v62 = vld [vmem:[%s0 + $0x158] sm:$0xff]
  %v63 = vld [vmem:[%s0 + $0x160] sm:$0xff]
  %v64 = vld [vmem:[%s0 + $0x168] sm:$0xff]
  %v65 = vld [vmem:[%s0 + $0x170] sm:$0xff]
  %v66 = vld [vmem:[%s0 + $0x178] sm:$0xff]
  %v67 = vld [vmem:[%s0 + $0x180] sm:$0xff]
  %v68 = vld [vmem:[%s0 + $0x188] sm:$0xff]
  %v69 = vld [vmem:[%s0 + $0x190] sm:$0xff]
  %v70 = vld [vmem:[%s0 + $0x198] sm:$0xff]
  %v71 = vld [vmem:[%s0 + $0x1a0] sm:$0xff]
  %v72 = vld [vmem:[%s0 + $0x1a8] sm:$0xff]
  %v73 = vld [vmem:[%s0 + $0x1b0] sm:$0xff]
  %v74 = vld [vmem:[%s0 + $0x1b8] sm:$0xff]
  %v75 = vld [vmem:[%s0 + $0x1c0] sm:$0xff]
  %v76 = vld [vmem:[%s0 + $0x1c8] sm:$0xff]
  %v77 = vld [vmem:[%s0 + $0x1d0] sm:$0xff]
  %v78 = vld [vmem:[%s0 + $0x1d8] sm:$0xff]
  %v79 = vld [vmem:[%s0 + $0x1e0] sm:$0xff]
  %v80 = vld [vmem:[%s0 + $0x1e8] sm:$0xff]
  %v81 = vld [vmem:[%s0 + $0x1f0] sm:$0xff]
  %v82 = vld [vmem:[%s0 + $0x1f8] sm:$0xff]
  %v83 = vld [vmem:[%s0 + $0x200] sm:$0xff]
  %v84 = vld [vmem:[%s0 + $0x208] sm:$0xff]
  %v85 = vld [vmem:[%s0 + $0x210] sm:$0xff]
  %v86 = vld [vmem:[%s0 + $0x218] sm:$0xff]
  %v87 = vld [vmem:[%s0 + $0x220] sm:$0xff]
  %v88 = vld [vmem:[%s0 + $0x228] sm:$0xff]
  %v89 = vld [vmem:[%s0 + $0x230] sm:$0xff]
  %v90 = vld [vmem:[%s0 + $0x238] sm:$0xff]
  %v91 = vld [vmem:[%s0 + $0x240] sm:$0xff]
  %v92 = vld [vmem:[%s0 + $0x248] sm:$0xff]
  %v93 = vld [vmem:[%s0 + $0x250] sm:$0xff]
  %v94 = vld [vmem:[%s0 + $0x258] sm:$0xff]
  %v95 = vld [vmem:[%s0 + $0x260] sm:$0xff]
  %v96 = vld [vmem:[%s0 + $0x268] sm:$0xff]
  %v97 = vld [vmem:[%s0 + $0x270] sm:$0xff]
  %v98 = vld [vmem:[%s0 + $0x278] sm:$0xff]
  %v99 = vld [vmem:[%s0 + $0x280] sm:$0xff]
  %v100 = vld [vmem:[%s0 + $0x288] sm:$0xff]
  %v101 = vld [vmem:[%s0 + $0x290] sm:$0xff]
  %v102 = vld [vmem:[%s0 + $0x298] sm:$0xff]
  %v103 = vld [vmem:[%s0 + $0x2a0] sm:$0xff]
  %v104 = vld [vmem:[%s0 + $0x2a8] sm:$0xff]
  %v105 = vld [vmem:[%s0 + $0x2b0] sm:$0xff]
  %v106 = vld [vmem:[%s0 + $0x2b8] sm:$0xff]
  %v107 = vld [vmem:[%s0 + $0x2c0] sm:$0xff]
  %v108 = vld [vmem:[%s0 + $0x2c8] sm:$0xff]
  %v109 = vld [vmem:[%s0 + $0x2d0] sm:$0xff]
  %v110 = vld [vmem:[%s0 + $0x2d8] sm:$0xff]
  %v111 = vld [vmem:[%s0 + $0x2e0] sm:$0xff]
  %v112 = vld [vmem:[%s0 + $0x2e8] sm:$0xff]
  %v113 = vld [vmem:[%s0 + $0x2f0] sm:$0xff]
  %v114 = vld [vmem:[%s0 + $0x2f8] sm:$0xff]
  %v115 = vld [vmem:[%s0 + $0x300] sm:$0xff]
  %v116 = vld [vmem:[%s0 + $0x308] sm:$0xff]
  %v117 = vld [vmem:[%s0 + $0x310] sm:$0xff]
  %v118 = vld [vmem:[%s0 + $0x318] sm:$0xff]
  %v119 = vld [vmem:[%s0 + $0x320] sm:$0xff]
  %v120 = vld [vmem:[%s0 + $0x328] sm:$0xff]
  %v121 = vld [vmem:[%s0 + $0x330] sm:$0xff]
  %v122 = vld [vmem:[%s0 + $0x338] sm:$0xff]
  %v123 = vld [vmem:[%s0 + $0x340] sm:$0xff]
  %v124 = vld [vmem:[%s0 + $0x348] sm:$0xff]
  %v125 = vld [vmem:[%s0 + $0x350] sm:$0xff]
  %v126 = vld [vmem:[%s0 + $0x358] sm:$0xff]
  %v127 = vld [vmem:[%s0 + $0x360] sm:$0xff]
  %v128 = vld [vmem:[%s0 + $0x368] sm:$0xff]
  %v129 = vld [vmem:[%s0 + $0x370] sm:$0xff]
  %v130 = vld [vmem:[%s0 + $0x378] sm:$0xff]
  %v131 = vld [vmem:[%s0 + $0x380] sm:$0xff]
  %v132 = vld [vmem:[%s0 + $0x388] sm:$0xff]
  %v133 = vld [vmem:[%s0 + $0x390] sm:$0xff]
  %v134 = vld [vmem:[%s0 + $0x398] sm:$0xff]
  %v135 = vld [vmem:[%s0 + $0x3a0] sm:$0xff]
  %v136 = vld [vmem:[%s0 + $0x3a8] sm:$0xff]
  %v137 = vld [vmem:[%s0 + $0x3b0] sm:$0xff]
  %v138 = vld [vmem:[%s0 + $0x3b8] sm:$0xff]
  %v139 = vld [vmem:[%s0 + $0x3c0] sm:$0xff]
  %v140 = vld [vmem:[%s0 + $0x3c8] sm:$0xff]
  %v141 = vld [vmem:[%s0 + $0x3d0] sm:$0xff]
  %v142 = vld [vmem:[%s0 + $0x3d8] sm:$0xff]
  %v143 = vld [vmem:[%s0 + $0x3e0] sm:$0xff]
  %v144 = vld [vmem:[%s0 + $0x3e8] sm:$0xff]
  %v145 = vld [vmem:[%s0 + $0x3f0] sm:$0xff]
  %v146 = vld [vmem:[%s0 + $0x3f8] sm:$0xff]
  %v147 = vld [vmem:[%s0 + $0x400] sm:$0xff]
  %v148 = vld [vmem:[%s0 + $0x408] sm:$0xff]
  %v149 = vld [vmem:[%s0 + $0x410] sm:$0xff]
  %v150 = vld [vmem:[%s0 + $0x418] sm:$0xff]
  %v151 = vld [vmem:[%s0 + $0x420] sm:$0xff]
  %v152 = vld [vmem:[%s0 + $0x428] sm:$0xff]
  %v153 = vld [vmem:[%s0 + $0x430] sm:$0xff]
  %v154 = vld [vmem:[%s0 + $0x438] sm:$0xff]
  %v155 = vld [vmem:[%s0 + $0x440] sm:$0xff]
  %v156 = vld [vmem:[%s0 + $0x448] sm:$0xff]
  %v157 = vld [vmem:[%s0 + $0x450] sm:$0xff]
  %v158 = vld [vmem:[%s0 + $0x458] sm:$0xff]
  %v159 = vld [vmem:[%s0 + $0x460] sm:$0xff]
  %v160 = vld [vmem:[%s0 + $0x468] sm:$0xff]
  %v161 = vld [vmem:[%s0 + $0x470] sm:$0xff]
  %v162 = vld [vmem:[%s0 + $0x478] sm:$0xff]
  %v163 = vld [vmem:[%s0 + $0x480] sm:$0xff]
  %v164 = vld [vmem:[%s0 + $0x488] sm:$0xff]
  %v165 = vld [vmem:[%s0 + $0x490] sm:$0xff]
  %v166 = vld [vmem:[%s0 + $0x498] sm:$0xff]
  %v167 = vld [vmem:[%s0 + $0x4a0] sm:$0xff]
  %v168 = vld [vmem:[%s0 + $0x4a8] sm:$0xff]
  %v169 = vld [vmem:[%s0 + $0x4b0] sm:$0xff]
  %v170 = vld [vmem:[%s0 + $0x4b8] sm:$0xff]
  %v171 = vld [vmem:[%s0 + $0x4c0] sm:$0xff]
  %v172 = vld [vmem:[%s0 + $0x4c8] sm:$0xff]
  %v173 = vld [vmem:[%s0 + $0x4d0] sm:$0xff]
  %v174 = vld [vmem:[%s0 + $0x4d8] sm:$0xff]
  %v175 = vld [vmem:[%s0 + $0x4e0] sm:$0xff]
  %v176 = vld [vmem:[%s0 + $0x4e8] sm:$0xff]
  %v177 = vld [vmem:[%s0 + $0x4f0] sm:$0xff]
  %v178 = vld [vmem:[%s0 + $0x4f8] sm:$0xff]
  %v179 = vld [vmem:[%s0 + $0x500] sm:$0xff]
  %v180 = vld [vmem:[%s0 + $0x508] sm:$0xff]
  %v181 = vld [vmem:[%s0 + $0x510] sm:$0xff]
  %v182 = vld [vmem:[%s0 + $0x518] sm:$0xff]
  %v183 = vld [vmem:[%s0 + $0x520] sm:$0xff]
  %v184 = vld [vmem:[%s0 + $0x528] sm:$0xff]
  %v185 = vld [vmem:[%s0 + $0x530] sm:$0xff]
  %v186 = vld [vmem:[%s0 + $0x538] sm:$0xff]
  %v187 = vld [vmem:[%s0 + $0x540] sm:$0xff]
  %v188 = vld [vmem:[%s0 + $0x548] sm:$0xff]
  %v189 = vld [vmem:[%s0 + $0x550] sm:$0xff]
  %v190 = vld [vmem:[%s0 + $0x558] sm:$0xff]
  %v191 = vld [vmem:[%s0 + $0x560] sm:$0xff]
  %v192 = vld [vmem:[%s0 + $0x568] sm:$0xff]
  %v193 = vld [vmem:[%s0 + $0x570] sm:$0xff]
  %v194 = vld [vmem:[%s0 + $0x578] sm:$0xff]
  %v195 = vld [vmem:[%s0 + $0x580] sm:$0xff]
  %v196 = vld [vmem:[%s0 + $0x588] sm:$0xff]
  %v197 = vld [vmem:[%s0 + $0x590] sm:$0xff]
  %v198 = vld [vmem:[%s0 + $0x598] sm:$0xff]
  %v199 = vld [vmem:[%s0 + $0x5a0] sm:$0xff]
  %v200 = vld [vmem:[%s0 + $0x5a8] sm:$0xff]
  %v201 = vld [vmem:[%s0 + $0x5b0] sm:$0xff]
  %v202 = vld [vmem:[%s0 + $0x5b8] sm:$0xff]
  %v203 = vld [vmem:[%s0 + $0x5c0] sm:$0xff]
  %v204 = vld [vmem:[%s0 + $0x5c8] sm:$0xff]
  %v205 = vld [vmem:[%s0 + $0x5d0] sm:$0xff]
  %v206 = vld [vmem:[%s0 + $0x5d8] sm:$0xff]
  %v207 = vld [vmem:[%s0 + $0x5e0] sm:$0xff]
  %v208 = vld [vmem:[%s0 + $0x5e8] sm:$0xff]
  %v209 = vld [vmem:[%s0 + $0x5f0] sm:$0xff]
  %v210 = vld [vmem:[%s0 + $0x5f8] sm:$0xff]
  %v211 = vld [vmem:[%s0 + $0x600] sm:$0xff]
  %v212 = vld [vmem:[%s0 + $0x608] sm:$0xff]
  %v213 = vld [vmem:[%s0 + $0x610] sm:$0xff]
  %v214 = vld [vmem:[%s0 + $0x618] sm:$0xff]
  %v216 = vperm.slane %v18, 0
  %vm218 = vcmask 261120
  %v220 = vsel %vm218, %v19, 0
  %v223 = vsel %vm218, %v20, 0
  %v226 = vsel %vm218, %v21, 0
  %v229 = vsel %vm218, %v22, 0
  %v232 = vsel %vm218, %v23, 0
  %v235 = vsel %vm218, %v24, 0
  %v238 = vsel %vm218, %v25, 0
  %v241 = vsel %vm218, %v26, 0
  %v244 = vsel %vm218, %v27, 0
  %v247 = vsel %vm218, %v28, 0
  %v250 = vsel %vm218, %v29, 0
  %v253 = vsel %vm218, %v30, 0
  %v256 = vsel %vm218, %v31, 0
  %v259 = vsel %vm218, %v32, 0
  %v262 = vsel %vm218, %v33, 0
  %v265 = vsel %vm218, %v34, 0
  %v268 = vsel %vm218, %v35, 0
  %v271 = vsel %vm218, %v36, 0
  %v274 = vsel %vm218, %v37, 0
  %v277 = vsel %vm218, %v38, 0
  %v280 = vsel %vm218, %v39, 0
  %v283 = vsel %vm218, %v40, 0
  %v286 = vsel %vm218, %v41, 0
  %v289 = vsel %vm218, %v42, 0
  %v292 = vsel %vm218, %v43, 0
  %v295 = vsel %vm218, %v44, 0
  %v298 = vsel %vm218, %v45, 0
  %v301 = vsel %vm218, %v46, 0
  %v304 = vsel %vm218, %v47, 0
  %v307 = vsel %vm218, %v48, 0
  %v310 = vsel %vm218, %v49, 0
  %v313 = vsel %vm218, %v50, 0
  %v316 = vsel %vm218, %v51, 0
  %v319 = vsel %vm218, %v52, 0
  %v322 = vsel %vm218, %v53, 0
  %v325 = vsel %vm218, %v54, 0
  %v328 = vsel %vm218, %v55, 0
  %v331 = vsel %vm218, %v56, 0
  %v334 = vsel %vm218, %v57, 0
  %v337 = vsel %vm218, %v58, 0
  %v340 = vsel %vm218, %v59, 0
  %v343 = vsel %vm218, %v60, 0
  %v346 = vsel %vm218, %v61, 0
  %v349 = vsel %vm218, %v62, 0
  %v352 = vsel %vm218, %v63, 0
  %v355 = vsel %vm218, %v64, 0
  %v358 = vsel %vm218, %v65, 0
  %v361 = vsel %vm218, %v66, 0
  %v364 = vsel %vm218, %v67, 0
  %v367 = vsel %vm218, %v68, 0
  %v370 = vsel %vm218, %v69, 0
  %v373 = vsel %vm218, %v70, 0
  %v376 = vsel %vm218, %v71, 0
  %v379 = vsel %vm218, %v72, 0
  %v382 = vsel %vm218, %v73, 0
  %v385 = vsel %vm218, %v74, 0
  %v388 = vsel %vm218, %v75, 0
  %v391 = vsel %vm218, %v76, 0
  %v394 = vsel %vm218, %v77, 0
  %v397 = vsel %vm218, %v78, 0
  %v400 = vsel %vm218, %v79, 0
  %v403 = vsel %vm218, %v80, 0
  %v406 = vsel %vm218, %v81, 0
  %v409 = vsel %vm218, %v82, 0
  %v412 = vsel %vm218, %v83, 0
  %v415 = vsel %vm218, %v84, 0
  %v418 = vsel %vm218, %v85, 0
  %v421 = vsel %vm218, %v86, 0
  %v424 = vsel %vm218, %v87, 0
  %v427 = vsel %vm218, %v88, 0
  %v430 = vsel %vm218, %v89, 0
  %v433 = vsel %vm218, %v90, 0
  %v436 = vsel %vm218, %v91, 0
  %v439 = vsel %vm218, %v92, 0
  %v442 = vsel %vm218, %v93, 0
  %v445 = vsel %vm218, %v94, 0
  %v448 = vsel %vm218, %v95, 0
  %v451 = vsel %vm218, %v96, 0
  %v454 = vsel %vm218, %v97, 0
  %v457 = vsel %vm218, %v98, 0
  %v460 = vsel %vm218, %v99, 0
  %v463 = vsel %vm218, %v100, 0
  %v466 = vsel %vm218, %v101, 0
  %v469 = vsel %vm218, %v102, 0
  %v472 = vsel %vm218, %v103, 0
  %v475 = vsel %vm218, %v104, 0
  %v478 = vsel %vm218, %v105, 0
  %v481 = vsel %vm218, %v106, 0
  %v484 = vsel %vm218, %v107, 0
  %v487 = vsel %vm218, %v108, 0
  %v490 = vsel %vm218, %v109, 0
  %v493 = vsel %vm218, %v110, 0
  %v496 = vsel %vm218, %v111, 0
  %v499 = vsel %vm218, %v112, 0
  %v502 = vsel %vm218, %v113, 0
  %v505 = vsel %vm218, %v114, 0
  %v508 = vsel %vm218, %v115, 0
  %v511 = vsel %vm218, %v116, 0
  %v514 = vsel %vm218, %v117, 0
  %v517 = vsel %vm218, %v118, 0
  %v520 = vsel %vm218, %v119, 0
  %v523 = vsel %vm218, %v120, 0
  %v526 = vsel %vm218, %v121, 0
  %v529 = vsel %vm218, %v122, 0
  %v532 = vsel %vm218, %v123, 0
  %v535 = vsel %vm218, %v124, 0
  %v538 = vsel %vm218, %v125, 0
  %v541 = vsel %vm218, %v126, 0
  %v544 = vsel %vm218, %v127, 0
  %v547 = vsel %vm218, %v128, 0
  %v550 = vsel %vm218, %v129, 0
  %v553 = vsel %vm218, %v130, 0
  %v556 = vsel %vm218, %v131, 0
  %v559 = vsel %vm218, %v132, 0
  %v562 = vsel %vm218, %v133, 0
  %v565 = vsel %vm218, %v134, 0
  %v568 = vsel %vm218, %v135, 0
  %v571 = vsel %vm218, %v136, 0
  %v574 = vsel %vm218, %v137, 0
  %v577 = vsel %vm218, %v138, 0
  %v580 = vsel %vm218, %v139, 0
  %v583 = vsel %vm218, %v140, 0
  %v586 = vsel %vm218, %v141, 0
  %v589 = vsel %vm218, %v142, 0
  %v592 = vsel %vm218, %v143, 0
  %v595 = vsel %vm218, %v144, 0
  %v598 = vsel %vm218, %v145, 0
  %v601 = vsel %vm218, %v146, 0
  %v604 = vsel %vm218, %v147, 0
  %v607 = vsel %vm218, %v148, 0
  %v610 = vsel %vm218, %v149, 0
  %v613 = vsel %vm218, %v150, 0
  %v616 = vsel %vm218, %v151, 0
  %v619 = vsel %vm218, %v152, 0
  %v622 = vsel %vm218, %v153, 0
  %v625 = vsel %vm218, %v154, 0
  %v628 = vsel %vm218, %v155, 0
  %v631 = vsel %vm218, %v156, 0
  %v634 = vsel %vm218, %v157, 0
  %v637 = vsel %vm218, %v158, 0
  %v640 = vsel %vm218, %v159, 0
  %v643 = vsel %vm218, %v160, 0
  %v646 = vsel %vm218, %v161, 0
  %v649 = vsel %vm218, %v162, 0
  %v652 = vsel %vm218, %v163, 0
  %v655 = vsel %vm218, %v164, 0
  %v658 = vsel %vm218, %v165, 0
  %v661 = vsel %vm218, %v166, 0
  %v664 = vsel %vm218, %v167, 0
  %v667 = vsel %vm218, %v168, 0
  %v670 = vsel %vm218, %v169, 0
  %v673 = vsel %vm218, %v170, 0
  %v676 = vsel %vm218, %v171, 0
  %v679 = vsel %vm218, %v172, 0
  %v682 = vsel %vm218, %v173, 0
  %v685 = vsel %vm218, %v174, 0
  %v688 = vsel %vm218, %v175, 0
  %v691 = vsel %vm218, %v176, 0
  %v694 = vsel %vm218, %v177, 0
  %v697 = vsel %vm218, %v178, 0
  %v700 = vsel %vm218, %v179, 0
  %v703 = vsel %vm218, %v180, 0
  %v706 = vsel %vm218, %v181, 0
  %v709 = vsel %vm218, %v182, 0
  %v712 = vsel %vm218, %v183, 0
  %v715 = vsel %vm218, %v184, 0
  %v718 = vsel %vm218, %v185, 0
  %v721 = vsel %vm218, %v186, 0
  %v724 = vsel %vm218, %v187, 0
  %v727 = vsel %vm218, %v188, 0
  %v730 = vsel %vm218, %v189, 0
  %v733 = vsel %vm218, %v190, 0
  %v736 = vsel %vm218, %v191, 0
  %v739 = vsel %vm218, %v192, 0
  %v742 = vsel %vm218, %v193, 0
  %v745 = vsel %vm218, %v194, 0
  %v748 = vsel %vm218, %v195, 0
  %v751 = vsel %vm218, %v196, 0
  %v754 = vsel %vm218, %v197, 0
  %v757 = vsel %vm218, %v198, 0
  %v760 = vsel %vm218, %v199, 0
  %v763 = vsel %vm218, %v200, 0
  %v766 = vsel %vm218, %v201, 0
  %v769 = vsel %vm218, %v202, 0
  %v772 = vsel %vm218, %v203, 0
  %v775 = vsel %vm218, %v204, 0
  %v778 = vsel %vm218, %v205, 0
  %v781 = vsel %vm218, %v206, 0
  %v784 = vsel %vm218, %v207, 0
  %v787 = vsel %vm218, %v208, 0
  %v790 = vsel %vm218, %v209, 0
  %v793 = vsel %vm218, %v210, 0
  %v796 = vsel %vm218, %v211, 0
  %v799 = vsel %vm218, %v212, 0
  %v802 = vsel %vm218, %v213, 0
  %v805 = vsel %vm218, %v214, 0
  %807 = vmatpush.msra.mxu0 0.0
  %808 = vmatpush.msra.mxu0 0.0
  %809 = vmatpush.msra.mxu0 0.0
  %810 = vmatpush.msra.mxu0 0.0
  %811 = vmatpush.msra.mxu0 0.0
  %812 = vmatpush.msra.mxu0 0.0
  %813 = vmatpush.msra.mxu0 0.0
  %814 = vmatpush.msra.mxu0 0.0
  %815 = vmatpush.msra.mxu0 0.0
  %816 = vmatpush.msra.mxu0 0.0
  %817 = vmatpush.msra.mxu0 0.0
  %818 = vmatpush.msra.mxu0 0.0
  %819 = vmatpush.msra.mxu0 %v17
  %820 = vmatpush.msra.mxu0 %v16
  %821 = vmatpush.msra.mxu0 %v15
  %822 = vmatpush.msra.mxu0 %v14
  %823 = vmatmul.f32.gmra.mxu0 %v220
  %v824 = vpop.f32.mrf.mxu0
  %v825 = vadd.f32 %v216, %v824
  %826 = vmatmul.f32.gmra.mxu0 %v223
  %v827 = vpop.f32.mrf.mxu0
  %v828 = vadd.f32 %v216, %v827
  %829 = vmatmul.f32.gmra.mxu0 %v226
  %v830 = vpop.f32.mrf.mxu0
  %v831 = vadd.f32 %v216, %v830
  %832 = vmatmul.f32.gmra.mxu0 %v229
  %v833 = vpop.f32.mrf.mxu0
  %v834 = vadd.f32 %v216, %v833
  %835 = vmatmul.f32.gmra.mxu0 %v232
  %v836 = vpop.f32.mrf.mxu0
  %v837 = vadd.f32 %v216, %v836
  %838 = vmatmul.f32.gmra.mxu0 %v235
  %v839 = vpop.f32.mrf.mxu0
  %v840 = vadd.f32 %v216, %v839
  %841 = vmatmul.f32.gmra.mxu0 %v238
  %v842 = vpop.f32.mrf.mxu0
  %v843 = vadd.f32 %v216, %v842
  %844 = vmatmul.f32.gmra.mxu0 %v241
  %v845 = vpop.f32.mrf.mxu0
  %v846 = vadd.f32 %v216, %v845
  %847 = vmatmul.f32.gmra.mxu0 %v244
  %v848 = vpop.f32.mrf.mxu0
  %v849 = vadd.f32 %v216, %v848
  %850 = vmatmul.f32.gmra.mxu0 %v247
  %v851 = vpop.f32.mrf.mxu0
  %v852 = vadd.f32 %v216, %v851
  %853 = vmatmul.f32.gmra.mxu0 %v250
  %v854 = vpop.f32.mrf.mxu0
  %v855 = vadd.f32 %v216, %v854
  %856 = vmatmul.f32.gmra.mxu0 %v253
  %v857 = vpop.f32.mrf.mxu0
  %v858 = vadd.f32 %v216, %v857
  %859 = vmatmul.f32.gmra.mxu0 %v256
  %v860 = vpop.f32.mrf.mxu0
  %v861 = vadd.f32 %v216, %v860
  %862 = vmatmul.f32.gmra.mxu0 %v259
  %v863 = vpop.f32.mrf.mxu0
  %v864 = vadd.f32 %v216, %v863
  %865 = vmatmul.f32.gmra.mxu0 %v262
  %v866 = vpop.f32.mrf.mxu0
  %v867 = vadd.f32 %v216, %v866
  %868 = vmatmul.f32.gmra.mxu0 %v265
  %v869 = vpop.f32.mrf.mxu0
  %v870 = vadd.f32 %v216, %v869
  %871 = vmatmul.f32.gmra.mxu0 %v268
  %v872 = vpop.f32.mrf.mxu0
  %v873 = vadd.f32 %v216, %v872
  %874 = vmatmul.f32.gmra.mxu0 %v271
  %v875 = vpop.f32.mrf.mxu0
  %v876 = vadd.f32 %v216, %v875
  %877 = vmatmul.f32.gmra.mxu0 %v274
  %v878 = vpop.f32.mrf.mxu0
  %v879 = vadd.f32 %v216, %v878
  %880 = vmatmul.f32.gmra.mxu0 %v277
  %v881 = vpop.f32.mrf.mxu0
  %v882 = vadd.f32 %v216, %v881
  %883 = vmatmul.f32.gmra.mxu0 %v280
  %v884 = vpop.f32.mrf.mxu0
  %v885 = vadd.f32 %v216, %v884
  %886 = vmatmul.f32.gmra.mxu0 %v283
  %v887 = vpop.f32.mrf.mxu0
  %v888 = vadd.f32 %v216, %v887
  %889 = vmatmul.f32.gmra.mxu0 %v286
  %v890 = vpop.f32.mrf.mxu0
  %v891 = vadd.f32 %v216, %v890
  %892 = vmatmul.f32.gmra.mxu0 %v289
  %v893 = vpop.f32.mrf.mxu0
  %v894 = vadd.f32 %v216, %v893
  %895 = vmatmul.f32.gmra.mxu0 %v292
  %v896 = vpop.f32.mrf.mxu0
  %v897 = vadd.f32 %v216, %v896
  %898 = vmatmul.f32.gmra.mxu0 %v295
  %v899 = vpop.f32.mrf.mxu0
  %v900 = vadd.f32 %v216, %v899
  %901 = vmatmul.f32.gmra.mxu0 %v298
  %v902 = vpop.f32.mrf.mxu0
  %v903 = vadd.f32 %v216, %v902
  %904 = vmatmul.f32.gmra.mxu0 %v301
  %v905 = vpop.f32.mrf.mxu0
  %v906 = vadd.f32 %v216, %v905
  %907 = vmatmul.f32.gmra.mxu0 %v304
  %v908 = vpop.f32.mrf.mxu0
  %v909 = vadd.f32 %v216, %v908
  %910 = vmatmul.f32.gmra.mxu0 %v307
  %v911 = vpop.f32.mrf.mxu0
  %v912 = vadd.f32 %v216, %v911
  %913 = vmatmul.f32.gmra.mxu0 %v310
  %v914 = vpop.f32.mrf.mxu0
  %v915 = vadd.f32 %v216, %v914
  %916 = vmatmul.f32.gmra.mxu0 %v313
  %v917 = vpop.f32.mrf.mxu0
  %v918 = vadd.f32 %v216, %v917
  %919 = vmatmul.f32.gmra.mxu0 %v316
  %v920 = vpop.f32.mrf.mxu0
  %v921 = vadd.f32 %v216, %v920
  %922 = vmatmul.f32.gmra.mxu0 %v319
  %v923 = vpop.f32.mrf.mxu0
  %v924 = vadd.f32 %v216, %v923
  %925 = vmatmul.f32.gmra.mxu0 %v322
  %v926 = vpop.f32.mrf.mxu0
  %v927 = vadd.f32 %v216, %v926
  %928 = vmatmul.f32.gmra.mxu0 %v325
  %v929 = vpop.f32.mrf.mxu0
  %v930 = vadd.f32 %v216, %v929
  %931 = vmatmul.f32.gmra.mxu0 %v328
  %v932 = vpop.f32.mrf.mxu0
  %v933 = vadd.f32 %v216, %v932
  %934 = vmatmul.f32.gmra.mxu0 %v331
  %v935 = vpop.f32.mrf.mxu0
  %v936 = vadd.f32 %v216, %v935
  %937 = vmatmul.f32.gmra.mxu0 %v334
  %v938 = vpop.f32.mrf.mxu0
  %v939 = vadd.f32 %v216, %v938
  %940 = vmatmul.f32.gmra.mxu0 %v337
  %v941 = vpop.f32.mrf.mxu0
  %v942 = vadd.f32 %v216, %v941
  %943 = vmatmul.f32.gmra.mxu0 %v340
  %v944 = vpop.f32.mrf.mxu0
  %v945 = vadd.f32 %v216, %v944
  %946 = vmatmul.f32.gmra.mxu0 %v343
  %v947 = vpop.f32.mrf.mxu0
  %v948 = vadd.f32 %v216, %v947
  %949 = vmatmul.f32.gmra.mxu0 %v346
  %v950 = vpop.f32.mrf.mxu0
  %v951 = vadd.f32 %v216, %v950
  %952 = vmatmul.f32.gmra.mxu0 %v349
  %v953 = vpop.f32.mrf.mxu0
  %v954 = vadd.f32 %v216, %v953
  %955 = vmatmul.f32.gmra.mxu0 %v352
  %v956 = vpop.f32.mrf.mxu0
  %v957 = vadd.f32 %v216, %v956
  %958 = vmatmul.f32.gmra.mxu0 %v355
  %v959 = vpop.f32.mrf.mxu0
  %v960 = vadd.f32 %v216, %v959
  %961 = vmatmul.f32.gmra.mxu0 %v358
  %v962 = vpop.f32.mrf.mxu0
  %v963 = vadd.f32 %v216, %v962
  %964 = vmatmul.f32.gmra.mxu0 %v361
  %v965 = vpop.f32.mrf.mxu0
  %v966 = vadd.f32 %v216, %v965
  %967 = vmatmul.f32.gmra.mxu0 %v364
  %v968 = vpop.f32.mrf.mxu0
  %v969 = vadd.f32 %v216, %v968
  %970 = vmatmul.f32.gmra.mxu0 %v367
  %v971 = vpop.f32.mrf.mxu0
  %v972 = vadd.f32 %v216, %v971
  %973 = vmatmul.f32.gmra.mxu0 %v370
  %v974 = vpop.f32.mrf.mxu0
  %v975 = vadd.f32 %v216, %v974
  %976 = vmatmul.f32.gmra.mxu0 %v373
  %v977 = vpop.f32.mrf.mxu0
  %v978 = vadd.f32 %v216, %v977
  %979 = vmatmul.f32.gmra.mxu0 %v376
  %v980 = vpop.f32.mrf.mxu0
  %v981 = vadd.f32 %v216, %v980
  %982 = vmatmul.f32.gmra.mxu0 %v379
  %v983 = vpop.f32.mrf.mxu0
  %v984 = vadd.f32 %v216, %v983
  %985 = vmatmul.f32.gmra.mxu0 %v382
  %v986 = vpop.f32.mrf.mxu0
  %v987 = vadd.f32 %v216, %v986
  %988 = vmatmul.f32.gmra.mxu0 %v385
  %v989 = vpop.f32.mrf.mxu0
  %v990 = vadd.f32 %v216, %v989
  %991 = vmatmul.f32.gmra.mxu0 %v388
  %v992 = vpop.f32.mrf.mxu0
  %v993 = vadd.f32 %v216, %v992
  %994 = vmatmul.f32.gmra.mxu0 %v391
  %v995 = vpop.f32.mrf.mxu0
  %v996 = vadd.f32 %v216, %v995
  %997 = vmatmul.f32.gmra.mxu0 %v394
  %v998 = vpop.f32.mrf.mxu0
  %v999 = vadd.f32 %v216, %v998
  %1000 = vmatmul.f32.gmra.mxu0 %v397
  %v1001 = vpop.f32.mrf.mxu0
  %v1002 = vadd.f32 %v216, %v1001
  %1003 = vmatmul.f32.gmra.mxu0 %v400
  %v1004 = vpop.f32.mrf.mxu0
  %v1005 = vadd.f32 %v216, %v1004
  %1006 = vmatmul.f32.gmra.mxu0 %v403
  %v1007 = vpop.f32.mrf.mxu0
  %v1008 = vadd.f32 %v216, %v1007
  %1009 = vmatmul.f32.gmra.mxu0 %v406
  %v1010 = vpop.f32.mrf.mxu0
  %v1011 = vadd.f32 %v216, %v1010
  %1012 = vmatmul.f32.gmra.mxu0 %v409
  %v1013 = vpop.f32.mrf.mxu0
  %v1014 = vadd.f32 %v216, %v1013
  %1015 = vmatmul.f32.gmra.mxu0 %v412
  %v1016 = vpop.f32.mrf.mxu0
  %v1017 = vadd.f32 %v216, %v1016
  %1018 = vmatmul.f32.gmra.mxu0 %v415
  %v1019 = vpop.f32.mrf.mxu0
  %v1020 = vadd.f32 %v216, %v1019
  %1021 = vmatmul.f32.gmra.mxu0 %v418
  %v1022 = vpop.f32.mrf.mxu0
  %v1023 = vadd.f32 %v216, %v1022
  %1024 = vmatmul.f32.gmra.mxu0 %v421
  %v1025 = vpop.f32.mrf.mxu0
  %v1026 = vadd.f32 %v216, %v1025
  %1027 = vmatmul.f32.gmra.mxu0 %v424
  %v1028 = vpop.f32.mrf.mxu0
  %v1029 = vadd.f32 %v216, %v1028
  %1030 = vmatmul.f32.gmra.mxu0 %v427
  %v1031 = vpop.f32.mrf.mxu0
  %v1032 = vadd.f32 %v216, %v1031
  %1033 = vmatmul.f32.gmra.mxu0 %v430
  %v1034 = vpop.f32.mrf.mxu0
  %v1035 = vadd.f32 %v216, %v1034
  %1036 = vmatmul.f32.gmra.mxu0 %v433
  %v1037 = vpop.f32.mrf.mxu0
  %v1038 = vadd.f32 %v216, %v1037
  %1039 = vmatmul.f32.gmra.mxu0 %v436
  %v1040 = vpop.f32.mrf.mxu0
  %v1041 = vadd.f32 %v216, %v1040
  %1042 = vmatmul.f32.gmra.mxu0 %v439
  %v1043 = vpop.f32.mrf.mxu0
  %v1044 = vadd.f32 %v216, %v1043
  %1045 = vmatmul.f32.gmra.mxu0 %v442
  %v1046 = vpop.f32.mrf.mxu0
  %v1047 = vadd.f32 %v216, %v1046
  %1048 = vmatmul.f32.gmra.mxu0 %v445
  %v1049 = vpop.f32.mrf.mxu0
  %v1050 = vadd.f32 %v216, %v1049
  %1051 = vmatmul.f32.gmra.mxu0 %v448
  %v1052 = vpop.f32.mrf.mxu0
  %v1053 = vadd.f32 %v216, %v1052
  %1054 = vmatmul.f32.gmra.mxu0 %v451
  %v1055 = vpop.f32.mrf.mxu0
  %v1056 = vadd.f32 %v216, %v1055
  %1057 = vmatmul.f32.gmra.mxu0 %v454
  %v1058 = vpop.f32.mrf.mxu0
  %v1059 = vadd.f32 %v216, %v1058
  %1060 = vmatmul.f32.gmra.mxu0 %v457
  %v1061 = vpop.f32.mrf.mxu0
  %v1062 = vadd.f32 %v216, %v1061
  %1063 = vmatmul.f32.gmra.mxu0 %v460
  %v1064 = vpop.f32.mrf.mxu0
  %v1065 = vadd.f32 %v216, %v1064
  %1066 = vmatmul.f32.gmra.mxu0 %v463
  %v1067 = vpop.f32.mrf.mxu0
  %v1068 = vadd.f32 %v216, %v1067
  %1069 = vmatmul.f32.gmra.mxu0 %v466
  %v1070 = vpop.f32.mrf.mxu0
  %v1071 = vadd.f32 %v216, %v1070
  %1072 = vmatmul.f32.gmra.mxu0 %v469
  %v1073 = vpop.f32.mrf.mxu0
  %v1074 = vadd.f32 %v216, %v1073
  %1075 = vmatmul.f32.gmra.mxu0 %v472
  %v1076 = vpop.f32.mrf.mxu0
  %v1077 = vadd.f32 %v216, %v1076
  %1078 = vmatmul.f32.gmra.mxu0 %v475
  %v1079 = vpop.f32.mrf.mxu0
  %v1080 = vadd.f32 %v216, %v1079
  %1081 = vmatmul.f32.gmra.mxu0 %v478
  %v1082 = vpop.f32.mrf.mxu0
  %v1083 = vadd.f32 %v216, %v1082
  %1084 = vmatmul.f32.gmra.mxu0 %v481
  %v1085 = vpop.f32.mrf.mxu0
  %v1086 = vadd.f32 %v216, %v1085
  %1087 = vmatmul.f32.gmra.mxu0 %v484
  %v1088 = vpop.f32.mrf.mxu0
  %v1089 = vadd.f32 %v216, %v1088
  %1090 = vmatmul.f32.gmra.mxu0 %v487
  %v1091 = vpop.f32.mrf.mxu0
  %v1092 = vadd.f32 %v216, %v1091
  %1093 = vmatmul.f32.gmra.mxu0 %v490
  %v1094 = vpop.f32.mrf.mxu0
  %v1095 = vadd.f32 %v216, %v1094
  %1096 = vmatmul.f32.gmra.mxu0 %v493
  %v1097 = vpop.f32.mrf.mxu0
  %v1098 = vadd.f32 %v216, %v1097
  %1099 = vmatmul.f32.gmra.mxu0 %v496
  %v1100 = vpop.f32.mrf.mxu0
  %v1101 = vadd.f32 %v216, %v1100
  %1102 = vmatmul.f32.gmra.mxu0 %v499
  %v1103 = vpop.f32.mrf.mxu0
  %v1104 = vadd.f32 %v216, %v1103
  %1105 = vmatmul.f32.gmra.mxu0 %v502
  %v1106 = vpop.f32.mrf.mxu0
  %v1107 = vadd.f32 %v216, %v1106
  %1108 = vmatmul.f32.gmra.mxu0 %v505
  %v1109 = vpop.f32.mrf.mxu0
  %v1110 = vadd.f32 %v216, %v1109
  %1111 = vmatmul.f32.gmra.mxu0 %v508
  %v1112 = vpop.f32.mrf.mxu0
  %v1113 = vadd.f32 %v216, %v1112
  %1114 = vmatmul.f32.gmra.mxu0 %v511
  %v1115 = vpop.f32.mrf.mxu0
  %v1116 = vadd.f32 %v216, %v1115
  %1117 = vmatmul.f32.gmra.mxu0 %v514
  %v1118 = vpop.f32.mrf.mxu0
  %v1119 = vadd.f32 %v216, %v1118
  %1120 = vmatmul.f32.gmra.mxu0 %v517
  %v1121 = vpop.f32.mrf.mxu0
  %v1122 = vadd.f32 %v216, %v1121
  %1123 = vmatmul.f32.gmra.mxu0 %v520
  %v1124 = vpop.f32.mrf.mxu0
  %v1125 = vadd.f32 %v216, %v1124
  %1126 = vmatmul.f32.gmra.mxu0 %v523
  %v1127 = vpop.f32.mrf.mxu0
  %v1128 = vadd.f32 %v216, %v1127
  %1129 = vmatmul.f32.gmra.mxu0 %v526
  %v1130 = vpop.f32.mrf.mxu0
  %v1131 = vadd.f32 %v216, %v1130
  %1132 = vmatmul.f32.gmra.mxu0 %v529
  %v1133 = vpop.f32.mrf.mxu0
  %v1134 = vadd.f32 %v216, %v1133
  %1135 = vmatmul.f32.gmra.mxu0 %v532
  %v1136 = vpop.f32.mrf.mxu0
  %v1137 = vadd.f32 %v216, %v1136
  %1138 = vmatmul.f32.gmra.mxu0 %v535
  %v1139 = vpop.f32.mrf.mxu0
  %v1140 = vadd.f32 %v216, %v1139
  %1141 = vmatmul.f32.gmra.mxu0 %v538
  %v1142 = vpop.f32.mrf.mxu0
  %v1143 = vadd.f32 %v216, %v1142
  %1144 = vmatmul.f32.gmra.mxu0 %v541
  %v1145 = vpop.f32.mrf.mxu0
  %v1146 = vadd.f32 %v216, %v1145
  %1147 = vmatmul.f32.gmra.mxu0 %v544
  %v1148 = vpop.f32.mrf.mxu0
  %v1149 = vadd.f32 %v216, %v1148
  %1150 = vmatmul.f32.gmra.mxu0 %v547
  %v1151 = vpop.f32.mrf.mxu0
  %v1152 = vadd.f32 %v216, %v1151
  %1153 = vmatmul.f32.gmra.mxu0 %v550
  %v1154 = vpop.f32.mrf.mxu0
  %v1155 = vadd.f32 %v216, %v1154
  %1156 = vmatmul.f32.gmra.mxu0 %v553
  %v1157 = vpop.f32.mrf.mxu0
  %v1158 = vadd.f32 %v216, %v1157
  %1159 = vmatmul.f32.gmra.mxu0 %v556
  %v1160 = vpop.f32.mrf.mxu0
  %v1161 = vadd.f32 %v216, %v1160
  %1162 = vmatmul.f32.gmra.mxu0 %v559
  %v1163 = vpop.f32.mrf.mxu0
  %v1164 = vadd.f32 %v216, %v1163
  %1165 = vmatmul.f32.gmra.mxu0 %v562
  %v1166 = vpop.f32.mrf.mxu0
  %v1167 = vadd.f32 %v216, %v1166
  %1168 = vmatmul.f32.gmra.mxu0 %v565
  %v1169 = vpop.f32.mrf.mxu0
  %v1170 = vadd.f32 %v216, %v1169
  %1171 = vmatmul.f32.gmra.mxu0 %v568
  %v1172 = vpop.f32.mrf.mxu0
  %v1173 = vadd.f32 %v216, %v1172
  %1174 = vmatmul.f32.gmra.mxu0 %v571
  %v1175 = vpop.f32.mrf.mxu0
  %v1176 = vadd.f32 %v216, %v1175
  %1177 = vmatmul.f32.gmra.mxu0 %v574
  %v1178 = vpop.f32.mrf.mxu0
  %v1179 = vadd.f32 %v216, %v1178
  %1180 = vmatmul.f32.gmra.mxu0 %v577
  %v1181 = vpop.f32.mrf.mxu0
  %v1182 = vadd.f32 %v216, %v1181
  %1183 = vmatmul.f32.gmra.mxu0 %v580
  %v1184 = vpop.f32.mrf.mxu0
  %v1185 = vadd.f32 %v216, %v1184
  %1186 = vmatmul.f32.gmra.mxu0 %v583
  %v1187 = vpop.f32.mrf.mxu0
  %v1188 = vadd.f32 %v216, %v1187
  %1189 = vmatmul.f32.gmra.mxu0 %v586
  %v1190 = vpop.f32.mrf.mxu0
  %v1191 = vadd.f32 %v216, %v1190
  %1192 = vmatmul.f32.gmra.mxu0 %v589
  %v1193 = vpop.f32.mrf.mxu0
  %v1194 = vadd.f32 %v216, %v1193
  %1195 = vmatmul.f32.gmra.mxu0 %v592
  %v1196 = vpop.f32.mrf.mxu0
  %v1197 = vadd.f32 %v216, %v1196
  %1198 = vmatmul.f32.gmra.mxu0 %v595
  %v1199 = vpop.f32.mrf.mxu0
  %v1200 = vadd.f32 %v216, %v1199
  %1201 = vmatmul.f32.gmra.mxu0 %v598
  %v1202 = vpop.f32.mrf.mxu0
  %v1203 = vadd.f32 %v216, %v1202
  %1204 = vmatmul.f32.gmra.mxu0 %v601
  %v1205 = vpop.f32.mrf.mxu0
  %v1206 = vadd.f32 %v216, %v1205
  %1207 = vmatmul.f32.gmra.mxu0 %v604
  %v1208 = vpop.f32.mrf.mxu0
  %v1209 = vadd.f32 %v216, %v1208
  %1210 = vmatmul.f32.gmra.mxu0 %v607
  %v1211 = vpop.f32.mrf.mxu0
  %v1212 = vadd.f32 %v216, %v1211
  %1213 = vmatmul.f32.gmra.mxu0 %v610
  %v1214 = vpop.f32.mrf.mxu0
  %v1215 = vadd.f32 %v216, %v1214
  %1216 = vmatmul.f32.gmra.mxu0 %v613
  %v1217 = vpop.f32.mrf.mxu0
  %v1218 = vadd.f32 %v216, %v1217
  %1219 = vmatmul.f32.gmra.mxu0 %v616
  %v1220 = vpop.f32.mrf.mxu0
  %v1221 = vadd.f32 %v216, %v1220
  %1222 = vmatmul.f32.gmra.mxu0 %v619
  %v1223 = vpop.f32.mrf.mxu0
  %v1224 = vadd.f32 %v216, %v1223
  %1225 = vmatmul.f32.gmra.mxu0 %v622
  %v1226 = vpop.f32.mrf.mxu0
  %v1227 = vadd.f32 %v216, %v1226
  %1228 = vmatmul.f32.gmra.mxu0 %v625
  %v1229 = vpop.f32.mrf.mxu0
  %v1230 = vadd.f32 %v216, %v1229
  %1231 = vmatmul.f32.gmra.mxu0 %v628
  %v1232 = vpop.f32.mrf.mxu0
  %v1233 = vadd.f32 %v216, %v1232
  %1234 = vmatmul.f32.gmra.mxu0 %v631
  %v1235 = vpop.f32.mrf.mxu0
  %v1236 = vadd.f32 %v216, %v1235
  %1237 = vmatmul.f32.gmra.mxu0 %v634
  %v1238 = vpop.f32.mrf.mxu0
  %v1239 = vadd.f32 %v216, %v1238
  %1240 = vmatmul.f32.gmra.mxu0 %v637
  %v1241 = vpop.f32.mrf.mxu0
  %v1242 = vadd.f32 %v216, %v1241
  %1243 = vmatmul.f32.gmra.mxu0 %v640
  %v1244 = vpop.f32.mrf.mxu0
  %v1245 = vadd.f32 %v216, %v1244
  %1246 = vmatmul.f32.gmra.mxu0 %v643
  %v1247 = vpop.f32.mrf.mxu0
  %v1248 = vadd.f32 %v216, %v1247
  %1249 = vmatmul.f32.gmra.mxu0 %v646
  %v1250 = vpop.f32.mrf.mxu0
  %v1251 = vadd.f32 %v216, %v1250
  %1252 = vmatmul.f32.gmra.mxu0 %v649
  %v1253 = vpop.f32.mrf.mxu0
  %v1254 = vadd.f32 %v216, %v1253
  %1255 = vmatmul.f32.gmra.mxu0 %v652
  %v1256 = vpop.f32.mrf.mxu0
  %v1257 = vadd.f32 %v216, %v1256
  %1258 = vmatmul.f32.gmra.mxu0 %v655
  %v1259 = vpop.f32.mrf.mxu0
  %v1260 = vadd.f32 %v216, %v1259
  %1261 = vmatmul.f32.gmra.mxu0 %v658
  %v1262 = vpop.f32.mrf.mxu0
  %v1263 = vadd.f32 %v216, %v1262
  %1264 = vmatmul.f32.gmra.mxu0 %v661
  %v1265 = vpop.f32.mrf.mxu0
  %v1266 = vadd.f32 %v216, %v1265
  %1267 = vmatmul.f32.gmra.mxu0 %v664
  %v1268 = vpop.f32.mrf.mxu0
  %v1269 = vadd.f32 %v216, %v1268
  %1270 = vmatmul.f32.gmra.mxu0 %v667
  %v1271 = vpop.f32.mrf.mxu0
  %v1272 = vadd.f32 %v216, %v1271
  %1273 = vmatmul.f32.gmra.mxu0 %v670
  %v1274 = vpop.f32.mrf.mxu0
  %v1275 = vadd.f32 %v216, %v1274
  %1276 = vmatmul.f32.gmra.mxu0 %v673
  %v1277 = vpop.f32.mrf.mxu0
  %v1278 = vadd.f32 %v216, %v1277
  %1279 = vmatmul.f32.gmra.mxu0 %v676
  %v1280 = vpop.f32.mrf.mxu0
  %v1281 = vadd.f32 %v216, %v1280
  %1282 = vmatmul.f32.gmra.mxu0 %v679
  %v1283 = vpop.f32.mrf.mxu0
  %v1284 = vadd.f32 %v216, %v1283
  %1285 = vmatmul.f32.gmra.mxu0 %v682
  %v1286 = vpop.f32.mrf.mxu0
  %v1287 = vadd.f32 %v216, %v1286
  %1288 = vmatmul.f32.gmra.mxu0 %v685
  %v1289 = vpop.f32.mrf.mxu0
  %v1290 = vadd.f32 %v216, %v1289
  %1291 = vmatmul.f32.gmra.mxu0 %v688
  %v1292 = vpop.f32.mrf.mxu0
  %v1293 = vadd.f32 %v216, %v1292
  %1294 = vmatmul.f32.gmra.mxu0 %v691
  %v1295 = vpop.f32.mrf.mxu0
  %v1296 = vadd.f32 %v216, %v1295
  %1297 = vmatmul.f32.gmra.mxu0 %v694
  %v1298 = vpop.f32.mrf.mxu0
  %v1299 = vadd.f32 %v216, %v1298
  %1300 = vmatmul.f32.gmra.mxu0 %v697
  %v1301 = vpop.f32.mrf.mxu0
  %v1302 = vadd.f32 %v216, %v1301
  %1303 = vmatmul.f32.gmra.mxu0 %v700
  %v1304 = vpop.f32.mrf.mxu0
  %v1305 = vadd.f32 %v216, %v1304
  %1306 = vmatmul.f32.gmra.mxu0 %v703
  %v1307 = vpop.f32.mrf.mxu0
  %v1308 = vadd.f32 %v216, %v1307
  %1309 = vmatmul.f32.gmra.mxu0 %v706
  %v1310 = vpop.f32.mrf.mxu0
  %v1311 = vadd.f32 %v216, %v1310
  %1312 = vmatmul.f32.gmra.mxu0 %v709
  %v1313 = vpop.f32.mrf.mxu0
  %v1314 = vadd.f32 %v216, %v1313
  %1315 = vmatmul.f32.gmra.mxu0 %v712
  %v1316 = vpop.f32.mrf.mxu0
  %v1317 = vadd.f32 %v216, %v1316
  %1318 = vmatmul.f32.gmra.mxu0 %v715
  %v1319 = vpop.f32.mrf.mxu0
  %v1320 = vadd.f32 %v216, %v1319
  %1321 = vmatmul.f32.gmra.mxu0 %v718
  %v1322 = vpop.f32.mrf.mxu0
  %v1323 = vadd.f32 %v216, %v1322
  %1324 = vmatmul.f32.gmra.mxu0 %v721
  %v1325 = vpop.f32.mrf.mxu0
  %v1326 = vadd.f32 %v216, %v1325
  %1327 = vmatmul.f32.gmra.mxu0 %v724
  %v1328 = vpop.f32.mrf.mxu0
  %v1329 = vadd.f32 %v216, %v1328
  %1330 = vmatmul.f32.gmra.mxu0 %v727
  %v1331 = vpop.f32.mrf.mxu0
  %v1332 = vadd.f32 %v216, %v1331
  %1333 = vmatmul.f32.gmra.mxu0 %v730
  %v1334 = vpop.f32.mrf.mxu0
  %v1335 = vadd.f32 %v216, %v1334
  %1336 = vmatmul.f32.gmra.mxu0 %v733
  %v1337 = vpop.f32.mrf.mxu0
  %v1338 = vadd.f32 %v216, %v1337
  %1339 = vmatmul.f32.gmra.mxu0 %v736
  %v1340 = vpop.f32.mrf.mxu0
  %v1341 = vadd.f32 %v216, %v1340
  %1342 = vmatmul.f32.gmra.mxu0 %v739
  %v1343 = vpop.f32.mrf.mxu0
  %v1344 = vadd.f32 %v216, %v1343
  %1345 = vmatmul.f32.gmra.mxu0 %v742
  %v1346 = vpop.f32.mrf.mxu0
  %v1347 = vadd.f32 %v216, %v1346
  %1348 = vmatmul.f32.gmra.mxu0 %v745
  %v1349 = vpop.f32.mrf.mxu0
  %v1350 = vadd.f32 %v216, %v1349
  %1351 = vmatmul.f32.gmra.mxu0 %v748
  %v1352 = vpop.f32.mrf.mxu0
  %v1353 = vadd.f32 %v216, %v1352
  %1354 = vmatmul.f32.gmra.mxu0 %v751
  %v1355 = vpop.f32.mrf.mxu0
  %v1356 = vadd.f32 %v216, %v1355
  %1357 = vmatmul.f32.gmra.mxu0 %v754
  %v1358 = vpop.f32.mrf.mxu0
  %v1359 = vadd.f32 %v216, %v1358
  %1360 = vmatmul.f32.gmra.mxu0 %v757
  %v1361 = vpop.f32.mrf.mxu0
  %v1362 = vadd.f32 %v216, %v1361
  %1363 = vmatmul.f32.gmra.mxu0 %v760
  %v1364 = vpop.f32.mrf.mxu0
  %v1365 = vadd.f32 %v216, %v1364
  %1366 = vmatmul.f32.gmra.mxu0 %v763
  %v1367 = vpop.f32.mrf.mxu0
  %v1368 = vadd.f32 %v216, %v1367
  %1369 = vmatmul.f32.gmra.mxu0 %v766
  %v1370 = vpop.f32.mrf.mxu0
  %v1371 = vadd.f32 %v216, %v1370
  %1372 = vmatmul.f32.gmra.mxu0 %v769
  %v1373 = vpop.f32.mrf.mxu0
  %v1374 = vadd.f32 %v216, %v1373
  %1375 = vmatmul.f32.gmra.mxu0 %v772
  %v1376 = vpop.f32.mrf.mxu0
  %v1377 = vadd.f32 %v216, %v1376
  %1378 = vmatmul.f32.gmra.mxu0 %v775
  %v1379 = vpop.f32.mrf.mxu0
  %v1380 = vadd.f32 %v216, %v1379
  %1381 = vmatmul.f32.gmra.mxu0 %v778
  %v1382 = vpop.f32.mrf.mxu0
  %v1383 = vadd.f32 %v216, %v1382
  %1384 = vmatmul.f32.gmra.mxu0 %v781
  %v1385 = vpop.f32.mrf.mxu0
  %v1386 = vadd.f32 %v216, %v1385
  %1387 = vmatmul.f32.gmra.mxu0 %v784
  %v1388 = vpop.f32.mrf.mxu0
  %v1389 = vadd.f32 %v216, %v1388
  %1390 = vmatmul.f32.gmra.mxu0 %v787
  %v1391 = vpop.f32.mrf.mxu0
  %v1392 = vadd.f32 %v216, %v1391
  %1393 = vmatmul.f32.gmra.mxu0 %v790
  %v1394 = vpop.f32.mrf.mxu0
  %v1395 = vadd.f32 %v216, %v1394
  %1396 = vmatmul.f32.gmra.mxu0 %v793
  %v1397 = vpop.f32.mrf.mxu0
  %v1398 = vadd.f32 %v216, %v1397
  %1399 = vmatmul.f32.gmra.mxu0 %v796
  %v1400 = vpop.f32.mrf.mxu0
  %v1401 = vadd.f32 %v216, %v1400
  %1402 = vmatmul.f32.gmra.mxu0 %v799
  %v1403 = vpop.f32.mrf.mxu0
  %v1404 = vadd.f32 %v216, %v1403
  %1405 = vmatmul.f32.gmra.mxu0 %v802
  %v1406 = vpop.f32.mrf.mxu0
  %v1407 = vadd.f32 %v216, %v1406
  %1408 = vmatmul.f32.gmra.mxu0 %v805
  %v1409 = vpop.f32.mrf.mxu0
  %v1410 = vadd.f32 %v216, %v1409
  %1411 = vdwg.mxu0
  %s1412 = scalar_lea.vmem %s0, 1568
  %v1413 = vld [vmem:[%s1412] sm:$0xff]
  %v1414 = vld [vmem:[%s1412 + $0x8] sm:$0xff]
  %v1415 = vld [vmem:[%s1412 + $0x10] sm:$0xff]
  %v1416 = vld [vmem:[%s1412 + $0x18] sm:$0xff]
  %v1417 = vld [vmem:[%s1412 + $0x20] sm:$0xff]
  %v1418 = vld [vmem:[%s1412 + $0x28] sm:$0xff]
  %v1419 = vld [vmem:[%s1412 + $0x30] sm:$0xff]
  %v1420 = vld [vmem:[%s1412 + $0x38] sm:$0xff]
  %v1421 = vld [vmem:[%s1412 + $0x40] sm:$0xff]
  %v1422 = vld [vmem:[%s1412 + $0x48] sm:$0xff]
  %v1423 = vld [vmem:[%s1412 + $0x50] sm:$0xff]
  %v1424 = vld [vmem:[%s1412 + $0x58] sm:$0xff]
  %v1425 = vld [vmem:[%s1412 + $0x60] sm:$0xff]
  %v1426 = vld [vmem:[%s1412 + $0x68] sm:$0xff]
  %v1427 = vld [vmem:[%s1412 + $0x70] sm:$0xff]
  %v1428 = vld [vmem:[%s1412 + $0x78] sm:$0xff]
  %v1429 = vld [vmem:[%s1412 + $0x80] sm:$0xff]
  %v1430 = vld [vmem:[%s1412 + $0x88] sm:$0xff]
  %v1431 = vld [vmem:[%s1412 + $0x90] sm:$0xff]
  %v1432 = vld [vmem:[%s1412 + $0x98] sm:$0xff]
  %v1433 = vld [vmem:[%s1412 + $0xa0] sm:$0xff]
  %v1434 = vld [vmem:[%s1412 + $0xa8] sm:$0xff]
  %v1435 = vld [vmem:[%s1412 + $0xb0] sm:$0xff]
  %v1436 = vld [vmem:[%s1412 + $0xb8] sm:$0xff]
  %v1437 = vld [vmem:[%s1412 + $0xc0] sm:$0xff]
  %v1438 = vld [vmem:[%s1412 + $0xc8] sm:$0xff]
  %v1439 = vld [vmem:[%s1412 + $0xd0] sm:$0xff]
  %v1440 = vld [vmem:[%s1412 + $0xd8] sm:$0xff]
  %v1441 = vld [vmem:[%s1412 + $0xe0] sm:$0xff]
  %v1442 = vld [vmem:[%s1412 + $0xe8] sm:$0xff]
  %v1443 = vld [vmem:[%s1412 + $0xf0] sm:$0xff]
  %v1444 = vld [vmem:[%s1412 + $0xf8] sm:$0xff]
  %v1445 = vld [vmem:[%s1412 + $0x100] sm:$0xff]
  %v1446 = vld [vmem:[%s1412 + $0x108] sm:$0xff]
  %v1447 = vld [vmem:[%s1412 + $0x110] sm:$0xff]
  %v1448 = vld [vmem:[%s1412 + $0x118] sm:$0xff]
  %v1449 = vld [vmem:[%s1412 + $0x120] sm:$0xff]
  %v1450 = vld [vmem:[%s1412 + $0x128] sm:$0xff]
  %v1451 = vld [vmem:[%s1412 + $0x130] sm:$0xff]
  %v1452 = vld [vmem:[%s1412 + $0x138] sm:$0xff]
  %v1453 = vld [vmem:[%s1412 + $0x140] sm:$0xff]
  %v1454 = vld [vmem:[%s1412 + $0x148] sm:$0xff]
  %v1455 = vld [vmem:[%s1412 + $0x150] sm:$0xff]
  %v1456 = vld [vmem:[%s1412 + $0x158] sm:$0xff]
  %v1457 = vld [vmem:[%s1412 + $0x160] sm:$0xff]
  %v1458 = vld [vmem:[%s1412 + $0x168] sm:$0xff]
  %v1459 = vld [vmem:[%s1412 + $0x170] sm:$0xff]
  %v1460 = vld [vmem:[%s1412 + $0x178] sm:$0xff]
  %v1461 = vld [vmem:[%s1412 + $0x180] sm:$0xff]
  %v1462 = vld [vmem:[%s1412 + $0x188] sm:$0xff]
  %v1463 = vld [vmem:[%s1412 + $0x190] sm:$0xff]
  %v1464 = vld [vmem:[%s1412 + $0x198] sm:$0xff]
  %v1465 = vld [vmem:[%s1412 + $0x1a0] sm:$0xff]
  %v1466 = vld [vmem:[%s1412 + $0x1a8] sm:$0xff]
  %v1467 = vld [vmem:[%s1412 + $0x1b0] sm:$0xff]
  %v1468 = vld [vmem:[%s1412 + $0x1b8] sm:$0xff]
  %v1469 = vld [vmem:[%s1412 + $0x1c0] sm:$0xff]
  %v1470 = vld [vmem:[%s1412 + $0x1c8] sm:$0xff]
  %v1471 = vld [vmem:[%s1412 + $0x1d0] sm:$0xff]
  %v1472 = vld [vmem:[%s1412 + $0x1d8] sm:$0xff]
  %v1473 = vld [vmem:[%s1412 + $0x1e0] sm:$0xff]
  %v1474 = vld [vmem:[%s1412 + $0x1e8] sm:$0xff]
  %v1475 = vld [vmem:[%s1412 + $0x1f0] sm:$0xff]
  %v1476 = vld [vmem:[%s1412 + $0x1f8] sm:$0xff]
  %v1477 = vld [vmem:[%s1412 + $0x200] sm:$0xff]
  %v1478 = vld [vmem:[%s1412 + $0x208] sm:$0xff]
  %v1479 = vld [vmem:[%s1412 + $0x210] sm:$0xff]
  %v1480 = vld [vmem:[%s1412 + $0x218] sm:$0xff]
  %v1481 = vld [vmem:[%s1412 + $0x220] sm:$0xff]
  %v1482 = vld [vmem:[%s1412 + $0x228] sm:$0xff]
  %v1483 = vld [vmem:[%s1412 + $0x230] sm:$0xff]
  %v1484 = vld [vmem:[%s1412 + $0x238] sm:$0xff]
  %v1485 = vld [vmem:[%s1412 + $0x240] sm:$0xff]
  %v1486 = vld [vmem:[%s1412 + $0x248] sm:$0xff]
  %v1487 = vld [vmem:[%s1412 + $0x250] sm:$0xff]
  %v1488 = vld [vmem:[%s1412 + $0x258] sm:$0xff]
  %v1489 = vld [vmem:[%s1412 + $0x260] sm:$0xff]
  %v1490 = vld [vmem:[%s1412 + $0x268] sm:$0xff]
  %v1491 = vld [vmem:[%s1412 + $0x270] sm:$0xff]
  %v1492 = vld [vmem:[%s1412 + $0x278] sm:$0xff]
  %v1493 = vld [vmem:[%s1412 + $0x280] sm:$0xff]
  %v1494 = vld [vmem:[%s1412 + $0x288] sm:$0xff]
  %v1495 = vld [vmem:[%s1412 + $0x290] sm:$0xff]
  %v1496 = vld [vmem:[%s1412 + $0x298] sm:$0xff]
  %v1497 = vld [vmem:[%s1412 + $0x2a0] sm:$0xff]
  %v1498 = vld [vmem:[%s1412 + $0x2a8] sm:$0xff]
  %v1499 = vld [vmem:[%s1412 + $0x2b0] sm:$0xff]
  %v1500 = vld [vmem:[%s1412 + $0x2b8] sm:$0xff]
  %v1501 = vld [vmem:[%s1412 + $0x2c0] sm:$0xff]
  %v1502 = vld [vmem:[%s1412 + $0x2c8] sm:$0xff]
  %v1503 = vld [vmem:[%s1412 + $0x2d0] sm:$0xff]
  %v1504 = vld [vmem:[%s1412 + $0x2d8] sm:$0xff]
  %v1505 = vld [vmem:[%s1412 + $0x2e0] sm:$0xff]
  %v1506 = vld [vmem:[%s1412 + $0x2e8] sm:$0xff]
  %v1507 = vld [vmem:[%s1412 + $0x2f0] sm:$0xff]
  %v1508 = vld [vmem:[%s1412 + $0x2f8] sm:$0xff]
  %v1509 = vld [vmem:[%s1412 + $0x300] sm:$0xff]
  %v1510 = vld [vmem:[%s1412 + $0x308] sm:$0xff]
  %v1511 = vld [vmem:[%s1412 + $0x310] sm:$0xff]
  %v1512 = vld [vmem:[%s1412 + $0x318] sm:$0xff]
  %v1513 = vld [vmem:[%s1412 + $0x320] sm:$0xff]
  %v1514 = vld [vmem:[%s1412 + $0x328] sm:$0xff]
  %v1515 = vld [vmem:[%s1412 + $0x330] sm:$0xff]
  %v1516 = vld [vmem:[%s1412 + $0x338] sm:$0xff]
  %v1517 = vld [vmem:[%s1412 + $0x340] sm:$0xff]
  %v1518 = vld [vmem:[%s1412 + $0x348] sm:$0xff]
  %v1519 = vld [vmem:[%s1412 + $0x350] sm:$0xff]
  %v1520 = vld [vmem:[%s1412 + $0x358] sm:$0xff]
  %v1521 = vld [vmem:[%s1412 + $0x360] sm:$0xff]
  %v1522 = vld [vmem:[%s1412 + $0x368] sm:$0xff]
  %v1523 = vld [vmem:[%s1412 + $0x370] sm:$0xff]
  %v1524 = vld [vmem:[%s1412 + $0x378] sm:$0xff]
  %v1525 = vld [vmem:[%s1412 + $0x380] sm:$0xff]
  %v1526 = vld [vmem:[%s1412 + $0x388] sm:$0xff]
  %v1527 = vld [vmem:[%s1412 + $0x390] sm:$0xff]
  %v1528 = vld [vmem:[%s1412 + $0x398] sm:$0xff]
  %v1529 = vld [vmem:[%s1412 + $0x3a0] sm:$0xff]
  %v1530 = vld [vmem:[%s1412 + $0x3a8] sm:$0xff]
  %v1531 = vld [vmem:[%s1412 + $0x3b0] sm:$0xff]
  %v1532 = vld [vmem:[%s1412 + $0x3b8] sm:$0xff]
  %v1533 = vld [vmem:[%s1412 + $0x3c0] sm:$0xff]
  %v1534 = vld [vmem:[%s1412 + $0x3c8] sm:$0xff]
  %v1535 = vld [vmem:[%s1412 + $0x3d0] sm:$0xff]
  %v1536 = vld [vmem:[%s1412 + $0x3d8] sm:$0xff]
  %v1537 = vld [vmem:[%s1412 + $0x3e0] sm:$0xff]
  %v1538 = vld [vmem:[%s1412 + $0x3e8] sm:$0xff]
  %v1539 = vld [vmem:[%s1412 + $0x3f0] sm:$0xff]
  %v1540 = vld [vmem:[%s1412 + $0x3f8] sm:$0xff]
  %v1541 = vld [vmem:[%s1412 + $0x400] sm:$0xff]
  %v1542 = vld [vmem:[%s1412 + $0x408] sm:$0xff]
  %v1543 = vld [vmem:[%s1412 + $0x410] sm:$0xff]
  %v1544 = vld [vmem:[%s1412 + $0x418] sm:$0xff]
  %v1545 = vld [vmem:[%s1412 + $0x420] sm:$0xff]
  %v1546 = vld [vmem:[%s1412 + $0x428] sm:$0xff]
  %v1547 = vld [vmem:[%s1412 + $0x430] sm:$0xff]
  %v1548 = vld [vmem:[%s1412 + $0x438] sm:$0xff]
  %v1549 = vld [vmem:[%s1412 + $0x440] sm:$0xff]
  %v1550 = vld [vmem:[%s1412 + $0x448] sm:$0xff]
  %v1551 = vld [vmem:[%s1412 + $0x450] sm:$0xff]
  %v1552 = vld [vmem:[%s1412 + $0x458] sm:$0xff]
  %v1553 = vld [vmem:[%s1412 + $0x460] sm:$0xff]
  %v1554 = vld [vmem:[%s1412 + $0x468] sm:$0xff]
  %v1555 = vld [vmem:[%s1412 + $0x470] sm:$0xff]
  %v1556 = vld [vmem:[%s1412 + $0x478] sm:$0xff]
  %v1557 = vld [vmem:[%s1412 + $0x480] sm:$0xff]
  %v1558 = vld [vmem:[%s1412 + $0x488] sm:$0xff]
  %v1559 = vld [vmem:[%s1412 + $0x490] sm:$0xff]
  %v1560 = vld [vmem:[%s1412 + $0x498] sm:$0xff]
  %v1561 = vld [vmem:[%s1412 + $0x4a0] sm:$0xff]
  %v1562 = vld [vmem:[%s1412 + $0x4a8] sm:$0xff]
  %v1563 = vld [vmem:[%s1412 + $0x4b0] sm:$0xff]
  %v1564 = vld [vmem:[%s1412 + $0x4b8] sm:$0xff]
  %v1565 = vld [vmem:[%s1412 + $0x4c0] sm:$0xff]
  %v1566 = vld [vmem:[%s1412 + $0x4c8] sm:$0xff]
  %v1567 = vld [vmem:[%s1412 + $0x4d0] sm:$0xff]
  %v1568 = vld [vmem:[%s1412 + $0x4d8] sm:$0xff]
  %v1569 = vld [vmem:[%s1412 + $0x4e0] sm:$0xff]
  %v1570 = vld [vmem:[%s1412 + $0x4e8] sm:$0xff]
  %v1571 = vld [vmem:[%s1412 + $0x4f0] sm:$0xff]
  %v1572 = vld [vmem:[%s1412 + $0x4f8] sm:$0xff]
  %v1573 = vld [vmem:[%s1412 + $0x500] sm:$0xff]
  %v1574 = vld [vmem:[%s1412 + $0x508] sm:$0xff]
  %v1575 = vld [vmem:[%s1412 + $0x510] sm:$0xff]
  %v1576 = vld [vmem:[%s1412 + $0x518] sm:$0xff]
  %v1577 = vld [vmem:[%s1412 + $0x520] sm:$0xff]
  %v1578 = vld [vmem:[%s1412 + $0x528] sm:$0xff]
  %v1579 = vld [vmem:[%s1412 + $0x530] sm:$0xff]
  %v1580 = vld [vmem:[%s1412 + $0x538] sm:$0xff]
  %v1581 = vld [vmem:[%s1412 + $0x540] sm:$0xff]
  %v1582 = vld [vmem:[%s1412 + $0x548] sm:$0xff]
  %v1583 = vld [vmem:[%s1412 + $0x550] sm:$0xff]
  %v1584 = vld [vmem:[%s1412 + $0x558] sm:$0xff]
  %v1585 = vld [vmem:[%s1412 + $0x560] sm:$0xff]
  %v1586 = vld [vmem:[%s1412 + $0x568] sm:$0xff]
  %v1587 = vld [vmem:[%s1412 + $0x570] sm:$0xff]
  %v1588 = vld [vmem:[%s1412 + $0x578] sm:$0xff]
  %v1589 = vld [vmem:[%s1412 + $0x580] sm:$0xff]
  %v1590 = vld [vmem:[%s1412 + $0x588] sm:$0xff]
  %v1591 = vld [vmem:[%s1412 + $0x590] sm:$0xff]
  %v1592 = vld [vmem:[%s1412 + $0x598] sm:$0xff]
  %v1593 = vld [vmem:[%s1412 + $0x5a0] sm:$0xff]
  %v1594 = vld [vmem:[%s1412 + $0x5a8] sm:$0xff]
  %v1595 = vld [vmem:[%s1412 + $0x5b0] sm:$0xff]
  %v1596 = vld [vmem:[%s1412 + $0x5b8] sm:$0xff]
  %v1597 = vld [vmem:[%s1412 + $0x5c0] sm:$0xff]
  %v1598 = vld [vmem:[%s1412 + $0x5c8] sm:$0xff]
  %v1599 = vld [vmem:[%s1412 + $0x5d0] sm:$0xff]
  %v1600 = vld [vmem:[%s1412 + $0x5d8] sm:$0xff]
  %v1601 = vld [vmem:[%s1412 + $0x5e0] sm:$0xff]
  %v1602 = vld [vmem:[%s1412 + $0x5e8] sm:$0xff]
  %v1603 = vld [vmem:[%s1412 + $0x5f0] sm:$0xff]
  %v1604 = vld [vmem:[%s1412 + $0x5f8] sm:$0xff]
  %v1605 = vld [vmem:[%s1412 + $0x600] sm:$0xff]
  %v1606 = vld [vmem:[%s1412 + $0x608] sm:$0xff]
  %v1607 = vld [vmem:[%s1412 + $0x610] sm:$0xff]
  %v1608 = vld [vmem:[%s1412 + $0x618] sm:$0xff]
  %v1610 = vsel %vm218, %v1413, 0
  %v1613 = vsel %vm218, %v1414, 0
  %v1616 = vsel %vm218, %v1415, 0
  %v1619 = vsel %vm218, %v1416, 0
  %v1622 = vsel %vm218, %v1417, 0
  %v1625 = vsel %vm218, %v1418, 0
  %v1628 = vsel %vm218, %v1419, 0
  %v1631 = vsel %vm218, %v1420, 0
  %v1634 = vsel %vm218, %v1421, 0
  %v1637 = vsel %vm218, %v1422, 0
  %v1640 = vsel %vm218, %v1423, 0
  %v1643 = vsel %vm218, %v1424, 0
  %v1646 = vsel %vm218, %v1425, 0
  %v1649 = vsel %vm218, %v1426, 0
  %v1652 = vsel %vm218, %v1427, 0
  %v1655 = vsel %vm218, %v1428, 0
  %v1658 = vsel %vm218, %v1429, 0
  %v1661 = vsel %vm218, %v1430, 0
  %v1664 = vsel %vm218, %v1431, 0
  %v1667 = vsel %vm218, %v1432, 0
  %v1670 = vsel %vm218, %v1433, 0
  %v1673 = vsel %vm218, %v1434, 0
  %v1676 = vsel %vm218, %v1435, 0
  %v1679 = vsel %vm218, %v1436, 0
  %v1682 = vsel %vm218, %v1437, 0
  %v1685 = vsel %vm218, %v1438, 0
  %v1688 = vsel %vm218, %v1439, 0
  %v1691 = vsel %vm218, %v1440, 0
  %v1694 = vsel %vm218, %v1441, 0
  %v1697 = vsel %vm218, %v1442, 0
  %v1700 = vsel %vm218, %v1443, 0
  %v1703 = vsel %vm218, %v1444, 0
  %v1706 = vsel %vm218, %v1445, 0
  %v1709 = vsel %vm218, %v1446, 0
  %v1712 = vsel %vm218, %v1447, 0
  %v1715 = vsel %vm218, %v1448, 0
  %v1718 = vsel %vm218, %v1449, 0
  %v1721 = vsel %vm218, %v1450, 0
  %v1724 = vsel %vm218, %v1451, 0
  %v1727 = vsel %vm218, %v1452, 0
  %v1730 = vsel %vm218, %v1453, 0
  %v1733 = vsel %vm218, %v1454, 0
  %v1736 = vsel %vm218, %v1455, 0
  %v1739 = vsel %vm218, %v1456, 0
  %v1742 = vsel %vm218, %v1457, 0
  %v1745 = vsel %vm218, %v1458, 0
  %v1748 = vsel %vm218, %v1459, 0
  %v1751 = vsel %vm218, %v1460, 0
  %v1754 = vsel %vm218, %v1461, 0
  %v1757 = vsel %vm218, %v1462, 0
  %v1760 = vsel %vm218, %v1463, 0
  %v1763 = vsel %vm218, %v1464, 0
  %v1766 = vsel %vm218, %v1465, 0
  %v1769 = vsel %vm218, %v1466, 0
  %v1772 = vsel %vm218, %v1467, 0
  %v1775 = vsel %vm218, %v1468, 0
  %v1778 = vsel %vm218, %v1469, 0
  %v1781 = vsel %vm218, %v1470, 0
  %v1784 = vsel %vm218, %v1471, 0
  %v1787 = vsel %vm218, %v1472, 0
  %v1790 = vsel %vm218, %v1473, 0
  %v1793 = vsel %vm218, %v1474, 0
  %v1796 = vsel %vm218, %v1475, 0
  %v1799 = vsel %vm218, %v1476, 0
  %v1802 = vsel %vm218, %v1477, 0
  %v1805 = vsel %vm218, %v1478, 0
  %v1808 = vsel %vm218, %v1479, 0
  %v1811 = vsel %vm218, %v1480, 0
  %v1814 = vsel %vm218, %v1481, 0
  %v1817 = vsel %vm218, %v1482, 0
  %v1820 = vsel %vm218, %v1483, 0
  %v1823 = vsel %vm218, %v1484, 0
  %v1826 = vsel %vm218, %v1485, 0
  %v1829 = vsel %vm218, %v1486, 0
  %v1832 = vsel %vm218, %v1487, 0
  %v1835 = vsel %vm218, %v1488, 0
  %v1838 = vsel %vm218, %v1489, 0
  %v1841 = vsel %vm218, %v1490, 0
  %v1844 = vsel %vm218, %v1491, 0
  %v1847 = vsel %vm218, %v1492, 0
  %v1850 = vsel %vm218, %v1493, 0
  %v1853 = vsel %vm218, %v1494, 0
  %v1856 = vsel %vm218, %v1495, 0
  %v1859 = vsel %vm218, %v1496, 0
  %v1862 = vsel %vm218, %v1497, 0
  %v1865 = vsel %vm218, %v1498, 0
  %v1868 = vsel %vm218, %v1499, 0
  %v1871 = vsel %vm218, %v1500, 0
  %v1874 = vsel %vm218, %v1501, 0
  %v1877 = vsel %vm218, %v1502, 0
  %v1880 = vsel %vm218, %v1503, 0
  %v1883 = vsel %vm218, %v1504, 0
  %v1886 = vsel %vm218, %v1505, 0
  %v1889 = vsel %vm218, %v1506, 0
  %v1892 = vsel %vm218, %v1507, 0
  %v1895 = vsel %vm218, %v1508, 0
  %v1898 = vsel %vm218, %v1509, 0
  %v1901 = vsel %vm218, %v1510, 0
  %v1904 = vsel %vm218, %v1511, 0
  %v1907 = vsel %vm218, %v1512, 0
  %v1910 = vsel %vm218, %v1513, 0
  %v1913 = vsel %vm218, %v1514, 0
  %v1916 = vsel %vm218, %v1515, 0
  %v1919 = vsel %vm218, %v1516, 0
  %v1922 = vsel %vm218, %v1517, 0
  %v1925 = vsel %vm218, %v1518, 0
  %v1928 = vsel %vm218, %v1519, 0
  %v1931 = vsel %vm218, %v1520, 0
  %v1934 = vsel %vm218, %v1521, 0
  %v1937 = vsel %vm218, %v1522, 0
  %v1940 = vsel %vm218, %v1523, 0
  %v1943 = vsel %vm218, %v1524, 0
  %v1946 = vsel %vm218, %v1525, 0
  %v1949 = vsel %vm218, %v1526, 0
  %v1952 = vsel %vm218, %v1527, 0
  %v1955 = vsel %vm218, %v1528, 0
  %v1958 = vsel %vm218, %v1529, 0
  %v1961 = vsel %vm218, %v1530, 0
  %v1964 = vsel %vm218, %v1531, 0
  %v1967 = vsel %vm218, %v1532, 0
  %v1970 = vsel %vm218, %v1533, 0
  %v1973 = vsel %vm218, %v1534, 0
  %v1976 = vsel %vm218, %v1535, 0
  %v1979 = vsel %vm218, %v1536, 0
  %v1982 = vsel %vm218, %v1537, 0
  %v1985 = vsel %vm218, %v1538, 0
  %v1988 = vsel %vm218, %v1539, 0
  %v1991 = vsel %vm218, %v1540, 0
  %v1994 = vsel %vm218, %v1541, 0
  %v1997 = vsel %vm218, %v1542, 0
  %v2000 = vsel %vm218, %v1543, 0
  %v2003 = vsel %vm218, %v1544, 0
  %v2006 = vsel %vm218, %v1545, 0
  %v2009 = vsel %vm218, %v1546, 0
  %v2012 = vsel %vm218, %v1547, 0
  %v2015 = vsel %vm218, %v1548, 0
  %v2018 = vsel %vm218, %v1549, 0
  %v2021 = vsel %vm218, %v1550, 0
  %v2024 = vsel %vm218, %v1551, 0
  %v2027 = vsel %vm218, %v1552, 0
  %v2030 = vsel %vm218, %v1553, 0
  %v2033 = vsel %vm218, %v1554, 0
  %v2036 = vsel %vm218, %v1555, 0
  %v2039 = vsel %vm218, %v1556, 0
  %v2042 = vsel %vm218, %v1557, 0
  %v2045 = vsel %vm218, %v1558, 0
  %v2048 = vsel %vm218, %v1559, 0
  %v2051 = vsel %vm218, %v1560, 0
  %v2054 = vsel %vm218, %v1561, 0
  %v2057 = vsel %vm218, %v1562, 0
  %v2060 = vsel %vm218, %v1563, 0
  %v2063 = vsel %vm218, %v1564, 0
  %v2066 = vsel %vm218, %v1565, 0
  %v2069 = vsel %vm218, %v1566, 0
  %v2072 = vsel %vm218, %v1567, 0
  %v2075 = vsel %vm218, %v1568, 0
  %v2078 = vsel %vm218, %v1569, 0
  %v2081 = vsel %vm218, %v1570, 0
  %v2084 = vsel %vm218, %v1571, 0
  %v2087 = vsel %vm218, %v1572, 0
  %v2090 = vsel %vm218, %v1573, 0
  %v2093 = vsel %vm218, %v1574, 0
  %v2096 = vsel %vm218, %v1575, 0
  %v2099 = vsel %vm218, %v1576, 0
  %v2102 = vsel %vm218, %v1577, 0
  %v2105 = vsel %vm218, %v1578, 0
  %v2108 = vsel %vm218, %v1579, 0
  %v2111 = vsel %vm218, %v1580, 0
  %v2114 = vsel %vm218, %v1581, 0
  %v2117 = vsel %vm218, %v1582, 0
  %v2120 = vsel %vm218, %v1583, 0
  %v2123 = vsel %vm218, %v1584, 0
  %v2126 = vsel %vm218, %v1585, 0
  %v2129 = vsel %vm218, %v1586, 0
  %v2132 = vsel %vm218, %v1587, 0
  %v2135 = vsel %vm218, %v1588, 0
  %v2138 = vsel %vm218, %v1589, 0
  %v2141 = vsel %vm218, %v1590, 0
  %v2144 = vsel %vm218, %v1591, 0
  %v2147 = vsel %vm218, %v1592, 0
  %v2150 = vsel %vm218, %v1593, 0
  %v2153 = vsel %vm218, %v1594, 0
  %v2156 = vsel %vm218, %v1595, 0
  %v2159 = vsel %vm218, %v1596, 0
  %v2162 = vsel %vm218, %v1597, 0
  %v2165 = vsel %vm218, %v1598, 0
  %v2168 = vsel %vm218, %v1599, 0
  %v2171 = vsel %vm218, %v1600, 0
  %v2174 = vsel %vm218, %v1601, 0
  %v2177 = vsel %vm218, %v1602, 0
  %v2180 = vsel %vm218, %v1603, 0
  %v2183 = vsel %vm218, %v1604, 0
  %v2186 = vsel %vm218, %v1605, 0
  %v2189 = vsel %vm218, %v1606, 0
  %v2192 = vsel %vm218, %v1607, 0
  %v2195 = vsel %vm218, %v1608, 0
  %2197 = vmatpush.msra.mxu0 0.0
  %2198 = vmatpush.msra.mxu0 0.0
  %2199 = vmatpush.msra.mxu0 0.0
  %2200 = vmatpush.msra.mxu0 0.0
  %2201 = vmatpush.msra.mxu0 0.0
  %2202 = vmatpush.msra.mxu0 0.0
  %2203 = vmatpush.msra.mxu0 0.0
  %2204 = vmatpush.msra.mxu0 0.0
  %2205 = vmatpush.msra.mxu0 0.0
  %2206 = vmatpush.msra.mxu0 0.0
  %2207 = vmatpush.msra.mxu0 0.0
  %2208 = vmatpush.msra.mxu0 0.0
  %2209 = vmatpush.msra.mxu0 %v17
  %2210 = vmatpush.msra.mxu0 %v16
  %2211 = vmatpush.msra.mxu0 %v15
  %2212 = vmatpush.msra.mxu0 %v14
  %2213 = vmatmul.f32.gmra.mxu0 %v1610
  %v2214 = vpop.f32.mrf.mxu0
  %v2215 = vadd.f32 %v216, %v2214
  %2216 = vmatmul.f32.gmra.mxu0 %v1613
  %v2217 = vpop.f32.mrf.mxu0
  %v2218 = vadd.f32 %v216, %v2217
  %2219 = vmatmul.f32.gmra.mxu0 %v1616
  %v2220 = vpop.f32.mrf.mxu0
  %v2221 = vadd.f32 %v216, %v2220
  %2222 = vmatmul.f32.gmra.mxu0 %v1619
  %v2223 = vpop.f32.mrf.mxu0
  %v2224 = vadd.f32 %v216, %v2223
  %2225 = vmatmul.f32.gmra.mxu0 %v1622
  %v2226 = vpop.f32.mrf.mxu0
  %v2227 = vadd.f32 %v216, %v2226
  %2228 = vmatmul.f32.gmra.mxu0 %v1625
  %v2229 = vpop.f32.mrf.mxu0
  %v2230 = vadd.f32 %v216, %v2229
  %2231 = vmatmul.f32.gmra.mxu0 %v1628
  %v2232 = vpop.f32.mrf.mxu0
  %v2233 = vadd.f32 %v216, %v2232
  %2234 = vmatmul.f32.gmra.mxu0 %v1631
  %v2235 = vpop.f32.mrf.mxu0
  %v2236 = vadd.f32 %v216, %v2235
  %2237 = vmatmul.f32.gmra.mxu0 %v1634
  %v2238 = vpop.f32.mrf.mxu0
  %v2239 = vadd.f32 %v216, %v2238
  %2240 = vmatmul.f32.gmra.mxu0 %v1637
  %v2241 = vpop.f32.mrf.mxu0
  %v2242 = vadd.f32 %v216, %v2241
  %2243 = vmatmul.f32.gmra.mxu0 %v1640
  %v2244 = vpop.f32.mrf.mxu0
  %v2245 = vadd.f32 %v216, %v2244
  %2246 = vmatmul.f32.gmra.mxu0 %v1643
  %v2247 = vpop.f32.mrf.mxu0
  %v2248 = vadd.f32 %v216, %v2247
  %2249 = vmatmul.f32.gmra.mxu0 %v1646
  %v2250 = vpop.f32.mrf.mxu0
  %v2251 = vadd.f32 %v216, %v2250
  %2252 = vmatmul.f32.gmra.mxu0 %v1649
  %v2253 = vpop.f32.mrf.mxu0
  %v2254 = vadd.f32 %v216, %v2253
  %2255 = vmatmul.f32.gmra.mxu0 %v1652
  %v2256 = vpop.f32.mrf.mxu0
  %v2257 = vadd.f32 %v216, %v2256
  %2258 = vmatmul.f32.gmra.mxu0 %v1655
  %v2259 = vpop.f32.mrf.mxu0
  %v2260 = vadd.f32 %v216, %v2259
  %2261 = vmatmul.f32.gmra.mxu0 %v1658
  %v2262 = vpop.f32.mrf.mxu0
  %v2263 = vadd.f32 %v216, %v2262
  %2264 = vmatmul.f32.gmra.mxu0 %v1661
  %v2265 = vpop.f32.mrf.mxu0
  %v2266 = vadd.f32 %v216, %v2265
  %2267 = vmatmul.f32.gmra.mxu0 %v1664
  %v2268 = vpop.f32.mrf.mxu0
  %v2269 = vadd.f32 %v216, %v2268
  %2270 = vmatmul.f32.gmra.mxu0 %v1667
  %v2271 = vpop.f32.mrf.mxu0
  %v2272 = vadd.f32 %v216, %v2271
  %2273 = vmatmul.f32.gmra.mxu0 %v1670
  %v2274 = vpop.f32.mrf.mxu0
  %v2275 = vadd.f32 %v216, %v2274
  %2276 = vmatmul.f32.gmra.mxu0 %v1673
  %v2277 = vpop.f32.mrf.mxu0
  %v2278 = vadd.f32 %v216, %v2277
  %2279 = vmatmul.f32.gmra.mxu0 %v1676
  %v2280 = vpop.f32.mrf.mxu0
  %v2281 = vadd.f32 %v216, %v2280
  %2282 = vmatmul.f32.gmra.mxu0 %v1679
  %v2283 = vpop.f32.mrf.mxu0
  %v2284 = vadd.f32 %v216, %v2283
  %2285 = vmatmul.f32.gmra.mxu0 %v1682
  %v2286 = vpop.f32.mrf.mxu0
  %v2287 = vadd.f32 %v216, %v2286
  %2288 = vmatmul.f32.gmra.mxu0 %v1685
  %v2289 = vpop.f32.mrf.mxu0
  %v2290 = vadd.f32 %v216, %v2289
  %2291 = vmatmul.f32.gmra.mxu0 %v1688
  %v2292 = vpop.f32.mrf.mxu0
  %v2293 = vadd.f32 %v216, %v2292
  %2294 = vmatmul.f32.gmra.mxu0 %v1691
  %v2295 = vpop.f32.mrf.mxu0
  %v2296 = vadd.f32 %v216, %v2295
  %2297 = vmatmul.f32.gmra.mxu0 %v1694
  %v2298 = vpop.f32.mrf.mxu0
  %v2299 = vadd.f32 %v216, %v2298
  %2300 = vmatmul.f32.gmra.mxu0 %v1697
  %v2301 = vpop.f32.mrf.mxu0
  %v2302 = vadd.f32 %v216, %v2301
  %2303 = vmatmul.f32.gmra.mxu0 %v1700
  %v2304 = vpop.f32.mrf.mxu0
  %v2305 = vadd.f32 %v216, %v2304
  %2306 = vmatmul.f32.gmra.mxu0 %v1703
  %v2307 = vpop.f32.mrf.mxu0
  %v2308 = vadd.f32 %v216, %v2307
  %2309 = vmatmul.f32.gmra.mxu0 %v1706
  %v2310 = vpop.f32.mrf.mxu0
  %v2311 = vadd.f32 %v216, %v2310
  %2312 = vmatmul.f32.gmra.mxu0 %v1709
  %v2313 = vpop.f32.mrf.mxu0
  %v2314 = vadd.f32 %v216, %v2313
  %2315 = vmatmul.f32.gmra.mxu0 %v1712
  %v2316 = vpop.f32.mrf.mxu0
  %v2317 = vadd.f32 %v216, %v2316
  %2318 = vmatmul.f32.gmra.mxu0 %v1715
  %v2319 = vpop.f32.mrf.mxu0
  %v2320 = vadd.f32 %v216, %v2319
  %2321 = vmatmul.f32.gmra.mxu0 %v1718
  %v2322 = vpop.f32.mrf.mxu0
  %v2323 = vadd.f32 %v216, %v2322
  %2324 = vmatmul.f32.gmra.mxu0 %v1721
  %v2325 = vpop.f32.mrf.mxu0
  %v2326 = vadd.f32 %v216, %v2325
  %2327 = vmatmul.f32.gmra.mxu0 %v1724
  %v2328 = vpop.f32.mrf.mxu0
  %v2329 = vadd.f32 %v216, %v2328
  %2330 = vmatmul.f32.gmra.mxu0 %v1727
  %v2331 = vpop.f32.mrf.mxu0
  %v2332 = vadd.f32 %v216, %v2331
  %2333 = vmatmul.f32.gmra.mxu0 %v1730
  %v2334 = vpop.f32.mrf.mxu0
  %v2335 = vadd.f32 %v216, %v2334
  %2336 = vmatmul.f32.gmra.mxu0 %v1733
  %v2337 = vpop.f32.mrf.mxu0
  %v2338 = vadd.f32 %v216, %v2337
  %2339 = vmatmul.f32.gmra.mxu0 %v1736
  %v2340 = vpop.f32.mrf.mxu0
  %v2341 = vadd.f32 %v216, %v2340
  %2342 = vmatmul.f32.gmra.mxu0 %v1739
  %v2343 = vpop.f32.mrf.mxu0
  %v2344 = vadd.f32 %v216, %v2343
  %2345 = vmatmul.f32.gmra.mxu0 %v1742
  %v2346 = vpop.f32.mrf.mxu0
  %v2347 = vadd.f32 %v216, %v2346
  %2348 = vmatmul.f32.gmra.mxu0 %v1745
  %v2349 = vpop.f32.mrf.mxu0
  %v2350 = vadd.f32 %v216, %v2349
  %2351 = vmatmul.f32.gmra.mxu0 %v1748
  %v2352 = vpop.f32.mrf.mxu0
  %v2353 = vadd.f32 %v216, %v2352
  %2354 = vmatmul.f32.gmra.mxu0 %v1751
  %v2355 = vpop.f32.mrf.mxu0
  %v2356 = vadd.f32 %v216, %v2355
  %2357 = vmatmul.f32.gmra.mxu0 %v1754
  %v2358 = vpop.f32.mrf.mxu0
  %v2359 = vadd.f32 %v216, %v2358
  %2360 = vmatmul.f32.gmra.mxu0 %v1757
  %v2361 = vpop.f32.mrf.mxu0
  %v2362 = vadd.f32 %v216, %v2361
  %2363 = vmatmul.f32.gmra.mxu0 %v1760
  %v2364 = vpop.f32.mrf.mxu0
  %v2365 = vadd.f32 %v216, %v2364
  %2366 = vmatmul.f32.gmra.mxu0 %v1763
  %v2367 = vpop.f32.mrf.mxu0
  %v2368 = vadd.f32 %v216, %v2367
  %2369 = vmatmul.f32.gmra.mxu0 %v1766
  %v2370 = vpop.f32.mrf.mxu0
  %v2371 = vadd.f32 %v216, %v2370
  %2372 = vmatmul.f32.gmra.mxu0 %v1769
  %v2373 = vpop.f32.mrf.mxu0
  %v2374 = vadd.f32 %v216, %v2373
  %2375 = vmatmul.f32.gmra.mxu0 %v1772
  %v2376 = vpop.f32.mrf.mxu0
  %v2377 = vadd.f32 %v216, %v2376
  %2378 = vmatmul.f32.gmra.mxu0 %v1775
  %v2379 = vpop.f32.mrf.mxu0
  %v2380 = vadd.f32 %v216, %v2379
  %2381 = vmatmul.f32.gmra.mxu0 %v1778
  %v2382 = vpop.f32.mrf.mxu0
  %v2383 = vadd.f32 %v216, %v2382
  %2384 = vmatmul.f32.gmra.mxu0 %v1781
  %v2385 = vpop.f32.mrf.mxu0
  %v2386 = vadd.f32 %v216, %v2385
  %2387 = vmatmul.f32.gmra.mxu0 %v1784
  %v2388 = vpop.f32.mrf.mxu0
  %v2389 = vadd.f32 %v216, %v2388
  %2390 = vmatmul.f32.gmra.mxu0 %v1787
  %v2391 = vpop.f32.mrf.mxu0
  %v2392 = vadd.f32 %v216, %v2391
  %2393 = vmatmul.f32.gmra.mxu0 %v1790
  %v2394 = vpop.f32.mrf.mxu0
  %v2395 = vadd.f32 %v216, %v2394
  %2396 = vmatmul.f32.gmra.mxu0 %v1793
  %v2397 = vpop.f32.mrf.mxu0
  %v2398 = vadd.f32 %v216, %v2397
  %2399 = vmatmul.f32.gmra.mxu0 %v1796
  %v2400 = vpop.f32.mrf.mxu0
  %v2401 = vadd.f32 %v216, %v2400
  %2402 = vmatmul.f32.gmra.mxu0 %v1799
  %v2403 = vpop.f32.mrf.mxu0
  %v2404 = vadd.f32 %v216, %v2403
  %2405 = vmatmul.f32.gmra.mxu0 %v1802
  %v2406 = vpop.f32.mrf.mxu0
  %v2407 = vadd.f32 %v216, %v2406
  %2408 = vmatmul.f32.gmra.mxu0 %v1805
  %v2409 = vpop.f32.mrf.mxu0
  %v2410 = vadd.f32 %v216, %v2409
  %2411 = vmatmul.f32.gmra.mxu0 %v1808
  %v2412 = vpop.f32.mrf.mxu0
  %v2413 = vadd.f32 %v216, %v2412
  %2414 = vmatmul.f32.gmra.mxu0 %v1811
  %v2415 = vpop.f32.mrf.mxu0
  %v2416 = vadd.f32 %v216, %v2415
  %2417 = vmatmul.f32.gmra.mxu0 %v1814
  %v2418 = vpop.f32.mrf.mxu0
  %v2419 = vadd.f32 %v216, %v2418
  %2420 = vmatmul.f32.gmra.mxu0 %v1817
  %v2421 = vpop.f32.mrf.mxu0
  %v2422 = vadd.f32 %v216, %v2421
  %2423 = vmatmul.f32.gmra.mxu0 %v1820
  %v2424 = vpop.f32.mrf.mxu0
  %v2425 = vadd.f32 %v216, %v2424
  %2426 = vmatmul.f32.gmra.mxu0 %v1823
  %v2427 = vpop.f32.mrf.mxu0
  %v2428 = vadd.f32 %v216, %v2427
  %2429 = vmatmul.f32.gmra.mxu0 %v1826
  %v2430 = vpop.f32.mrf.mxu0
  %v2431 = vadd.f32 %v216, %v2430
  %2432 = vmatmul.f32.gmra.mxu0 %v1829
  %v2433 = vpop.f32.mrf.mxu0
  %v2434 = vadd.f32 %v216, %v2433
  %2435 = vmatmul.f32.gmra.mxu0 %v1832
  %v2436 = vpop.f32.mrf.mxu0
  %v2437 = vadd.f32 %v216, %v2436
  %2438 = vmatmul.f32.gmra.mxu0 %v1835
  %v2439 = vpop.f32.mrf.mxu0
  %v2440 = vadd.f32 %v216, %v2439
  %2441 = vmatmul.f32.gmra.mxu0 %v1838
  %v2442 = vpop.f32.mrf.mxu0
  %v2443 = vadd.f32 %v216, %v2442
  %2444 = vmatmul.f32.gmra.mxu0 %v1841
  %v2445 = vpop.f32.mrf.mxu0
  %v2446 = vadd.f32 %v216, %v2445
  %2447 = vmatmul.f32.gmra.mxu0 %v1844
  %v2448 = vpop.f32.mrf.mxu0
  %v2449 = vadd.f32 %v216, %v2448
  %2450 = vmatmul.f32.gmra.mxu0 %v1847
  %v2451 = vpop.f32.mrf.mxu0
  %v2452 = vadd.f32 %v216, %v2451
  %2453 = vmatmul.f32.gmra.mxu0 %v1850
  %v2454 = vpop.f32.mrf.mxu0
  %v2455 = vadd.f32 %v216, %v2454
  %2456 = vmatmul.f32.gmra.mxu0 %v1853
  %v2457 = vpop.f32.mrf.mxu0
  %v2458 = vadd.f32 %v216, %v2457
  %2459 = vmatmul.f32.gmra.mxu0 %v1856
  %v2460 = vpop.f32.mrf.mxu0
  %v2461 = vadd.f32 %v216, %v2460
  %2462 = vmatmul.f32.gmra.mxu0 %v1859
  %v2463 = vpop.f32.mrf.mxu0
  %v2464 = vadd.f32 %v216, %v2463
  %2465 = vmatmul.f32.gmra.mxu0 %v1862
  %v2466 = vpop.f32.mrf.mxu0
  %v2467 = vadd.f32 %v216, %v2466
  %2468 = vmatmul.f32.gmra.mxu0 %v1865
  %v2469 = vpop.f32.mrf.mxu0
  %v2470 = vadd.f32 %v216, %v2469
  %2471 = vmatmul.f32.gmra.mxu0 %v1868
  %v2472 = vpop.f32.mrf.mxu0
  %v2473 = vadd.f32 %v216, %v2472
  %2474 = vmatmul.f32.gmra.mxu0 %v1871
  %v2475 = vpop.f32.mrf.mxu0
  %v2476 = vadd.f32 %v216, %v2475
  %2477 = vmatmul.f32.gmra.mxu0 %v1874
  %v2478 = vpop.f32.mrf.mxu0
  %v2479 = vadd.f32 %v216, %v2478
  %2480 = vmatmul.f32.gmra.mxu0 %v1877
  %v2481 = vpop.f32.mrf.mxu0
  %v2482 = vadd.f32 %v216, %v2481
  %2483 = vmatmul.f32.gmra.mxu0 %v1880
  %v2484 = vpop.f32.mrf.mxu0
  %v2485 = vadd.f32 %v216, %v2484
  %2486 = vmatmul.f32.gmra.mxu0 %v1883
  %v2487 = vpop.f32.mrf.mxu0
  %v2488 = vadd.f32 %v216, %v2487
  %2489 = vmatmul.f32.gmra.mxu0 %v1886
  %v2490 = vpop.f32.mrf.mxu0
  %v2491 = vadd.f32 %v216, %v2490
  %2492 = vmatmul.f32.gmra.mxu0 %v1889
  %v2493 = vpop.f32.mrf.mxu0
  %v2494 = vadd.f32 %v216, %v2493
  %2495 = vmatmul.f32.gmra.mxu0 %v1892
  %v2496 = vpop.f32.mrf.mxu0
  %v2497 = vadd.f32 %v216, %v2496
  %2498 = vmatmul.f32.gmra.mxu0 %v1895
  %v2499 = vpop.f32.mrf.mxu0
  %v2500 = vadd.f32 %v216, %v2499
  %2501 = vmatmul.f32.gmra.mxu0 %v1898
  %v2502 = vpop.f32.mrf.mxu0
  %v2503 = vadd.f32 %v216, %v2502
  %2504 = vmatmul.f32.gmra.mxu0 %v1901
  %v2505 = vpop.f32.mrf.mxu0
  %v2506 = vadd.f32 %v216, %v2505
  %2507 = vmatmul.f32.gmra.mxu0 %v1904
  %v2508 = vpop.f32.mrf.mxu0
  %v2509 = vadd.f32 %v216, %v2508
  %2510 = vmatmul.f32.gmra.mxu0 %v1907
  %v2511 = vpop.f32.mrf.mxu0
  %v2512 = vadd.f32 %v216, %v2511
  %2513 = vmatmul.f32.gmra.mxu0 %v1910
  %v2514 = vpop.f32.mrf.mxu0
  %v2515 = vadd.f32 %v216, %v2514
  %2516 = vmatmul.f32.gmra.mxu0 %v1913
  %v2517 = vpop.f32.mrf.mxu0
  %v2518 = vadd.f32 %v216, %v2517
  %2519 = vmatmul.f32.gmra.mxu0 %v1916
  %v2520 = vpop.f32.mrf.mxu0
  %v2521 = vadd.f32 %v216, %v2520
  %2522 = vmatmul.f32.gmra.mxu0 %v1919
  %v2523 = vpop.f32.mrf.mxu0
  %v2524 = vadd.f32 %v216, %v2523
  %2525 = vmatmul.f32.gmra.mxu0 %v1922
  %v2526 = vpop.f32.mrf.mxu0
  %v2527 = vadd.f32 %v216, %v2526
  %2528 = vmatmul.f32.gmra.mxu0 %v1925
  %v2529 = vpop.f32.mrf.mxu0
  %v2530 = vadd.f32 %v216, %v2529
  %2531 = vmatmul.f32.gmra.mxu0 %v1928
  %v2532 = vpop.f32.mrf.mxu0
  %v2533 = vadd.f32 %v216, %v2532
  %2534 = vmatmul.f32.gmra.mxu0 %v1931
  %v2535 = vpop.f32.mrf.mxu0
  %v2536 = vadd.f32 %v216, %v2535
  %2537 = vmatmul.f32.gmra.mxu0 %v1934
  %v2538 = vpop.f32.mrf.mxu0
  %v2539 = vadd.f32 %v216, %v2538
  %2540 = vmatmul.f32.gmra.mxu0 %v1937
  %v2541 = vpop.f32.mrf.mxu0
  %v2542 = vadd.f32 %v216, %v2541
  %2543 = vmatmul.f32.gmra.mxu0 %v1940
  %v2544 = vpop.f32.mrf.mxu0
  %v2545 = vadd.f32 %v216, %v2544
  %2546 = vmatmul.f32.gmra.mxu0 %v1943
  %v2547 = vpop.f32.mrf.mxu0
  %v2548 = vadd.f32 %v216, %v2547
  %2549 = vmatmul.f32.gmra.mxu0 %v1946
  %v2550 = vpop.f32.mrf.mxu0
  %v2551 = vadd.f32 %v216, %v2550
  %2552 = vmatmul.f32.gmra.mxu0 %v1949
  %v2553 = vpop.f32.mrf.mxu0
  %v2554 = vadd.f32 %v216, %v2553
  %2555 = vmatmul.f32.gmra.mxu0 %v1952
  %v2556 = vpop.f32.mrf.mxu0
  %v2557 = vadd.f32 %v216, %v2556
  %2558 = vmatmul.f32.gmra.mxu0 %v1955
  %v2559 = vpop.f32.mrf.mxu0
  %v2560 = vadd.f32 %v216, %v2559
  %2561 = vmatmul.f32.gmra.mxu0 %v1958
  %v2562 = vpop.f32.mrf.mxu0
  %v2563 = vadd.f32 %v216, %v2562
  %2564 = vmatmul.f32.gmra.mxu0 %v1961
  %v2565 = vpop.f32.mrf.mxu0
  %v2566 = vadd.f32 %v216, %v2565
  %2567 = vmatmul.f32.gmra.mxu0 %v1964
  %v2568 = vpop.f32.mrf.mxu0
  %v2569 = vadd.f32 %v216, %v2568
  %2570 = vmatmul.f32.gmra.mxu0 %v1967
  %v2571 = vpop.f32.mrf.mxu0
  %v2572 = vadd.f32 %v216, %v2571
  %2573 = vmatmul.f32.gmra.mxu0 %v1970
  %v2574 = vpop.f32.mrf.mxu0
  %v2575 = vadd.f32 %v216, %v2574
  %2576 = vmatmul.f32.gmra.mxu0 %v1973
  %v2577 = vpop.f32.mrf.mxu0
  %v2578 = vadd.f32 %v216, %v2577
  %2579 = vmatmul.f32.gmra.mxu0 %v1976
  %v2580 = vpop.f32.mrf.mxu0
  %v2581 = vadd.f32 %v216, %v2580
  %2582 = vmatmul.f32.gmra.mxu0 %v1979
  %v2583 = vpop.f32.mrf.mxu0
  %v2584 = vadd.f32 %v216, %v2583
  %2585 = vmatmul.f32.gmra.mxu0 %v1982
  %v2586 = vpop.f32.mrf.mxu0
  %v2587 = vadd.f32 %v216, %v2586
  %2588 = vmatmul.f32.gmra.mxu0 %v1985
  %v2589 = vpop.f32.mrf.mxu0
  %v2590 = vadd.f32 %v216, %v2589
  %2591 = vmatmul.f32.gmra.mxu0 %v1988
  %v2592 = vpop.f32.mrf.mxu0
  %v2593 = vadd.f32 %v216, %v2592
  %2594 = vmatmul.f32.gmra.mxu0 %v1991
  %v2595 = vpop.f32.mrf.mxu0
  %v2596 = vadd.f32 %v216, %v2595
  %2597 = vmatmul.f32.gmra.mxu0 %v1994
  %v2598 = vpop.f32.mrf.mxu0
  %v2599 = vadd.f32 %v216, %v2598
  %2600 = vmatmul.f32.gmra.mxu0 %v1997
  %v2601 = vpop.f32.mrf.mxu0
  %v2602 = vadd.f32 %v216, %v2601
  %2603 = vmatmul.f32.gmra.mxu0 %v2000
  %v2604 = vpop.f32.mrf.mxu0
  %v2605 = vadd.f32 %v216, %v2604
  %2606 = vmatmul.f32.gmra.mxu0 %v2003
  %v2607 = vpop.f32.mrf.mxu0
  %v2608 = vadd.f32 %v216, %v2607
  %2609 = vmatmul.f32.gmra.mxu0 %v2006
  %v2610 = vpop.f32.mrf.mxu0
  %v2611 = vadd.f32 %v216, %v2610
  %2612 = vmatmul.f32.gmra.mxu0 %v2009
  %v2613 = vpop.f32.mrf.mxu0
  %v2614 = vadd.f32 %v216, %v2613
  %2615 = vmatmul.f32.gmra.mxu0 %v2012
  %v2616 = vpop.f32.mrf.mxu0
  %v2617 = vadd.f32 %v216, %v2616
  %2618 = vmatmul.f32.gmra.mxu0 %v2015
  %v2619 = vpop.f32.mrf.mxu0
  %v2620 = vadd.f32 %v216, %v2619
  %2621 = vmatmul.f32.gmra.mxu0 %v2018
  %v2622 = vpop.f32.mrf.mxu0
  %v2623 = vadd.f32 %v216, %v2622
  %2624 = vmatmul.f32.gmra.mxu0 %v2021
  %v2625 = vpop.f32.mrf.mxu0
  %v2626 = vadd.f32 %v216, %v2625
  %2627 = vmatmul.f32.gmra.mxu0 %v2024
  %v2628 = vpop.f32.mrf.mxu0
  %v2629 = vadd.f32 %v216, %v2628
  %2630 = vmatmul.f32.gmra.mxu0 %v2027
  %v2631 = vpop.f32.mrf.mxu0
  %v2632 = vadd.f32 %v216, %v2631
  %2633 = vmatmul.f32.gmra.mxu0 %v2030
  %v2634 = vpop.f32.mrf.mxu0
  %v2635 = vadd.f32 %v216, %v2634
  %2636 = vmatmul.f32.gmra.mxu0 %v2033
  %v2637 = vpop.f32.mrf.mxu0
  %v2638 = vadd.f32 %v216, %v2637
  %2639 = vmatmul.f32.gmra.mxu0 %v2036
  %v2640 = vpop.f32.mrf.mxu0
  %v2641 = vadd.f32 %v216, %v2640
  %2642 = vmatmul.f32.gmra.mxu0 %v2039
  %v2643 = vpop.f32.mrf.mxu0
  %v2644 = vadd.f32 %v216, %v2643
  %2645 = vmatmul.f32.gmra.mxu0 %v2042
  %v2646 = vpop.f32.mrf.mxu0
  %v2647 = vadd.f32 %v216, %v2646
  %2648 = vmatmul.f32.gmra.mxu0 %v2045
  %v2649 = vpop.f32.mrf.mxu0
  %v2650 = vadd.f32 %v216, %v2649
  %2651 = vmatmul.f32.gmra.mxu0 %v2048
  %v2652 = vpop.f32.mrf.mxu0
  %v2653 = vadd.f32 %v216, %v2652
  %2654 = vmatmul.f32.gmra.mxu0 %v2051
  %v2655 = vpop.f32.mrf.mxu0
  %v2656 = vadd.f32 %v216, %v2655
  %2657 = vmatmul.f32.gmra.mxu0 %v2054
  %v2658 = vpop.f32.mrf.mxu0
  %v2659 = vadd.f32 %v216, %v2658
  %2660 = vmatmul.f32.gmra.mxu0 %v2057
  %v2661 = vpop.f32.mrf.mxu0
  %v2662 = vadd.f32 %v216, %v2661
  %2663 = vmatmul.f32.gmra.mxu0 %v2060
  %v2664 = vpop.f32.mrf.mxu0
  %v2665 = vadd.f32 %v216, %v2664
  %2666 = vmatmul.f32.gmra.mxu0 %v2063
  %v2667 = vpop.f32.mrf.mxu0
  %v2668 = vadd.f32 %v216, %v2667
  %2669 = vmatmul.f32.gmra.mxu0 %v2066
  %v2670 = vpop.f32.mrf.mxu0
  %v2671 = vadd.f32 %v216, %v2670
  %2672 = vmatmul.f32.gmra.mxu0 %v2069
  %v2673 = vpop.f32.mrf.mxu0
  %v2674 = vadd.f32 %v216, %v2673
  %2675 = vmatmul.f32.gmra.mxu0 %v2072
  %v2676 = vpop.f32.mrf.mxu0
  %v2677 = vadd.f32 %v216, %v2676
  %2678 = vmatmul.f32.gmra.mxu0 %v2075
  %v2679 = vpop.f32.mrf.mxu0
  %v2680 = vadd.f32 %v216, %v2679
  %2681 = vmatmul.f32.gmra.mxu0 %v2078
  %v2682 = vpop.f32.mrf.mxu0
  %v2683 = vadd.f32 %v216, %v2682
  %2684 = vmatmul.f32.gmra.mxu0 %v2081
  %v2685 = vpop.f32.mrf.mxu0
  %v2686 = vadd.f32 %v216, %v2685
  %2687 = vmatmul.f32.gmra.mxu0 %v2084
  %v2688 = vpop.f32.mrf.mxu0
  %v2689 = vadd.f32 %v216, %v2688
  %2690 = vmatmul.f32.gmra.mxu0 %v2087
  %v2691 = vpop.f32.mrf.mxu0
  %v2692 = vadd.f32 %v216, %v2691
  %2693 = vmatmul.f32.gmra.mxu0 %v2090
  %v2694 = vpop.f32.mrf.mxu0
  %v2695 = vadd.f32 %v216, %v2694
  %2696 = vmatmul.f32.gmra.mxu0 %v2093
  %v2697 = vpop.f32.mrf.mxu0
  %v2698 = vadd.f32 %v216, %v2697
  %2699 = vmatmul.f32.gmra.mxu0 %v2096
  %v2700 = vpop.f32.mrf.mxu0
  %v2701 = vadd.f32 %v216, %v2700
  %2702 = vmatmul.f32.gmra.mxu0 %v2099
  %v2703 = vpop.f32.mrf.mxu0
  %v2704 = vadd.f32 %v216, %v2703
  %2705 = vmatmul.f32.gmra.mxu0 %v2102
  %v2706 = vpop.f32.mrf.mxu0
  %v2707 = vadd.f32 %v216, %v2706
  %2708 = vmatmul.f32.gmra.mxu0 %v2105
  %v2709 = vpop.f32.mrf.mxu0
  %v2710 = vadd.f32 %v216, %v2709
  %2711 = vmatmul.f32.gmra.mxu0 %v2108
  %v2712 = vpop.f32.mrf.mxu0
  %v2713 = vadd.f32 %v216, %v2712
  %2714 = vmatmul.f32.gmra.mxu0 %v2111
  %v2715 = vpop.f32.mrf.mxu0
  %v2716 = vadd.f32 %v216, %v2715
  %2717 = vmatmul.f32.gmra.mxu0 %v2114
  %v2718 = vpop.f32.mrf.mxu0
  %v2719 = vadd.f32 %v216, %v2718
  %2720 = vmatmul.f32.gmra.mxu0 %v2117
  %v2721 = vpop.f32.mrf.mxu0
  %v2722 = vadd.f32 %v216, %v2721
  %2723 = vmatmul.f32.gmra.mxu0 %v2120
  %v2724 = vpop.f32.mrf.mxu0
  %v2725 = vadd.f32 %v216, %v2724
  %2726 = vmatmul.f32.gmra.mxu0 %v2123
  %v2727 = vpop.f32.mrf.mxu0
  %v2728 = vadd.f32 %v216, %v2727
  %2729 = vmatmul.f32.gmra.mxu0 %v2126
  %v2730 = vpop.f32.mrf.mxu0
  %v2731 = vadd.f32 %v216, %v2730
  %2732 = vmatmul.f32.gmra.mxu0 %v2129
  %v2733 = vpop.f32.mrf.mxu0
  %v2734 = vadd.f32 %v216, %v2733
  %2735 = vmatmul.f32.gmra.mxu0 %v2132
  %v2736 = vpop.f32.mrf.mxu0
  %v2737 = vadd.f32 %v216, %v2736
  %2738 = vmatmul.f32.gmra.mxu0 %v2135
  %v2739 = vpop.f32.mrf.mxu0
  %v2740 = vadd.f32 %v216, %v2739
  %2741 = vmatmul.f32.gmra.mxu0 %v2138
  %v2742 = vpop.f32.mrf.mxu0
  %v2743 = vadd.f32 %v216, %v2742
  %2744 = vmatmul.f32.gmra.mxu0 %v2141
  %v2745 = vpop.f32.mrf.mxu0
  %v2746 = vadd.f32 %v216, %v2745
  %2747 = vmatmul.f32.gmra.mxu0 %v2144
  %v2748 = vpop.f32.mrf.mxu0
  %v2749 = vadd.f32 %v216, %v2748
  %2750 = vmatmul.f32.gmra.mxu0 %v2147
  %v2751 = vpop.f32.mrf.mxu0
  %v2752 = vadd.f32 %v216, %v2751
  %2753 = vmatmul.f32.gmra.mxu0 %v2150
  %v2754 = vpop.f32.mrf.mxu0
  %v2755 = vadd.f32 %v216, %v2754
  %2756 = vmatmul.f32.gmra.mxu0 %v2153
  %v2757 = vpop.f32.mrf.mxu0
  %v2758 = vadd.f32 %v216, %v2757
  %2759 = vmatmul.f32.gmra.mxu0 %v2156
  %v2760 = vpop.f32.mrf.mxu0
  %v2761 = vadd.f32 %v216, %v2760
  %2762 = vmatmul.f32.gmra.mxu0 %v2159
  %v2763 = vpop.f32.mrf.mxu0
  %v2764 = vadd.f32 %v216, %v2763
  %2765 = vmatmul.f32.gmra.mxu0 %v2162
  %v2766 = vpop.f32.mrf.mxu0
  %v2767 = vadd.f32 %v216, %v2766
  %2768 = vmatmul.f32.gmra.mxu0 %v2165
  %v2769 = vpop.f32.mrf.mxu0
  %v2770 = vadd.f32 %v216, %v2769
  %2771 = vmatmul.f32.gmra.mxu0 %v2168
  %v2772 = vpop.f32.mrf.mxu0
  %v2773 = vadd.f32 %v216, %v2772
  %2774 = vmatmul.f32.gmra.mxu0 %v2171
  %v2775 = vpop.f32.mrf.mxu0
  %v2776 = vadd.f32 %v216, %v2775
  %2777 = vmatmul.f32.gmra.mxu0 %v2174
  %v2778 = vpop.f32.mrf.mxu0
  %v2779 = vadd.f32 %v216, %v2778
  %2780 = vmatmul.f32.gmra.mxu0 %v2177
  %v2781 = vpop.f32.mrf.mxu0
  %v2782 = vadd.f32 %v216, %v2781
  %2783 = vmatmul.f32.gmra.mxu0 %v2180
  %v2784 = vpop.f32.mrf.mxu0
  %v2785 = vadd.f32 %v216, %v2784
  %2786 = vmatmul.f32.gmra.mxu0 %v2183
  %v2787 = vpop.f32.mrf.mxu0
  %v2788 = vadd.f32 %v216, %v2787
  %2789 = vmatmul.f32.gmra.mxu0 %v2186
  %v2790 = vpop.f32.mrf.mxu0
  %v2791 = vadd.f32 %v216, %v2790
  %2792 = vmatmul.f32.gmra.mxu0 %v2189
  %v2793 = vpop.f32.mrf.mxu0
  %v2794 = vadd.f32 %v216, %v2793
  %2795 = vmatmul.f32.gmra.mxu0 %v2192
  %v2796 = vpop.f32.mrf.mxu0
  %v2797 = vadd.f32 %v216, %v2796
  %2798 = vmatmul.f32.gmra.mxu0 %v2195
  %v2799 = vpop.f32.mrf.mxu0
  %v2800 = vadd.f32 %v216, %v2799
  %2801 = vdwg.mxu0
  %v2802 = vmax.f32 %v825, %v2215
  %v2803 = vmax.f32 %v828, %v2218
  %v2804 = vmax.f32 %v831, %v2221
  %v2805 = vmax.f32 %v834, %v2224
  %v2806 = vmax.f32 %v837, %v2227
  %v2807 = vmax.f32 %v840, %v2230
  %v2808 = vmax.f32 %v843, %v2233
  %v2809 = vmax.f32 %v846, %v2236
  %v2810 = vmax.f32 %v849, %v2239
  %v2811 = vmax.f32 %v852, %v2242
  %v2812 = vmax.f32 %v855, %v2245
  %v2813 = vmax.f32 %v858, %v2248
  %v2814 = vmax.f32 %v861, %v2251
  %v2815 = vmax.f32 %v864, %v2254
  %v2816 = vmax.f32 %v867, %v2257
  %v2817 = vmax.f32 %v870, %v2260
  %v2818 = vmax.f32 %v873, %v2263
  %v2819 = vmax.f32 %v876, %v2266
  %v2820 = vmax.f32 %v879, %v2269
  %v2821 = vmax.f32 %v882, %v2272
  %v2822 = vmax.f32 %v885, %v2275
  %v2823 = vmax.f32 %v888, %v2278
  %v2824 = vmax.f32 %v891, %v2281
  %v2825 = vmax.f32 %v894, %v2284
  %v2826 = vmax.f32 %v897, %v2287
  %v2827 = vmax.f32 %v900, %v2290
  %v2828 = vmax.f32 %v903, %v2293
  %v2829 = vmax.f32 %v906, %v2296
  %v2830 = vmax.f32 %v909, %v2299
  %v2831 = vmax.f32 %v912, %v2302
  %v2832 = vmax.f32 %v915, %v2305
  %v2833 = vmax.f32 %v918, %v2308
  %v2834 = vmax.f32 %v921, %v2311
  %v2835 = vmax.f32 %v924, %v2314
  %v2836 = vmax.f32 %v927, %v2317
  %v2837 = vmax.f32 %v930, %v2320
  %v2838 = vmax.f32 %v933, %v2323
  %v2839 = vmax.f32 %v936, %v2326
  %v2840 = vmax.f32 %v939, %v2329
  %v2841 = vmax.f32 %v942, %v2332
  %v2842 = vmax.f32 %v945, %v2335
  %v2843 = vmax.f32 %v948, %v2338
  %v2844 = vmax.f32 %v951, %v2341
  %v2845 = vmax.f32 %v954, %v2344
  %v2846 = vmax.f32 %v957, %v2347
  %v2847 = vmax.f32 %v960, %v2350
  %v2848 = vmax.f32 %v963, %v2353
  %v2849 = vmax.f32 %v966, %v2356
  %v2850 = vmax.f32 %v969, %v2359
  %v2851 = vmax.f32 %v972, %v2362
  %v2852 = vmax.f32 %v975, %v2365
  %v2853 = vmax.f32 %v978, %v2368
  %v2854 = vmax.f32 %v981, %v2371
  %v2855 = vmax.f32 %v984, %v2374
  %v2856 = vmax.f32 %v987, %v2377
  %v2857 = vmax.f32 %v990, %v2380
  %v2858 = vmax.f32 %v993, %v2383
  %v2859 = vmax.f32 %v996, %v2386
  %v2860 = vmax.f32 %v999, %v2389
  %v2861 = vmax.f32 %v1002, %v2392
  %v2862 = vmax.f32 %v1005, %v2395
  %v2863 = vmax.f32 %v1008, %v2398
  %v2864 = vmax.f32 %v1011, %v2401
  %v2865 = vmax.f32 %v1014, %v2404
  %v2866 = vmax.f32 %v1017, %v2407
  %v2867 = vmax.f32 %v1020, %v2410
  %v2868 = vmax.f32 %v1023, %v2413
  %v2869 = vmax.f32 %v1026, %v2416
  %v2870 = vmax.f32 %v1029, %v2419
  %v2871 = vmax.f32 %v1032, %v2422
  %v2872 = vmax.f32 %v1035, %v2425
  %v2873 = vmax.f32 %v1038, %v2428
  %v2874 = vmax.f32 %v1041, %v2431
  %v2875 = vmax.f32 %v1044, %v2434
  %v2876 = vmax.f32 %v1047, %v2437
  %v2877 = vmax.f32 %v1050, %v2440
  %v2878 = vmax.f32 %v1053, %v2443
  %v2879 = vmax.f32 %v1056, %v2446
  %v2880 = vmax.f32 %v1059, %v2449
  %v2881 = vmax.f32 %v1062, %v2452
  %v2882 = vmax.f32 %v1065, %v2455
  %v2883 = vmax.f32 %v1068, %v2458
  %v2884 = vmax.f32 %v1071, %v2461
  %v2885 = vmax.f32 %v1074, %v2464
  %v2886 = vmax.f32 %v1077, %v2467
  %v2887 = vmax.f32 %v1080, %v2470
  %v2888 = vmax.f32 %v1083, %v2473
  %v2889 = vmax.f32 %v1086, %v2476
  %v2890 = vmax.f32 %v1089, %v2479
  %v2891 = vmax.f32 %v1092, %v2482
  %v2892 = vmax.f32 %v1095, %v2485
  %v2893 = vmax.f32 %v1098, %v2488
  %v2894 = vmax.f32 %v1101, %v2491
  %v2895 = vmax.f32 %v1104, %v2494
  %v2896 = vmax.f32 %v1107, %v2497
  %v2897 = vmax.f32 %v1110, %v2500
  %v2898 = vmax.f32 %v1113, %v2503
  %v2899 = vmax.f32 %v1116, %v2506
  %v2900 = vmax.f32 %v1119, %v2509
  %v2901 = vmax.f32 %v1122, %v2512
  %v2902 = vmax.f32 %v1125, %v2515
  %v2903 = vmax.f32 %v1128, %v2518
  %v2904 = vmax.f32 %v1131, %v2521
  %v2905 = vmax.f32 %v1134, %v2524
  %v2906 = vmax.f32 %v1137, %v2527
  %v2907 = vmax.f32 %v1140, %v2530
  %v2908 = vmax.f32 %v1143, %v2533
  %v2909 = vmax.f32 %v1146, %v2536
  %v2910 = vmax.f32 %v1149, %v2539
  %v2911 = vmax.f32 %v1152, %v2542
  %v2912 = vmax.f32 %v1155, %v2545
  %v2913 = vmax.f32 %v1158, %v2548
  %v2914 = vmax.f32 %v1161, %v2551
  %v2915 = vmax.f32 %v1164, %v2554
  %v2916 = vmax.f32 %v1167, %v2557
  %v2917 = vmax.f32 %v1170, %v2560
  %v2918 = vmax.f32 %v1173, %v2563
  %v2919 = vmax.f32 %v1176, %v2566
  %v2920 = vmax.f32 %v1179, %v2569
  %v2921 = vmax.f32 %v1182, %v2572
  %v2922 = vmax.f32 %v1185, %v2575
  %v2923 = vmax.f32 %v1188, %v2578
  %v2924 = vmax.f32 %v1191, %v2581
  %v2925 = vmax.f32 %v1194, %v2584
  %v2926 = vmax.f32 %v1197, %v2587
  %v2927 = vmax.f32 %v1200, %v2590
  %v2928 = vmax.f32 %v1203, %v2593
  %v2929 = vmax.f32 %v1206, %v2596
  %v2930 = vmax.f32 %v1209, %v2599
  %v2931 = vmax.f32 %v1212, %v2602
  %v2932 = vmax.f32 %v1215, %v2605
  %v2933 = vmax.f32 %v1218, %v2608
  %v2934 = vmax.f32 %v1221, %v2611
  %v2935 = vmax.f32 %v1224, %v2614
  %v2936 = vmax.f32 %v1227, %v2617
  %v2937 = vmax.f32 %v1230, %v2620
  %v2938 = vmax.f32 %v1233, %v2623
  %v2939 = vmax.f32 %v1236, %v2626
  %v2940 = vmax.f32 %v1239, %v2629
  %v2941 = vmax.f32 %v1242, %v2632
  %v2942 = vmax.f32 %v1245, %v2635
  %v2943 = vmax.f32 %v1248, %v2638
  %v2944 = vmax.f32 %v1251, %v2641
  %v2945 = vmax.f32 %v1254, %v2644
  %v2946 = vmax.f32 %v1257, %v2647
  %v2947 = vmax.f32 %v1260, %v2650
  %v2948 = vmax.f32 %v1263, %v2653
  %v2949 = vmax.f32 %v1266, %v2656
  %v2950 = vmax.f32 %v1269, %v2659
  %v2951 = vmax.f32 %v1272, %v2662
  %v2952 = vmax.f32 %v1275, %v2665
  %v2953 = vmax.f32 %v1278, %v2668
  %v2954 = vmax.f32 %v1281, %v2671
  %v2955 = vmax.f32 %v1284, %v2674
  %v2956 = vmax.f32 %v1287, %v2677
  %v2957 = vmax.f32 %v1290, %v2680
  %v2958 = vmax.f32 %v1293, %v2683
  %v2959 = vmax.f32 %v1296, %v2686
  %v2960 = vmax.f32 %v1299, %v2689
  %v2961 = vmax.f32 %v1302, %v2692
  %v2962 = vmax.f32 %v1305, %v2695
  %v2963 = vmax.f32 %v1308, %v2698
  %v2964 = vmax.f32 %v1311, %v2701
  %v2965 = vmax.f32 %v1314, %v2704
  %v2966 = vmax.f32 %v1317, %v2707
  %v2967 = vmax.f32 %v1320, %v2710
  %v2968 = vmax.f32 %v1323, %v2713
  %v2969 = vmax.f32 %v1326, %v2716
  %v2970 = vmax.f32 %v1329, %v2719
  %v2971 = vmax.f32 %v1332, %v2722
  %v2972 = vmax.f32 %v1335, %v2725
  %v2973 = vmax.f32 %v1338, %v2728
  %v2974 = vmax.f32 %v1341, %v2731
  %v2975 = vmax.f32 %v1344, %v2734
  %v2976 = vmax.f32 %v1347, %v2737
  %v2977 = vmax.f32 %v1350, %v2740
  %v2978 = vmax.f32 %v1353, %v2743
  %v2979 = vmax.f32 %v1356, %v2746
  %v2980 = vmax.f32 %v1359, %v2749
  %v2981 = vmax.f32 %v1362, %v2752
  %v2982 = vmax.f32 %v1365, %v2755
  %v2983 = vmax.f32 %v1368, %v2758
  %v2984 = vmax.f32 %v1371, %v2761
  %v2985 = vmax.f32 %v1374, %v2764
  %v2986 = vmax.f32 %v1377, %v2767
  %v2987 = vmax.f32 %v1380, %v2770
  %v2988 = vmax.f32 %v1383, %v2773
  %v2989 = vmax.f32 %v1386, %v2776
  %v2990 = vmax.f32 %v1389, %v2779
  %v2991 = vmax.f32 %v1392, %v2782
  %v2992 = vmax.f32 %v1395, %v2785
  %v2993 = vmax.f32 %v1398, %v2788
  %v2994 = vmax.f32 %v1401, %v2791
  %v2995 = vmax.f32 %v1404, %v2794
  %v2996 = vmax.f32 %v1407, %v2797
  %v2997 = vmax.f32 %v1410, %v2800
  %s2998 = scalar_lea.vmem %s0, 3136
  %v2999 = vld [vmem:[%s2998] sm:$0xff]
  %v3000 = vld [vmem:[%s2998 + $0x8] sm:$0xff]
  %v3001 = vld [vmem:[%s2998 + $0x10] sm:$0xff]
  %v3002 = vld [vmem:[%s2998 + $0x18] sm:$0xff]
  %v3003 = vld [vmem:[%s2998 + $0x20] sm:$0xff]
  %v3004 = vld [vmem:[%s2998 + $0x28] sm:$0xff]
  %v3005 = vld [vmem:[%s2998 + $0x30] sm:$0xff]
  %v3006 = vld [vmem:[%s2998 + $0x38] sm:$0xff]
  %v3007 = vld [vmem:[%s2998 + $0x40] sm:$0xff]
  %v3008 = vld [vmem:[%s2998 + $0x48] sm:$0xff]
  %v3009 = vld [vmem:[%s2998 + $0x50] sm:$0xff]
  %v3010 = vld [vmem:[%s2998 + $0x58] sm:$0xff]
  %v3011 = vld [vmem:[%s2998 + $0x60] sm:$0xff]
  %v3012 = vld [vmem:[%s2998 + $0x68] sm:$0xff]
  %v3013 = vld [vmem:[%s2998 + $0x70] sm:$0xff]
  %v3014 = vld [vmem:[%s2998 + $0x78] sm:$0xff]
  %v3015 = vld [vmem:[%s2998 + $0x80] sm:$0xff]
  %v3016 = vld [vmem:[%s2998 + $0x88] sm:$0xff]
  %v3017 = vld [vmem:[%s2998 + $0x90] sm:$0xff]
  %v3018 = vld [vmem:[%s2998 + $0x98] sm:$0xff]
  %v3019 = vld [vmem:[%s2998 + $0xa0] sm:$0xff]
  %v3020 = vld [vmem:[%s2998 + $0xa8] sm:$0xff]
  %v3021 = vld [vmem:[%s2998 + $0xb0] sm:$0xff]
  %v3022 = vld [vmem:[%s2998 + $0xb8] sm:$0xff]
  %v3023 = vld [vmem:[%s2998 + $0xc0] sm:$0xff]
  %v3024 = vld [vmem:[%s2998 + $0xc8] sm:$0xff]
  %v3025 = vld [vmem:[%s2998 + $0xd0] sm:$0xff]
  %v3026 = vld [vmem:[%s2998 + $0xd8] sm:$0xff]
  %v3027 = vld [vmem:[%s2998 + $0xe0] sm:$0xff]
  %v3028 = vld [vmem:[%s2998 + $0xe8] sm:$0xff]
  %v3029 = vld [vmem:[%s2998 + $0xf0] sm:$0xff]
  %v3030 = vld [vmem:[%s2998 + $0xf8] sm:$0xff]
  %v3031 = vld [vmem:[%s2998 + $0x100] sm:$0xff]
  %v3032 = vld [vmem:[%s2998 + $0x108] sm:$0xff]
  %v3033 = vld [vmem:[%s2998 + $0x110] sm:$0xff]
  %v3034 = vld [vmem:[%s2998 + $0x118] sm:$0xff]
  %v3035 = vld [vmem:[%s2998 + $0x120] sm:$0xff]
  %v3036 = vld [vmem:[%s2998 + $0x128] sm:$0xff]
  %v3037 = vld [vmem:[%s2998 + $0x130] sm:$0xff]
  %v3038 = vld [vmem:[%s2998 + $0x138] sm:$0xff]
  %v3039 = vld [vmem:[%s2998 + $0x140] sm:$0xff]
  %v3040 = vld [vmem:[%s2998 + $0x148] sm:$0xff]
  %v3041 = vld [vmem:[%s2998 + $0x150] sm:$0xff]
  %v3042 = vld [vmem:[%s2998 + $0x158] sm:$0xff]
  %v3043 = vld [vmem:[%s2998 + $0x160] sm:$0xff]
  %v3044 = vld [vmem:[%s2998 + $0x168] sm:$0xff]
  %v3045 = vld [vmem:[%s2998 + $0x170] sm:$0xff]
  %v3046 = vld [vmem:[%s2998 + $0x178] sm:$0xff]
  %v3047 = vld [vmem:[%s2998 + $0x180] sm:$0xff]
  %v3048 = vld [vmem:[%s2998 + $0x188] sm:$0xff]
  %v3049 = vld [vmem:[%s2998 + $0x190] sm:$0xff]
  %v3050 = vld [vmem:[%s2998 + $0x198] sm:$0xff]
  %v3051 = vld [vmem:[%s2998 + $0x1a0] sm:$0xff]
  %v3052 = vld [vmem:[%s2998 + $0x1a8] sm:$0xff]
  %v3053 = vld [vmem:[%s2998 + $0x1b0] sm:$0xff]
  %v3054 = vld [vmem:[%s2998 + $0x1b8] sm:$0xff]
  %v3055 = vld [vmem:[%s2998 + $0x1c0] sm:$0xff]
  %v3056 = vld [vmem:[%s2998 + $0x1c8] sm:$0xff]
  %v3057 = vld [vmem:[%s2998 + $0x1d0] sm:$0xff]
  %v3058 = vld [vmem:[%s2998 + $0x1d8] sm:$0xff]
  %v3059 = vld [vmem:[%s2998 + $0x1e0] sm:$0xff]
  %v3060 = vld [vmem:[%s2998 + $0x1e8] sm:$0xff]
  %v3061 = vld [vmem:[%s2998 + $0x1f0] sm:$0xff]
  %v3062 = vld [vmem:[%s2998 + $0x1f8] sm:$0xff]
  %v3063 = vld [vmem:[%s2998 + $0x200] sm:$0xff]
  %v3064 = vld [vmem:[%s2998 + $0x208] sm:$0xff]
  %v3065 = vld [vmem:[%s2998 + $0x210] sm:$0xff]
  %v3066 = vld [vmem:[%s2998 + $0x218] sm:$0xff]
  %v3067 = vld [vmem:[%s2998 + $0x220] sm:$0xff]
  %v3068 = vld [vmem:[%s2998 + $0x228] sm:$0xff]
  %v3069 = vld [vmem:[%s2998 + $0x230] sm:$0xff]
  %v3070 = vld [vmem:[%s2998 + $0x238] sm:$0xff]
  %v3071 = vld [vmem:[%s2998 + $0x240] sm:$0xff]
  %v3072 = vld [vmem:[%s2998 + $0x248] sm:$0xff]
  %v3073 = vld [vmem:[%s2998 + $0x250] sm:$0xff]
  %v3074 = vld [vmem:[%s2998 + $0x258] sm:$0xff]
  %v3075 = vld [vmem:[%s2998 + $0x260] sm:$0xff]
  %v3076 = vld [vmem:[%s2998 + $0x268] sm:$0xff]
  %v3077 = vld [vmem:[%s2998 + $0x270] sm:$0xff]
  %v3078 = vld [vmem:[%s2998 + $0x278] sm:$0xff]
  %v3079 = vld [vmem:[%s2998 + $0x280] sm:$0xff]
  %v3080 = vld [vmem:[%s2998 + $0x288] sm:$0xff]
  %v3081 = vld [vmem:[%s2998 + $0x290] sm:$0xff]
  %v3082 = vld [vmem:[%s2998 + $0x298] sm:$0xff]
  %v3083 = vld [vmem:[%s2998 + $0x2a0] sm:$0xff]
  %v3084 = vld [vmem:[%s2998 + $0x2a8] sm:$0xff]
  %v3085 = vld [vmem:[%s2998 + $0x2b0] sm:$0xff]
  %v3086 = vld [vmem:[%s2998 + $0x2b8] sm:$0xff]
  %v3087 = vld [vmem:[%s2998 + $0x2c0] sm:$0xff]
  %v3088 = vld [vmem:[%s2998 + $0x2c8] sm:$0xff]
  %v3089 = vld [vmem:[%s2998 + $0x2d0] sm:$0xff]
  %v3090 = vld [vmem:[%s2998 + $0x2d8] sm:$0xff]
  %v3091 = vld [vmem:[%s2998 + $0x2e0] sm:$0xff]
  %v3092 = vld [vmem:[%s2998 + $0x2e8] sm:$0xff]
  %v3093 = vld [vmem:[%s2998 + $0x2f0] sm:$0xff]
  %v3094 = vld [vmem:[%s2998 + $0x2f8] sm:$0xff]
  %v3095 = vld [vmem:[%s2998 + $0x300] sm:$0xff]
  %v3096 = vld [vmem:[%s2998 + $0x308] sm:$0xff]
  %v3097 = vld [vmem:[%s2998 + $0x310] sm:$0xff]
  %v3098 = vld [vmem:[%s2998 + $0x318] sm:$0xff]
  %v3099 = vld [vmem:[%s2998 + $0x320] sm:$0xff]
  %v3100 = vld [vmem:[%s2998 + $0x328] sm:$0xff]
  %v3101 = vld [vmem:[%s2998 + $0x330] sm:$0xff]
  %v3102 = vld [vmem:[%s2998 + $0x338] sm:$0xff]
  %v3103 = vld [vmem:[%s2998 + $0x340] sm:$0xff]
  %v3104 = vld [vmem:[%s2998 + $0x348] sm:$0xff]
  %v3105 = vld [vmem:[%s2998 + $0x350] sm:$0xff]
  %v3106 = vld [vmem:[%s2998 + $0x358] sm:$0xff]
  %v3107 = vld [vmem:[%s2998 + $0x360] sm:$0xff]
  %v3108 = vld [vmem:[%s2998 + $0x368] sm:$0xff]
  %v3109 = vld [vmem:[%s2998 + $0x370] sm:$0xff]
  %v3110 = vld [vmem:[%s2998 + $0x378] sm:$0xff]
  %v3111 = vld [vmem:[%s2998 + $0x380] sm:$0xff]
  %v3112 = vld [vmem:[%s2998 + $0x388] sm:$0xff]
  %v3113 = vld [vmem:[%s2998 + $0x390] sm:$0xff]
  %v3114 = vld [vmem:[%s2998 + $0x398] sm:$0xff]
  %v3115 = vld [vmem:[%s2998 + $0x3a0] sm:$0xff]
  %v3116 = vld [vmem:[%s2998 + $0x3a8] sm:$0xff]
  %v3117 = vld [vmem:[%s2998 + $0x3b0] sm:$0xff]
  %v3118 = vld [vmem:[%s2998 + $0x3b8] sm:$0xff]
  %v3119 = vld [vmem:[%s2998 + $0x3c0] sm:$0xff]
  %v3120 = vld [vmem:[%s2998 + $0x3c8] sm:$0xff]
  %v3121 = vld [vmem:[%s2998 + $0x3d0] sm:$0xff]
  %v3122 = vld [vmem:[%s2998 + $0x3d8] sm:$0xff]
  %v3123 = vld [vmem:[%s2998 + $0x3e0] sm:$0xff]
  %v3124 = vld [vmem:[%s2998 + $0x3e8] sm:$0xff]
  %v3125 = vld [vmem:[%s2998 + $0x3f0] sm:$0xff]
  %v3126 = vld [vmem:[%s2998 + $0x3f8] sm:$0xff]
  %v3127 = vld [vmem:[%s2998 + $0x400] sm:$0xff]
  %v3128 = vld [vmem:[%s2998 + $0x408] sm:$0xff]
  %v3129 = vld [vmem:[%s2998 + $0x410] sm:$0xff]
  %v3130 = vld [vmem:[%s2998 + $0x418] sm:$0xff]
  %v3131 = vld [vmem:[%s2998 + $0x420] sm:$0xff]
  %v3132 = vld [vmem:[%s2998 + $0x428] sm:$0xff]
  %v3133 = vld [vmem:[%s2998 + $0x430] sm:$0xff]
  %v3134 = vld [vmem:[%s2998 + $0x438] sm:$0xff]
  %v3135 = vld [vmem:[%s2998 + $0x440] sm:$0xff]
  %v3136 = vld [vmem:[%s2998 + $0x448] sm:$0xff]
  %v3137 = vld [vmem:[%s2998 + $0x450] sm:$0xff]
  %v3138 = vld [vmem:[%s2998 + $0x458] sm:$0xff]
  %v3139 = vld [vmem:[%s2998 + $0x460] sm:$0xff]
  %v3140 = vld [vmem:[%s2998 + $0x468] sm:$0xff]
  %v3141 = vld [vmem:[%s2998 + $0x470] sm:$0xff]
  %v3142 = vld [vmem:[%s2998 + $0x478] sm:$0xff]
  %v3143 = vld [vmem:[%s2998 + $0x480] sm:$0xff]
  %v3144 = vld [vmem:[%s2998 + $0x488] sm:$0xff]
  %v3145 = vld [vmem:[%s2998 + $0x490] sm:$0xff]
  %v3146 = vld [vmem:[%s2998 + $0x498] sm:$0xff]
  %v3147 = vld [vmem:[%s2998 + $0x4a0] sm:$0xff]
  %v3148 = vld [vmem:[%s2998 + $0x4a8] sm:$0xff]
  %v3149 = vld [vmem:[%s2998 + $0x4b0] sm:$0xff]
  %v3150 = vld [vmem:[%s2998 + $0x4b8] sm:$0xff]
  %v3151 = vld [vmem:[%s2998 + $0x4c0] sm:$0xff]
  %v3152 = vld [vmem:[%s2998 + $0x4c8] sm:$0xff]
  %v3153 = vld [vmem:[%s2998 + $0x4d0] sm:$0xff]
  %v3154 = vld [vmem:[%s2998 + $0x4d8] sm:$0xff]
  %v3155 = vld [vmem:[%s2998 + $0x4e0] sm:$0xff]
  %v3156 = vld [vmem:[%s2998 + $0x4e8] sm:$0xff]
  %v3157 = vld [vmem:[%s2998 + $0x4f0] sm:$0xff]
  %v3158 = vld [vmem:[%s2998 + $0x4f8] sm:$0xff]
  %v3159 = vld [vmem:[%s2998 + $0x500] sm:$0xff]
  %v3160 = vld [vmem:[%s2998 + $0x508] sm:$0xff]
  %v3161 = vld [vmem:[%s2998 + $0x510] sm:$0xff]
  %v3162 = vld [vmem:[%s2998 + $0x518] sm:$0xff]
  %v3163 = vld [vmem:[%s2998 + $0x520] sm:$0xff]
  %v3164 = vld [vmem:[%s2998 + $0x528] sm:$0xff]
  %v3165 = vld [vmem:[%s2998 + $0x530] sm:$0xff]
  %v3166 = vld [vmem:[%s2998 + $0x538] sm:$0xff]
  %v3167 = vld [vmem:[%s2998 + $0x540] sm:$0xff]
  %v3168 = vld [vmem:[%s2998 + $0x548] sm:$0xff]
  %v3169 = vld [vmem:[%s2998 + $0x550] sm:$0xff]
  %v3170 = vld [vmem:[%s2998 + $0x558] sm:$0xff]
  %v3171 = vld [vmem:[%s2998 + $0x560] sm:$0xff]
  %v3172 = vld [vmem:[%s2998 + $0x568] sm:$0xff]
  %v3173 = vld [vmem:[%s2998 + $0x570] sm:$0xff]
  %v3174 = vld [vmem:[%s2998 + $0x578] sm:$0xff]
  %v3175 = vld [vmem:[%s2998 + $0x580] sm:$0xff]
  %v3176 = vld [vmem:[%s2998 + $0x588] sm:$0xff]
  %v3177 = vld [vmem:[%s2998 + $0x590] sm:$0xff]
  %v3178 = vld [vmem:[%s2998 + $0x598] sm:$0xff]
  %v3179 = vld [vmem:[%s2998 + $0x5a0] sm:$0xff]
  %v3180 = vld [vmem:[%s2998 + $0x5a8] sm:$0xff]
  %v3181 = vld [vmem:[%s2998 + $0x5b0] sm:$0xff]
  %v3182 = vld [vmem:[%s2998 + $0x5b8] sm:$0xff]
  %v3183 = vld [vmem:[%s2998 + $0x5c0] sm:$0xff]
  %v3184 = vld [vmem:[%s2998 + $0x5c8] sm:$0xff]
  %v3185 = vld [vmem:[%s2998 + $0x5d0] sm:$0xff]
  %v3186 = vld [vmem:[%s2998 + $0x5d8] sm:$0xff]
  %v3187 = vld [vmem:[%s2998 + $0x5e0] sm:$0xff]
  %v3188 = vld [vmem:[%s2998 + $0x5e8] sm:$0xff]
  %v3189 = vld [vmem:[%s2998 + $0x5f0] sm:$0xff]
  %v3190 = vld [vmem:[%s2998 + $0x5f8] sm:$0xff]
  %v3191 = vld [vmem:[%s2998 + $0x600] sm:$0xff]
  %v3192 = vld [vmem:[%s2998 + $0x608] sm:$0xff]
  %v3193 = vld [vmem:[%s2998 + $0x610] sm:$0xff]
  %v3194 = vld [vmem:[%s2998 + $0x618] sm:$0xff]
  %v3196 = vsel %vm218, %v2999, 0
  %v3199 = vsel %vm218, %v3000, 0
  %v3202 = vsel %vm218, %v3001, 0
  %v3205 = vsel %vm218, %v3002, 0
  %v3208 = vsel %vm218, %v3003, 0
  %v3211 = vsel %vm218, %v3004, 0
  %v3214 = vsel %vm218, %v3005, 0
  %v3217 = vsel %vm218, %v3006, 0
  %v3220 = vsel %vm218, %v3007, 0
  %v3223 = vsel %vm218, %v3008, 0
  %v3226 = vsel %vm218, %v3009, 0
  %v3229 = vsel %vm218, %v3010, 0
  %v3232 = vsel %vm218, %v3011, 0
  %v3235 = vsel %vm218, %v3012, 0
  %v3238 = vsel %vm218, %v3013, 0
  %v3241 = vsel %vm218, %v3014, 0
  %v3244 = vsel %vm218, %v3015, 0
  %v3247 = vsel %vm218, %v3016, 0
  %v3250 = vsel %vm218, %v3017, 0
  %v3253 = vsel %vm218, %v3018, 0
  %v3256 = vsel %vm218, %v3019, 0
  %v3259 = vsel %vm218, %v3020, 0
  %v3262 = vsel %vm218, %v3021, 0
  %v3265 = vsel %vm218, %v3022, 0
  %v3268 = vsel %vm218, %v3023, 0
  %v3271 = vsel %vm218, %v3024, 0
  %v3274 = vsel %vm218, %v3025, 0
  %v3277 = vsel %vm218, %v3026, 0
  %v3280 = vsel %vm218, %v3027, 0
  %v3283 = vsel %vm218, %v3028, 0
  %v3286 = vsel %vm218, %v3029, 0
  %v3289 = vsel %vm218, %v3030, 0
  %v3292 = vsel %vm218, %v3031, 0
  %v3295 = vsel %vm218, %v3032, 0
  %v3298 = vsel %vm218, %v3033, 0
  %v3301 = vsel %vm218, %v3034, 0
  %v3304 = vsel %vm218, %v3035, 0
  %v3307 = vsel %vm218, %v3036, 0
  %v3310 = vsel %vm218, %v3037, 0
  %v3313 = vsel %vm218, %v3038, 0
  %v3316 = vsel %vm218, %v3039, 0
  %v3319 = vsel %vm218, %v3040, 0
  %v3322 = vsel %vm218, %v3041, 0
  %v3325 = vsel %vm218, %v3042, 0
  %v3328 = vsel %vm218, %v3043, 0
  %v3331 = vsel %vm218, %v3044, 0
  %v3334 = vsel %vm218, %v3045, 0
  %v3337 = vsel %vm218, %v3046, 0
  %v3340 = vsel %vm218, %v3047, 0
  %v3343 = vsel %vm218, %v3048, 0
  %v3346 = vsel %vm218, %v3049, 0
  %v3349 = vsel %vm218, %v3050, 0
  %v3352 = vsel %vm218, %v3051, 0
  %v3355 = vsel %vm218, %v3052, 0
  %v3358 = vsel %vm218, %v3053, 0
  %v3361 = vsel %vm218, %v3054, 0
  %v3364 = vsel %vm218, %v3055, 0
  %v3367 = vsel %vm218, %v3056, 0
  %v3370 = vsel %vm218, %v3057, 0
  %v3373 = vsel %vm218, %v3058, 0
  %v3376 = vsel %vm218, %v3059, 0
  %v3379 = vsel %vm218, %v3060, 0
  %v3382 = vsel %vm218, %v3061, 0
  %v3385 = vsel %vm218, %v3062, 0
  %v3388 = vsel %vm218, %v3063, 0
  %v3391 = vsel %vm218, %v3064, 0
  %v3394 = vsel %vm218, %v3065, 0
  %v3397 = vsel %vm218, %v3066, 0
  %v3400 = vsel %vm218, %v3067, 0
  %v3403 = vsel %vm218, %v3068, 0
  %v3406 = vsel %vm218, %v3069, 0
  %v3409 = vsel %vm218, %v3070, 0
  %v3412 = vsel %vm218, %v3071, 0
  %v3415 = vsel %vm218, %v3072, 0
  %v3418 = vsel %vm218, %v3073, 0
  %v3421 = vsel %vm218, %v3074, 0
  %v3424 = vsel %vm218, %v3075, 0
  %v3427 = vsel %vm218, %v3076, 0
  %v3430 = vsel %vm218, %v3077, 0
  %v3433 = vsel %vm218, %v3078, 0
  %v3436 = vsel %vm218, %v3079, 0
  %v3439 = vsel %vm218, %v3080, 0
  %v3442 = vsel %vm218, %v3081, 0
  %v3445 = vsel %vm218, %v3082, 0
  %v3448 = vsel %vm218, %v3083, 0
  %v3451 = vsel %vm218, %v3084, 0
  %v3454 = vsel %vm218, %v3085, 0
  %v3457 = vsel %vm218, %v3086, 0
  %v3460 = vsel %vm218, %v3087, 0
  %v3463 = vsel %vm218, %v3088, 0
  %v3466 = vsel %vm218, %v3089, 0
  %v3469 = vsel %vm218, %v3090, 0
  %v3472 = vsel %vm218, %v3091, 0
  %v3475 = vsel %vm218, %v3092, 0
  %v3478 = vsel %vm218, %v3093, 0
  %v3481 = vsel %vm218, %v3094, 0
  %v3484 = vsel %vm218, %v3095, 0
  %v3487 = vsel %vm218, %v3096, 0
  %v3490 = vsel %vm218, %v3097, 0
  %v3493 = vsel %vm218, %v3098, 0
  %v3496 = vsel %vm218, %v3099, 0
  %v3499 = vsel %vm218, %v3100, 0
  %v3502 = vsel %vm218, %v3101, 0
  %v3505 = vsel %vm218, %v3102, 0
  %v3508 = vsel %vm218, %v3103, 0
  %v3511 = vsel %vm218, %v3104, 0
  %v3514 = vsel %vm218, %v3105, 0
  %v3517 = vsel %vm218, %v3106, 0
  %v3520 = vsel %vm218, %v3107, 0
  %v3523 = vsel %vm218, %v3108, 0
  %v3526 = vsel %vm218, %v3109, 0
  %v3529 = vsel %vm218, %v3110, 0
  %v3532 = vsel %vm218, %v3111, 0
  %v3535 = vsel %vm218, %v3112, 0
  %v3538 = vsel %vm218, %v3113, 0
  %v3541 = vsel %vm218, %v3114, 0
  %v3544 = vsel %vm218, %v3115, 0
  %v3547 = vsel %vm218, %v3116, 0
  %v3550 = vsel %vm218, %v3117, 0
  %v3553 = vsel %vm218, %v3118, 0
  %v3556 = vsel %vm218, %v3119, 0
  %v3559 = vsel %vm218, %v3120, 0
  %v3562 = vsel %vm218, %v3121, 0
  %v3565 = vsel %vm218, %v3122, 0
  %v3568 = vsel %vm218, %v3123, 0
  %v3571 = vsel %vm218, %v3124, 0
  %v3574 = vsel %vm218, %v3125, 0
  %v3577 = vsel %vm218, %v3126, 0
  %v3580 = vsel %vm218, %v3127, 0
  %v3583 = vsel %vm218, %v3128, 0
  %v3586 = vsel %vm218, %v3129, 0
  %v3589 = vsel %vm218, %v3130, 0
  %v3592 = vsel %vm218, %v3131, 0
  %v3595 = vsel %vm218, %v3132, 0
  %v3598 = vsel %vm218, %v3133, 0
  %v3601 = vsel %vm218, %v3134, 0
  %v3604 = vsel %vm218, %v3135, 0
  %v3607 = vsel %vm218, %v3136, 0
  %v3610 = vsel %vm218, %v3137, 0
  %v3613 = vsel %vm218, %v3138, 0
  %v3616 = vsel %vm218, %v3139, 0
  %v3619 = vsel %vm218, %v3140, 0
  %v3622 = vsel %vm218, %v3141, 0
  %v3625 = vsel %vm218, %v3142, 0
  %v3628 = vsel %vm218, %v3143, 0
  %v3631 = vsel %vm218, %v3144, 0
  %v3634 = vsel %vm218, %v3145, 0
  %v3637 = vsel %vm218, %v3146, 0
  %v3640 = vsel %vm218, %v3147, 0
  %v3643 = vsel %vm218, %v3148, 0
  %v3646 = vsel %vm218, %v3149, 0
  %v3649 = vsel %vm218, %v3150, 0
  %v3652 = vsel %vm218, %v3151, 0
  %v3655 = vsel %vm218, %v3152, 0
  %v3658 = vsel %vm218, %v3153, 0
  %v3661 = vsel %vm218, %v3154, 0
  %v3664 = vsel %vm218, %v3155, 0
  %v3667 = vsel %vm218, %v3156, 0
  %v3670 = vsel %vm218, %v3157, 0
  %v3673 = vsel %vm218, %v3158, 0
  %v3676 = vsel %vm218, %v3159, 0
  %v3679 = vsel %vm218, %v3160, 0
  %v3682 = vsel %vm218, %v3161, 0
  %v3685 = vsel %vm218, %v3162, 0
  %v3688 = vsel %vm218, %v3163, 0
  %v3691 = vsel %vm218, %v3164, 0
  %v3694 = vsel %vm218, %v3165, 0
  %v3697 = vsel %vm218, %v3166, 0
  %v3700 = vsel %vm218, %v3167, 0
  %v3703 = vsel %vm218, %v3168, 0
  %v3706 = vsel %vm218, %v3169, 0
  %v3709 = vsel %vm218, %v3170, 0
  %v3712 = vsel %vm218, %v3171, 0
  %v3715 = vsel %vm218, %v3172, 0
  %v3718 = vsel %vm218, %v3173, 0
  %v3721 = vsel %vm218, %v3174, 0
  %v3724 = vsel %vm218, %v3175, 0
  %v3727 = vsel %vm218, %v3176, 0
  %v3730 = vsel %vm218, %v3177, 0
  %v3733 = vsel %vm218, %v3178, 0
  %v3736 = vsel %vm218, %v3179, 0
  %v3739 = vsel %vm218, %v3180, 0
  %v3742 = vsel %vm218, %v3181, 0
  %v3745 = vsel %vm218, %v3182, 0
  %v3748 = vsel %vm218, %v3183, 0
  %v3751 = vsel %vm218, %v3184, 0
  %v3754 = vsel %vm218, %v3185, 0
  %v3757 = vsel %vm218, %v3186, 0
  %v3760 = vsel %vm218, %v3187, 0
  %v3763 = vsel %vm218, %v3188, 0
  %v3766 = vsel %vm218, %v3189, 0
  %v3769 = vsel %vm218, %v3190, 0
  %v3772 = vsel %vm218, %v3191, 0
  %v3775 = vsel %vm218, %v3192, 0
  %v3778 = vsel %vm218, %v3193, 0
  %v3781 = vsel %vm218, %v3194, 0
  %3783 = vmatpush.msra.mxu0 0.0
  %3784 = vmatpush.msra.mxu0 0.0
  %3785 = vmatpush.msra.mxu0 0.0
  %3786 = vmatpush.msra.mxu0 0.0
  %3787 = vmatpush.msra.mxu0 0.0
  %3788 = vmatpush.msra.mxu0 0.0
  %3789 = vmatpush.msra.mxu0 0.0
  %3790 = vmatpush.msra.mxu0 0.0
  %3791 = vmatpush.msra.mxu0 0.0
  %3792 = vmatpush.msra.mxu0 0.0
  %3793 = vmatpush.msra.mxu0 0.0
  %3794 = vmatpush.msra.mxu0 0.0
  %3795 = vmatpush.msra.mxu0 %v17
  %3796 = vmatpush.msra.mxu0 %v16
  %3797 = vmatpush.msra.mxu0 %v15
  %3798 = vmatpush.msra.mxu0 %v14
  %3799 = vmatmul.f32.gmra.mxu0 %v3196
  %v3800 = vpop.f32.mrf.mxu0
  %v3801 = vadd.f32 %v216, %v3800
  %3802 = vmatmul.f32.gmra.mxu0 %v3199
  %v3803 = vpop.f32.mrf.mxu0
  %v3804 = vadd.f32 %v216, %v3803
  %3805 = vmatmul.f32.gmra.mxu0 %v3202
  %v3806 = vpop.f32.mrf.mxu0
  %v3807 = vadd.f32 %v216, %v3806
  %3808 = vmatmul.f32.gmra.mxu0 %v3205
  %v3809 = vpop.f32.mrf.mxu0
  %v3810 = vadd.f32 %v216, %v3809
  %3811 = vmatmul.f32.gmra.mxu0 %v3208
  %v3812 = vpop.f32.mrf.mxu0
  %v3813 = vadd.f32 %v216, %v3812
  %3814 = vmatmul.f32.gmra.mxu0 %v3211
  %v3815 = vpop.f32.mrf.mxu0
  %v3816 = vadd.f32 %v216, %v3815
  %3817 = vmatmul.f32.gmra.mxu0 %v3214
  %v3818 = vpop.f32.mrf.mxu0
  %v3819 = vadd.f32 %v216, %v3818
  %3820 = vmatmul.f32.gmra.mxu0 %v3217
  %v3821 = vpop.f32.mrf.mxu0
  %v3822 = vadd.f32 %v216, %v3821
  %3823 = vmatmul.f32.gmra.mxu0 %v3220
  %v3824 = vpop.f32.mrf.mxu0
  %v3825 = vadd.f32 %v216, %v3824
  %3826 = vmatmul.f32.gmra.mxu0 %v3223
  %v3827 = vpop.f32.mrf.mxu0
  %v3828 = vadd.f32 %v216, %v3827
  %3829 = vmatmul.f32.gmra.mxu0 %v3226
  %v3830 = vpop.f32.mrf.mxu0
  %v3831 = vadd.f32 %v216, %v3830
  %3832 = vmatmul.f32.gmra.mxu0 %v3229
  %v3833 = vpop.f32.mrf.mxu0
  %v3834 = vadd.f32 %v216, %v3833
  %3835 = vmatmul.f32.gmra.mxu0 %v3232
  %v3836 = vpop.f32.mrf.mxu0
  %v3837 = vadd.f32 %v216, %v3836
  %3838 = vmatmul.f32.gmra.mxu0 %v3235
  %v3839 = vpop.f32.mrf.mxu0
  %v3840 = vadd.f32 %v216, %v3839
  %3841 = vmatmul.f32.gmra.mxu0 %v3238
  %v3842 = vpop.f32.mrf.mxu0
  %v3843 = vadd.f32 %v216, %v3842
  %3844 = vmatmul.f32.gmra.mxu0 %v3241
  %v3845 = vpop.f32.mrf.mxu0
  %v3846 = vadd.f32 %v216, %v3845
  %3847 = vmatmul.f32.gmra.mxu0 %v3244
  %v3848 = vpop.f32.mrf.mxu0
  %v3849 = vadd.f32 %v216, %v3848
  %3850 = vmatmul.f32.gmra.mxu0 %v3247
  %v3851 = vpop.f32.mrf.mxu0
  %v3852 = vadd.f32 %v216, %v3851
  %3853 = vmatmul.f32.gmra.mxu0 %v3250
  %v3854 = vpop.f32.mrf.mxu0
  %v3855 = vadd.f32 %v216, %v3854
  %3856 = vmatmul.f32.gmra.mxu0 %v3253
  %v3857 = vpop.f32.mrf.mxu0
  %v3858 = vadd.f32 %v216, %v3857
  %3859 = vmatmul.f32.gmra.mxu0 %v3256
  %v3860 = vpop.f32.mrf.mxu0
  %v3861 = vadd.f32 %v216, %v3860
  %3862 = vmatmul.f32.gmra.mxu0 %v3259
  %v3863 = vpop.f32.mrf.mxu0
  %v3864 = vadd.f32 %v216, %v3863
  %3865 = vmatmul.f32.gmra.mxu0 %v3262
  %v3866 = vpop.f32.mrf.mxu0
  %v3867 = vadd.f32 %v216, %v3866
  %3868 = vmatmul.f32.gmra.mxu0 %v3265
  %v3869 = vpop.f32.mrf.mxu0
  %v3870 = vadd.f32 %v216, %v3869
  %3871 = vmatmul.f32.gmra.mxu0 %v3268
  %v3872 = vpop.f32.mrf.mxu0
  %v3873 = vadd.f32 %v216, %v3872
  %3874 = vmatmul.f32.gmra.mxu0 %v3271
  %v3875 = vpop.f32.mrf.mxu0
  %v3876 = vadd.f32 %v216, %v3875
  %3877 = vmatmul.f32.gmra.mxu0 %v3274
  %v3878 = vpop.f32.mrf.mxu0
  %v3879 = vadd.f32 %v216, %v3878
  %3880 = vmatmul.f32.gmra.mxu0 %v3277
  %v3881 = vpop.f32.mrf.mxu0
  %v3882 = vadd.f32 %v216, %v3881
  %3883 = vmatmul.f32.gmra.mxu0 %v3280
  %v3884 = vpop.f32.mrf.mxu0
  %v3885 = vadd.f32 %v216, %v3884
  %3886 = vmatmul.f32.gmra.mxu0 %v3283
  %v3887 = vpop.f32.mrf.mxu0
  %v3888 = vadd.f32 %v216, %v3887
  %3889 = vmatmul.f32.gmra.mxu0 %v3286
  %v3890 = vpop.f32.mrf.mxu0
  %v3891 = vadd.f32 %v216, %v3890
  %3892 = vmatmul.f32.gmra.mxu0 %v3289
  %v3893 = vpop.f32.mrf.mxu0
  %v3894 = vadd.f32 %v216, %v3893
  %3895 = vmatmul.f32.gmra.mxu0 %v3292
  %v3896 = vpop.f32.mrf.mxu0
  %v3897 = vadd.f32 %v216, %v3896
  %3898 = vmatmul.f32.gmra.mxu0 %v3295
  %v3899 = vpop.f32.mrf.mxu0
  %v3900 = vadd.f32 %v216, %v3899
  %3901 = vmatmul.f32.gmra.mxu0 %v3298
  %v3902 = vpop.f32.mrf.mxu0
  %v3903 = vadd.f32 %v216, %v3902
  %3904 = vmatmul.f32.gmra.mxu0 %v3301
  %v3905 = vpop.f32.mrf.mxu0
  %v3906 = vadd.f32 %v216, %v3905
  %3907 = vmatmul.f32.gmra.mxu0 %v3304
  %v3908 = vpop.f32.mrf.mxu0
  %v3909 = vadd.f32 %v216, %v3908
  %3910 = vmatmul.f32.gmra.mxu0 %v3307
  %v3911 = vpop.f32.mrf.mxu0
  %v3912 = vadd.f32 %v216, %v3911
  %3913 = vmatmul.f32.gmra.mxu0 %v3310
  %v3914 = vpop.f32.mrf.mxu0
  %v3915 = vadd.f32 %v216, %v3914
  %3916 = vmatmul.f32.gmra.mxu0 %v3313
  %v3917 = vpop.f32.mrf.mxu0
  %v3918 = vadd.f32 %v216, %v3917
  %3919 = vmatmul.f32.gmra.mxu0 %v3316
  %v3920 = vpop.f32.mrf.mxu0
  %v3921 = vadd.f32 %v216, %v3920
  %3922 = vmatmul.f32.gmra.mxu0 %v3319
  %v3923 = vpop.f32.mrf.mxu0
  %v3924 = vadd.f32 %v216, %v3923
  %3925 = vmatmul.f32.gmra.mxu0 %v3322
  %v3926 = vpop.f32.mrf.mxu0
  %v3927 = vadd.f32 %v216, %v3926
  %3928 = vmatmul.f32.gmra.mxu0 %v3325
  %v3929 = vpop.f32.mrf.mxu0
  %v3930 = vadd.f32 %v216, %v3929
  %3931 = vmatmul.f32.gmra.mxu0 %v3328
  %v3932 = vpop.f32.mrf.mxu0
  %v3933 = vadd.f32 %v216, %v3932
  %3934 = vmatmul.f32.gmra.mxu0 %v3331
  %v3935 = vpop.f32.mrf.mxu0
  %v3936 = vadd.f32 %v216, %v3935
  %3937 = vmatmul.f32.gmra.mxu0 %v3334
  %v3938 = vpop.f32.mrf.mxu0
  %v3939 = vadd.f32 %v216, %v3938
  %3940 = vmatmul.f32.gmra.mxu0 %v3337
  %v3941 = vpop.f32.mrf.mxu0
  %v3942 = vadd.f32 %v216, %v3941
  %3943 = vmatmul.f32.gmra.mxu0 %v3340
  %v3944 = vpop.f32.mrf.mxu0
  %v3945 = vadd.f32 %v216, %v3944
  %3946 = vmatmul.f32.gmra.mxu0 %v3343
  %v3947 = vpop.f32.mrf.mxu0
  %v3948 = vadd.f32 %v216, %v3947
  %3949 = vmatmul.f32.gmra.mxu0 %v3346
  %v3950 = vpop.f32.mrf.mxu0
  %v3951 = vadd.f32 %v216, %v3950
  %3952 = vmatmul.f32.gmra.mxu0 %v3349
  %v3953 = vpop.f32.mrf.mxu0
  %v3954 = vadd.f32 %v216, %v3953
  %3955 = vmatmul.f32.gmra.mxu0 %v3352
  %v3956 = vpop.f32.mrf.mxu0
  %v3957 = vadd.f32 %v216, %v3956
  %3958 = vmatmul.f32.gmra.mxu0 %v3355
  %v3959 = vpop.f32.mrf.mxu0
  %v3960 = vadd.f32 %v216, %v3959
  %3961 = vmatmul.f32.gmra.mxu0 %v3358
  %v3962 = vpop.f32.mrf.mxu0
  %v3963 = vadd.f32 %v216, %v3962
  %3964 = vmatmul.f32.gmra.mxu0 %v3361
  %v3965 = vpop.f32.mrf.mxu0
  %v3966 = vadd.f32 %v216, %v3965
  %3967 = vmatmul.f32.gmra.mxu0 %v3364
  %v3968 = vpop.f32.mrf.mxu0
  %v3969 = vadd.f32 %v216, %v3968
  %3970 = vmatmul.f32.gmra.mxu0 %v3367
  %v3971 = vpop.f32.mrf.mxu0
  %v3972 = vadd.f32 %v216, %v3971
  %3973 = vmatmul.f32.gmra.mxu0 %v3370
  %v3974 = vpop.f32.mrf.mxu0
  %v3975 = vadd.f32 %v216, %v3974
  %3976 = vmatmul.f32.gmra.mxu0 %v3373
  %v3977 = vpop.f32.mrf.mxu0
  %v3978 = vadd.f32 %v216, %v3977
  %3979 = vmatmul.f32.gmra.mxu0 %v3376
  %v3980 = vpop.f32.mrf.mxu0
  %v3981 = vadd.f32 %v216, %v3980
  %3982 = vmatmul.f32.gmra.mxu0 %v3379
  %v3983 = vpop.f32.mrf.mxu0
  %v3984 = vadd.f32 %v216, %v3983
  %3985 = vmatmul.f32.gmra.mxu0 %v3382
  %v3986 = vpop.f32.mrf.mxu0
  %v3987 = vadd.f32 %v216, %v3986
  %3988 = vmatmul.f32.gmra.mxu0 %v3385
  %v3989 = vpop.f32.mrf.mxu0
  %v3990 = vadd.f32 %v216, %v3989
  %3991 = vmatmul.f32.gmra.mxu0 %v3388
  %v3992 = vpop.f32.mrf.mxu0
  %v3993 = vadd.f32 %v216, %v3992
  %3994 = vmatmul.f32.gmra.mxu0 %v3391
  %v3995 = vpop.f32.mrf.mxu0
  %v3996 = vadd.f32 %v216, %v3995
  %3997 = vmatmul.f32.gmra.mxu0 %v3394
  %v3998 = vpop.f32.mrf.mxu0
  %v3999 = vadd.f32 %v216, %v3998
  %4000 = vmatmul.f32.gmra.mxu0 %v3397
  %v4001 = vpop.f32.mrf.mxu0
  %v4002 = vadd.f32 %v216, %v4001
  %4003 = vmatmul.f32.gmra.mxu0 %v3400
  %v4004 = vpop.f32.mrf.mxu0
  %v4005 = vadd.f32 %v216, %v4004
  %4006 = vmatmul.f32.gmra.mxu0 %v3403
  %v4007 = vpop.f32.mrf.mxu0
  %v4008 = vadd.f32 %v216, %v4007
  %4009 = vmatmul.f32.gmra.mxu0 %v3406
  %v4010 = vpop.f32.mrf.mxu0
  %v4011 = vadd.f32 %v216, %v4010
  %4012 = vmatmul.f32.gmra.mxu0 %v3409
  %v4013 = vpop.f32.mrf.mxu0
  %v4014 = vadd.f32 %v216, %v4013
  %4015 = vmatmul.f32.gmra.mxu0 %v3412
  %v4016 = vpop.f32.mrf.mxu0
  %v4017 = vadd.f32 %v216, %v4016
  %4018 = vmatmul.f32.gmra.mxu0 %v3415
  %v4019 = vpop.f32.mrf.mxu0
  %v4020 = vadd.f32 %v216, %v4019
  %4021 = vmatmul.f32.gmra.mxu0 %v3418
  %v4022 = vpop.f32.mrf.mxu0
  %v4023 = vadd.f32 %v216, %v4022
  %4024 = vmatmul.f32.gmra.mxu0 %v3421
  %v4025 = vpop.f32.mrf.mxu0
  %v4026 = vadd.f32 %v216, %v4025
  %4027 = vmatmul.f32.gmra.mxu0 %v3424
  %v4028 = vpop.f32.mrf.mxu0
  %v4029 = vadd.f32 %v216, %v4028
  %4030 = vmatmul.f32.gmra.mxu0 %v3427
  %v4031 = vpop.f32.mrf.mxu0
  %v4032 = vadd.f32 %v216, %v4031
  %4033 = vmatmul.f32.gmra.mxu0 %v3430
  %v4034 = vpop.f32.mrf.mxu0
  %v4035 = vadd.f32 %v216, %v4034
  %4036 = vmatmul.f32.gmra.mxu0 %v3433
  %v4037 = vpop.f32.mrf.mxu0
  %v4038 = vadd.f32 %v216, %v4037
  %4039 = vmatmul.f32.gmra.mxu0 %v3436
  %v4040 = vpop.f32.mrf.mxu0
  %v4041 = vadd.f32 %v216, %v4040
  %4042 = vmatmul.f32.gmra.mxu0 %v3439
  %v4043 = vpop.f32.mrf.mxu0
  %v4044 = vadd.f32 %v216, %v4043
  %4045 = vmatmul.f32.gmra.mxu0 %v3442
  %v4046 = vpop.f32.mrf.mxu0
  %v4047 = vadd.f32 %v216, %v4046
  %4048 = vmatmul.f32.gmra.mxu0 %v3445
  %v4049 = vpop.f32.mrf.mxu0
  %v4050 = vadd.f32 %v216, %v4049
  %4051 = vmatmul.f32.gmra.mxu0 %v3448
  %v4052 = vpop.f32.mrf.mxu0
  %v4053 = vadd.f32 %v216, %v4052
  %4054 = vmatmul.f32.gmra.mxu0 %v3451
  %v4055 = vpop.f32.mrf.mxu0
  %v4056 = vadd.f32 %v216, %v4055
  %4057 = vmatmul.f32.gmra.mxu0 %v3454
  %v4058 = vpop.f32.mrf.mxu0
  %v4059 = vadd.f32 %v216, %v4058
  %4060 = vmatmul.f32.gmra.mxu0 %v3457
  %v4061 = vpop.f32.mrf.mxu0
  %v4062 = vadd.f32 %v216, %v4061
  %4063 = vmatmul.f32.gmra.mxu0 %v3460
  %v4064 = vpop.f32.mrf.mxu0
  %v4065 = vadd.f32 %v216, %v4064
  %4066 = vmatmul.f32.gmra.mxu0 %v3463
  %v4067 = vpop.f32.mrf.mxu0
  %v4068 = vadd.f32 %v216, %v4067
  %4069 = vmatmul.f32.gmra.mxu0 %v3466
  %v4070 = vpop.f32.mrf.mxu0
  %v4071 = vadd.f32 %v216, %v4070
  %4072 = vmatmul.f32.gmra.mxu0 %v3469
  %v4073 = vpop.f32.mrf.mxu0
  %v4074 = vadd.f32 %v216, %v4073
  %4075 = vmatmul.f32.gmra.mxu0 %v3472
  %v4076 = vpop.f32.mrf.mxu0
  %v4077 = vadd.f32 %v216, %v4076
  %4078 = vmatmul.f32.gmra.mxu0 %v3475
  %v4079 = vpop.f32.mrf.mxu0
  %v4080 = vadd.f32 %v216, %v4079
  %4081 = vmatmul.f32.gmra.mxu0 %v3478
  %v4082 = vpop.f32.mrf.mxu0
  %v4083 = vadd.f32 %v216, %v4082
  %4084 = vmatmul.f32.gmra.mxu0 %v3481
  %v4085 = vpop.f32.mrf.mxu0
  %v4086 = vadd.f32 %v216, %v4085
  %4087 = vmatmul.f32.gmra.mxu0 %v3484
  %v4088 = vpop.f32.mrf.mxu0
  %v4089 = vadd.f32 %v216, %v4088
  %4090 = vmatmul.f32.gmra.mxu0 %v3487
  %v4091 = vpop.f32.mrf.mxu0
  %v4092 = vadd.f32 %v216, %v4091
  %4093 = vmatmul.f32.gmra.mxu0 %v3490
  %v4094 = vpop.f32.mrf.mxu0
  %v4095 = vadd.f32 %v216, %v4094
  %4096 = vmatmul.f32.gmra.mxu0 %v3493
  %v4097 = vpop.f32.mrf.mxu0
  %v4098 = vadd.f32 %v216, %v4097
  %4099 = vmatmul.f32.gmra.mxu0 %v3496
  %v4100 = vpop.f32.mrf.mxu0
  %v4101 = vadd.f32 %v216, %v4100
  %4102 = vmatmul.f32.gmra.mxu0 %v3499
  %v4103 = vpop.f32.mrf.mxu0
  %v4104 = vadd.f32 %v216, %v4103
  %4105 = vmatmul.f32.gmra.mxu0 %v3502
  %v4106 = vpop.f32.mrf.mxu0
  %v4107 = vadd.f32 %v216, %v4106
  %4108 = vmatmul.f32.gmra.mxu0 %v3505
  %v4109 = vpop.f32.mrf.mxu0
  %v4110 = vadd.f32 %v216, %v4109
  %4111 = vmatmul.f32.gmra.mxu0 %v3508
  %v4112 = vpop.f32.mrf.mxu0
  %v4113 = vadd.f32 %v216, %v4112
  %4114 = vmatmul.f32.gmra.mxu0 %v3511
  %v4115 = vpop.f32.mrf.mxu0
  %v4116 = vadd.f32 %v216, %v4115
  %4117 = vmatmul.f32.gmra.mxu0 %v3514
  %v4118 = vpop.f32.mrf.mxu0
  %v4119 = vadd.f32 %v216, %v4118
  %4120 = vmatmul.f32.gmra.mxu0 %v3517
  %v4121 = vpop.f32.mrf.mxu0
  %v4122 = vadd.f32 %v216, %v4121
  %4123 = vmatmul.f32.gmra.mxu0 %v3520
  %v4124 = vpop.f32.mrf.mxu0
  %v4125 = vadd.f32 %v216, %v4124
  %4126 = vmatmul.f32.gmra.mxu0 %v3523
  %v4127 = vpop.f32.mrf.mxu0
  %v4128 = vadd.f32 %v216, %v4127
  %4129 = vmatmul.f32.gmra.mxu0 %v3526
  %v4130 = vpop.f32.mrf.mxu0
  %v4131 = vadd.f32 %v216, %v4130
  %4132 = vmatmul.f32.gmra.mxu0 %v3529
  %v4133 = vpop.f32.mrf.mxu0
  %v4134 = vadd.f32 %v216, %v4133
  %4135 = vmatmul.f32.gmra.mxu0 %v3532
  %v4136 = vpop.f32.mrf.mxu0
  %v4137 = vadd.f32 %v216, %v4136
  %4138 = vmatmul.f32.gmra.mxu0 %v3535
  %v4139 = vpop.f32.mrf.mxu0
  %v4140 = vadd.f32 %v216, %v4139
  %4141 = vmatmul.f32.gmra.mxu0 %v3538
  %v4142 = vpop.f32.mrf.mxu0
  %v4143 = vadd.f32 %v216, %v4142
  %4144 = vmatmul.f32.gmra.mxu0 %v3541
  %v4145 = vpop.f32.mrf.mxu0
  %v4146 = vadd.f32 %v216, %v4145
  %4147 = vmatmul.f32.gmra.mxu0 %v3544
  %v4148 = vpop.f32.mrf.mxu0
  %v4149 = vadd.f32 %v216, %v4148
  %4150 = vmatmul.f32.gmra.mxu0 %v3547
  %v4151 = vpop.f32.mrf.mxu0
  %v4152 = vadd.f32 %v216, %v4151
  %4153 = vmatmul.f32.gmra.mxu0 %v3550
  %v4154 = vpop.f32.mrf.mxu0
  %v4155 = vadd.f32 %v216, %v4154
  %4156 = vmatmul.f32.gmra.mxu0 %v3553
  %v4157 = vpop.f32.mrf.mxu0
  %v4158 = vadd.f32 %v216, %v4157
  %4159 = vmatmul.f32.gmra.mxu0 %v3556
  %v4160 = vpop.f32.mrf.mxu0
  %v4161 = vadd.f32 %v216, %v4160
  %4162 = vmatmul.f32.gmra.mxu0 %v3559
  %v4163 = vpop.f32.mrf.mxu0
  %v4164 = vadd.f32 %v216, %v4163
  %4165 = vmatmul.f32.gmra.mxu0 %v3562
  %v4166 = vpop.f32.mrf.mxu0
  %v4167 = vadd.f32 %v216, %v4166
  %4168 = vmatmul.f32.gmra.mxu0 %v3565
  %v4169 = vpop.f32.mrf.mxu0
  %v4170 = vadd.f32 %v216, %v4169
  %4171 = vmatmul.f32.gmra.mxu0 %v3568
  %v4172 = vpop.f32.mrf.mxu0
  %v4173 = vadd.f32 %v216, %v4172
  %4174 = vmatmul.f32.gmra.mxu0 %v3571
  %v4175 = vpop.f32.mrf.mxu0
  %v4176 = vadd.f32 %v216, %v4175
  %4177 = vmatmul.f32.gmra.mxu0 %v3574
  %v4178 = vpop.f32.mrf.mxu0
  %v4179 = vadd.f32 %v216, %v4178
  %4180 = vmatmul.f32.gmra.mxu0 %v3577
  %v4181 = vpop.f32.mrf.mxu0
  %v4182 = vadd.f32 %v216, %v4181
  %4183 = vmatmul.f32.gmra.mxu0 %v3580
  %v4184 = vpop.f32.mrf.mxu0
  %v4185 = vadd.f32 %v216, %v4184
  %4186 = vmatmul.f32.gmra.mxu0 %v3583
  %v4187 = vpop.f32.mrf.mxu0
  %v4188 = vadd.f32 %v216, %v4187
  %4189 = vmatmul.f32.gmra.mxu0 %v3586
  %v4190 = vpop.f32.mrf.mxu0
  %v4191 = vadd.f32 %v216, %v4190
  %4192 = vmatmul.f32.gmra.mxu0 %v3589
  %v4193 = vpop.f32.mrf.mxu0
  %v4194 = vadd.f32 %v216, %v4193
  %4195 = vmatmul.f32.gmra.mxu0 %v3592
  %v4196 = vpop.f32.mrf.mxu0
  %v4197 = vadd.f32 %v216, %v4196
  %4198 = vmatmul.f32.gmra.mxu0 %v3595
  %v4199 = vpop.f32.mrf.mxu0
  %v4200 = vadd.f32 %v216, %v4199
  %4201 = vmatmul.f32.gmra.mxu0 %v3598
  %v4202 = vpop.f32.mrf.mxu0
  %v4203 = vadd.f32 %v216, %v4202
  %4204 = vmatmul.f32.gmra.mxu0 %v3601
  %v4205 = vpop.f32.mrf.mxu0
  %v4206 = vadd.f32 %v216, %v4205
  %4207 = vmatmul.f32.gmra.mxu0 %v3604
  %v4208 = vpop.f32.mrf.mxu0
  %v4209 = vadd.f32 %v216, %v4208
  %4210 = vmatmul.f32.gmra.mxu0 %v3607
  %v4211 = vpop.f32.mrf.mxu0
  %v4212 = vadd.f32 %v216, %v4211
  %4213 = vmatmul.f32.gmra.mxu0 %v3610
  %v4214 = vpop.f32.mrf.mxu0
  %v4215 = vadd.f32 %v216, %v4214
  %4216 = vmatmul.f32.gmra.mxu0 %v3613
  %v4217 = vpop.f32.mrf.mxu0
  %v4218 = vadd.f32 %v216, %v4217
  %4219 = vmatmul.f32.gmra.mxu0 %v3616
  %v4220 = vpop.f32.mrf.mxu0
  %v4221 = vadd.f32 %v216, %v4220
  %4222 = vmatmul.f32.gmra.mxu0 %v3619
  %v4223 = vpop.f32.mrf.mxu0
  %v4224 = vadd.f32 %v216, %v4223
  %4225 = vmatmul.f32.gmra.mxu0 %v3622
  %v4226 = vpop.f32.mrf.mxu0
  %v4227 = vadd.f32 %v216, %v4226
  %4228 = vmatmul.f32.gmra.mxu0 %v3625
  %v4229 = vpop.f32.mrf.mxu0
  %v4230 = vadd.f32 %v216, %v4229
  %4231 = vmatmul.f32.gmra.mxu0 %v3628
  %v4232 = vpop.f32.mrf.mxu0
  %v4233 = vadd.f32 %v216, %v4232
  %4234 = vmatmul.f32.gmra.mxu0 %v3631
  %v4235 = vpop.f32.mrf.mxu0
  %v4236 = vadd.f32 %v216, %v4235
  %4237 = vmatmul.f32.gmra.mxu0 %v3634
  %v4238 = vpop.f32.mrf.mxu0
  %v4239 = vadd.f32 %v216, %v4238
  %4240 = vmatmul.f32.gmra.mxu0 %v3637
  %v4241 = vpop.f32.mrf.mxu0
  %v4242 = vadd.f32 %v216, %v4241
  %4243 = vmatmul.f32.gmra.mxu0 %v3640
  %v4244 = vpop.f32.mrf.mxu0
  %v4245 = vadd.f32 %v216, %v4244
  %4246 = vmatmul.f32.gmra.mxu0 %v3643
  %v4247 = vpop.f32.mrf.mxu0
  %v4248 = vadd.f32 %v216, %v4247
  %4249 = vmatmul.f32.gmra.mxu0 %v3646
  %v4250 = vpop.f32.mrf.mxu0
  %v4251 = vadd.f32 %v216, %v4250
  %4252 = vmatmul.f32.gmra.mxu0 %v3649
  %v4253 = vpop.f32.mrf.mxu0
  %v4254 = vadd.f32 %v216, %v4253
  %4255 = vmatmul.f32.gmra.mxu0 %v3652
  %v4256 = vpop.f32.mrf.mxu0
  %v4257 = vadd.f32 %v216, %v4256
  %4258 = vmatmul.f32.gmra.mxu0 %v3655
  %v4259 = vpop.f32.mrf.mxu0
  %v4260 = vadd.f32 %v216, %v4259
  %4261 = vmatmul.f32.gmra.mxu0 %v3658
  %v4262 = vpop.f32.mrf.mxu0
  %v4263 = vadd.f32 %v216, %v4262
  %4264 = vmatmul.f32.gmra.mxu0 %v3661
  %v4265 = vpop.f32.mrf.mxu0
  %v4266 = vadd.f32 %v216, %v4265
  %4267 = vmatmul.f32.gmra.mxu0 %v3664
  %v4268 = vpop.f32.mrf.mxu0
  %v4269 = vadd.f32 %v216, %v4268
  %4270 = vmatmul.f32.gmra.mxu0 %v3667
  %v4271 = vpop.f32.mrf.mxu0
  %v4272 = vadd.f32 %v216, %v4271
  %4273 = vmatmul.f32.gmra.mxu0 %v3670
  %v4274 = vpop.f32.mrf.mxu0
  %v4275 = vadd.f32 %v216, %v4274
  %4276 = vmatmul.f32.gmra.mxu0 %v3673
  %v4277 = vpop.f32.mrf.mxu0
  %v4278 = vadd.f32 %v216, %v4277
  %4279 = vmatmul.f32.gmra.mxu0 %v3676
  %v4280 = vpop.f32.mrf.mxu0
  %v4281 = vadd.f32 %v216, %v4280
  %4282 = vmatmul.f32.gmra.mxu0 %v3679
  %v4283 = vpop.f32.mrf.mxu0
  %v4284 = vadd.f32 %v216, %v4283
  %4285 = vmatmul.f32.gmra.mxu0 %v3682
  %v4286 = vpop.f32.mrf.mxu0
  %v4287 = vadd.f32 %v216, %v4286
  %4288 = vmatmul.f32.gmra.mxu0 %v3685
  %v4289 = vpop.f32.mrf.mxu0
  %v4290 = vadd.f32 %v216, %v4289
  %4291 = vmatmul.f32.gmra.mxu0 %v3688
  %v4292 = vpop.f32.mrf.mxu0
  %v4293 = vadd.f32 %v216, %v4292
  %4294 = vmatmul.f32.gmra.mxu0 %v3691
  %v4295 = vpop.f32.mrf.mxu0
  %v4296 = vadd.f32 %v216, %v4295
  %4297 = vmatmul.f32.gmra.mxu0 %v3694
  %v4298 = vpop.f32.mrf.mxu0
  %v4299 = vadd.f32 %v216, %v4298
  %4300 = vmatmul.f32.gmra.mxu0 %v3697
  %v4301 = vpop.f32.mrf.mxu0
  %v4302 = vadd.f32 %v216, %v4301
  %4303 = vmatmul.f32.gmra.mxu0 %v3700
  %v4304 = vpop.f32.mrf.mxu0
  %v4305 = vadd.f32 %v216, %v4304
  %4306 = vmatmul.f32.gmra.mxu0 %v3703
  %v4307 = vpop.f32.mrf.mxu0
  %v4308 = vadd.f32 %v216, %v4307
  %4309 = vmatmul.f32.gmra.mxu0 %v3706
  %v4310 = vpop.f32.mrf.mxu0
  %v4311 = vadd.f32 %v216, %v4310
  %4312 = vmatmul.f32.gmra.mxu0 %v3709
  %v4313 = vpop.f32.mrf.mxu0
  %v4314 = vadd.f32 %v216, %v4313
  %4315 = vmatmul.f32.gmra.mxu0 %v3712
  %v4316 = vpop.f32.mrf.mxu0
  %v4317 = vadd.f32 %v216, %v4316
  %4318 = vmatmul.f32.gmra.mxu0 %v3715
  %v4319 = vpop.f32.mrf.mxu0
  %v4320 = vadd.f32 %v216, %v4319
  %4321 = vmatmul.f32.gmra.mxu0 %v3718
  %v4322 = vpop.f32.mrf.mxu0
  %v4323 = vadd.f32 %v216, %v4322
  %4324 = vmatmul.f32.gmra.mxu0 %v3721
  %v4325 = vpop.f32.mrf.mxu0
  %v4326 = vadd.f32 %v216, %v4325
  %4327 = vmatmul.f32.gmra.mxu0 %v3724
  %v4328 = vpop.f32.mrf.mxu0
  %v4329 = vadd.f32 %v216, %v4328
  %4330 = vmatmul.f32.gmra.mxu0 %v3727
  %v4331 = vpop.f32.mrf.mxu0
  %v4332 = vadd.f32 %v216, %v4331
  %4333 = vmatmul.f32.gmra.mxu0 %v3730
  %v4334 = vpop.f32.mrf.mxu0
  %v4335 = vadd.f32 %v216, %v4334
  %4336 = vmatmul.f32.gmra.mxu0 %v3733
  %v4337 = vpop.f32.mrf.mxu0
  %v4338 = vadd.f32 %v216, %v4337
  %4339 = vmatmul.f32.gmra.mxu0 %v3736
  %v4340 = vpop.f32.mrf.mxu0
  %v4341 = vadd.f32 %v216, %v4340
  %4342 = vmatmul.f32.gmra.mxu0 %v3739
  %v4343 = vpop.f32.mrf.mxu0
  %v4344 = vadd.f32 %v216, %v4343
  %4345 = vmatmul.f32.gmra.mxu0 %v3742
  %v4346 = vpop.f32.mrf.mxu0
  %v4347 = vadd.f32 %v216, %v4346
  %4348 = vmatmul.f32.gmra.mxu0 %v3745
  %v4349 = vpop.f32.mrf.mxu0
  %v4350 = vadd.f32 %v216, %v4349
  %4351 = vmatmul.f32.gmra.mxu0 %v3748
  %v4352 = vpop.f32.mrf.mxu0
  %v4353 = vadd.f32 %v216, %v4352
  %4354 = vmatmul.f32.gmra.mxu0 %v3751
  %v4355 = vpop.f32.mrf.mxu0
  %v4356 = vadd.f32 %v216, %v4355
  %4357 = vmatmul.f32.gmra.mxu0 %v3754
  %v4358 = vpop.f32.mrf.mxu0
  %v4359 = vadd.f32 %v216, %v4358
  %4360 = vmatmul.f32.gmra.mxu0 %v3757
  %v4361 = vpop.f32.mrf.mxu0
  %v4362 = vadd.f32 %v216, %v4361
  %4363 = vmatmul.f32.gmra.mxu0 %v3760
  %v4364 = vpop.f32.mrf.mxu0
  %v4365 = vadd.f32 %v216, %v4364
  %4366 = vmatmul.f32.gmra.mxu0 %v3763
  %v4367 = vpop.f32.mrf.mxu0
  %v4368 = vadd.f32 %v216, %v4367
  %4369 = vmatmul.f32.gmra.mxu0 %v3766
  %v4370 = vpop.f32.mrf.mxu0
  %v4371 = vadd.f32 %v216, %v4370
  %4372 = vmatmul.f32.gmra.mxu0 %v3769
  %v4373 = vpop.f32.mrf.mxu0
  %v4374 = vadd.f32 %v216, %v4373
  %4375 = vmatmul.f32.gmra.mxu0 %v3772
  %v4376 = vpop.f32.mrf.mxu0
  %v4377 = vadd.f32 %v216, %v4376
  %4378 = vmatmul.f32.gmra.mxu0 %v3775
  %v4379 = vpop.f32.mrf.mxu0
  %v4380 = vadd.f32 %v216, %v4379
  %4381 = vmatmul.f32.gmra.mxu0 %v3778
  %v4382 = vpop.f32.mrf.mxu0
  %v4383 = vadd.f32 %v216, %v4382
  %4384 = vmatmul.f32.gmra.mxu0 %v3781
  %v4385 = vpop.f32.mrf.mxu0
  %v4386 = vadd.f32 %v216, %v4385
  %4387 = vdwg.mxu0
  %v4388 = vmax.f32 %v2802, %v3801
  %v4389 = vmax.f32 %v2803, %v3804
  %v4390 = vmax.f32 %v2804, %v3807
  %v4391 = vmax.f32 %v2805, %v3810
  %v4392 = vmax.f32 %v2806, %v3813
  %v4393 = vmax.f32 %v2807, %v3816
  %v4394 = vmax.f32 %v2808, %v3819
  %v4395 = vmax.f32 %v2809, %v3822
  %v4396 = vmax.f32 %v2810, %v3825
  %v4397 = vmax.f32 %v2811, %v3828
  %v4398 = vmax.f32 %v2812, %v3831
  %v4399 = vmax.f32 %v2813, %v3834
  %v4400 = vmax.f32 %v2814, %v3837
  %v4401 = vmax.f32 %v2815, %v3840
  %v4402 = vmax.f32 %v2816, %v3843
  %v4403 = vmax.f32 %v2817, %v3846
  %v4404 = vmax.f32 %v2818, %v3849
  %v4405 = vmax.f32 %v2819, %v3852
  %v4406 = vmax.f32 %v2820, %v3855
  %v4407 = vmax.f32 %v2821, %v3858
  %v4408 = vmax.f32 %v2822, %v3861
  %v4409 = vmax.f32 %v2823, %v3864
  %v4410 = vmax.f32 %v2824, %v3867
  %v4411 = vmax.f32 %v2825, %v3870
  %v4412 = vmax.f32 %v2826, %v3873
  %v4413 = vmax.f32 %v2827, %v3876
  %v4414 = vmax.f32 %v2828, %v3879
  %v4415 = vmax.f32 %v2829, %v3882
  %v4416 = vmax.f32 %v2830, %v3885
  %v4417 = vmax.f32 %v2831, %v3888
  %v4418 = vmax.f32 %v2832, %v3891
  %v4419 = vmax.f32 %v2833, %v3894
  %v4420 = vmax.f32 %v2834, %v3897
  %v4421 = vmax.f32 %v2835, %v3900
  %v4422 = vmax.f32 %v2836, %v3903
  %v4423 = vmax.f32 %v2837, %v3906
  %v4424 = vmax.f32 %v2838, %v3909
  %v4425 = vmax.f32 %v2839, %v3912
  %v4426 = vmax.f32 %v2840, %v3915
  %v4427 = vmax.f32 %v2841, %v3918
  %v4428 = vmax.f32 %v2842, %v3921
  %v4429 = vmax.f32 %v2843, %v3924
  %v4430 = vmax.f32 %v2844, %v3927
  %v4431 = vmax.f32 %v2845, %v3930
  %v4432 = vmax.f32 %v2846, %v3933
  %v4433 = vmax.f32 %v2847, %v3936
  %v4434 = vmax.f32 %v2848, %v3939
  %v4435 = vmax.f32 %v2849, %v3942
  %v4436 = vmax.f32 %v2850, %v3945
  %v4437 = vmax.f32 %v2851, %v3948
  %v4438 = vmax.f32 %v2852, %v3951
  %v4439 = vmax.f32 %v2853, %v3954
  %v4440 = vmax.f32 %v2854, %v3957
  %v4441 = vmax.f32 %v2855, %v3960
  %v4442 = vmax.f32 %v2856, %v3963
  %v4443 = vmax.f32 %v2857, %v3966
  %v4444 = vmax.f32 %v2858, %v3969
  %v4445 = vmax.f32 %v2859, %v3972
  %v4446 = vmax.f32 %v2860, %v3975
  %v4447 = vmax.f32 %v2861, %v3978
  %v4448 = vmax.f32 %v2862, %v3981
  %v4449 = vmax.f32 %v2863, %v3984
  %v4450 = vmax.f32 %v2864, %v3987
  %v4451 = vmax.f32 %v2865, %v3990
  %v4452 = vmax.f32 %v2866, %v3993
  %v4453 = vmax.f32 %v2867, %v3996
  %v4454 = vmax.f32 %v2868, %v3999
  %v4455 = vmax.f32 %v2869, %v4002
  %v4456 = vmax.f32 %v2870, %v4005
  %v4457 = vmax.f32 %v2871, %v4008
  %v4458 = vmax.f32 %v2872, %v4011
  %v4459 = vmax.f32 %v2873, %v4014
  %v4460 = vmax.f32 %v2874, %v4017
  %v4461 = vmax.f32 %v2875, %v4020
  %v4462 = vmax.f32 %v2876, %v4023
  %v4463 = vmax.f32 %v2877, %v4026
  %v4464 = vmax.f32 %v2878, %v4029
  %v4465 = vmax.f32 %v2879, %v4032
  %v4466 = vmax.f32 %v2880, %v4035
  %v4467 = vmax.f32 %v2881, %v4038
  %v4468 = vmax.f32 %v2882, %v4041
  %v4469 = vmax.f32 %v2883, %v4044
  %v4470 = vmax.f32 %v2884, %v4047
  %v4471 = vmax.f32 %v2885, %v4050
  %v4472 = vmax.f32 %v2886, %v4053
  %v4473 = vmax.f32 %v2887, %v4056
  %v4474 = vmax.f32 %v2888, %v4059
  %v4475 = vmax.f32 %v2889, %v4062
  %v4476 = vmax.f32 %v2890, %v4065
  %v4477 = vmax.f32 %v2891, %v4068
  %v4478 = vmax.f32 %v2892, %v4071
  %v4479 = vmax.f32 %v2893, %v4074
  %v4480 = vmax.f32 %v2894, %v4077
  %v4481 = vmax.f32 %v2895, %v4080
  %v4482 = vmax.f32 %v2896, %v4083
  %v4483 = vmax.f32 %v2897, %v4086
  %v4484 = vmax.f32 %v2898, %v4089
  %v4485 = vmax.f32 %v2899, %v4092
  %v4486 = vmax.f32 %v2900, %v4095
  %v4487 = vmax.f32 %v2901, %v4098
  %v4488 = vmax.f32 %v2902, %v4101
  %v4489 = vmax.f32 %v2903, %v4104
  %v4490 = vmax.f32 %v2904, %v4107
  %v4491 = vmax.f32 %v2905, %v4110
  %v4492 = vmax.f32 %v2906, %v4113
  %v4493 = vmax.f32 %v2907, %v4116
  %v4494 = vmax.f32 %v2908, %v4119
  %v4495 = vmax.f32 %v2909, %v4122
  %v4496 = vmax.f32 %v2910, %v4125
  %v4497 = vmax.f32 %v2911, %v4128
  %v4498 = vmax.f32 %v2912, %v4131
  %v4499 = vmax.f32 %v2913, %v4134
  %v4500 = vmax.f32 %v2914, %v4137
  %v4501 = vmax.f32 %v2915, %v4140
  %v4502 = vmax.f32 %v2916, %v4143
  %v4503 = vmax.f32 %v2917, %v4146
  %v4504 = vmax.f32 %v2918, %v4149
  %v4505 = vmax.f32 %v2919, %v4152
  %v4506 = vmax.f32 %v2920, %v4155
  %v4507 = vmax.f32 %v2921, %v4158
  %v4508 = vmax.f32 %v2922, %v4161
  %v4509 = vmax.f32 %v2923, %v4164
  %v4510 = vmax.f32 %v2924, %v4167
  %v4511 = vmax.f32 %v2925, %v4170
  %v4512 = vmax.f32 %v2926, %v4173
  %v4513 = vmax.f32 %v2927, %v4176
  %v4514 = vmax.f32 %v2928, %v4179
  %v4515 = vmax.f32 %v2929, %v4182
  %v4516 = vmax.f32 %v2930, %v4185
  %v4517 = vmax.f32 %v2931, %v4188
  %v4518 = vmax.f32 %v2932, %v4191
  %v4519 = vmax.f32 %v2933, %v4194
  %v4520 = vmax.f32 %v2934, %v4197
  %v4521 = vmax.f32 %v2935, %v4200
  %v4522 = vmax.f32 %v2936, %v4203
  %v4523 = vmax.f32 %v2937, %v4206
  %v4524 = vmax.f32 %v2938, %v4209
  %v4525 = vmax.f32 %v2939, %v4212
  %v4526 = vmax.f32 %v2940, %v4215
  %v4527 = vmax.f32 %v2941, %v4218
  %v4528 = vmax.f32 %v2942, %v4221
  %v4529 = vmax.f32 %v2943, %v4224
  %v4530 = vmax.f32 %v2944, %v4227
  %v4531 = vmax.f32 %v2945, %v4230
  %v4532 = vmax.f32 %v2946, %v4233
  %v4533 = vmax.f32 %v2947, %v4236
  %v4534 = vmax.f32 %v2948, %v4239
  %v4535 = vmax.f32 %v2949, %v4242
  %v4536 = vmax.f32 %v2950, %v4245
  %v4537 = vmax.f32 %v2951, %v4248
  %v4538 = vmax.f32 %v2952, %v4251
  %v4539 = vmax.f32 %v2953, %v4254
  %v4540 = vmax.f32 %v2954, %v4257
  %v4541 = vmax.f32 %v2955, %v4260
  %v4542 = vmax.f32 %v2956, %v4263
  %v4543 = vmax.f32 %v2957, %v4266
  %v4544 = vmax.f32 %v2958, %v4269
  %v4545 = vmax.f32 %v2959, %v4272
  %v4546 = vmax.f32 %v2960, %v4275
  %v4547 = vmax.f32 %v2961, %v4278
  %v4548 = vmax.f32 %v2962, %v4281
  %v4549 = vmax.f32 %v2963, %v4284
  %v4550 = vmax.f32 %v2964, %v4287
  %v4551 = vmax.f32 %v2965, %v4290
  %v4552 = vmax.f32 %v2966, %v4293
  %v4553 = vmax.f32 %v2967, %v4296
  %v4554 = vmax.f32 %v2968, %v4299
  %v4555 = vmax.f32 %v2969, %v4302
  %v4556 = vmax.f32 %v2970, %v4305
  %v4557 = vmax.f32 %v2971, %v4308
  %v4558 = vmax.f32 %v2972, %v4311
  %v4559 = vmax.f32 %v2973, %v4314
  %v4560 = vmax.f32 %v2974, %v4317
  %v4561 = vmax.f32 %v2975, %v4320
  %v4562 = vmax.f32 %v2976, %v4323
  %v4563 = vmax.f32 %v2977, %v4326
  %v4564 = vmax.f32 %v2978, %v4329
  %v4565 = vmax.f32 %v2979, %v4332
  %v4566 = vmax.f32 %v2980, %v4335
  %v4567 = vmax.f32 %v2981, %v4338
  %v4568 = vmax.f32 %v2982, %v4341
  %v4569 = vmax.f32 %v2983, %v4344
  %v4570 = vmax.f32 %v2984, %v4347
  %v4571 = vmax.f32 %v2985, %v4350
  %v4572 = vmax.f32 %v2986, %v4353
  %v4573 = vmax.f32 %v2987, %v4356
  %v4574 = vmax.f32 %v2988, %v4359
  %v4575 = vmax.f32 %v2989, %v4362
  %v4576 = vmax.f32 %v2990, %v4365
  %v4577 = vmax.f32 %v2991, %v4368
  %v4578 = vmax.f32 %v2992, %v4371
  %v4579 = vmax.f32 %v2993, %v4374
  %v4580 = vmax.f32 %v2994, %v4377
  %v4581 = vmax.f32 %v2995, %v4380
  %v4582 = vmax.f32 %v2996, %v4383
  %v4583 = vmax.f32 %v2997, %v4386
  %s4584 = scalar_lea.vmem %s0, 4704
  %v4585 = vld [vmem:[%s4584] sm:$0xff]
  %v4586 = vld [vmem:[%s4584 + $0x8] sm:$0xff]
  %v4587 = vld [vmem:[%s4584 + $0x10] sm:$0xff]
  %v4588 = vld [vmem:[%s4584 + $0x18] sm:$0xff]
  %v4589 = vld [vmem:[%s4584 + $0x20] sm:$0xff]
  %v4590 = vld [vmem:[%s4584 + $0x28] sm:$0xff]
  %v4591 = vld [vmem:[%s4584 + $0x30] sm:$0xff]
  %v4592 = vld [vmem:[%s4584 + $0x38] sm:$0xff]
  %v4593 = vld [vmem:[%s4584 + $0x40] sm:$0xff]
  %v4594 = vld [vmem:[%s4584 + $0x48] sm:$0xff]
  %v4595 = vld [vmem:[%s4584 + $0x50] sm:$0xff]
  %v4596 = vld [vmem:[%s4584 + $0x58] sm:$0xff]
  %v4597 = vld [vmem:[%s4584 + $0x60] sm:$0xff]
  %v4598 = vld [vmem:[%s4584 + $0x68] sm:$0xff]
  %v4599 = vld [vmem:[%s4584 + $0x70] sm:$0xff]
  %v4600 = vld [vmem:[%s4584 + $0x78] sm:$0xff]
  %v4601 = vld [vmem:[%s4584 + $0x80] sm:$0xff]
  %v4602 = vld [vmem:[%s4584 + $0x88] sm:$0xff]
  %v4603 = vld [vmem:[%s4584 + $0x90] sm:$0xff]
  %v4604 = vld [vmem:[%s4584 + $0x98] sm:$0xff]
  %v4605 = vld [vmem:[%s4584 + $0xa0] sm:$0xff]
  %v4606 = vld [vmem:[%s4584 + $0xa8] sm:$0xff]
  %v4607 = vld [vmem:[%s4584 + $0xb0] sm:$0xff]
  %v4608 = vld [vmem:[%s4584 + $0xb8] sm:$0xff]
  %v4609 = vld [vmem:[%s4584 + $0xc0] sm:$0xff]
  %v4610 = vld [vmem:[%s4584 + $0xc8] sm:$0xff]
  %v4611 = vld [vmem:[%s4584 + $0xd0] sm:$0xff]
  %v4612 = vld [vmem:[%s4584 + $0xd8] sm:$0xff]
  %v4613 = vld [vmem:[%s4584 + $0xe0] sm:$0xff]
  %v4614 = vld [vmem:[%s4584 + $0xe8] sm:$0xff]
  %v4615 = vld [vmem:[%s4584 + $0xf0] sm:$0xff]
  %v4616 = vld [vmem:[%s4584 + $0xf8] sm:$0xff]
  %v4617 = vld [vmem:[%s4584 + $0x100] sm:$0xff]
  %v4618 = vld [vmem:[%s4584 + $0x108] sm:$0xff]
  %v4619 = vld [vmem:[%s4584 + $0x110] sm:$0xff]
  %v4620 = vld [vmem:[%s4584 + $0x118] sm:$0xff]
  %v4621 = vld [vmem:[%s4584 + $0x120] sm:$0xff]
  %v4622 = vld [vmem:[%s4584 + $0x128] sm:$0xff]
  %v4623 = vld [vmem:[%s4584 + $0x130] sm:$0xff]
  %v4624 = vld [vmem:[%s4584 + $0x138] sm:$0xff]
  %v4625 = vld [vmem:[%s4584 + $0x140] sm:$0xff]
  %v4626 = vld [vmem:[%s4584 + $0x148] sm:$0xff]
  %v4627 = vld [vmem:[%s4584 + $0x150] sm:$0xff]
  %v4628 = vld [vmem:[%s4584 + $0x158] sm:$0xff]
  %v4629 = vld [vmem:[%s4584 + $0x160] sm:$0xff]
  %v4630 = vld [vmem:[%s4584 + $0x168] sm:$0xff]
  %v4631 = vld [vmem:[%s4584 + $0x170] sm:$0xff]
  %v4632 = vld [vmem:[%s4584 + $0x178] sm:$0xff]
  %v4633 = vld [vmem:[%s4584 + $0x180] sm:$0xff]
  %v4634 = vld [vmem:[%s4584 + $0x188] sm:$0xff]
  %v4635 = vld [vmem:[%s4584 + $0x190] sm:$0xff]
  %v4636 = vld [vmem:[%s4584 + $0x198] sm:$0xff]
  %v4637 = vld [vmem:[%s4584 + $0x1a0] sm:$0xff]
  %v4638 = vld [vmem:[%s4584 + $0x1a8] sm:$0xff]
  %v4639 = vld [vmem:[%s4584 + $0x1b0] sm:$0xff]
  %v4640 = vld [vmem:[%s4584 + $0x1b8] sm:$0xff]
  %v4641 = vld [vmem:[%s4584 + $0x1c0] sm:$0xff]
  %v4642 = vld [vmem:[%s4584 + $0x1c8] sm:$0xff]
  %v4643 = vld [vmem:[%s4584 + $0x1d0] sm:$0xff]
  %v4644 = vld [vmem:[%s4584 + $0x1d8] sm:$0xff]
  %v4645 = vld [vmem:[%s4584 + $0x1e0] sm:$0xff]
  %v4646 = vld [vmem:[%s4584 + $0x1e8] sm:$0xff]
  %v4647 = vld [vmem:[%s4584 + $0x1f0] sm:$0xff]
  %v4648 = vld [vmem:[%s4584 + $0x1f8] sm:$0xff]
  %v4649 = vld [vmem:[%s4584 + $0x200] sm:$0xff]
  %v4650 = vld [vmem:[%s4584 + $0x208] sm:$0xff]
  %v4651 = vld [vmem:[%s4584 + $0x210] sm:$0xff]
  %v4652 = vld [vmem:[%s4584 + $0x218] sm:$0xff]
  %v4653 = vld [vmem:[%s4584 + $0x220] sm:$0xff]
  %v4654 = vld [vmem:[%s4584 + $0x228] sm:$0xff]
  %v4655 = vld [vmem:[%s4584 + $0x230] sm:$0xff]
  %v4656 = vld [vmem:[%s4584 + $0x238] sm:$0xff]
  %v4657 = vld [vmem:[%s4584 + $0x240] sm:$0xff]
  %v4658 = vld [vmem:[%s4584 + $0x248] sm:$0xff]
  %v4659 = vld [vmem:[%s4584 + $0x250] sm:$0xff]
  %v4660 = vld [vmem:[%s4584 + $0x258] sm:$0xff]
  %v4661 = vld [vmem:[%s4584 + $0x260] sm:$0xff]
  %v4662 = vld [vmem:[%s4584 + $0x268] sm:$0xff]
  %v4663 = vld [vmem:[%s4584 + $0x270] sm:$0xff]
  %v4664 = vld [vmem:[%s4584 + $0x278] sm:$0xff]
  %v4665 = vld [vmem:[%s4584 + $0x280] sm:$0xff]
  %v4666 = vld [vmem:[%s4584 + $0x288] sm:$0xff]
  %v4667 = vld [vmem:[%s4584 + $0x290] sm:$0xff]
  %v4668 = vld [vmem:[%s4584 + $0x298] sm:$0xff]
  %v4669 = vld [vmem:[%s4584 + $0x2a0] sm:$0xff]
  %v4670 = vld [vmem:[%s4584 + $0x2a8] sm:$0xff]
  %v4671 = vld [vmem:[%s4584 + $0x2b0] sm:$0xff]
  %v4672 = vld [vmem:[%s4584 + $0x2b8] sm:$0xff]
  %v4673 = vld [vmem:[%s4584 + $0x2c0] sm:$0xff]
  %v4674 = vld [vmem:[%s4584 + $0x2c8] sm:$0xff]
  %v4675 = vld [vmem:[%s4584 + $0x2d0] sm:$0xff]
  %v4676 = vld [vmem:[%s4584 + $0x2d8] sm:$0xff]
  %v4677 = vld [vmem:[%s4584 + $0x2e0] sm:$0xff]
  %v4678 = vld [vmem:[%s4584 + $0x2e8] sm:$0xff]
  %v4679 = vld [vmem:[%s4584 + $0x2f0] sm:$0xff]
  %v4680 = vld [vmem:[%s4584 + $0x2f8] sm:$0xff]
  %v4681 = vld [vmem:[%s4584 + $0x300] sm:$0xff]
  %v4682 = vld [vmem:[%s4584 + $0x308] sm:$0xff]
  %v4683 = vld [vmem:[%s4584 + $0x310] sm:$0xff]
  %v4684 = vld [vmem:[%s4584 + $0x318] sm:$0xff]
  %v4685 = vld [vmem:[%s4584 + $0x320] sm:$0xff]
  %v4686 = vld [vmem:[%s4584 + $0x328] sm:$0xff]
  %v4687 = vld [vmem:[%s4584 + $0x330] sm:$0xff]
  %v4688 = vld [vmem:[%s4584 + $0x338] sm:$0xff]
  %v4689 = vld [vmem:[%s4584 + $0x340] sm:$0xff]
  %v4690 = vld [vmem:[%s4584 + $0x348] sm:$0xff]
  %v4691 = vld [vmem:[%s4584 + $0x350] sm:$0xff]
  %v4692 = vld [vmem:[%s4584 + $0x358] sm:$0xff]
  %v4693 = vld [vmem:[%s4584 + $0x360] sm:$0xff]
  %v4694 = vld [vmem:[%s4584 + $0x368] sm:$0xff]
  %v4695 = vld [vmem:[%s4584 + $0x370] sm:$0xff]
  %v4696 = vld [vmem:[%s4584 + $0x378] sm:$0xff]
  %v4697 = vld [vmem:[%s4584 + $0x380] sm:$0xff]
  %v4698 = vld [vmem:[%s4584 + $0x388] sm:$0xff]
  %v4699 = vld [vmem:[%s4584 + $0x390] sm:$0xff]
  %v4700 = vld [vmem:[%s4584 + $0x398] sm:$0xff]
  %v4701 = vld [vmem:[%s4584 + $0x3a0] sm:$0xff]
  %v4702 = vld [vmem:[%s4584 + $0x3a8] sm:$0xff]
  %v4703 = vld [vmem:[%s4584 + $0x3b0] sm:$0xff]
  %v4704 = vld [vmem:[%s4584 + $0x3b8] sm:$0xff]
  %v4705 = vld [vmem:[%s4584 + $0x3c0] sm:$0xff]
  %v4706 = vld [vmem:[%s4584 + $0x3c8] sm:$0xff]
  %v4707 = vld [vmem:[%s4584 + $0x3d0] sm:$0xff]
  %v4708 = vld [vmem:[%s4584 + $0x3d8] sm:$0xff]
  %v4709 = vld [vmem:[%s4584 + $0x3e0] sm:$0xff]
  %v4710 = vld [vmem:[%s4584 + $0x3e8] sm:$0xff]
  %v4711 = vld [vmem:[%s4584 + $0x3f0] sm:$0xff]
  %v4712 = vld [vmem:[%s4584 + $0x3f8] sm:$0xff]
  %v4713 = vld [vmem:[%s4584 + $0x400] sm:$0xff]
  %v4714 = vld [vmem:[%s4584 + $0x408] sm:$0xff]
  %v4715 = vld [vmem:[%s4584 + $0x410] sm:$0xff]
  %v4716 = vld [vmem:[%s4584 + $0x418] sm:$0xff]
  %v4717 = vld [vmem:[%s4584 + $0x420] sm:$0xff]
  %v4718 = vld [vmem:[%s4584 + $0x428] sm:$0xff]
  %v4719 = vld [vmem:[%s4584 + $0x430] sm:$0xff]
  %v4720 = vld [vmem:[%s4584 + $0x438] sm:$0xff]
  %v4721 = vld [vmem:[%s4584 + $0x440] sm:$0xff]
  %v4722 = vld [vmem:[%s4584 + $0x448] sm:$0xff]
  %v4723 = vld [vmem:[%s4584 + $0x450] sm:$0xff]
  %v4724 = vld [vmem:[%s4584 + $0x458] sm:$0xff]
  %v4725 = vld [vmem:[%s4584 + $0x460] sm:$0xff]
  %v4726 = vld [vmem:[%s4584 + $0x468] sm:$0xff]
  %v4727 = vld [vmem:[%s4584 + $0x470] sm:$0xff]
  %v4728 = vld [vmem:[%s4584 + $0x478] sm:$0xff]
  %v4729 = vld [vmem:[%s4584 + $0x480] sm:$0xff]
  %v4730 = vld [vmem:[%s4584 + $0x488] sm:$0xff]
  %v4731 = vld [vmem:[%s4584 + $0x490] sm:$0xff]
  %v4732 = vld [vmem:[%s4584 + $0x498] sm:$0xff]
  %v4733 = vld [vmem:[%s4584 + $0x4a0] sm:$0xff]
  %v4734 = vld [vmem:[%s4584 + $0x4a8] sm:$0xff]
  %v4735 = vld [vmem:[%s4584 + $0x4b0] sm:$0xff]
  %v4736 = vld [vmem:[%s4584 + $0x4b8] sm:$0xff]
  %v4737 = vld [vmem:[%s4584 + $0x4c0] sm:$0xff]
  %v4738 = vld [vmem:[%s4584 + $0x4c8] sm:$0xff]
  %v4739 = vld [vmem:[%s4584 + $0x4d0] sm:$0xff]
  %v4740 = vld [vmem:[%s4584 + $0x4d8] sm:$0xff]
  %v4741 = vld [vmem:[%s4584 + $0x4e0] sm:$0xff]
  %v4742 = vld [vmem:[%s4584 + $0x4e8] sm:$0xff]
  %v4743 = vld [vmem:[%s4584 + $0x4f0] sm:$0xff]
  %v4744 = vld [vmem:[%s4584 + $0x4f8] sm:$0xff]
  %v4745 = vld [vmem:[%s4584 + $0x500] sm:$0xff]
  %v4746 = vld [vmem:[%s4584 + $0x508] sm:$0xff]
  %v4747 = vld [vmem:[%s4584 + $0x510] sm:$0xff]
  %v4748 = vld [vmem:[%s4584 + $0x518] sm:$0xff]
  %v4749 = vld [vmem:[%s4584 + $0x520] sm:$0xff]
  %v4750 = vld [vmem:[%s4584 + $0x528] sm:$0xff]
  %v4751 = vld [vmem:[%s4584 + $0x530] sm:$0xff]
  %v4752 = vld [vmem:[%s4584 + $0x538] sm:$0xff]
  %v4753 = vld [vmem:[%s4584 + $0x540] sm:$0xff]
  %v4754 = vld [vmem:[%s4584 + $0x548] sm:$0xff]
  %v4755 = vld [vmem:[%s4584 + $0x550] sm:$0xff]
  %v4756 = vld [vmem:[%s4584 + $0x558] sm:$0xff]
  %v4757 = vld [vmem:[%s4584 + $0x560] sm:$0xff]
  %v4758 = vld [vmem:[%s4584 + $0x568] sm:$0xff]
  %v4759 = vld [vmem:[%s4584 + $0x570] sm:$0xff]
  %v4760 = vld [vmem:[%s4584 + $0x578] sm:$0xff]
  %v4761 = vld [vmem:[%s4584 + $0x580] sm:$0xff]
  %v4762 = vld [vmem:[%s4584 + $0x588] sm:$0xff]
  %v4763 = vld [vmem:[%s4584 + $0x590] sm:$0xff]
  %v4764 = vld [vmem:[%s4584 + $0x598] sm:$0xff]
  %v4765 = vld [vmem:[%s4584 + $0x5a0] sm:$0xff]
  %v4766 = vld [vmem:[%s4584 + $0x5a8] sm:$0xff]
  %v4767 = vld [vmem:[%s4584 + $0x5b0] sm:$0xff]
  %v4768 = vld [vmem:[%s4584 + $0x5b8] sm:$0xff]
  %v4769 = vld [vmem:[%s4584 + $0x5c0] sm:$0xff]
  %v4770 = vld [vmem:[%s4584 + $0x5c8] sm:$0xff]
  %v4771 = vld [vmem:[%s4584 + $0x5d0] sm:$0xff]
  %v4772 = vld [vmem:[%s4584 + $0x5d8] sm:$0xff]
  %v4773 = vld [vmem:[%s4584 + $0x5e0] sm:$0xff]
  %v4774 = vld [vmem:[%s4584 + $0x5e8] sm:$0xff]
  %v4775 = vld [vmem:[%s4584 + $0x5f0] sm:$0xff]
  %v4776 = vld [vmem:[%s4584 + $0x5f8] sm:$0xff]
  %v4777 = vld [vmem:[%s4584 + $0x600] sm:$0xff]
  %v4778 = vld [vmem:[%s4584 + $0x608] sm:$0xff]
  %v4779 = vld [vmem:[%s4584 + $0x610] sm:$0xff]
  %v4780 = vld [vmem:[%s4584 + $0x618] sm:$0xff]
  %v4782 = vsel %vm218, %v4585, 0
  %v4785 = vsel %vm218, %v4586, 0
  %v4788 = vsel %vm218, %v4587, 0
  %v4791 = vsel %vm218, %v4588, 0
  %v4794 = vsel %vm218, %v4589, 0
  %v4797 = vsel %vm218, %v4590, 0
  %v4800 = vsel %vm218, %v4591, 0
  %v4803 = vsel %vm218, %v4592, 0
  %v4806 = vsel %vm218, %v4593, 0
  %v4809 = vsel %vm218, %v4594, 0
  %v4812 = vsel %vm218, %v4595, 0
  %v4815 = vsel %vm218, %v4596, 0
  %v4818 = vsel %vm218, %v4597, 0
  %v4821 = vsel %vm218, %v4598, 0
  %v4824 = vsel %vm218, %v4599, 0
  %v4827 = vsel %vm218, %v4600, 0
  %v4830 = vsel %vm218, %v4601, 0
  %v4833 = vsel %vm218, %v4602, 0
  %v4836 = vsel %vm218, %v4603, 0
  %v4839 = vsel %vm218, %v4604, 0
  %v4842 = vsel %vm218, %v4605, 0
  %v4845 = vsel %vm218, %v4606, 0
  %v4848 = vsel %vm218, %v4607, 0
  %v4851 = vsel %vm218, %v4608, 0
  %v4854 = vsel %vm218, %v4609, 0
  %v4857 = vsel %vm218, %v4610, 0
  %v4860 = vsel %vm218, %v4611, 0
  %v4863 = vsel %vm218, %v4612, 0
  %v4866 = vsel %vm218, %v4613, 0
  %v4869 = vsel %vm218, %v4614, 0
  %v4872 = vsel %vm218, %v4615, 0
  %v4875 = vsel %vm218, %v4616, 0
  %v4878 = vsel %vm218, %v4617, 0
  %v4881 = vsel %vm218, %v4618, 0
  %v4884 = vsel %vm218, %v4619, 0
  %v4887 = vsel %vm218, %v4620, 0
  %v4890 = vsel %vm218, %v4621, 0
  %v4893 = vsel %vm218, %v4622, 0
  %v4896 = vsel %vm218, %v4623, 0
  %v4899 = vsel %vm218, %v4624, 0
  %v4902 = vsel %vm218, %v4625, 0
  %v4905 = vsel %vm218, %v4626, 0
  %v4908 = vsel %vm218, %v4627, 0
  %v4911 = vsel %vm218, %v4628, 0
  %v4914 = vsel %vm218, %v4629, 0
  %v4917 = vsel %vm218, %v4630, 0
  %v4920 = vsel %vm218, %v4631, 0
  %v4923 = vsel %vm218, %v4632, 0
  %v4926 = vsel %vm218, %v4633, 0
  %v4929 = vsel %vm218, %v4634, 0
  %v4932 = vsel %vm218, %v4635, 0
  %v4935 = vsel %vm218, %v4636, 0
  %v4938 = vsel %vm218, %v4637, 0
  %v4941 = vsel %vm218, %v4638, 0
  %v4944 = vsel %vm218, %v4639, 0
  %v4947 = vsel %vm218, %v4640, 0
  %v4950 = vsel %vm218, %v4641, 0
  %v4953 = vsel %vm218, %v4642, 0
  %v4956 = vsel %vm218, %v4643, 0
  %v4959 = vsel %vm218, %v4644, 0
  %v4962 = vsel %vm218, %v4645, 0
  %v4965 = vsel %vm218, %v4646, 0
  %v4968 = vsel %vm218, %v4647, 0
  %v4971 = vsel %vm218, %v4648, 0
  %v4974 = vsel %vm218, %v4649, 0
  %v4977 = vsel %vm218, %v4650, 0
  %v4980 = vsel %vm218, %v4651, 0
  %v4983 = vsel %vm218, %v4652, 0
  %v4986 = vsel %vm218, %v4653, 0
  %v4989 = vsel %vm218, %v4654, 0
  %v4992 = vsel %vm218, %v4655, 0
  %v4995 = vsel %vm218, %v4656, 0
  %v4998 = vsel %vm218, %v4657, 0
  %v5001 = vsel %vm218, %v4658, 0
  %v5004 = vsel %vm218, %v4659, 0
  %v5007 = vsel %vm218, %v4660, 0
  %v5010 = vsel %vm218, %v4661, 0
  %v5013 = vsel %vm218, %v4662, 0
  %v5016 = vsel %vm218, %v4663, 0
  %v5019 = vsel %vm218, %v4664, 0
  %v5022 = vsel %vm218, %v4665, 0
  %v5025 = vsel %vm218, %v4666, 0
  %v5028 = vsel %vm218, %v4667, 0
  %v5031 = vsel %vm218, %v4668, 0
  %v5034 = vsel %vm218, %v4669, 0
  %v5037 = vsel %vm218, %v4670, 0
  %v5040 = vsel %vm218, %v4671, 0
  %v5043 = vsel %vm218, %v4672, 0
  %v5046 = vsel %vm218, %v4673, 0
  %v5049 = vsel %vm218, %v4674, 0
  %v5052 = vsel %vm218, %v4675, 0
  %v5055 = vsel %vm218, %v4676, 0
  %v5058 = vsel %vm218, %v4677, 0
  %v5061 = vsel %vm218, %v4678, 0
  %v5064 = vsel %vm218, %v4679, 0
  %v5067 = vsel %vm218, %v4680, 0
  %v5070 = vsel %vm218, %v4681, 0
  %v5073 = vsel %vm218, %v4682, 0
  %v5076 = vsel %vm218, %v4683, 0
  %v5079 = vsel %vm218, %v4684, 0
  %v5082 = vsel %vm218, %v4685, 0
  %v5085 = vsel %vm218, %v4686, 0
  %v5088 = vsel %vm218, %v4687, 0
  %v5091 = vsel %vm218, %v4688, 0
  %v5094 = vsel %vm218, %v4689, 0
  %v5097 = vsel %vm218, %v4690, 0
  %v5100 = vsel %vm218, %v4691, 0
  %v5103 = vsel %vm218, %v4692, 0
  %v5106 = vsel %vm218, %v4693, 0
  %v5109 = vsel %vm218, %v4694, 0
  %v5112 = vsel %vm218, %v4695, 0
  %v5115 = vsel %vm218, %v4696, 0
  %v5118 = vsel %vm218, %v4697, 0
  %v5121 = vsel %vm218, %v4698, 0
  %v5124 = vsel %vm218, %v4699, 0
  %v5127 = vsel %vm218, %v4700, 0
  %v5130 = vsel %vm218, %v4701, 0
  %v5133 = vsel %vm218, %v4702, 0
  %v5136 = vsel %vm218, %v4703, 0
  %v5139 = vsel %vm218, %v4704, 0
  %v5142 = vsel %vm218, %v4705, 0
  %v5145 = vsel %vm218, %v4706, 0
  %v5148 = vsel %vm218, %v4707, 0
  %v5151 = vsel %vm218, %v4708, 0
  %v5154 = vsel %vm218, %v4709, 0
  %v5157 = vsel %vm218, %v4710, 0
  %v5160 = vsel %vm218, %v4711, 0
  %v5163 = vsel %vm218, %v4712, 0
  %v5166 = vsel %vm218, %v4713, 0
  %v5169 = vsel %vm218, %v4714, 0
  %v5172 = vsel %vm218, %v4715, 0
  %v5175 = vsel %vm218, %v4716, 0
  %v5178 = vsel %vm218, %v4717, 0
  %v5181 = vsel %vm218, %v4718, 0
  %v5184 = vsel %vm218, %v4719, 0
  %v5187 = vsel %vm218, %v4720, 0
  %v5190 = vsel %vm218, %v4721, 0
  %v5193 = vsel %vm218, %v4722, 0
  %v5196 = vsel %vm218, %v4723, 0
  %v5199 = vsel %vm218, %v4724, 0
  %v5202 = vsel %vm218, %v4725, 0
  %v5205 = vsel %vm218, %v4726, 0
  %v5208 = vsel %vm218, %v4727, 0
  %v5211 = vsel %vm218, %v4728, 0
  %v5214 = vsel %vm218, %v4729, 0
  %v5217 = vsel %vm218, %v4730, 0
  %v5220 = vsel %vm218, %v4731, 0
  %v5223 = vsel %vm218, %v4732, 0
  %v5226 = vsel %vm218, %v4733, 0
  %v5229 = vsel %vm218, %v4734, 0
  %v5232 = vsel %vm218, %v4735, 0
  %v5235 = vsel %vm218, %v4736, 0
  %v5238 = vsel %vm218, %v4737, 0
  %v5241 = vsel %vm218, %v4738, 0
  %v5244 = vsel %vm218, %v4739, 0
  %v5247 = vsel %vm218, %v4740, 0
  %v5250 = vsel %vm218, %v4741, 0
  %v5253 = vsel %vm218, %v4742, 0
  %v5256 = vsel %vm218, %v4743, 0
  %v5259 = vsel %vm218, %v4744, 0
  %v5262 = vsel %vm218, %v4745, 0
  %v5265 = vsel %vm218, %v4746, 0
  %v5268 = vsel %vm218, %v4747, 0
  %v5271 = vsel %vm218, %v4748, 0
  %v5274 = vsel %vm218, %v4749, 0
  %v5277 = vsel %vm218, %v4750, 0
  %v5280 = vsel %vm218, %v4751, 0
  %v5283 = vsel %vm218, %v4752, 0
  %v5286 = vsel %vm218, %v4753, 0
  %v5289 = vsel %vm218, %v4754, 0
  %v5292 = vsel %vm218, %v4755, 0
  %v5295 = vsel %vm218, %v4756, 0
  %v5298 = vsel %vm218, %v4757, 0
  %v5301 = vsel %vm218, %v4758, 0
  %v5304 = vsel %vm218, %v4759, 0
  %v5307 = vsel %vm218, %v4760, 0
  %v5310 = vsel %vm218, %v4761, 0
  %v5313 = vsel %vm218, %v4762, 0
  %v5316 = vsel %vm218, %v4763, 0
  %v5319 = vsel %vm218, %v4764, 0
  %v5322 = vsel %vm218, %v4765, 0
  %v5325 = vsel %vm218, %v4766, 0
  %v5328 = vsel %vm218, %v4767, 0
  %v5331 = vsel %vm218, %v4768, 0
  %v5334 = vsel %vm218, %v4769, 0
  %v5337 = vsel %vm218, %v4770, 0
  %v5340 = vsel %vm218, %v4771, 0
  %v5343 = vsel %vm218, %v4772, 0
  %v5346 = vsel %vm218, %v4773, 0
  %v5349 = vsel %vm218, %v4774, 0
  %v5352 = vsel %vm218, %v4775, 0
  %v5355 = vsel %vm218, %v4776, 0
  %v5358 = vsel %vm218, %v4777, 0
  %v5361 = vsel %vm218, %v4778, 0
  %v5364 = vsel %vm218, %v4779, 0
  %v5367 = vsel %vm218, %v4780, 0
  %5369 = vmatpush.msra.mxu0 0.0
  %5370 = vmatpush.msra.mxu0 0.0
  %5371 = vmatpush.msra.mxu0 0.0
  %5372 = vmatpush.msra.mxu0 0.0
  %5373 = vmatpush.msra.mxu0 0.0
  %5374 = vmatpush.msra.mxu0 0.0
  %5375 = vmatpush.msra.mxu0 0.0
  %5376 = vmatpush.msra.mxu0 0.0
  %5377 = vmatpush.msra.mxu0 0.0
  %5378 = vmatpush.msra.mxu0 0.0
  %5379 = vmatpush.msra.mxu0 0.0
  %5380 = vmatpush.msra.mxu0 0.0
  %5381 = vmatpush.msra.mxu0 %v17
  %5382 = vmatpush.msra.mxu0 %v16
  %5383 = vmatpush.msra.mxu0 %v15
  %5384 = vmatpush.msra.mxu0 %v14
  %5385 = vmatmul.f32.gmra.mxu0 %v4782
  %v5386 = vpop.f32.mrf.mxu0
  %v5387 = vadd.f32 %v216, %v5386
  %5388 = vmatmul.f32.gmra.mxu0 %v4785
  %v5389 = vpop.f32.mrf.mxu0
  %v5390 = vadd.f32 %v216, %v5389
  %5391 = vmatmul.f32.gmra.mxu0 %v4788
  %v5392 = vpop.f32.mrf.mxu0
  %v5393 = vadd.f32 %v216, %v5392
  %5394 = vmatmul.f32.gmra.mxu0 %v4791
  %v5395 = vpop.f32.mrf.mxu0
  %v5396 = vadd.f32 %v216, %v5395
  %5397 = vmatmul.f32.gmra.mxu0 %v4794
  %v5398 = vpop.f32.mrf.mxu0
  %v5399 = vadd.f32 %v216, %v5398
  %5400 = vmatmul.f32.gmra.mxu0 %v4797
  %v5401 = vpop.f32.mrf.mxu0
  %v5402 = vadd.f32 %v216, %v5401
  %5403 = vmatmul.f32.gmra.mxu0 %v4800
  %v5404 = vpop.f32.mrf.mxu0
  %v5405 = vadd.f32 %v216, %v5404
  %5406 = vmatmul.f32.gmra.mxu0 %v4803
  %v5407 = vpop.f32.mrf.mxu0
  %v5408 = vadd.f32 %v216, %v5407
  %5409 = vmatmul.f32.gmra.mxu0 %v4806
  %v5410 = vpop.f32.mrf.mxu0
  %v5411 = vadd.f32 %v216, %v5410
  %5412 = vmatmul.f32.gmra.mxu0 %v4809
  %v5413 = vpop.f32.mrf.mxu0
  %v5414 = vadd.f32 %v216, %v5413
  %5415 = vmatmul.f32.gmra.mxu0 %v4812
  %v5416 = vpop.f32.mrf.mxu0
  %v5417 = vadd.f32 %v216, %v5416
  %5418 = vmatmul.f32.gmra.mxu0 %v4815
  %v5419 = vpop.f32.mrf.mxu0
  %v5420 = vadd.f32 %v216, %v5419
  %5421 = vmatmul.f32.gmra.mxu0 %v4818
  %v5422 = vpop.f32.mrf.mxu0
  %v5423 = vadd.f32 %v216, %v5422
  %5424 = vmatmul.f32.gmra.mxu0 %v4821
  %v5425 = vpop.f32.mrf.mxu0
  %v5426 = vadd.f32 %v216, %v5425
  %5427 = vmatmul.f32.gmra.mxu0 %v4824
  %v5428 = vpop.f32.mrf.mxu0
  %v5429 = vadd.f32 %v216, %v5428
  %5430 = vmatmul.f32.gmra.mxu0 %v4827
  %v5431 = vpop.f32.mrf.mxu0
  %v5432 = vadd.f32 %v216, %v5431
  %5433 = vmatmul.f32.gmra.mxu0 %v4830
  %v5434 = vpop.f32.mrf.mxu0
  %v5435 = vadd.f32 %v216, %v5434
  %5436 = vmatmul.f32.gmra.mxu0 %v4833
  %v5437 = vpop.f32.mrf.mxu0
  %v5438 = vadd.f32 %v216, %v5437
  %5439 = vmatmul.f32.gmra.mxu0 %v4836
  %v5440 = vpop.f32.mrf.mxu0
  %v5441 = vadd.f32 %v216, %v5440
  %5442 = vmatmul.f32.gmra.mxu0 %v4839
  %v5443 = vpop.f32.mrf.mxu0
  %v5444 = vadd.f32 %v216, %v5443
  %5445 = vmatmul.f32.gmra.mxu0 %v4842
  %v5446 = vpop.f32.mrf.mxu0
  %v5447 = vadd.f32 %v216, %v5446
  %5448 = vmatmul.f32.gmra.mxu0 %v4845
  %v5449 = vpop.f32.mrf.mxu0
  %v5450 = vadd.f32 %v216, %v5449
  %5451 = vmatmul.f32.gmra.mxu0 %v4848
  %v5452 = vpop.f32.mrf.mxu0
  %v5453 = vadd.f32 %v216, %v5452
  %5454 = vmatmul.f32.gmra.mxu0 %v4851
  %v5455 = vpop.f32.mrf.mxu0
  %v5456 = vadd.f32 %v216, %v5455
  %5457 = vmatmul.f32.gmra.mxu0 %v4854
  %v5458 = vpop.f32.mrf.mxu0
  %v5459 = vadd.f32 %v216, %v5458
  %5460 = vmatmul.f32.gmra.mxu0 %v4857
  %v5461 = vpop.f32.mrf.mxu0
  %v5462 = vadd.f32 %v216, %v5461
  %5463 = vmatmul.f32.gmra.mxu0 %v4860
  %v5464 = vpop.f32.mrf.mxu0
  %v5465 = vadd.f32 %v216, %v5464
  %5466 = vmatmul.f32.gmra.mxu0 %v4863
  %v5467 = vpop.f32.mrf.mxu0
  %v5468 = vadd.f32 %v216, %v5467
  %5469 = vmatmul.f32.gmra.mxu0 %v4866
  %v5470 = vpop.f32.mrf.mxu0
  %v5471 = vadd.f32 %v216, %v5470
  %5472 = vmatmul.f32.gmra.mxu0 %v4869
  %v5473 = vpop.f32.mrf.mxu0
  %v5474 = vadd.f32 %v216, %v5473
  %5475 = vmatmul.f32.gmra.mxu0 %v4872
  %v5476 = vpop.f32.mrf.mxu0
  %v5477 = vadd.f32 %v216, %v5476
  %5478 = vmatmul.f32.gmra.mxu0 %v4875
  %v5479 = vpop.f32.mrf.mxu0
  %v5480 = vadd.f32 %v216, %v5479
  %5481 = vmatmul.f32.gmra.mxu0 %v4878
  %v5482 = vpop.f32.mrf.mxu0
  %v5483 = vadd.f32 %v216, %v5482
  %5484 = vmatmul.f32.gmra.mxu0 %v4881
  %v5485 = vpop.f32.mrf.mxu0
  %v5486 = vadd.f32 %v216, %v5485
  %5487 = vmatmul.f32.gmra.mxu0 %v4884
  %v5488 = vpop.f32.mrf.mxu0
  %v5489 = vadd.f32 %v216, %v5488
  %5490 = vmatmul.f32.gmra.mxu0 %v4887
  %v5491 = vpop.f32.mrf.mxu0
  %v5492 = vadd.f32 %v216, %v5491
  %5493 = vmatmul.f32.gmra.mxu0 %v4890
  %v5494 = vpop.f32.mrf.mxu0
  %v5495 = vadd.f32 %v216, %v5494
  %5496 = vmatmul.f32.gmra.mxu0 %v4893
  %v5497 = vpop.f32.mrf.mxu0
  %v5498 = vadd.f32 %v216, %v5497
  %5499 = vmatmul.f32.gmra.mxu0 %v4896
  %v5500 = vpop.f32.mrf.mxu0
  %v5501 = vadd.f32 %v216, %v5500
  %5502 = vmatmul.f32.gmra.mxu0 %v4899
  %v5503 = vpop.f32.mrf.mxu0
  %v5504 = vadd.f32 %v216, %v5503
  %5505 = vmatmul.f32.gmra.mxu0 %v4902
  %v5506 = vpop.f32.mrf.mxu0
  %v5507 = vadd.f32 %v216, %v5506
  %5508 = vmatmul.f32.gmra.mxu0 %v4905
  %v5509 = vpop.f32.mrf.mxu0
  %v5510 = vadd.f32 %v216, %v5509
  %5511 = vmatmul.f32.gmra.mxu0 %v4908
  %v5512 = vpop.f32.mrf.mxu0
  %v5513 = vadd.f32 %v216, %v5512
  %5514 = vmatmul.f32.gmra.mxu0 %v4911
  %v5515 = vpop.f32.mrf.mxu0
  %v5516 = vadd.f32 %v216, %v5515
  %5517 = vmatmul.f32.gmra.mxu0 %v4914
  %v5518 = vpop.f32.mrf.mxu0
  %v5519 = vadd.f32 %v216, %v5518
  %5520 = vmatmul.f32.gmra.mxu0 %v4917
  %v5521 = vpop.f32.mrf.mxu0
  %v5522 = vadd.f32 %v216, %v5521
  %5523 = vmatmul.f32.gmra.mxu0 %v4920
  %v5524 = vpop.f32.mrf.mxu0
  %v5525 = vadd.f32 %v216, %v5524
  %5526 = vmatmul.f32.gmra.mxu0 %v4923
  %v5527 = vpop.f32.mrf.mxu0
  %v5528 = vadd.f32 %v216, %v5527
  %5529 = vmatmul.f32.gmra.mxu0 %v4926
  %v5530 = vpop.f32.mrf.mxu0
  %v5531 = vadd.f32 %v216, %v5530
  %5532 = vmatmul.f32.gmra.mxu0 %v4929
  %v5533 = vpop.f32.mrf.mxu0
  %v5534 = vadd.f32 %v216, %v5533
  %5535 = vmatmul.f32.gmra.mxu0 %v4932
  %v5536 = vpop.f32.mrf.mxu0
  %v5537 = vadd.f32 %v216, %v5536
  %5538 = vmatmul.f32.gmra.mxu0 %v4935
  %v5539 = vpop.f32.mrf.mxu0
  %v5540 = vadd.f32 %v216, %v5539
  %5541 = vmatmul.f32.gmra.mxu0 %v4938
  %v5542 = vpop.f32.mrf.mxu0
  %v5543 = vadd.f32 %v216, %v5542
  %5544 = vmatmul.f32.gmra.mxu0 %v4941
  %v5545 = vpop.f32.mrf.mxu0
  %v5546 = vadd.f32 %v216, %v5545
  %5547 = vmatmul.f32.gmra.mxu0 %v4944
  %v5548 = vpop.f32.mrf.mxu0
  %v5549 = vadd.f32 %v216, %v5548
  %5550 = vmatmul.f32.gmra.mxu0 %v4947
  %v5551 = vpop.f32.mrf.mxu0
  %v5552 = vadd.f32 %v216, %v5551
  %5553 = vmatmul.f32.gmra.mxu0 %v4950
  %v5554 = vpop.f32.mrf.mxu0
  %v5555 = vadd.f32 %v216, %v5554
  %5556 = vmatmul.f32.gmra.mxu0 %v4953
  %v5557 = vpop.f32.mrf.mxu0
  %v5558 = vadd.f32 %v216, %v5557
  %5559 = vmatmul.f32.gmra.mxu0 %v4956
  %v5560 = vpop.f32.mrf.mxu0
  %v5561 = vadd.f32 %v216, %v5560
  %5562 = vmatmul.f32.gmra.mxu0 %v4959
  %v5563 = vpop.f32.mrf.mxu0
  %v5564 = vadd.f32 %v216, %v5563
  %5565 = vmatmul.f32.gmra.mxu0 %v4962
  %v5566 = vpop.f32.mrf.mxu0
  %v5567 = vadd.f32 %v216, %v5566
  %5568 = vmatmul.f32.gmra.mxu0 %v4965
  %v5569 = vpop.f32.mrf.mxu0
  %v5570 = vadd.f32 %v216, %v5569
  %5571 = vmatmul.f32.gmra.mxu0 %v4968
  %v5572 = vpop.f32.mrf.mxu0
  %v5573 = vadd.f32 %v216, %v5572
  %5574 = vmatmul.f32.gmra.mxu0 %v4971
  %v5575 = vpop.f32.mrf.mxu0
  %v5576 = vadd.f32 %v216, %v5575
  %5577 = vmatmul.f32.gmra.mxu0 %v4974
  %v5578 = vpop.f32.mrf.mxu0
  %v5579 = vadd.f32 %v216, %v5578
  %5580 = vmatmul.f32.gmra.mxu0 %v4977
  %v5581 = vpop.f32.mrf.mxu0
  %v5582 = vadd.f32 %v216, %v5581
  %5583 = vmatmul.f32.gmra.mxu0 %v4980
  %v5584 = vpop.f32.mrf.mxu0
  %v5585 = vadd.f32 %v216, %v5584
  %5586 = vmatmul.f32.gmra.mxu0 %v4983
  %v5587 = vpop.f32.mrf.mxu0
  %v5588 = vadd.f32 %v216, %v5587
  %5589 = vmatmul.f32.gmra.mxu0 %v4986
  %v5590 = vpop.f32.mrf.mxu0
  %v5591 = vadd.f32 %v216, %v5590
  %5592 = vmatmul.f32.gmra.mxu0 %v4989
  %v5593 = vpop.f32.mrf.mxu0
  %v5594 = vadd.f32 %v216, %v5593
  %5595 = vmatmul.f32.gmra.mxu0 %v4992
  %v5596 = vpop.f32.mrf.mxu0
  %v5597 = vadd.f32 %v216, %v5596
  %5598 = vmatmul.f32.gmra.mxu0 %v4995
  %v5599 = vpop.f32.mrf.mxu0
  %v5600 = vadd.f32 %v216, %v5599
  %5601 = vmatmul.f32.gmra.mxu0 %v4998
  %v5602 = vpop.f32.mrf.mxu0
  %v5603 = vadd.f32 %v216, %v5602
  %5604 = vmatmul.f32.gmra.mxu0 %v5001
  %v5605 = vpop.f32.mrf.mxu0
  %v5606 = vadd.f32 %v216, %v5605
  %5607 = vmatmul.f32.gmra.mxu0 %v5004
  %v5608 = vpop.f32.mrf.mxu0
  %v5609 = vadd.f32 %v216, %v5608
  %5610 = vmatmul.f32.gmra.mxu0 %v5007
  %v5611 = vpop.f32.mrf.mxu0
  %v5612 = vadd.f32 %v216, %v5611
  %5613 = vmatmul.f32.gmra.mxu0 %v5010
  %v5614 = vpop.f32.mrf.mxu0
  %v5615 = vadd.f32 %v216, %v5614
  %5616 = vmatmul.f32.gmra.mxu0 %v5013
  %v5617 = vpop.f32.mrf.mxu0
  %v5618 = vadd.f32 %v216, %v5617
  %5619 = vmatmul.f32.gmra.mxu0 %v5016
  %v5620 = vpop.f32.mrf.mxu0
  %v5621 = vadd.f32 %v216, %v5620
  %5622 = vmatmul.f32.gmra.mxu0 %v5019
  %v5623 = vpop.f32.mrf.mxu0
  %v5624 = vadd.f32 %v216, %v5623
  %5625 = vmatmul.f32.gmra.mxu0 %v5022
  %v5626 = vpop.f32.mrf.mxu0
  %v5627 = vadd.f32 %v216, %v5626
  %5628 = vmatmul.f32.gmra.mxu0 %v5025
  %v5629 = vpop.f32.mrf.mxu0
  %v5630 = vadd.f32 %v216, %v5629
  %5631 = vmatmul.f32.gmra.mxu0 %v5028
  %v5632 = vpop.f32.mrf.mxu0
  %v5633 = vadd.f32 %v216, %v5632
  %5634 = vmatmul.f32.gmra.mxu0 %v5031
  %v5635 = vpop.f32.mrf.mxu0
  %v5636 = vadd.f32 %v216, %v5635
  %5637 = vmatmul.f32.gmra.mxu0 %v5034
  %v5638 = vpop.f32.mrf.mxu0
  %v5639 = vadd.f32 %v216, %v5638
  %5640 = vmatmul.f32.gmra.mxu0 %v5037
  %v5641 = vpop.f32.mrf.mxu0
  %v5642 = vadd.f32 %v216, %v5641
  %5643 = vmatmul.f32.gmra.mxu0 %v5040
  %v5644 = vpop.f32.mrf.mxu0
  %v5645 = vadd.f32 %v216, %v5644
  %5646 = vmatmul.f32.gmra.mxu0 %v5043
  %v5647 = vpop.f32.mrf.mxu0
  %v5648 = vadd.f32 %v216, %v5647
  %5649 = vmatmul.f32.gmra.mxu0 %v5046
  %v5650 = vpop.f32.mrf.mxu0
  %v5651 = vadd.f32 %v216, %v5650
  %5652 = vmatmul.f32.gmra.mxu0 %v5049
  %v5653 = vpop.f32.mrf.mxu0
  %v5654 = vadd.f32 %v216, %v5653
  %5655 = vmatmul.f32.gmra.mxu0 %v5052
  %v5656 = vpop.f32.mrf.mxu0
  %v5657 = vadd.f32 %v216, %v5656
  %5658 = vmatmul.f32.gmra.mxu0 %v5055
  %v5659 = vpop.f32.mrf.mxu0
  %v5660 = vadd.f32 %v216, %v5659
  %5661 = vmatmul.f32.gmra.mxu0 %v5058
  %v5662 = vpop.f32.mrf.mxu0
  %v5663 = vadd.f32 %v216, %v5662
  %5664 = vmatmul.f32.gmra.mxu0 %v5061
  %v5665 = vpop.f32.mrf.mxu0
  %v5666 = vadd.f32 %v216, %v5665
  %5667 = vmatmul.f32.gmra.mxu0 %v5064
  %v5668 = vpop.f32.mrf.mxu0
  %v5669 = vadd.f32 %v216, %v5668
  %5670 = vmatmul.f32.gmra.mxu0 %v5067
  %v5671 = vpop.f32.mrf.mxu0
  %v5672 = vadd.f32 %v216, %v5671
  %5673 = vmatmul.f32.gmra.mxu0 %v5070
  %v5674 = vpop.f32.mrf.mxu0
  %v5675 = vadd.f32 %v216, %v5674
  %5676 = vmatmul.f32.gmra.mxu0 %v5073
  %v5677 = vpop.f32.mrf.mxu0
  %v5678 = vadd.f32 %v216, %v5677
  %5679 = vmatmul.f32.gmra.mxu0 %v5076
  %v5680 = vpop.f32.mrf.mxu0
  %v5681 = vadd.f32 %v216, %v5680
  %5682 = vmatmul.f32.gmra.mxu0 %v5079
  %v5683 = vpop.f32.mrf.mxu0
  %v5684 = vadd.f32 %v216, %v5683
  %5685 = vmatmul.f32.gmra.mxu0 %v5082
  %v5686 = vpop.f32.mrf.mxu0
  %v5687 = vadd.f32 %v216, %v5686
  %5688 = vmatmul.f32.gmra.mxu0 %v5085
  %v5689 = vpop.f32.mrf.mxu0
  %v5690 = vadd.f32 %v216, %v5689
  %5691 = vmatmul.f32.gmra.mxu0 %v5088
  %v5692 = vpop.f32.mrf.mxu0
  %v5693 = vadd.f32 %v216, %v5692
  %5694 = vmatmul.f32.gmra.mxu0 %v5091
  %v5695 = vpop.f32.mrf.mxu0
  %v5696 = vadd.f32 %v216, %v5695
  %5697 = vmatmul.f32.gmra.mxu0 %v5094
  %v5698 = vpop.f32.mrf.mxu0
  %v5699 = vadd.f32 %v216, %v5698
  %5700 = vmatmul.f32.gmra.mxu0 %v5097
  %v5701 = vpop.f32.mrf.mxu0
  %v5702 = vadd.f32 %v216, %v5701
  %5703 = vmatmul.f32.gmra.mxu0 %v5100
  %v5704 = vpop.f32.mrf.mxu0
  %v5705 = vadd.f32 %v216, %v5704
  %5706 = vmatmul.f32.gmra.mxu0 %v5103
  %v5707 = vpop.f32.mrf.mxu0
  %v5708 = vadd.f32 %v216, %v5707
  %5709 = vmatmul.f32.gmra.mxu0 %v5106
  %v5710 = vpop.f32.mrf.mxu0
  %v5711 = vadd.f32 %v216, %v5710
  %5712 = vmatmul.f32.gmra.mxu0 %v5109
  %v5713 = vpop.f32.mrf.mxu0
  %v5714 = vadd.f32 %v216, %v5713
  %5715 = vmatmul.f32.gmra.mxu0 %v5112
  %v5716 = vpop.f32.mrf.mxu0
  %v5717 = vadd.f32 %v216, %v5716
  %5718 = vmatmul.f32.gmra.mxu0 %v5115
  %v5719 = vpop.f32.mrf.mxu0
  %v5720 = vadd.f32 %v216, %v5719
  %5721 = vmatmul.f32.gmra.mxu0 %v5118
  %v5722 = vpop.f32.mrf.mxu0
  %v5723 = vadd.f32 %v216, %v5722
  %5724 = vmatmul.f32.gmra.mxu0 %v5121
  %v5725 = vpop.f32.mrf.mxu0
  %v5726 = vadd.f32 %v216, %v5725
  %5727 = vmatmul.f32.gmra.mxu0 %v5124
  %v5728 = vpop.f32.mrf.mxu0
  %v5729 = vadd.f32 %v216, %v5728
  %5730 = vmatmul.f32.gmra.mxu0 %v5127
  %v5731 = vpop.f32.mrf.mxu0
  %v5732 = vadd.f32 %v216, %v5731
  %5733 = vmatmul.f32.gmra.mxu0 %v5130
  %v5734 = vpop.f32.mrf.mxu0
  %v5735 = vadd.f32 %v216, %v5734
  %5736 = vmatmul.f32.gmra.mxu0 %v5133
  %v5737 = vpop.f32.mrf.mxu0
  %v5738 = vadd.f32 %v216, %v5737
  %5739 = vmatmul.f32.gmra.mxu0 %v5136
  %v5740 = vpop.f32.mrf.mxu0
  %v5741 = vadd.f32 %v216, %v5740
  %5742 = vmatmul.f32.gmra.mxu0 %v5139
  %v5743 = vpop.f32.mrf.mxu0
  %v5744 = vadd.f32 %v216, %v5743
  %5745 = vmatmul.f32.gmra.mxu0 %v5142
  %v5746 = vpop.f32.mrf.mxu0
  %v5747 = vadd.f32 %v216, %v5746
  %5748 = vmatmul.f32.gmra.mxu0 %v5145
  %v5749 = vpop.f32.mrf.mxu0
  %v5750 = vadd.f32 %v216, %v5749
  %5751 = vmatmul.f32.gmra.mxu0 %v5148
  %v5752 = vpop.f32.mrf.mxu0
  %v5753 = vadd.f32 %v216, %v5752
  %5754 = vmatmul.f32.gmra.mxu0 %v5151
  %v5755 = vpop.f32.mrf.mxu0
  %v5756 = vadd.f32 %v216, %v5755
  %5757 = vmatmul.f32.gmra.mxu0 %v5154
  %v5758 = vpop.f32.mrf.mxu0
  %v5759 = vadd.f32 %v216, %v5758
  %5760 = vmatmul.f32.gmra.mxu0 %v5157
  %v5761 = vpop.f32.mrf.mxu0
  %v5762 = vadd.f32 %v216, %v5761
  %5763 = vmatmul.f32.gmra.mxu0 %v5160
  %v5764 = vpop.f32.mrf.mxu0
  %v5765 = vadd.f32 %v216, %v5764
  %5766 = vmatmul.f32.gmra.mxu0 %v5163
  %v5767 = vpop.f32.mrf.mxu0
  %v5768 = vadd.f32 %v216, %v5767
  %5769 = vmatmul.f32.gmra.mxu0 %v5166
  %v5770 = vpop.f32.mrf.mxu0
  %v5771 = vadd.f32 %v216, %v5770
  %5772 = vmatmul.f32.gmra.mxu0 %v5169
  %v5773 = vpop.f32.mrf.mxu0
  %v5774 = vadd.f32 %v216, %v5773
  %5775 = vmatmul.f32.gmra.mxu0 %v5172
  %v5776 = vpop.f32.mrf.mxu0
  %v5777 = vadd.f32 %v216, %v5776
  %5778 = vmatmul.f32.gmra.mxu0 %v5175
  %v5779 = vpop.f32.mrf.mxu0
  %v5780 = vadd.f32 %v216, %v5779
  %5781 = vmatmul.f32.gmra.mxu0 %v5178
  %v5782 = vpop.f32.mrf.mxu0
  %v5783 = vadd.f32 %v216, %v5782
  %5784 = vmatmul.f32.gmra.mxu0 %v5181
  %v5785 = vpop.f32.mrf.mxu0
  %v5786 = vadd.f32 %v216, %v5785
  %5787 = vmatmul.f32.gmra.mxu0 %v5184
  %v5788 = vpop.f32.mrf.mxu0
  %v5789 = vadd.f32 %v216, %v5788
  %5790 = vmatmul.f32.gmra.mxu0 %v5187
  %v5791 = vpop.f32.mrf.mxu0
  %v5792 = vadd.f32 %v216, %v5791
  %5793 = vmatmul.f32.gmra.mxu0 %v5190
  %v5794 = vpop.f32.mrf.mxu0
  %v5795 = vadd.f32 %v216, %v5794
  %5796 = vmatmul.f32.gmra.mxu0 %v5193
  %v5797 = vpop.f32.mrf.mxu0
  %v5798 = vadd.f32 %v216, %v5797
  %5799 = vmatmul.f32.gmra.mxu0 %v5196
  %v5800 = vpop.f32.mrf.mxu0
  %v5801 = vadd.f32 %v216, %v5800
  %5802 = vmatmul.f32.gmra.mxu0 %v5199
  %v5803 = vpop.f32.mrf.mxu0
  %v5804 = vadd.f32 %v216, %v5803
  %5805 = vmatmul.f32.gmra.mxu0 %v5202
  %v5806 = vpop.f32.mrf.mxu0
  %v5807 = vadd.f32 %v216, %v5806
  %5808 = vmatmul.f32.gmra.mxu0 %v5205
  %v5809 = vpop.f32.mrf.mxu0
  %v5810 = vadd.f32 %v216, %v5809
  %5811 = vmatmul.f32.gmra.mxu0 %v5208
  %v5812 = vpop.f32.mrf.mxu0
  %v5813 = vadd.f32 %v216, %v5812
  %5814 = vmatmul.f32.gmra.mxu0 %v5211
  %v5815 = vpop.f32.mrf.mxu0
  %v5816 = vadd.f32 %v216, %v5815
  %5817 = vmatmul.f32.gmra.mxu0 %v5214
  %v5818 = vpop.f32.mrf.mxu0
  %v5819 = vadd.f32 %v216, %v5818
  %5820 = vmatmul.f32.gmra.mxu0 %v5217
  %v5821 = vpop.f32.mrf.mxu0
  %v5822 = vadd.f32 %v216, %v5821
  %5823 = vmatmul.f32.gmra.mxu0 %v5220
  %v5824 = vpop.f32.mrf.mxu0
  %v5825 = vadd.f32 %v216, %v5824
  %5826 = vmatmul.f32.gmra.mxu0 %v5223
  %v5827 = vpop.f32.mrf.mxu0
  %v5828 = vadd.f32 %v216, %v5827
  %5829 = vmatmul.f32.gmra.mxu0 %v5226
  %v5830 = vpop.f32.mrf.mxu0
  %v5831 = vadd.f32 %v216, %v5830
  %5832 = vmatmul.f32.gmra.mxu0 %v5229
  %v5833 = vpop.f32.mrf.mxu0
  %v5834 = vadd.f32 %v216, %v5833
  %5835 = vmatmul.f32.gmra.mxu0 %v5232
  %v5836 = vpop.f32.mrf.mxu0
  %v5837 = vadd.f32 %v216, %v5836
  %5838 = vmatmul.f32.gmra.mxu0 %v5235
  %v5839 = vpop.f32.mrf.mxu0
  %v5840 = vadd.f32 %v216, %v5839
  %5841 = vmatmul.f32.gmra.mxu0 %v5238
  %v5842 = vpop.f32.mrf.mxu0
  %v5843 = vadd.f32 %v216, %v5842
  %5844 = vmatmul.f32.gmra.mxu0 %v5241
  %v5845 = vpop.f32.mrf.mxu0
  %v5846 = vadd.f32 %v216, %v5845
  %5847 = vmatmul.f32.gmra.mxu0 %v5244
  %v5848 = vpop.f32.mrf.mxu0
  %v5849 = vadd.f32 %v216, %v5848
  %5850 = vmatmul.f32.gmra.mxu0 %v5247
  %v5851 = vpop.f32.mrf.mxu0
  %v5852 = vadd.f32 %v216, %v5851
  %5853 = vmatmul.f32.gmra.mxu0 %v5250
  %v5854 = vpop.f32.mrf.mxu0
  %v5855 = vadd.f32 %v216, %v5854
  %5856 = vmatmul.f32.gmra.mxu0 %v5253
  %v5857 = vpop.f32.mrf.mxu0
  %v5858 = vadd.f32 %v216, %v5857
  %5859 = vmatmul.f32.gmra.mxu0 %v5256
  %v5860 = vpop.f32.mrf.mxu0
  %v5861 = vadd.f32 %v216, %v5860
  %5862 = vmatmul.f32.gmra.mxu0 %v5259
  %v5863 = vpop.f32.mrf.mxu0
  %v5864 = vadd.f32 %v216, %v5863
  %5865 = vmatmul.f32.gmra.mxu0 %v5262
  %v5866 = vpop.f32.mrf.mxu0
  %v5867 = vadd.f32 %v216, %v5866
  %5868 = vmatmul.f32.gmra.mxu0 %v5265
  %v5869 = vpop.f32.mrf.mxu0
  %v5870 = vadd.f32 %v216, %v5869
  %5871 = vmatmul.f32.gmra.mxu0 %v5268
  %v5872 = vpop.f32.mrf.mxu0
  %v5873 = vadd.f32 %v216, %v5872
  %5874 = vmatmul.f32.gmra.mxu0 %v5271
  %v5875 = vpop.f32.mrf.mxu0
  %v5876 = vadd.f32 %v216, %v5875
  %5877 = vmatmul.f32.gmra.mxu0 %v5274
  %v5878 = vpop.f32.mrf.mxu0
  %v5879 = vadd.f32 %v216, %v5878
  %5880 = vmatmul.f32.gmra.mxu0 %v5277
  %v5881 = vpop.f32.mrf.mxu0
  %v5882 = vadd.f32 %v216, %v5881
  %5883 = vmatmul.f32.gmra.mxu0 %v5280
  %v5884 = vpop.f32.mrf.mxu0
  %v5885 = vadd.f32 %v216, %v5884
  %5886 = vmatmul.f32.gmra.mxu0 %v5283
  %v5887 = vpop.f32.mrf.mxu0
  %v5888 = vadd.f32 %v216, %v5887
  %5889 = vmatmul.f32.gmra.mxu0 %v5286
  %v5890 = vpop.f32.mrf.mxu0
  %v5891 = vadd.f32 %v216, %v5890
  %5892 = vmatmul.f32.gmra.mxu0 %v5289
  %v5893 = vpop.f32.mrf.mxu0
  %v5894 = vadd.f32 %v216, %v5893
  %5895 = vmatmul.f32.gmra.mxu0 %v5292
  %v5896 = vpop.f32.mrf.mxu0
  %v5897 = vadd.f32 %v216, %v5896
  %5898 = vmatmul.f32.gmra.mxu0 %v5295
  %v5899 = vpop.f32.mrf.mxu0
  %v5900 = vadd.f32 %v216, %v5899
  %5901 = vmatmul.f32.gmra.mxu0 %v5298
  %v5902 = vpop.f32.mrf.mxu0
  %v5903 = vadd.f32 %v216, %v5902
  %5904 = vmatmul.f32.gmra.mxu0 %v5301
  %v5905 = vpop.f32.mrf.mxu0
  %v5906 = vadd.f32 %v216, %v5905
  %5907 = vmatmul.f32.gmra.mxu0 %v5304
  %v5908 = vpop.f32.mrf.mxu0
  %v5909 = vadd.f32 %v216, %v5908
  %5910 = vmatmul.f32.gmra.mxu0 %v5307
  %v5911 = vpop.f32.mrf.mxu0
  %v5912 = vadd.f32 %v216, %v5911
  %5913 = vmatmul.f32.gmra.mxu0 %v5310
  %v5914 = vpop.f32.mrf.mxu0
  %v5915 = vadd.f32 %v216, %v5914
  %5916 = vmatmul.f32.gmra.mxu0 %v5313
  %v5917 = vpop.f32.mrf.mxu0
  %v5918 = vadd.f32 %v216, %v5917
  %5919 = vmatmul.f32.gmra.mxu0 %v5316
  %v5920 = vpop.f32.mrf.mxu0
  %v5921 = vadd.f32 %v216, %v5920
  %5922 = vmatmul.f32.gmra.mxu0 %v5319
  %v5923 = vpop.f32.mrf.mxu0
  %v5924 = vadd.f32 %v216, %v5923
  %5925 = vmatmul.f32.gmra.mxu0 %v5322
  %v5926 = vpop.f32.mrf.mxu0
  %v5927 = vadd.f32 %v216, %v5926
  %5928 = vmatmul.f32.gmra.mxu0 %v5325
  %v5929 = vpop.f32.mrf.mxu0
  %v5930 = vadd.f32 %v216, %v5929
  %5931 = vmatmul.f32.gmra.mxu0 %v5328
  %v5932 = vpop.f32.mrf.mxu0
  %v5933 = vadd.f32 %v216, %v5932
  %5934 = vmatmul.f32.gmra.mxu0 %v5331
  %v5935 = vpop.f32.mrf.mxu0
  %v5936 = vadd.f32 %v216, %v5935
  %5937 = vmatmul.f32.gmra.mxu0 %v5334
  %v5938 = vpop.f32.mrf.mxu0
  %v5939 = vadd.f32 %v216, %v5938
  %5940 = vmatmul.f32.gmra.mxu0 %v5337
  %v5941 = vpop.f32.mrf.mxu0
  %v5942 = vadd.f32 %v216, %v5941
  %5943 = vmatmul.f32.gmra.mxu0 %v5340
  %v5944 = vpop.f32.mrf.mxu0
  %v5945 = vadd.f32 %v216, %v5944
  %5946 = vmatmul.f32.gmra.mxu0 %v5343
  %v5947 = vpop.f32.mrf.mxu0
  %v5948 = vadd.f32 %v216, %v5947
  %5949 = vmatmul.f32.gmra.mxu0 %v5346
  %v5950 = vpop.f32.mrf.mxu0
  %v5951 = vadd.f32 %v216, %v5950
  %5952 = vmatmul.f32.gmra.mxu0 %v5349
  %v5953 = vpop.f32.mrf.mxu0
  %v5954 = vadd.f32 %v216, %v5953
  %5955 = vmatmul.f32.gmra.mxu0 %v5352
  %v5956 = vpop.f32.mrf.mxu0
  %v5957 = vadd.f32 %v216, %v5956
  %5958 = vmatmul.f32.gmra.mxu0 %v5355
  %v5959 = vpop.f32.mrf.mxu0
  %v5960 = vadd.f32 %v216, %v5959
  %5961 = vmatmul.f32.gmra.mxu0 %v5358
  %v5962 = vpop.f32.mrf.mxu0
  %v5963 = vadd.f32 %v216, %v5962
  %5964 = vmatmul.f32.gmra.mxu0 %v5361
  %v5965 = vpop.f32.mrf.mxu0
  %v5966 = vadd.f32 %v216, %v5965
  %5967 = vmatmul.f32.gmra.mxu0 %v5364
  %v5968 = vpop.f32.mrf.mxu0
  %v5969 = vadd.f32 %v216, %v5968
  %5970 = vmatmul.f32.gmra.mxu0 %v5367
  %v5971 = vpop.f32.mrf.mxu0
  %v5972 = vadd.f32 %v216, %v5971
  %5973 = vdwg.mxu0
  %v5974 = vmax.f32 %v4388, %v5387
  %v5975 = vmax.f32 %v4389, %v5390
  %v5976 = vmax.f32 %v4390, %v5393
  %v5977 = vmax.f32 %v4391, %v5396
  %v5978 = vmax.f32 %v4392, %v5399
  %v5979 = vmax.f32 %v4393, %v5402
  %v5980 = vmax.f32 %v4394, %v5405
  %v5981 = vmax.f32 %v4395, %v5408
  %v5982 = vmax.f32 %v4396, %v5411
  %v5983 = vmax.f32 %v4397, %v5414
  %v5984 = vmax.f32 %v4398, %v5417
  %v5985 = vmax.f32 %v4399, %v5420
  %v5986 = vmax.f32 %v4400, %v5423
  %v5987 = vmax.f32 %v4401, %v5426
  %v5988 = vmax.f32 %v4402, %v5429
  %v5989 = vmax.f32 %v4403, %v5432
  %v5990 = vmax.f32 %v4404, %v5435
  %v5991 = vmax.f32 %v4405, %v5438
  %v5992 = vmax.f32 %v4406, %v5441
  %v5993 = vmax.f32 %v4407, %v5444
  %v5994 = vmax.f32 %v4408, %v5447
  %v5995 = vmax.f32 %v4409, %v5450
  %v5996 = vmax.f32 %v4410, %v5453
  %v5997 = vmax.f32 %v4411, %v5456
  %v5998 = vmax.f32 %v4412, %v5459
  %v5999 = vmax.f32 %v4413, %v5462
  %v6000 = vmax.f32 %v4414, %v5465
  %v6001 = vmax.f32 %v4415, %v5468
  %v6002 = vmax.f32 %v4416, %v5471
  %v6003 = vmax.f32 %v4417, %v5474
  %v6004 = vmax.f32 %v4418, %v5477
  %v6005 = vmax.f32 %v4419, %v5480
  %v6006 = vmax.f32 %v4420, %v5483
  %v6007 = vmax.f32 %v4421, %v5486
  %v6008 = vmax.f32 %v4422, %v5489
  %v6009 = vmax.f32 %v4423, %v5492
  %v6010 = vmax.f32 %v4424, %v5495
  %v6011 = vmax.f32 %v4425, %v5498
  %v6012 = vmax.f32 %v4426, %v5501
  %v6013 = vmax.f32 %v4427, %v5504
  %v6014 = vmax.f32 %v4428, %v5507
  %v6015 = vmax.f32 %v4429, %v5510
  %v6016 = vmax.f32 %v4430, %v5513
  %v6017 = vmax.f32 %v4431, %v5516
  %v6018 = vmax.f32 %v4432, %v5519
  %v6019 = vmax.f32 %v4433, %v5522
  %v6020 = vmax.f32 %v4434, %v5525
  %v6021 = vmax.f32 %v4435, %v5528
  %v6022 = vmax.f32 %v4436, %v5531
  %v6023 = vmax.f32 %v4437, %v5534
  %v6024 = vmax.f32 %v4438, %v5537
  %v6025 = vmax.f32 %v4439, %v5540
  %v6026 = vmax.f32 %v4440, %v5543
  %v6027 = vmax.f32 %v4441, %v5546
  %v6028 = vmax.f32 %v4442, %v5549
  %v6029 = vmax.f32 %v4443, %v5552
  %v6030 = vmax.f32 %v4444, %v5555
  %v6031 = vmax.f32 %v4445, %v5558
  %v6032 = vmax.f32 %v4446, %v5561
  %v6033 = vmax.f32 %v4447, %v5564
  %v6034 = vmax.f32 %v4448, %v5567
  %v6035 = vmax.f32 %v4449, %v5570
  %v6036 = vmax.f32 %v4450, %v5573
  %v6037 = vmax.f32 %v4451, %v5576
  %v6038 = vmax.f32 %v4452, %v5579
  %v6039 = vmax.f32 %v4453, %v5582
  %v6040 = vmax.f32 %v4454, %v5585
  %v6041 = vmax.f32 %v4455, %v5588
  %v6042 = vmax.f32 %v4456, %v5591
  %v6043 = vmax.f32 %v4457, %v5594
  %v6044 = vmax.f32 %v4458, %v5597
  %v6045 = vmax.f32 %v4459, %v5600
  %v6046 = vmax.f32 %v4460, %v5603
  %v6047 = vmax.f32 %v4461, %v5606
  %v6048 = vmax.f32 %v4462, %v5609
  %v6049 = vmax.f32 %v4463, %v5612
  %v6050 = vmax.f32 %v4464, %v5615
  %v6051 = vmax.f32 %v4465, %v5618
  %v6052 = vmax.f32 %v4466, %v5621
  %v6053 = vmax.f32 %v4467, %v5624
  %v6054 = vmax.f32 %v4468, %v5627
  %v6055 = vmax.f32 %v4469, %v5630
  %v6056 = vmax.f32 %v4470, %v5633
  %v6057 = vmax.f32 %v4471, %v5636
  %v6058 = vmax.f32 %v4472, %v5639
  %v6059 = vmax.f32 %v4473, %v5642
  %v6060 = vmax.f32 %v4474, %v5645
  %v6061 = vmax.f32 %v4475, %v5648
  %v6062 = vmax.f32 %v4476, %v5651
  %v6063 = vmax.f32 %v4477, %v5654
  %v6064 = vmax.f32 %v4478, %v5657
  %v6065 = vmax.f32 %v4479, %v5660
  %v6066 = vmax.f32 %v4480, %v5663
  %v6067 = vmax.f32 %v4481, %v5666
  %v6068 = vmax.f32 %v4482, %v5669
  %v6069 = vmax.f32 %v4483, %v5672
  %v6070 = vmax.f32 %v4484, %v5675
  %v6071 = vmax.f32 %v4485, %v5678
  %v6072 = vmax.f32 %v4486, %v5681
  %v6073 = vmax.f32 %v4487, %v5684
  %v6074 = vmax.f32 %v4488, %v5687
  %v6075 = vmax.f32 %v4489, %v5690
  %v6076 = vmax.f32 %v4490, %v5693
  %v6077 = vmax.f32 %v4491, %v5696
  %v6078 = vmax.f32 %v4492, %v5699
  %v6079 = vmax.f32 %v4493, %v5702
  %v6080 = vmax.f32 %v4494, %v5705
  %v6081 = vmax.f32 %v4495, %v5708
  %v6082 = vmax.f32 %v4496, %v5711
  %v6083 = vmax.f32 %v4497, %v5714
  %v6084 = vmax.f32 %v4498, %v5717
  %v6085 = vmax.f32 %v4499, %v5720
  %v6086 = vmax.f32 %v4500, %v5723
  %v6087 = vmax.f32 %v4501, %v5726
  %v6088 = vmax.f32 %v4502, %v5729
  %v6089 = vmax.f32 %v4503, %v5732
  %v6090 = vmax.f32 %v4504, %v5735
  %v6091 = vmax.f32 %v4505, %v5738
  %v6092 = vmax.f32 %v4506, %v5741
  %v6093 = vmax.f32 %v4507, %v5744
  %v6094 = vmax.f32 %v4508, %v5747
  %v6095 = vmax.f32 %v4509, %v5750
  %v6096 = vmax.f32 %v4510, %v5753
  %v6097 = vmax.f32 %v4511, %v5756
  %v6098 = vmax.f32 %v4512, %v5759
  %v6099 = vmax.f32 %v4513, %v5762
  %v6100 = vmax.f32 %v4514, %v5765
  %v6101 = vmax.f32 %v4515, %v5768
  %v6102 = vmax.f32 %v4516, %v5771
  %v6103 = vmax.f32 %v4517, %v5774
  %v6104 = vmax.f32 %v4518, %v5777
  %v6105 = vmax.f32 %v4519, %v5780
  %v6106 = vmax.f32 %v4520, %v5783
  %v6107 = vmax.f32 %v4521, %v5786
  %v6108 = vmax.f32 %v4522, %v5789
  %v6109 = vmax.f32 %v4523, %v5792
  %v6110 = vmax.f32 %v4524, %v5795
  %v6111 = vmax.f32 %v4525, %v5798
  %v6112 = vmax.f32 %v4526, %v5801
  %v6113 = vmax.f32 %v4527, %v5804
  %v6114 = vmax.f32 %v4528, %v5807
  %v6115 = vmax.f32 %v4529, %v5810
  %v6116 = vmax.f32 %v4530, %v5813
  %v6117 = vmax.f32 %v4531, %v5816
  %v6118 = vmax.f32 %v4532, %v5819
  %v6119 = vmax.f32 %v4533, %v5822
  %v6120 = vmax.f32 %v4534, %v5825
  %v6121 = vmax.f32 %v4535, %v5828
  %v6122 = vmax.f32 %v4536, %v5831
  %v6123 = vmax.f32 %v4537, %v5834
  %v6124 = vmax.f32 %v4538, %v5837
  %v6125 = vmax.f32 %v4539, %v5840
  %v6126 = vmax.f32 %v4540, %v5843
  %v6127 = vmax.f32 %v4541, %v5846
  %v6128 = vmax.f32 %v4542, %v5849
  %v6129 = vmax.f32 %v4543, %v5852
  %v6130 = vmax.f32 %v4544, %v5855
  %v6131 = vmax.f32 %v4545, %v5858
  %v6132 = vmax.f32 %v4546, %v5861
  %v6133 = vmax.f32 %v4547, %v5864
  %v6134 = vmax.f32 %v4548, %v5867
  %v6135 = vmax.f32 %v4549, %v5870
  %v6136 = vmax.f32 %v4550, %v5873
  %v6137 = vmax.f32 %v4551, %v5876
  %v6138 = vmax.f32 %v4552, %v5879
  %v6139 = vmax.f32 %v4553, %v5882
  %v6140 = vmax.f32 %v4554, %v5885
  %v6141 = vmax.f32 %v4555, %v5888
  %v6142 = vmax.f32 %v4556, %v5891
  %v6143 = vmax.f32 %v4557, %v5894
  %v6144 = vmax.f32 %v4558, %v5897
  %v6145 = vmax.f32 %v4559, %v5900
  %v6146 = vmax.f32 %v4560, %v5903
  %v6147 = vmax.f32 %v4561, %v5906
  %v6148 = vmax.f32 %v4562, %v5909
  %v6149 = vmax.f32 %v4563, %v5912
  %v6150 = vmax.f32 %v4564, %v5915
  %v6151 = vmax.f32 %v4565, %v5918
  %v6152 = vmax.f32 %v4566, %v5921
  %v6153 = vmax.f32 %v4567, %v5924
  %v6154 = vmax.f32 %v4568, %v5927
  %v6155 = vmax.f32 %v4569, %v5930
  %v6156 = vmax.f32 %v4570, %v5933
  %v6157 = vmax.f32 %v4571, %v5936
  %v6158 = vmax.f32 %v4572, %v5939
  %v6159 = vmax.f32 %v4573, %v5942
  %v6160 = vmax.f32 %v4574, %v5945
  %v6161 = vmax.f32 %v4575, %v5948
  %v6162 = vmax.f32 %v4576, %v5951
  %v6163 = vmax.f32 %v4577, %v5954
  %v6164 = vmax.f32 %v4578, %v5957
  %v6165 = vmax.f32 %v4579, %v5960
  %v6166 = vmax.f32 %v4580, %v5963
  %v6167 = vmax.f32 %v4581, %v5966
  %v6168 = vmax.f32 %v4582, %v5969
  %v6169 = vmax.f32 %v4583, %v5972
  %v6170 = vmax.f32 %v5974, 0.0
  %v6171 = vmax.f32 %v5975, 0.0
  %v6172 = vmax.f32 %v5976, 0.0
  %v6173 = vmax.f32 %v5977, 0.0
  %v6174 = vmax.f32 %v5978, 0.0
  %v6175 = vmax.f32 %v5979, 0.0
  %v6176 = vmax.f32 %v5980, 0.0
  %v6177 = vmax.f32 %v5981, 0.0
  %v6178 = vmax.f32 %v5982, 0.0
  %v6179 = vmax.f32 %v5983, 0.0
  %v6180 = vmax.f32 %v5984, 0.0
  %v6181 = vmax.f32 %v5985, 0.0
  %v6182 = vmax.f32 %v5986, 0.0
  %v6183 = vmax.f32 %v5987, 0.0
  %v6184 = vmax.f32 %v5988, 0.0
  %v6185 = vmax.f32 %v5989, 0.0
  %v6186 = vmax.f32 %v5990, 0.0
  %v6187 = vmax.f32 %v5991, 0.0
  %v6188 = vmax.f32 %v5992, 0.0
  %v6189 = vmax.f32 %v5993, 0.0
  %v6190 = vmax.f32 %v5994, 0.0
  %v6191 = vmax.f32 %v5995, 0.0
  %v6192 = vmax.f32 %v5996, 0.0
  %v6193 = vmax.f32 %v5997, 0.0
  %v6194 = vmax.f32 %v5998, 0.0
  %v6195 = vmax.f32 %v5999, 0.0
  %v6196 = vmax.f32 %v6000, 0.0
  %v6197 = vmax.f32 %v6001, 0.0
  %v6198 = vmax.f32 %v6002, 0.0
  %v6199 = vmax.f32 %v6003, 0.0
  %v6200 = vmax.f32 %v6004, 0.0
  %v6201 = vmax.f32 %v6005, 0.0
  %v6202 = vmax.f32 %v6006, 0.0
  %v6203 = vmax.f32 %v6007, 0.0
  %v6204 = vmax.f32 %v6008, 0.0
  %v6205 = vmax.f32 %v6009, 0.0
  %v6206 = vmax.f32 %v6010, 0.0
  %v6207 = vmax.f32 %v6011, 0.0
  %v6208 = vmax.f32 %v6012, 0.0
  %v6209 = vmax.f32 %v6013, 0.0
  %v6210 = vmax.f32 %v6014, 0.0
  %v6211 = vmax.f32 %v6015, 0.0
  %v6212 = vmax.f32 %v6016, 0.0
  %v6213 = vmax.f32 %v6017, 0.0
  %v6214 = vmax.f32 %v6018, 0.0
  %v6215 = vmax.f32 %v6019, 0.0
  %v6216 = vmax.f32 %v6020, 0.0
  %v6217 = vmax.f32 %v6021, 0.0
  %v6218 = vmax.f32 %v6022, 0.0
  %v6219 = vmax.f32 %v6023, 0.0
  %v6220 = vmax.f32 %v6024, 0.0
  %v6221 = vmax.f32 %v6025, 0.0
  %v6222 = vmax.f32 %v6026, 0.0
  %v6223 = vmax.f32 %v6027, 0.0
  %v6224 = vmax.f32 %v6028, 0.0
  %v6225 = vmax.f32 %v6029, 0.0
  %v6226 = vmax.f32 %v6030, 0.0
  %v6227 = vmax.f32 %v6031, 0.0
  %v6228 = vmax.f32 %v6032, 0.0
  %v6229 = vmax.f32 %v6033, 0.0
  %v6230 = vmax.f32 %v6034, 0.0
  %v6231 = vmax.f32 %v6035, 0.0
  %v6232 = vmax.f32 %v6036, 0.0
  %v6233 = vmax.f32 %v6037, 0.0
  %v6234 = vmax.f32 %v6038, 0.0
  %v6235 = vmax.f32 %v6039, 0.0
  %v6236 = vmax.f32 %v6040, 0.0
  %v6237 = vmax.f32 %v6041, 0.0
  %v6238 = vmax.f32 %v6042, 0.0
  %v6239 = vmax.f32 %v6043, 0.0
  %v6240 = vmax.f32 %v6044, 0.0
  %v6241 = vmax.f32 %v6045, 0.0
  %v6242 = vmax.f32 %v6046, 0.0
  %v6243 = vmax.f32 %v6047, 0.0
  %v6244 = vmax.f32 %v6048, 0.0
  %v6245 = vmax.f32 %v6049, 0.0
  %v6246 = vmax.f32 %v6050, 0.0
  %v6247 = vmax.f32 %v6051, 0.0
  %v6248 = vmax.f32 %v6052, 0.0
  %v6249 = vmax.f32 %v6053, 0.0
  %v6250 = vmax.f32 %v6054, 0.0
  %v6251 = vmax.f32 %v6055, 0.0
  %v6252 = vmax.f32 %v6056, 0.0
  %v6253 = vmax.f32 %v6057, 0.0
  %v6254 = vmax.f32 %v6058, 0.0
  %v6255 = vmax.f32 %v6059, 0.0
  %v6256 = vmax.f32 %v6060, 0.0
  %v6257 = vmax.f32 %v6061, 0.0
  %v6258 = vmax.f32 %v6062, 0.0
  %v6259 = vmax.f32 %v6063, 0.0
  %v6260 = vmax.f32 %v6064, 0.0
  %v6261 = vmax.f32 %v6065, 0.0
  %v6262 = vmax.f32 %v6066, 0.0
  %v6263 = vmax.f32 %v6067, 0.0
  %v6264 = vmax.f32 %v6068, 0.0
  %v6265 = vmax.f32 %v6069, 0.0
  %v6266 = vmax.f32 %v6070, 0.0
  %v6267 = vmax.f32 %v6071, 0.0
  %v6268 = vmax.f32 %v6072, 0.0
  %v6269 = vmax.f32 %v6073, 0.0
  %v6270 = vmax.f32 %v6074, 0.0
  %v6271 = vmax.f32 %v6075, 0.0
  %v6272 = vmax.f32 %v6076, 0.0
  %v6273 = vmax.f32 %v6077, 0.0
  %v6274 = vmax.f32 %v6078, 0.0
  %v6275 = vmax.f32 %v6079, 0.0
  %v6276 = vmax.f32 %v6080, 0.0
  %v6277 = vmax.f32 %v6081, 0.0
  %v6278 = vmax.f32 %v6082, 0.0
  %v6279 = vmax.f32 %v6083, 0.0
  %v6280 = vmax.f32 %v6084, 0.0
  %v6281 = vmax.f32 %v6085, 0.0
  %v6282 = vmax.f32 %v6086, 0.0
  %v6283 = vmax.f32 %v6087, 0.0
  %v6284 = vmax.f32 %v6088, 0.0
  %v6285 = vmax.f32 %v6089, 0.0
  %v6286 = vmax.f32 %v6090, 0.0
  %v6287 = vmax.f32 %v6091, 0.0
  %v6288 = vmax.f32 %v6092, 0.0
  %v6289 = vmax.f32 %v6093, 0.0
  %v6290 = vmax.f32 %v6094, 0.0
  %v6291 = vmax.f32 %v6095, 0.0
  %v6292 = vmax.f32 %v6096, 0.0
  %v6293 = vmax.f32 %v6097, 0.0
  %v6294 = vmax.f32 %v6098, 0.0
  %v6295 = vmax.f32 %v6099, 0.0
  %v6296 = vmax.f32 %v6100, 0.0
  %v6297 = vmax.f32 %v6101, 0.0
  %v6298 = vmax.f32 %v6102, 0.0
  %v6299 = vmax.f32 %v6103, 0.0
  %v6300 = vmax.f32 %v6104, 0.0
  %v6301 = vmax.f32 %v6105, 0.0
  %v6302 = vmax.f32 %v6106, 0.0
  %v6303 = vmax.f32 %v6107, 0.0
  %v6304 = vmax.f32 %v6108, 0.0
  %v6305 = vmax.f32 %v6109, 0.0
  %v6306 = vmax.f32 %v6110, 0.0
  %v6307 = vmax.f32 %v6111, 0.0
  %v6308 = vmax.f32 %v6112, 0.0
  %v6309 = vmax.f32 %v6113, 0.0
  %v6310 = vmax.f32 %v6114, 0.0
  %v6311 = vmax.f32 %v6115, 0.0
  %v6312 = vmax.f32 %v6116, 0.0
  %v6313 = vmax.f32 %v6117, 0.0
  %v6314 = vmax.f32 %v6118, 0.0
  %v6315 = vmax.f32 %v6119, 0.0
  %v6316 = vmax.f32 %v6120, 0.0
  %v6317 = vmax.f32 %v6121, 0.0
  %v6318 = vmax.f32 %v6122, 0.0
  %v6319 = vmax.f32 %v6123, 0.0
  %v6320 = vmax.f32 %v6124, 0.0
  %v6321 = vmax.f32 %v6125, 0.0
  %v6322 = vmax.f32 %v6126, 0.0
  %v6323 = vmax.f32 %v6127, 0.0
  %v6324 = vmax.f32 %v6128, 0.0
  %v6325 = vmax.f32 %v6129, 0.0
  %v6326 = vmax.f32 %v6130, 0.0
  %v6327 = vmax.f32 %v6131, 0.0
  %v6328 = vmax.f32 %v6132, 0.0
  %v6329 = vmax.f32 %v6133, 0.0
  %v6330 = vmax.f32 %v6134, 0.0
  %v6331 = vmax.f32 %v6135, 0.0
  %v6332 = vmax.f32 %v6136, 0.0
  %v6333 = vmax.f32 %v6137, 0.0
  %v6334 = vmax.f32 %v6138, 0.0
  %v6335 = vmax.f32 %v6139, 0.0
  %v6336 = vmax.f32 %v6140, 0.0
  %v6337 = vmax.f32 %v6141, 0.0
  %v6338 = vmax.f32 %v6142, 0.0
  %v6339 = vmax.f32 %v6143, 0.0
  %v6340 = vmax.f32 %v6144, 0.0
  %v6341 = vmax.f32 %v6145, 0.0
  %v6342 = vmax.f32 %v6146, 0.0
  %v6343 = vmax.f32 %v6147, 0.0
  %v6344 = vmax.f32 %v6148, 0.0
  %v6345 = vmax.f32 %v6149, 0.0
  %v6346 = vmax.f32 %v6150, 0.0
  %v6347 = vmax.f32 %v6151, 0.0
  %v6348 = vmax.f32 %v6152, 0.0
  %v6349 = vmax.f32 %v6153, 0.0
  %v6350 = vmax.f32 %v6154, 0.0
  %v6351 = vmax.f32 %v6155, 0.0
  %v6352 = vmax.f32 %v6156, 0.0
  %v6353 = vmax.f32 %v6157, 0.0
  %v6354 = vmax.f32 %v6158, 0.0
  %v6355 = vmax.f32 %v6159, 0.0
  %v6356 = vmax.f32 %v6160, 0.0
  %v6357 = vmax.f32 %v6161, 0.0
  %v6358 = vmax.f32 %v6162, 0.0
  %v6359 = vmax.f32 %v6163, 0.0
  %v6360 = vmax.f32 %v6164, 0.0
  %v6361 = vmax.f32 %v6165, 0.0
  %v6362 = vmax.f32 %v6166, 0.0
  %v6363 = vmax.f32 %v6167, 0.0
  %v6364 = vmax.f32 %v6168, 0.0
  %v6365 = vmax.f32 %v6169, 0.0
  %6366 = vst [vmem:[%s3] sm:$0xff] %v6170
  %6367 = vst [vmem:[%s3 + $0x8] sm:$0xff] %v6171
  %6368 = vst [vmem:[%s3 + $0x10] sm:$0xff] %v6172
  %6369 = vst [vmem:[%s3 + $0x18] sm:$0xff] %v6173
  %6370 = vst [vmem:[%s3 + $0x20] sm:$0xff] %v6174
  %6371 = vst [vmem:[%s3 + $0x28] sm:$0xff] %v6175
  %6372 = vst [vmem:[%s3 + $0x30] sm:$0xff] %v6176
  %6373 = vst [vmem:[%s3 + $0x38] sm:$0xff] %v6177
  %6374 = vst [vmem:[%s3 + $0x40] sm:$0xff] %v6178
  %6375 = vst [vmem:[%s3 + $0x48] sm:$0xff] %v6179
  %6376 = vst [vmem:[%s3 + $0x50] sm:$0xff] %v6180
  %6377 = vst [vmem:[%s3 + $0x58] sm:$0xff] %v6181
  %6378 = vst [vmem:[%s3 + $0x60] sm:$0xff] %v6182
  %6379 = vst [vmem:[%s3 + $0x68] sm:$0xff] %v6183
  %6380 = vst [vmem:[%s3 + $0x70] sm:$0xff] %v6184
  %6381 = vst [vmem:[%s3 + $0x78] sm:$0xff] %v6185
  %6382 = vst [vmem:[%s3 + $0x80] sm:$0xff] %v6186
  %6383 = vst [vmem:[%s3 + $0x88] sm:$0xff] %v6187
  %6384 = vst [vmem:[%s3 + $0x90] sm:$0xff] %v6188
  %6385 = vst [vmem:[%s3 + $0x98] sm:$0xff] %v6189
  %6386 = vst [vmem:[%s3 + $0xa0] sm:$0xff] %v6190
  %6387 = vst [vmem:[%s3 + $0xa8] sm:$0xff] %v6191
  %6388 = vst [vmem:[%s3 + $0xb0] sm:$0xff] %v6192
  %6389 = vst [vmem:[%s3 + $0xb8] sm:$0xff] %v6193
  %6390 = vst [vmem:[%s3 + $0xc0] sm:$0xff] %v6194
  %6391 = vst [vmem:[%s3 + $0xc8] sm:$0xff] %v6195
  %6392 = vst [vmem:[%s3 + $0xd0] sm:$0xff] %v6196
  %6393 = vst [vmem:[%s3 + $0xd8] sm:$0xff] %v6197
  %6394 = vst [vmem:[%s3 + $0xe0] sm:$0xff] %v6198
  %6395 = vst [vmem:[%s3 + $0xe8] sm:$0xff] %v6199
  %6396 = vst [vmem:[%s3 + $0xf0] sm:$0xff] %v6200
  %6397 = vst [vmem:[%s3 + $0xf8] sm:$0xff] %v6201
  %6398 = vst [vmem:[%s3 + $0x100] sm:$0xff] %v6202
  %6399 = vst [vmem:[%s3 + $0x108] sm:$0xff] %v6203
  %6400 = vst [vmem:[%s3 + $0x110] sm:$0xff] %v6204
  %6401 = vst [vmem:[%s3 + $0x118] sm:$0xff] %v6205
  %6402 = vst [vmem:[%s3 + $0x120] sm:$0xff] %v6206
  %6403 = vst [vmem:[%s3 + $0x128] sm:$0xff] %v6207
  %6404 = vst [vmem:[%s3 + $0x130] sm:$0xff] %v6208
  %6405 = vst [vmem:[%s3 + $0x138] sm:$0xff] %v6209
  %6406 = vst [vmem:[%s3 + $0x140] sm:$0xff] %v6210
  %6407 = vst [vmem:[%s3 + $0x148] sm:$0xff] %v6211
  %6408 = vst [vmem:[%s3 + $0x150] sm:$0xff] %v6212
  %6409 = vst [vmem:[%s3 + $0x158] sm:$0xff] %v6213
  %6410 = vst [vmem:[%s3 + $0x160] sm:$0xff] %v6214
  %6411 = vst [vmem:[%s3 + $0x168] sm:$0xff] %v6215
  %6412 = vst [vmem:[%s3 + $0x170] sm:$0xff] %v6216
  %6413 = vst [vmem:[%s3 + $0x178] sm:$0xff] %v6217
  %6414 = vst [vmem:[%s3 + $0x180] sm:$0xff] %v6218
  %6415 = vst [vmem:[%s3 + $0x188] sm:$0xff] %v6219
  %6416 = vst [vmem:[%s3 + $0x190] sm:$0xff] %v6220
  %6417 = vst [vmem:[%s3 + $0x198] sm:$0xff] %v6221
  %6418 = vst [vmem:[%s3 + $0x1a0] sm:$0xff] %v6222
  %6419 = vst [vmem:[%s3 + $0x1a8] sm:$0xff] %v6223
  %6420 = vst [vmem:[%s3 + $0x1b0] sm:$0xff] %v6224
  %6421 = vst [vmem:[%s3 + $0x1b8] sm:$0xff] %v6225
  %6422 = vst [vmem:[%s3 + $0x1c0] sm:$0xff] %v6226
  %6423 = vst [vmem:[%s3 + $0x1c8] sm:$0xff] %v6227
  %6424 = vst [vmem:[%s3 + $0x1d0] sm:$0xff] %v6228
  %6425 = vst [vmem:[%s3 + $0x1d8] sm:$0xff] %v6229
  %6426 = vst [vmem:[%s3 + $0x1e0] sm:$0xff] %v6230
  %6427 = vst [vmem:[%s3 + $0x1e8] sm:$0xff] %v6231
  %6428 = vst [vmem:[%s3 + $0x1f0] sm:$0xff] %v6232
  %6429 = vst [vmem:[%s3 + $0x1f8] sm:$0xff] %v6233
  %6430 = vst [vmem:[%s3 + $0x200] sm:$0xff] %v6234
  %6431 = vst [vmem:[%s3 + $0x208] sm:$0xff] %v6235
  %6432 = vst [vmem:[%s3 + $0x210] sm:$0xff] %v6236
  %6433 = vst [vmem:[%s3 + $0x218] sm:$0xff] %v6237
  %6434 = vst [vmem:[%s3 + $0x220] sm:$0xff] %v6238
  %6435 = vst [vmem:[%s3 + $0x228] sm:$0xff] %v6239
  %6436 = vst [vmem:[%s3 + $0x230] sm:$0xff] %v6240
  %6437 = vst [vmem:[%s3 + $0x238] sm:$0xff] %v6241
  %6438 = vst [vmem:[%s3 + $0x240] sm:$0xff] %v6242
  %6439 = vst [vmem:[%s3 + $0x248] sm:$0xff] %v6243
  %6440 = vst [vmem:[%s3 + $0x250] sm:$0xff] %v6244
  %6441 = vst [vmem:[%s3 + $0x258] sm:$0xff] %v6245
  %6442 = vst [vmem:[%s3 + $0x260] sm:$0xff] %v6246
  %6443 = vst [vmem:[%s3 + $0x268] sm:$0xff] %v6247
  %6444 = vst [vmem:[%s3 + $0x270] sm:$0xff] %v6248
  %6445 = vst [vmem:[%s3 + $0x278] sm:$0xff] %v6249
  %6446 = vst [vmem:[%s3 + $0x280] sm:$0xff] %v6250
  %6447 = vst [vmem:[%s3 + $0x288] sm:$0xff] %v6251
  %6448 = vst [vmem:[%s3 + $0x290] sm:$0xff] %v6252
  %6449 = vst [vmem:[%s3 + $0x298] sm:$0xff] %v6253
  %6450 = vst [vmem:[%s3 + $0x2a0] sm:$0xff] %v6254
  %6451 = vst [vmem:[%s3 + $0x2a8] sm:$0xff] %v6255
  %6452 = vst [vmem:[%s3 + $0x2b0] sm:$0xff] %v6256
  %6453 = vst [vmem:[%s3 + $0x2b8] sm:$0xff] %v6257
  %6454 = vst [vmem:[%s3 + $0x2c0] sm:$0xff] %v6258
  %6455 = vst [vmem:[%s3 + $0x2c8] sm:$0xff] %v6259
  %6456 = vst [vmem:[%s3 + $0x2d0] sm:$0xff] %v6260
  %6457 = vst [vmem:[%s3 + $0x2d8] sm:$0xff] %v6261
  %6458 = vst [vmem:[%s3 + $0x2e0] sm:$0xff] %v6262
  %6459 = vst [vmem:[%s3 + $0x2e8] sm:$0xff] %v6263
  %6460 = vst [vmem:[%s3 + $0x2f0] sm:$0xff] %v6264
  %6461 = vst [vmem:[%s3 + $0x2f8] sm:$0xff] %v6265
  %6462 = vst [vmem:[%s3 + $0x300] sm:$0xff] %v6266
  %6463 = vst [vmem:[%s3 + $0x308] sm:$0xff] %v6267
  %6464 = vst [vmem:[%s3 + $0x310] sm:$0xff] %v6268
  %6465 = vst [vmem:[%s3 + $0x318] sm:$0xff] %v6269
  %6466 = vst [vmem:[%s3 + $0x320] sm:$0xff] %v6270
  %6467 = vst [vmem:[%s3 + $0x328] sm:$0xff] %v6271
  %6468 = vst [vmem:[%s3 + $0x330] sm:$0xff] %v6272
  %6469 = vst [vmem:[%s3 + $0x338] sm:$0xff] %v6273
  %6470 = vst [vmem:[%s3 + $0x340] sm:$0xff] %v6274
  %6471 = vst [vmem:[%s3 + $0x348] sm:$0xff] %v6275
  %6472 = vst [vmem:[%s3 + $0x350] sm:$0xff] %v6276
  %6473 = vst [vmem:[%s3 + $0x358] sm:$0xff] %v6277
  %6474 = vst [vmem:[%s3 + $0x360] sm:$0xff] %v6278
  %6475 = vst [vmem:[%s3 + $0x368] sm:$0xff] %v6279
  %6476 = vst [vmem:[%s3 + $0x370] sm:$0xff] %v6280
  %6477 = vst [vmem:[%s3 + $0x378] sm:$0xff] %v6281
  %6478 = vst [vmem:[%s3 + $0x380] sm:$0xff] %v6282
  %6479 = vst [vmem:[%s3 + $0x388] sm:$0xff] %v6283
  %6480 = vst [vmem:[%s3 + $0x390] sm:$0xff] %v6284
  %6481 = vst [vmem:[%s3 + $0x398] sm:$0xff] %v6285
  %6482 = vst [vmem:[%s3 + $0x3a0] sm:$0xff] %v6286
  %6483 = vst [vmem:[%s3 + $0x3a8] sm:$0xff] %v6287
  %6484 = vst [vmem:[%s3 + $0x3b0] sm:$0xff] %v6288
  %6485 = vst [vmem:[%s3 + $0x3b8] sm:$0xff] %v6289
  %6486 = vst [vmem:[%s3 + $0x3c0] sm:$0xff] %v6290
  %6487 = vst [vmem:[%s3 + $0x3c8] sm:$0xff] %v6291
  %6488 = vst [vmem:[%s3 + $0x3d0] sm:$0xff] %v6292
  %6489 = vst [vmem:[%s3 + $0x3d8] sm:$0xff] %v6293
  %6490 = vst [vmem:[%s3 + $0x3e0] sm:$0xff] %v6294
  %6491 = vst [vmem:[%s3 + $0x3e8] sm:$0xff] %v6295
  %6492 = vst [vmem:[%s3 + $0x3f0] sm:$0xff] %v6296
  %6493 = vst [vmem:[%s3 + $0x3f8] sm:$0xff] %v6297
  %6494 = vst [vmem:[%s3 + $0x400] sm:$0xff] %v6298
  %6495 = vst [vmem:[%s3 + $0x408] sm:$0xff] %v6299
  %6496 = vst [vmem:[%s3 + $0x410] sm:$0xff] %v6300
  %6497 = vst [vmem:[%s3 + $0x418] sm:$0xff] %v6301
  %6498 = vst [vmem:[%s3 + $0x420] sm:$0xff] %v6302
  %6499 = vst [vmem:[%s3 + $0x428] sm:$0xff] %v6303
  %6500 = vst [vmem:[%s3 + $0x430] sm:$0xff] %v6304
  %6501 = vst [vmem:[%s3 + $0x438] sm:$0xff] %v6305
  %6502 = vst [vmem:[%s3 + $0x440] sm:$0xff] %v6306
  %6503 = vst [vmem:[%s3 + $0x448] sm:$0xff] %v6307
  %6504 = vst [vmem:[%s3 + $0x450] sm:$0xff] %v6308
  %6505 = vst [vmem:[%s3 + $0x458] sm:$0xff] %v6309
  %6506 = vst [vmem:[%s3 + $0x460] sm:$0xff] %v6310
  %6507 = vst [vmem:[%s3 + $0x468] sm:$0xff] %v6311
  %6508 = vst [vmem:[%s3 + $0x470] sm:$0xff] %v6312
  %6509 = vst [vmem:[%s3 + $0x478] sm:$0xff] %v6313
  %6510 = vst [vmem:[%s3 + $0x480] sm:$0xff] %v6314
  %6511 = vst [vmem:[%s3 + $0x488] sm:$0xff] %v6315
  %6512 = vst [vmem:[%s3 + $0x490] sm:$0xff] %v6316
  %6513 = vst [vmem:[%s3 + $0x498] sm:$0xff] %v6317
  %6514 = vst [vmem:[%s3 + $0x4a0] sm:$0xff] %v6318
  %6515 = vst [vmem:[%s3 + $0x4a8] sm:$0xff] %v6319
  %6516 = vst [vmem:[%s3 + $0x4b0] sm:$0xff] %v6320
  %6517 = vst [vmem:[%s3 + $0x4b8] sm:$0xff] %v6321
  %6518 = vst [vmem:[%s3 + $0x4c0] sm:$0xff] %v6322
  %6519 = vst [vmem:[%s3 + $0x4c8] sm:$0xff] %v6323
  %6520 = vst [vmem:[%s3 + $0x4d0] sm:$0xff] %v6324
  %6521 = vst [vmem:[%s3 + $0x4d8] sm:$0xff] %v6325
  %6522 = vst [vmem:[%s3 + $0x4e0] sm:$0xff] %v6326
  %6523 = vst [vmem:[%s3 + $0x4e8] sm:$0xff] %v6327
  %6524 = vst [vmem:[%s3 + $0x4f0] sm:$0xff] %v6328
  %6525 = vst [vmem:[%s3 + $0x4f8] sm:$0xff] %v6329
  %6526 = vst [vmem:[%s3 + $0x500] sm:$0xff] %v6330
  %6527 = vst [vmem:[%s3 + $0x508] sm:$0xff] %v6331
  %6528 = vst [vmem:[%s3 + $0x510] sm:$0xff] %v6332
  %6529 = vst [vmem:[%s3 + $0x518] sm:$0xff] %v6333
  %6530 = vst [vmem:[%s3 + $0x520] sm:$0xff] %v6334
  %6531 = vst [vmem:[%s3 + $0x528] sm:$0xff] %v6335
  %6532 = vst [vmem:[%s3 + $0x530] sm:$0xff] %v6336
  %6533 = vst [vmem:[%s3 + $0x538] sm:$0xff] %v6337
  %6534 = vst [vmem:[%s3 + $0x540] sm:$0xff] %v6338
  %6535 = vst [vmem:[%s3 + $0x548] sm:$0xff] %v6339
  %6536 = vst [vmem:[%s3 + $0x550] sm:$0xff] %v6340
  %6537 = vst [vmem:[%s3 + $0x558] sm:$0xff] %v6341
  %6538 = vst [vmem:[%s3 + $0x560] sm:$0xff] %v6342
  %6539 = vst [vmem:[%s3 + $0x568] sm:$0xff] %v6343
  %6540 = vst [vmem:[%s3 + $0x570] sm:$0xff] %v6344
  %6541 = vst [vmem:[%s3 + $0x578] sm:$0xff] %v6345
  %6542 = vst [vmem:[%s3 + $0x580] sm:$0xff] %v6346
  %6543 = vst [vmem:[%s3 + $0x588] sm:$0xff] %v6347
  %6544 = vst [vmem:[%s3 + $0x590] sm:$0xff] %v6348
  %6545 = vst [vmem:[%s3 + $0x598] sm:$0xff] %v6349
  %6546 = vst [vmem:[%s3 + $0x5a0] sm:$0xff] %v6350
  %6547 = vst [vmem:[%s3 + $0x5a8] sm:$0xff] %v6351
  %6548 = vst [vmem:[%s3 + $0x5b0] sm:$0xff] %v6352
  %6549 = vst [vmem:[%s3 + $0x5b8] sm:$0xff] %v6353
  %6550 = vst [vmem:[%s3 + $0x5c0] sm:$0xff] %v6354
  %6551 = vst [vmem:[%s3 + $0x5c8] sm:$0xff] %v6355
  %6552 = vst [vmem:[%s3 + $0x5d0] sm:$0xff] %v6356
  %6553 = vst [vmem:[%s3 + $0x5d8] sm:$0xff] %v6357
  %6554 = vst [vmem:[%s3 + $0x5e0] sm:$0xff] %v6358
  %6555 = vst [vmem:[%s3 + $0x5e8] sm:$0xff] %v6359
  %6556 = vst [vmem:[%s3 + $0x5f0] sm:$0xff] %v6360
  %6557 = vst [vmem:[%s3 + $0x5f8] sm:$0xff] %v6361
  %6558 = vst [vmem:[%s3 + $0x600] sm:$0xff] %v6362
  %6559 = vst [vmem:[%s3 + $0x608] sm:$0xff] %v6363
  %6560 = vst [vmem:[%s3 + $0x610] sm:$0xff] %v6364
  %6561 = vst [vmem:[%s3 + $0x618] sm:$0xff] %v6365
  // Predicated region
  $region14: #{_lenet_forward.2} parent=0 // pred_check
    _
  $region15: #{_lenet_forward.2} parent=0 // pred_check_branch
    %6563 = sbr.rel (0) target = $region17
  $region16: #{_lenet_forward.2} parent=0 // pred_region
    _
  $region17: #{_lenet_forward.2} parent=0 // pred_fallthru
    _
  // Predicated region
  $region18: #{_lenet_forward.2} parent=0 // pred_check
    _
  $region19: #{_lenet_forward.2} parent=0 // pred_check_branch
    %6565 = sbr.rel (0) target = $region21
  $region20: #{_lenet_forward.2} parent=0 // pred_region
    _
  $region21: #{_lenet_forward.2} parent=0 // pred_fallthru
    _

// kernel: _lenet_forward.3
$region0: #{_lenet_forward.3}
  #allocation0 [shape = 'u32[]', space=smem, size = 0x4, offset = 0x4, fixed_abs, tag = 'smem constant byte address 0x4 - core index']
  #allocation1 [shape = 'u32[72,128]{1,0:T(1,128)}', space=vmem, size = 0x9000, scoped, tag = 'internal scratch']
  #allocation2 [shape = 'f32[200,128]{1,0:T(8,128)}', space=vmem, size = 0x19000, scoped, tag = 'scratch operand']
  %s0 = inlined_call_operand.vmem [shape: f32[4,200,160], index: 0, kind: input, shape index: {}]
  %s1 = inlined_call_operand.vmem [shape: f32[160,128], index: 1, kind: input, shape index: {}]
  %s2 = inlined_call_operand.vmem [shape: f32[1,128], index: 2, kind: input, shape index: {}]
  %s3 = inlined_call_operand.vmem [shape: f32[400,128], index: 3, kind: input, shape index: {}]
  %s4 = inlined_call_operand.vmem [shape: f32[1,128], index: 4, kind: input, shape index: {}]
  %s5 = inlined_call_operand.vmem [shape: f32[128,128], index: 5, kind: input, shape index: {}]
  %s6 = inlined_call_operand.vmem [shape: f32[1,128], index: 6, kind: input, shape index: {}]
  %s7 = inlined_call_operand.vmem [shape: f32[128,128], index: 7, kind: input, shape index: {}]
  %s8 = inlined_call_operand.vmem [shape: f32[1,128], index: 8, kind: input, shape index: {}]
  %s9 = inlined_call_operand.vmem [shape: f32[8,128], index: 9, kind: output, shape index: {}]
  %s10 = sld [smem:[#allocation0]]
  $region46: #{_lenet_forward.3} parent=0
    _
  %s12 = ssub.s32 1, %s10
  %s13 = scalar_select 0, %s12, %s10
  // Predicated region
  $region2: #{_lenet_forward.3} parent=0 // pred_check
    _
  $region3: #{_lenet_forward.3} parent=0 // pred_check_branch
    %15 = sbr.rel (0) target = $region5
  $region4: #{_lenet_forward.3} parent=0 // pred_region
    _
  $region5: #{_lenet_forward.3} parent=0 // pred_fallthru
    _
  // Predicated region
  $region6: #{_lenet_forward.3} parent=0 // pred_check
    _
  $region7: #{_lenet_forward.3} parent=0 // pred_check_branch
    %17 = sbr.rel (0) target = $region9
  $region8: #{_lenet_forward.3} parent=0 // pred_region
    _
  $region9: #{_lenet_forward.3} parent=0 // pred_fallthru
    _
  // Predicated region
  $region10: #{_lenet_forward.3} parent=0 // pred_check
    _
  $region11: #{_lenet_forward.3} parent=0 // pred_check_branch
    %19 = sbr.rel (0) target = $region13
  $region12: #{_lenet_forward.3} parent=0 // pred_region
    _
  $region13: #{_lenet_forward.3} parent=0 // pred_fallthru
    _
  // Predicated region
  $region14: #{_lenet_forward.3} parent=0 // pred_check
    _
  $region15: #{_lenet_forward.3} parent=0 // pred_check_branch
    %21 = sbr.rel (0) target = $region17
  $region16: #{_lenet_forward.3} parent=0 // pred_region
    _
  $region17: #{_lenet_forward.3} parent=0 // pred_fallthru
    _
  // Predicated region
  $region18: #{_lenet_forward.3} parent=0 // pred_check
    _
  $region19: #{_lenet_forward.3} parent=0 // pred_check_branch
    %23 = sbr.rel (0) target = $region21
  $region20: #{_lenet_forward.3} parent=0 // pred_region
    _
  $region21: #{_lenet_forward.3} parent=0 // pred_fallthru
    _
  // Predicated region
  $region22: #{_lenet_forward.3} parent=0 // pred_check
    _
  $region23: #{_lenet_forward.3} parent=0 // pred_check_branch
    %25 = sbr.rel (0) target = $region25
  $region24: #{_lenet_forward.3} parent=0 // pred_region
    _
  $region25: #{_lenet_forward.3} parent=0 // pred_fallthru
    _
  // Predicated region
  $region26: #{_lenet_forward.3} parent=0 // pred_check
    _
  $region27: #{_lenet_forward.3} parent=0 // pred_check_branch
    %27 = sbr.rel (0) target = $region29
  $region28: #{_lenet_forward.3} parent=0 // pred_region
    _
  $region29: #{_lenet_forward.3} parent=0 // pred_fallthru
    _
  // Predicated region
  $region30: #{_lenet_forward.3} parent=0 // pred_check
    _
  $region31: #{_lenet_forward.3} parent=0 // pred_check_branch
    %29 = sbr.rel (0) target = $region33
  $region32: #{_lenet_forward.3} parent=0 // pred_region
    _
  $region33: #{_lenet_forward.3} parent=0 // pred_fallthru
    _
  // Predicated region
  $region34: #{_lenet_forward.3} parent=0 // pred_check
    _
  $region35: #{_lenet_forward.3} parent=0 // pred_check_branch
    %31 = sbr.rel (0) target = $region37
  $region36: #{_lenet_forward.3} parent=0 // pred_region
    _
  $region37: #{_lenet_forward.3} parent=0 // pred_fallthru
    _
  %v32 = vld [vmem:[%s1] sm:$0xff]
  %v33 = vld [vmem:[%s1 + $0x8] sm:$0xff]
  %v34 = vld [vmem:[%s1 + $0x10] sm:$0xff]
  %v35 = vld [vmem:[%s1 + $0x18] sm:$0xff]
  %v36 = vld [vmem:[%s1 + $0x20] sm:$0xff]
  %v37 = vld [vmem:[%s1 + $0x28] sm:$0xff]
  %v38 = vld [vmem:[%s1 + $0x30] sm:$0xff]
  %v39 = vld [vmem:[%s1 + $0x38] sm:$0xff]
  %v40 = vld [vmem:[%s1 + $0x40] sm:$0xff]
  %v41 = vld [vmem:[%s1 + $0x48] sm:$0xff]
  %v42 = vld [vmem:[%s1 + $0x50] sm:$0xff]
  %v43 = vld [vmem:[%s1 + $0x58] sm:$0xff]
  %v44 = vld [vmem:[%s1 + $0x60] sm:$0xff]
  %v45 = vld [vmem:[%s1 + $0x68] sm:$0xff]
  %v46 = vld [vmem:[%s1 + $0x70] sm:$0xff]
  %v47 = vld [vmem:[%s1 + $0x78] sm:$0xff]
  %v48 = vld [vmem:[%s1 + $0x80] sm:$0xff]
  %v49 = vld [vmem:[%s1 + $0x88] sm:$0xff]
  %v50 = vld [vmem:[%s1 + $0x90] sm:$0xff]
  %v51 = vld [vmem:[%s1 + $0x98] sm:$0xff]
  %v52 = vld [vmem:[%s2] sm:$0x1]
  %v53 = vld [vmem:[%s0] sm:$0xff]
  %v54 = vld [vmem:[%s0 + $0x8] sm:$0xff]
  %v55 = vld [vmem:[%s0 + $0x10] sm:$0xff]
  %v56 = vld [vmem:[%s0 + $0x18] sm:$0xff]
  %v57 = vld [vmem:[%s0 + $0x20] sm:$0xff]
  %v58 = vld [vmem:[%s0 + $0x28] sm:$0xff]
  %v59 = vld [vmem:[%s0 + $0x30] sm:$0xff]
  %v60 = vld [vmem:[%s0 + $0x38] sm:$0xff]
  %v61 = vld [vmem:[%s0 + $0x40] sm:$0xff]
  %v62 = vld [vmem:[%s0 + $0x48] sm:$0xff]
  %v63 = vld [vmem:[%s0 + $0x50] sm:$0xff]
  %v64 = vld [vmem:[%s0 + $0x58] sm:$0xff]
  %v65 = vld [vmem:[%s0 + $0x60] sm:$0xff]
  %v66 = vld [vmem:[%s0 + $0x68] sm:$0xff]
  %v67 = vld [vmem:[%s0 + $0x70] sm:$0xff]
  %v68 = vld [vmem:[%s0 + $0x78] sm:$0xff]
  %v69 = vld [vmem:[%s0 + $0x80] sm:$0xff]
  %v70 = vld [vmem:[%s0 + $0x88] sm:$0xff]
  %v71 = vld [vmem:[%s0 + $0x90] sm:$0xff]
  %v72 = vld [vmem:[%s0 + $0x98] sm:$0xff]
  %v73 = vld [vmem:[%s0 + $0xa0] sm:$0xff]
  %v74 = vld [vmem:[%s0 + $0xa8] sm:$0xff]
  %v75 = vld [vmem:[%s0 + $0xb0] sm:$0xff]
  %v76 = vld [vmem:[%s0 + $0xb8] sm:$0xff]
  %v77 = vld [vmem:[%s0 + $0xc0] sm:$0xff]
  %v78 = vld [vmem:[%s0 + $0xc8] sm:$0xff]
  %v79 = vld [vmem:[%s0 + $0xd0] sm:$0xff]
  %v80 = vld [vmem:[%s0 + $0xd8] sm:$0xff]
  %v81 = vld [vmem:[%s0 + $0xe0] sm:$0xff]
  %v82 = vld [vmem:[%s0 + $0xe8] sm:$0xff]
  %v83 = vld [vmem:[%s0 + $0xf0] sm:$0xff]
  %v84 = vld [vmem:[%s0 + $0xf8] sm:$0xff]
  %v85 = vld [vmem:[%s0 + $0x100] sm:$0xff]
  %v86 = vld [vmem:[%s0 + $0x108] sm:$0xff]
  %v87 = vld [vmem:[%s0 + $0x110] sm:$0xff]
  %v88 = vld [vmem:[%s0 + $0x118] sm:$0xff]
  %v89 = vld [vmem:[%s0 + $0x120] sm:$0xff]
  %v90 = vld [vmem:[%s0 + $0x128] sm:$0xff]
  %v91 = vld [vmem:[%s0 + $0x130] sm:$0xff]
  %v92 = vld [vmem:[%s0 + $0x138] sm:$0xff]
  %v93 = vld [vmem:[%s0 + $0x140] sm:$0xff]
  %v94 = vld [vmem:[%s0 + $0x148] sm:$0xff]
  %v95 = vld [vmem:[%s0 + $0x150] sm:$0xff]
  %v96 = vld [vmem:[%s0 + $0x158] sm:$0xff]
  %v97 = vld [vmem:[%s0 + $0x160] sm:$0xff]
  %v98 = vld [vmem:[%s0 + $0x168] sm:$0xff]
  %v99 = vld [vmem:[%s0 + $0x170] sm:$0xff]
  %v100 = vld [vmem:[%s0 + $0x178] sm:$0xff]
  %v101 = vld [vmem:[%s0 + $0x180] sm:$0xff]
  %v102 = vld [vmem:[%s0 + $0x188] sm:$0xff]
  %v104 = vperm.slane %v52, 0
  %vm106 = vcmask 261120
  %v108 = vsel %vm106, %v54, 0
  %v111 = vsel %vm106, %v56, 0
  %v114 = vsel %vm106, %v58, 0
  %v117 = vsel %vm106, %v60, 0
  %v120 = vsel %vm106, %v62, 0
  %v123 = vsel %vm106, %v64, 0
  %v126 = vsel %vm106, %v66, 0
  %v129 = vsel %vm106, %v68, 0
  %v132 = vsel %vm106, %v70, 0
  %v135 = vsel %vm106, %v72, 0
  %v138 = vsel %vm106, %v74, 0
  %v141 = vsel %vm106, %v76, 0
  %v144 = vsel %vm106, %v78, 0
  %v147 = vsel %vm106, %v80, 0
  %v150 = vsel %vm106, %v82, 0
  %v153 = vsel %vm106, %v84, 0
  %v156 = vsel %vm106, %v86, 0
  %v159 = vsel %vm106, %v88, 0
  %v162 = vsel %vm106, %v90, 0
  %v165 = vsel %vm106, %v92, 0
  %v168 = vsel %vm106, %v94, 0
  %v171 = vsel %vm106, %v96, 0
  %v174 = vsel %vm106, %v98, 0
  %v177 = vsel %vm106, %v100, 0
  %v180 = vsel %vm106, %v102, 0
  %182 = vmatpush.msra.mxu0 %v47
  %183 = vmatpush.msra.mxu0 %v46
  %184 = vmatpush.msra.mxu0 %v45
  %185 = vmatpush.msra.mxu0 %v44
  %186 = vmatpush.msra.mxu0 %v43
  %187 = vmatpush.msra.mxu0 %v42
  %188 = vmatpush.msra.mxu0 %v41
  %189 = vmatpush.msra.mxu0 %v40
  %190 = vmatpush.msra.mxu0 %v39
  %191 = vmatpush.msra.mxu0 %v38
  %192 = vmatpush.msra.mxu0 %v37
  %193 = vmatpush.msra.mxu0 %v36
  %194 = vmatpush.msra.mxu0 %v35
  %195 = vmatpush.msra.mxu0 %v34
  %196 = vmatpush.msra.mxu0 %v33
  %197 = vmatpush.msra.mxu0 %v32
  %198 = vmatmul.f32.gmra.mxu0 %v53
  %v199 = vpop.f32.mrf.mxu0
  %v200 = vadd.f32 %v104, %v199
  %201 = vmatmul.f32.gmra.mxu0 %v55
  %v202 = vpop.f32.mrf.mxu0
  %v203 = vadd.f32 %v104, %v202
  %204 = vmatmul.f32.gmra.mxu0 %v57
  %v205 = vpop.f32.mrf.mxu0
  %v206 = vadd.f32 %v104, %v205
  %207 = vmatmul.f32.gmra.mxu0 %v59
  %v208 = vpop.f32.mrf.mxu0
  %v209 = vadd.f32 %v104, %v208
  %210 = vmatmul.f32.gmra.mxu0 %v61
  %v211 = vpop.f32.mrf.mxu0
  %v212 = vadd.f32 %v104, %v211
  %213 = vmatmul.f32.gmra.mxu0 %v63
  %v214 = vpop.f32.mrf.mxu0
  %v215 = vadd.f32 %v104, %v214
  %216 = vmatmul.f32.gmra.mxu0 %v65
  %v217 = vpop.f32.mrf.mxu0
  %v218 = vadd.f32 %v104, %v217
  %219 = vmatmul.f32.gmra.mxu0 %v67
  %v220 = vpop.f32.mrf.mxu0
  %v221 = vadd.f32 %v104, %v220
  %222 = vmatmul.f32.gmra.mxu0 %v69
  %v223 = vpop.f32.mrf.mxu0
  %v224 = vadd.f32 %v104, %v223
  %225 = vmatmul.f32.gmra.mxu0 %v71
  %v226 = vpop.f32.mrf.mxu0
  %v227 = vadd.f32 %v104, %v226
  %228 = vmatmul.f32.gmra.mxu0 %v73
  %v229 = vpop.f32.mrf.mxu0
  %v230 = vadd.f32 %v104, %v229
  %231 = vmatmul.f32.gmra.mxu0 %v75
  %v232 = vpop.f32.mrf.mxu0
  %v233 = vadd.f32 %v104, %v232
  %234 = vmatmul.f32.gmra.mxu0 %v77
  %v235 = vpop.f32.mrf.mxu0
  %v236 = vadd.f32 %v104, %v235
  %237 = vmatmul.f32.gmra.mxu0 %v79
  %v238 = vpop.f32.mrf.mxu0
  %v239 = vadd.f32 %v104, %v238
  %240 = vmatmul.f32.gmra.mxu0 %v81
  %v241 = vpop.f32.mrf.mxu0
  %v242 = vadd.f32 %v104, %v241
  %243 = vmatmul.f32.gmra.mxu0 %v83
  %v244 = vpop.f32.mrf.mxu0
  %v245 = vadd.f32 %v104, %v244
  %246 = vmatmul.f32.gmra.mxu0 %v85
  %v247 = vpop.f32.mrf.mxu0
  %v248 = vadd.f32 %v104, %v247
  %249 = vmatmul.f32.gmra.mxu0 %v87
  %v250 = vpop.f32.mrf.mxu0
  %v251 = vadd.f32 %v104, %v250
  %252 = vmatmul.f32.gmra.mxu0 %v89
  %v253 = vpop.f32.mrf.mxu0
  %v254 = vadd.f32 %v104, %v253
  %255 = vmatmul.f32.gmra.mxu0 %v91
  %v256 = vpop.f32.mrf.mxu0
  %v257 = vadd.f32 %v104, %v256
  %258 = vmatmul.f32.gmra.mxu0 %v93
  %v259 = vpop.f32.mrf.mxu0
  %v260 = vadd.f32 %v104, %v259
  %261 = vmatmul.f32.gmra.mxu0 %v95
  %v262 = vpop.f32.mrf.mxu0
  %v263 = vadd.f32 %v104, %v262
  %264 = vmatmul.f32.gmra.mxu0 %v97
  %v265 = vpop.f32.mrf.mxu0
  %v266 = vadd.f32 %v104, %v265
  %267 = vmatmul.f32.gmra.mxu0 %v99
  %v268 = vpop.f32.mrf.mxu0
  %v269 = vadd.f32 %v104, %v268
  %270 = vmatmul.f32.gmra.mxu0 %v101
  %v271 = vpop.f32.mrf.mxu0
  %v272 = vadd.f32 %v104, %v271
  %273 = vdwg.mxu0
  %274 = vmatpush.msra.mxu0 0.0
  %275 = vmatpush.msra.mxu0 0.0
  %276 = vmatpush.msra.mxu0 0.0
  %277 = vmatpush.msra.mxu0 0.0
  %278 = vmatpush.msra.mxu0 0.0
  %279 = vmatpush.msra.mxu0 0.0
  %280 = vmatpush.msra.mxu0 0.0
  %281 = vmatpush.msra.mxu0 0.0
  %282 = vmatpush.msra.mxu0 0.0
  %283 = vmatpush.msra.mxu0 0.0
  %284 = vmatpush.msra.mxu0 0.0
  %285 = vmatpush.msra.mxu0 0.0
  %286 = vmatpush.msra.mxu0 %v51
  %287 = vmatpush.msra.mxu0 %v50
  %288 = vmatpush.msra.mxu0 %v49
  %289 = vmatpush.msra.mxu0 %v48
  %290 = vmatmul.f32.gmra.mxu0 %v108
  %v291 = vpop.f32.mrf.mxu0
  %v292 = vadd.f32 %v200, %v291
  %293 = vmatmul.f32.gmra.mxu0 %v111
  %v294 = vpop.f32.mrf.mxu0
  %v295 = vadd.f32 %v203, %v294
  %296 = vmatmul.f32.gmra.mxu0 %v114
  %v297 = vpop.f32.mrf.mxu0
  %v298 = vadd.f32 %v206, %v297
  %299 = vmatmul.f32.gmra.mxu0 %v117
  %v300 = vpop.f32.mrf.mxu0
  %v301 = vadd.f32 %v209, %v300
  %302 = vmatmul.f32.gmra.mxu0 %v120
  %v303 = vpop.f32.mrf.mxu0
  %v304 = vadd.f32 %v212, %v303
  %305 = vmatmul.f32.gmra.mxu0 %v123
  %v306 = vpop.f32.mrf.mxu0
  %v307 = vadd.f32 %v215, %v306
  %308 = vmatmul.f32.gmra.mxu0 %v126
  %v309 = vpop.f32.mrf.mxu0
  %v310 = vadd.f32 %v218, %v309
  %311 = vmatmul.f32.gmra.mxu0 %v129
  %v312 = vpop.f32.mrf.mxu0
  %v313 = vadd.f32 %v221, %v312
  %314 = vmatmul.f32.gmra.mxu0 %v132
  %v315 = vpop.f32.mrf.mxu0
  %v316 = vadd.f32 %v224, %v315
  %317 = vmatmul.f32.gmra.mxu0 %v135
  %v318 = vpop.f32.mrf.mxu0
  %v319 = vadd.f32 %v227, %v318
  %320 = vmatmul.f32.gmra.mxu0 %v138
  %v321 = vpop.f32.mrf.mxu0
  %v322 = vadd.f32 %v230, %v321
  %323 = vmatmul.f32.gmra.mxu0 %v141
  %v324 = vpop.f32.mrf.mxu0
  %v325 = vadd.f32 %v233, %v324
  %326 = vmatmul.f32.gmra.mxu0 %v144
  %v327 = vpop.f32.mrf.mxu0
  %v328 = vadd.f32 %v236, %v327
  %329 = vmatmul.f32.gmra.mxu0 %v147
  %v330 = vpop.f32.mrf.mxu0
  %v331 = vadd.f32 %v239, %v330
  %332 = vmatmul.f32.gmra.mxu0 %v150
  %v333 = vpop.f32.mrf.mxu0
  %v334 = vadd.f32 %v242, %v333
  %335 = vmatmul.f32.gmra.mxu0 %v153
  %v336 = vpop.f32.mrf.mxu0
  %v337 = vadd.f32 %v245, %v336
  %338 = vmatmul.f32.gmra.mxu0 %v156
  %v339 = vpop.f32.mrf.mxu0
  %v340 = vadd.f32 %v248, %v339
  %341 = vmatmul.f32.gmra.mxu0 %v159
  %v342 = vpop.f32.mrf.mxu0
  %v343 = vadd.f32 %v251, %v342
  %344 = vmatmul.f32.gmra.mxu0 %v162
  %v345 = vpop.f32.mrf.mxu0
  %v346 = vadd.f32 %v254, %v345
  %347 = vmatmul.f32.gmra.mxu0 %v165
  %v348 = vpop.f32.mrf.mxu0
  %v349 = vadd.f32 %v257, %v348
  %350 = vmatmul.f32.gmra.mxu0 %v168
  %v351 = vpop.f32.mrf.mxu0
  %v352 = vadd.f32 %v260, %v351
  %353 = vmatmul.f32.gmra.mxu0 %v171
  %v354 = vpop.f32.mrf.mxu0
  %v355 = vadd.f32 %v263, %v354
  %356 = vmatmul.f32.gmra.mxu0 %v174
  %v357 = vpop.f32.mrf.mxu0
  %v358 = vadd.f32 %v266, %v357
  %359 = vmatmul.f32.gmra.mxu0 %v177
  %v360 = vpop.f32.mrf.mxu0
  %v361 = vadd.f32 %v269, %v360
  %362 = vmatmul.f32.gmra.mxu0 %v180
  %v363 = vpop.f32.mrf.mxu0
  %v364 = vadd.f32 %v272, %v363
  %365 = vdwg.mxu0
  %s366 = scalar_lea.vmem %s0, 400
  %v367 = vld [vmem:[%s366] sm:$0xff]
  %v368 = vld [vmem:[%s366 + $0x8] sm:$0xff]
  %v369 = vld [vmem:[%s366 + $0x10] sm:$0xff]
  %v370 = vld [vmem:[%s366 + $0x18] sm:$0xff]
  %v371 = vld [vmem:[%s366 + $0x20] sm:$0xff]
  %v372 = vld [vmem:[%s366 + $0x28] sm:$0xff]
  %v373 = vld [vmem:[%s366 + $0x30] sm:$0xff]
  %v374 = vld [vmem:[%s366 + $0x38] sm:$0xff]
  %v375 = vld [vmem:[%s366 + $0x40] sm:$0xff]
  %v376 = vld [vmem:[%s366 + $0x48] sm:$0xff]
  %v377 = vld [vmem:[%s366 + $0x50] sm:$0xff]
  %v378 = vld [vmem:[%s366 + $0x58] sm:$0xff]
  %v379 = vld [vmem:[%s366 + $0x60] sm:$0xff]
  %v380 = vld [vmem:[%s366 + $0x68] sm:$0xff]
  %v381 = vld [vmem:[%s366 + $0x70] sm:$0xff]
  %v382 = vld [vmem:[%s366 + $0x78] sm:$0xff]
  %v383 = vld [vmem:[%s366 + $0x80] sm:$0xff]
  %v384 = vld [vmem:[%s366 + $0x88] sm:$0xff]
  %v385 = vld [vmem:[%s366 + $0x90] sm:$0xff]
  %v386 = vld [vmem:[%s366 + $0x98] sm:$0xff]
  %v387 = vld [vmem:[%s366 + $0xa0] sm:$0xff]
  %v388 = vld [vmem:[%s366 + $0xa8] sm:$0xff]
  %v389 = vld [vmem:[%s366 + $0xb0] sm:$0xff]
  %v390 = vld [vmem:[%s366 + $0xb8] sm:$0xff]
  %v391 = vld [vmem:[%s366 + $0xc0] sm:$0xff]
  %v392 = vld [vmem:[%s366 + $0xc8] sm:$0xff]
  %v393 = vld [vmem:[%s366 + $0xd0] sm:$0xff]
  %v394 = vld [vmem:[%s366 + $0xd8] sm:$0xff]
  %v395 = vld [vmem:[%s366 + $0xe0] sm:$0xff]
  %v396 = vld [vmem:[%s366 + $0xe8] sm:$0xff]
  %v397 = vld [vmem:[%s366 + $0xf0] sm:$0xff]
  %v398 = vld [vmem:[%s366 + $0xf8] sm:$0xff]
  %v399 = vld [vmem:[%s366 + $0x100] sm:$0xff]
  %v400 = vld [vmem:[%s366 + $0x108] sm:$0xff]
  %v401 = vld [vmem:[%s366 + $0x110] sm:$0xff]
  %v402 = vld [vmem:[%s366 + $0x118] sm:$0xff]
  %v403 = vld [vmem:[%s366 + $0x120] sm:$0xff]
  %v404 = vld [vmem:[%s366 + $0x128] sm:$0xff]
  %v405 = vld [vmem:[%s366 + $0x130] sm:$0xff]
  %v406 = vld [vmem:[%s366 + $0x138] sm:$0xff]
  %v407 = vld [vmem:[%s366 + $0x140] sm:$0xff]
  %v408 = vld [vmem:[%s366 + $0x148] sm:$0xff]
  %v409 = vld [vmem:[%s366 + $0x150] sm:$0xff]
  %v410 = vld [vmem:[%s366 + $0x158] sm:$0xff]
  %v411 = vld [vmem:[%s366 + $0x160] sm:$0xff]
  %v412 = vld [vmem:[%s366 + $0x168] sm:$0xff]
  %v413 = vld [vmem:[%s366 + $0x170] sm:$0xff]
  %v414 = vld [vmem:[%s366 + $0x178] sm:$0xff]
  %v415 = vld [vmem:[%s366 + $0x180] sm:$0xff]
  %v416 = vld [vmem:[%s366 + $0x188] sm:$0xff]
  %v418 = vsel %vm106, %v368, 0
  %v421 = vsel %vm106, %v370, 0
  %v424 = vsel %vm106, %v372, 0
  %v427 = vsel %vm106, %v374, 0
  %v430 = vsel %vm106, %v376, 0
  %v433 = vsel %vm106, %v378, 0
  %v436 = vsel %vm106, %v380, 0
  %v439 = vsel %vm106, %v382, 0
  %v442 = vsel %vm106, %v384, 0
  %v445 = vsel %vm106, %v386, 0
  %v448 = vsel %vm106, %v388, 0
  %v451 = vsel %vm106, %v390, 0
  %v454 = vsel %vm106, %v392, 0
  %v457 = vsel %vm106, %v394, 0
  %v460 = vsel %vm106, %v396, 0
  %v463 = vsel %vm106, %v398, 0
  %v466 = vsel %vm106, %v400, 0
  %v469 = vsel %vm106, %v402, 0
  %v472 = vsel %vm106, %v404, 0
  %v475 = vsel %vm106, %v406, 0
  %v478 = vsel %vm106, %v408, 0
  %v481 = vsel %vm106, %v410, 0
  %v484 = vsel %vm106, %v412, 0
  %v487 = vsel %vm106, %v414, 0
  %v490 = vsel %vm106, %v416, 0
  %492 = vmatpush.msra.mxu0 %v47
  %493 = vmatpush.msra.mxu0 %v46
  %494 = vmatpush.msra.mxu0 %v45
  %495 = vmatpush.msra.mxu0 %v44
  %496 = vmatpush.msra.mxu0 %v43
  %497 = vmatpush.msra.mxu0 %v42
  %498 = vmatpush.msra.mxu0 %v41
  %499 = vmatpush.msra.mxu0 %v40
  %500 = vmatpush.msra.mxu0 %v39
  %501 = vmatpush.msra.mxu0 %v38
  %502 = vmatpush.msra.mxu0 %v37
  %503 = vmatpush.msra.mxu0 %v36
  %504 = vmatpush.msra.mxu0 %v35
  %505 = vmatpush.msra.mxu0 %v34
  %506 = vmatpush.msra.mxu0 %v33
  %507 = vmatpush.msra.mxu0 %v32
  %508 = vmatmul.f32.gmra.mxu0 %v367
  %v509 = vpop.f32.mrf.mxu0
  %v510 = vadd.f32 %v104, %v509
  %511 = vmatmul.f32.gmra.mxu0 %v369
  %v512 = vpop.f32.mrf.mxu0
  %v513 = vadd.f32 %v104, %v512
  %514 = vmatmul.f32.gmra.mxu0 %v371
  %v515 = vpop.f32.mrf.mxu0
  %v516 = vadd.f32 %v104, %v515
  %517 = vmatmul.f32.gmra.mxu0 %v373
  %v518 = vpop.f32.mrf.mxu0
  %v519 = vadd.f32 %v104, %v518
  %520 = vmatmul.f32.gmra.mxu0 %v375
  %v521 = vpop.f32.mrf.mxu0
  %v522 = vadd.f32 %v104, %v521
  %523 = vmatmul.f32.gmra.mxu0 %v377
  %v524 = vpop.f32.mrf.mxu0
  %v525 = vadd.f32 %v104, %v524
  %526 = vmatmul.f32.gmra.mxu0 %v379
  %v527 = vpop.f32.mrf.mxu0
  %v528 = vadd.f32 %v104, %v527
  %529 = vmatmul.f32.gmra.mxu0 %v381
  %v530 = vpop.f32.mrf.mxu0
  %v531 = vadd.f32 %v104, %v530
  %532 = vmatmul.f32.gmra.mxu0 %v383
  %v533 = vpop.f32.mrf.mxu0
  %v534 = vadd.f32 %v104, %v533
  %535 = vmatmul.f32.gmra.mxu0 %v385
  %v536 = vpop.f32.mrf.mxu0
  %v537 = vadd.f32 %v104, %v536
  %538 = vmatmul.f32.gmra.mxu0 %v387
  %v539 = vpop.f32.mrf.mxu0
  %v540 = vadd.f32 %v104, %v539
  %541 = vmatmul.f32.gmra.mxu0 %v389
  %v542 = vpop.f32.mrf.mxu0
  %v543 = vadd.f32 %v104, %v542
  %544 = vmatmul.f32.gmra.mxu0 %v391
  %v545 = vpop.f32.mrf.mxu0
  %v546 = vadd.f32 %v104, %v545
  %547 = vmatmul.f32.gmra.mxu0 %v393
  %v548 = vpop.f32.mrf.mxu0
  %v549 = vadd.f32 %v104, %v548
  %550 = vmatmul.f32.gmra.mxu0 %v395
  %v551 = vpop.f32.mrf.mxu0
  %v552 = vadd.f32 %v104, %v551
  %553 = vmatmul.f32.gmra.mxu0 %v397
  %v554 = vpop.f32.mrf.mxu0
  %v555 = vadd.f32 %v104, %v554
  %556 = vmatmul.f32.gmra.mxu0 %v399
  %v557 = vpop.f32.mrf.mxu0
  %v558 = vadd.f32 %v104, %v557
  %559 = vmatmul.f32.gmra.mxu0 %v401
  %v560 = vpop.f32.mrf.mxu0
  %v561 = vadd.f32 %v104, %v560
  %562 = vmatmul.f32.gmra.mxu0 %v403
  %v563 = vpop.f32.mrf.mxu0
  %v564 = vadd.f32 %v104, %v563
  %565 = vmatmul.f32.gmra.mxu0 %v405
  %v566 = vpop.f32.mrf.mxu0
  %v567 = vadd.f32 %v104, %v566
  %568 = vmatmul.f32.gmra.mxu0 %v407
  %v569 = vpop.f32.mrf.mxu0
  %v570 = vadd.f32 %v104, %v569
  %571 = vmatmul.f32.gmra.mxu0 %v409
  %v572 = vpop.f32.mrf.mxu0
  %v573 = vadd.f32 %v104, %v572
  %574 = vmatmul.f32.gmra.mxu0 %v411
  %v575 = vpop.f32.mrf.mxu0
  %v576 = vadd.f32 %v104, %v575
  %577 = vmatmul.f32.gmra.mxu0 %v413
  %v578 = vpop.f32.mrf.mxu0
  %v579 = vadd.f32 %v104, %v578
  %580 = vmatmul.f32.gmra.mxu0 %v415
  %v581 = vpop.f32.mrf.mxu0
  %v582 = vadd.f32 %v104, %v581
  %583 = vdwg.mxu0
  %584 = vmatpush.msra.mxu0 0.0
  %585 = vmatpush.msra.mxu0 0.0
  %586 = vmatpush.msra.mxu0 0.0
  %587 = vmatpush.msra.mxu0 0.0
  %588 = vmatpush.msra.mxu0 0.0
  %589 = vmatpush.msra.mxu0 0.0
  %590 = vmatpush.msra.mxu0 0.0
  %591 = vmatpush.msra.mxu0 0.0
  %592 = vmatpush.msra.mxu0 0.0
  %593 = vmatpush.msra.mxu0 0.0
  %594 = vmatpush.msra.mxu0 0.0
  %595 = vmatpush.msra.mxu0 0.0
  %596 = vmatpush.msra.mxu0 %v51
  %597 = vmatpush.msra.mxu0 %v50
  %598 = vmatpush.msra.mxu0 %v49
  %599 = vmatpush.msra.mxu0 %v48
  %600 = vmatmul.f32.gmra.mxu0 %v418
  %v601 = vpop.f32.mrf.mxu0
  %v602 = vadd.f32 %v510, %v601
  %603 = vmatmul.f32.gmra.mxu0 %v421
  %v604 = vpop.f32.mrf.mxu0
  %v605 = vadd.f32 %v513, %v604
  %606 = vmatmul.f32.gmra.mxu0 %v424
  %v607 = vpop.f32.mrf.mxu0
  %v608 = vadd.f32 %v516, %v607
  %609 = vmatmul.f32.gmra.mxu0 %v427
  %v610 = vpop.f32.mrf.mxu0
  %v611 = vadd.f32 %v519, %v610
  %612 = vmatmul.f32.gmra.mxu0 %v430
  %v613 = vpop.f32.mrf.mxu0
  %v614 = vadd.f32 %v522, %v613
  %615 = vmatmul.f32.gmra.mxu0 %v433
  %v616 = vpop.f32.mrf.mxu0
  %v617 = vadd.f32 %v525, %v616
  %618 = vmatmul.f32.gmra.mxu0 %v436
  %v619 = vpop.f32.mrf.mxu0
  %v620 = vadd.f32 %v528, %v619
  %621 = vmatmul.f32.gmra.mxu0 %v439
  %v622 = vpop.f32.mrf.mxu0
  %v623 = vadd.f32 %v531, %v622
  %624 = vmatmul.f32.gmra.mxu0 %v442
  %v625 = vpop.f32.mrf.mxu0
  %v626 = vadd.f32 %v534, %v625
  %627 = vmatmul.f32.gmra.mxu0 %v445
  %v628 = vpop.f32.mrf.mxu0
  %v629 = vadd.f32 %v537, %v628
  %630 = vmatmul.f32.gmra.mxu0 %v448
  %v631 = vpop.f32.mrf.mxu0
  %v632 = vadd.f32 %v540, %v631
  %633 = vmatmul.f32.gmra.mxu0 %v451
  %v634 = vpop.f32.mrf.mxu0
  %v635 = vadd.f32 %v543, %v634
  %636 = vmatmul.f32.gmra.mxu0 %v454
  %v637 = vpop.f32.mrf.mxu0
  %v638 = vadd.f32 %v546, %v637
  %639 = vmatmul.f32.gmra.mxu0 %v457
  %v640 = vpop.f32.mrf.mxu0
  %v641 = vadd.f32 %v549, %v640
  %642 = vmatmul.f32.gmra.mxu0 %v460
  %v643 = vpop.f32.mrf.mxu0
  %v644 = vadd.f32 %v552, %v643
  %645 = vmatmul.f32.gmra.mxu0 %v463
  %v646 = vpop.f32.mrf.mxu0
  %v647 = vadd.f32 %v555, %v646
  %648 = vmatmul.f32.gmra.mxu0 %v466
  %v649 = vpop.f32.mrf.mxu0
  %v650 = vadd.f32 %v558, %v649
  %651 = vmatmul.f32.gmra.mxu0 %v469
  %v652 = vpop.f32.mrf.mxu0
  %v653 = vadd.f32 %v561, %v652
  %654 = vmatmul.f32.gmra.mxu0 %v472
  %v655 = vpop.f32.mrf.mxu0
  %v656 = vadd.f32 %v564, %v655
  %657 = vmatmul.f32.gmra.mxu0 %v475
  %v658 = vpop.f32.mrf.mxu0
  %v659 = vadd.f32 %v567, %v658
  %660 = vmatmul.f32.gmra.mxu0 %v478
  %v661 = vpop.f32.mrf.mxu0
  %v662 = vadd.f32 %v570, %v661
  %663 = vmatmul.f32.gmra.mxu0 %v481
  %v664 = vpop.f32.mrf.mxu0
  %v665 = vadd.f32 %v573, %v664
  %666 = vmatmul.f32.gmra.mxu0 %v484
  %v667 = vpop.f32.mrf.mxu0
  %v668 = vadd.f32 %v576, %v667
  %669 = vmatmul.f32.gmra.mxu0 %v487
  %v670 = vpop.f32.mrf.mxu0
  %v671 = vadd.f32 %v579, %v670
  %672 = vmatmul.f32.gmra.mxu0 %v490
  %v673 = vpop.f32.mrf.mxu0
  %v674 = vadd.f32 %v582, %v673
  %675 = vdwg.mxu0
  %v676 = vmax.f32 %v292, %v602
  %v677 = vmax.f32 %v295, %v605
  %v678 = vmax.f32 %v298, %v608
  %v679 = vmax.f32 %v301, %v611
  %v680 = vmax.f32 %v304, %v614
  %v681 = vmax.f32 %v307, %v617
  %v682 = vmax.f32 %v310, %v620
  %v683 = vmax.f32 %v313, %v623
  %v684 = vmax.f32 %v316, %v626
  %v685 = vmax.f32 %v319, %v629
  %v686 = vmax.f32 %v322, %v632
  %v687 = vmax.f32 %v325, %v635
  %v688 = vmax.f32 %v328, %v638
  %v689 = vmax.f32 %v331, %v641
  %v690 = vmax.f32 %v334, %v644
  %v691 = vmax.f32 %v337, %v647
  %v692 = vmax.f32 %v340, %v650
  %v693 = vmax.f32 %v343, %v653
  %v694 = vmax.f32 %v346, %v656
  %v695 = vmax.f32 %v349, %v659
  %v696 = vmax.f32 %v352, %v662
  %v697 = vmax.f32 %v355, %v665
  %v698 = vmax.f32 %v358, %v668
  %v699 = vmax.f32 %v361, %v671
  %v700 = vmax.f32 %v364, %v674
  %s701 = scalar_lea.vmem %s0, 800
  %v702 = vld [vmem:[%s701] sm:$0xff]
  %v703 = vld [vmem:[%s701 + $0x8] sm:$0xff]
  %v704 = vld [vmem:[%s701 + $0x10] sm:$0xff]
  %v705 = vld [vmem:[%s701 + $0x18] sm:$0xff]
  %v706 = vld [vmem:[%s701 + $0x20] sm:$0xff]
  %v707 = vld [vmem:[%s701 + $0x28] sm:$0xff]
  %v708 = vld [vmem:[%s701 + $0x30] sm:$0xff]
  %v709 = vld [vmem:[%s701 + $0x38] sm:$0xff]
  %v710 = vld [vmem:[%s701 + $0x40] sm:$0xff]
  %v711 = vld [vmem:[%s701 + $0x48] sm:$0xff]
  %v712 = vld [vmem:[%s701 + $0x50] sm:$0xff]
  %v713 = vld [vmem:[%s701 + $0x58] sm:$0xff]
  %v714 = vld [vmem:[%s701 + $0x60] sm:$0xff]
  %v715 = vld [vmem:[%s701 + $0x68] sm:$0xff]
  %v716 = vld [vmem:[%s701 + $0x70] sm:$0xff]
  %v717 = vld [vmem:[%s701 + $0x78] sm:$0xff]
  %v718 = vld [vmem:[%s701 + $0x80] sm:$0xff]
  %v719 = vld [vmem:[%s701 + $0x88] sm:$0xff]
  %v720 = vld [vmem:[%s701 + $0x90] sm:$0xff]
  %v721 = vld [vmem:[%s701 + $0x98] sm:$0xff]
  %v722 = vld [vmem:[%s701 + $0xa0] sm:$0xff]
  %v723 = vld [vmem:[%s701 + $0xa8] sm:$0xff]
  %v724 = vld [vmem:[%s701 + $0xb0] sm:$0xff]
  %v725 = vld [vmem:[%s701 + $0xb8] sm:$0xff]
  %v726 = vld [vmem:[%s701 + $0xc0] sm:$0xff]
  %v727 = vld [vmem:[%s701 + $0xc8] sm:$0xff]
  %v728 = vld [vmem:[%s701 + $0xd0] sm:$0xff]
  %v729 = vld [vmem:[%s701 + $0xd8] sm:$0xff]
  %v730 = vld [vmem:[%s701 + $0xe0] sm:$0xff]
  %v731 = vld [vmem:[%s701 + $0xe8] sm:$0xff]
  %v732 = vld [vmem:[%s701 + $0xf0] sm:$0xff]
  %v733 = vld [vmem:[%s701 + $0xf8] sm:$0xff]
  %v734 = vld [vmem:[%s701 + $0x100] sm:$0xff]
  %v735 = vld [vmem:[%s701 + $0x108] sm:$0xff]
  %v736 = vld [vmem:[%s701 + $0x110] sm:$0xff]
  %v737 = vld [vmem:[%s701 + $0x118] sm:$0xff]
  %v738 = vld [vmem:[%s701 + $0x120] sm:$0xff]
  %v739 = vld [vmem:[%s701 + $0x128] sm:$0xff]
  %v740 = vld [vmem:[%s701 + $0x130] sm:$0xff]
  %v741 = vld [vmem:[%s701 + $0x138] sm:$0xff]
  %v742 = vld [vmem:[%s701 + $0x140] sm:$0xff]
  %v743 = vld [vmem:[%s701 + $0x148] sm:$0xff]
  %v744 = vld [vmem:[%s701 + $0x150] sm:$0xff]
  %v745 = vld [vmem:[%s701 + $0x158] sm:$0xff]
  %v746 = vld [vmem:[%s701 + $0x160] sm:$0xff]
  %v747 = vld [vmem:[%s701 + $0x168] sm:$0xff]
  %v748 = vld [vmem:[%s701 + $0x170] sm:$0xff]
  %v749 = vld [vmem:[%s701 + $0x178] sm:$0xff]
  %v750 = vld [vmem:[%s701 + $0x180] sm:$0xff]
  %v751 = vld [vmem:[%s701 + $0x188] sm:$0xff]
  %v753 = vsel %vm106, %v703, 0
  %v756 = vsel %vm106, %v705, 0
  %v759 = vsel %vm106, %v707, 0
  %v762 = vsel %vm106, %v709, 0
  %v765 = vsel %vm106, %v711, 0
  %v768 = vsel %vm106, %v713, 0
  %v771 = vsel %vm106, %v715, 0
  %v774 = vsel %vm106, %v717, 0
  %v777 = vsel %vm106, %v719, 0
  %v780 = vsel %vm106, %v721, 0
  %v783 = vsel %vm106, %v723, 0
  %v786 = vsel %vm106, %v725, 0
  %v789 = vsel %vm106, %v727, 0
  %v792 = vsel %vm106, %v729, 0
  %v795 = vsel %vm106, %v731, 0
  %v798 = vsel %vm106, %v733, 0
  %v801 = vsel %vm106, %v735, 0
  %v804 = vsel %vm106, %v737, 0
  %v807 = vsel %vm106, %v739, 0
  %v810 = vsel %vm106, %v741, 0
  %v813 = vsel %vm106, %v743, 0
  %v816 = vsel %vm106, %v745, 0
  %v819 = vsel %vm106, %v747, 0
  %v822 = vsel %vm106, %v749, 0
  %v825 = vsel %vm106, %v751, 0
  %827 = vmatpush.msra.mxu0 %v47
  %828 = vmatpush.msra.mxu0 %v46
  %829 = vmatpush.msra.mxu0 %v45
  %830 = vmatpush.msra.mxu0 %v44
  %831 = vmatpush.msra.mxu0 %v43
  %832 = vmatpush.msra.mxu0 %v42
  %833 = vmatpush.msra.mxu0 %v41
  %834 = vmatpush.msra.mxu0 %v40
  %835 = vmatpush.msra.mxu0 %v39
  %836 = vmatpush.msra.mxu0 %v38
  %837 = vmatpush.msra.mxu0 %v37
  %838 = vmatpush.msra.mxu0 %v36
  %839 = vmatpush.msra.mxu0 %v35
  %840 = vmatpush.msra.mxu0 %v34
  %841 = vmatpush.msra.mxu0 %v33
  %842 = vmatpush.msra.mxu0 %v32
  %843 = vmatmul.f32.gmra.mxu0 %v702
  %v844 = vpop.f32.mrf.mxu0
  %v845 = vadd.f32 %v104, %v844
  %846 = vmatmul.f32.gmra.mxu0 %v704
  %v847 = vpop.f32.mrf.mxu0
  %v848 = vadd.f32 %v104, %v847
  %849 = vmatmul.f32.gmra.mxu0 %v706
  %v850 = vpop.f32.mrf.mxu0
  %v851 = vadd.f32 %v104, %v850
  %852 = vmatmul.f32.gmra.mxu0 %v708
  %v853 = vpop.f32.mrf.mxu0
  %v854 = vadd.f32 %v104, %v853
  %855 = vmatmul.f32.gmra.mxu0 %v710
  %v856 = vpop.f32.mrf.mxu0
  %v857 = vadd.f32 %v104, %v856
  %858 = vmatmul.f32.gmra.mxu0 %v712
  %v859 = vpop.f32.mrf.mxu0
  %v860 = vadd.f32 %v104, %v859
  %861 = vmatmul.f32.gmra.mxu0 %v714
  %v862 = vpop.f32.mrf.mxu0
  %v863 = vadd.f32 %v104, %v862
  %864 = vmatmul.f32.gmra.mxu0 %v716
  %v865 = vpop.f32.mrf.mxu0
  %v866 = vadd.f32 %v104, %v865
  %867 = vmatmul.f32.gmra.mxu0 %v718
  %v868 = vpop.f32.mrf.mxu0
  %v869 = vadd.f32 %v104, %v868
  %870 = vmatmul.f32.gmra.mxu0 %v720
  %v871 = vpop.f32.mrf.mxu0
  %v872 = vadd.f32 %v104, %v871
  %873 = vmatmul.f32.gmra.mxu0 %v722
  %v874 = vpop.f32.mrf.mxu0
  %v875 = vadd.f32 %v104, %v874
  %876 = vmatmul.f32.gmra.mxu0 %v724
  %v877 = vpop.f32.mrf.mxu0
  %v878 = vadd.f32 %v104, %v877
  %879 = vmatmul.f32.gmra.mxu0 %v726
  %v880 = vpop.f32.mrf.mxu0
  %v881 = vadd.f32 %v104, %v880
  %882 = vmatmul.f32.gmra.mxu0 %v728
  %v883 = vpop.f32.mrf.mxu0
  %v884 = vadd.f32 %v104, %v883
  %885 = vmatmul.f32.gmra.mxu0 %v730
  %v886 = vpop.f32.mrf.mxu0
  %v887 = vadd.f32 %v104, %v886
  %888 = vmatmul.f32.gmra.mxu0 %v732
  %v889 = vpop.f32.mrf.mxu0
  %v890 = vadd.f32 %v104, %v889
  %891 = vmatmul.f32.gmra.mxu0 %v734
  %v892 = vpop.f32.mrf.mxu0
  %v893 = vadd.f32 %v104, %v892
  %894 = vmatmul.f32.gmra.mxu0 %v736
  %v895 = vpop.f32.mrf.mxu0
  %v896 = vadd.f32 %v104, %v895
  %897 = vmatmul.f32.gmra.mxu0 %v738
  %v898 = vpop.f32.mrf.mxu0
  %v899 = vadd.f32 %v104, %v898
  %900 = vmatmul.f32.gmra.mxu0 %v740
  %v901 = vpop.f32.mrf.mxu0
  %v902 = vadd.f32 %v104, %v901
  %903 = vmatmul.f32.gmra.mxu0 %v742
  %v904 = vpop.f32.mrf.mxu0
  %v905 = vadd.f32 %v104, %v904
  %906 = vmatmul.f32.gmra.mxu0 %v744
  %v907 = vpop.f32.mrf.mxu0
  %v908 = vadd.f32 %v104, %v907
  %909 = vmatmul.f32.gmra.mxu0 %v746
  %v910 = vpop.f32.mrf.mxu0
  %v911 = vadd.f32 %v104, %v910
  %912 = vmatmul.f32.gmra.mxu0 %v748
  %v913 = vpop.f32.mrf.mxu0
  %v914 = vadd.f32 %v104, %v913
  %915 = vmatmul.f32.gmra.mxu0 %v750
  %v916 = vpop.f32.mrf.mxu0
  %v917 = vadd.f32 %v104, %v916
  %918 = vdwg.mxu0
  %919 = vmatpush.msra.mxu0 0.0
  %920 = vmatpush.msra.mxu0 0.0
  %921 = vmatpush.msra.mxu0 0.0
  %922 = vmatpush.msra.mxu0 0.0
  %923 = vmatpush.msra.mxu0 0.0
  %924 = vmatpush.msra.mxu0 0.0
  %925 = vmatpush.msra.mxu0 0.0
  %926 = vmatpush.msra.mxu0 0.0
  %927 = vmatpush.msra.mxu0 0.0
  %928 = vmatpush.msra.mxu0 0.0
  %929 = vmatpush.msra.mxu0 0.0
  %930 = vmatpush.msra.mxu0 0.0
  %931 = vmatpush.msra.mxu0 %v51
  %932 = vmatpush.msra.mxu0 %v50
  %933 = vmatpush.msra.mxu0 %v49
  %934 = vmatpush.msra.mxu0 %v48
  %935 = vmatmul.f32.gmra.mxu0 %v753
  %v936 = vpop.f32.mrf.mxu0
  %v937 = vadd.f32 %v845, %v936
  %938 = vmatmul.f32.gmra.mxu0 %v756
  %v939 = vpop.f32.mrf.mxu0
  %v940 = vadd.f32 %v848, %v939
  %941 = vmatmul.f32.gmra.mxu0 %v759
  %v942 = vpop.f32.mrf.mxu0
  %v943 = vadd.f32 %v851, %v942
  %944 = vmatmul.f32.gmra.mxu0 %v762
  %v945 = vpop.f32.mrf.mxu0
  %v946 = vadd.f32 %v854, %v945
  %947 = vmatmul.f32.gmra.mxu0 %v765
  %v948 = vpop.f32.mrf.mxu0
  %v949 = vadd.f32 %v857, %v948
  %950 = vmatmul.f32.gmra.mxu0 %v768
  %v951 = vpop.f32.mrf.mxu0
  %v952 = vadd.f32 %v860, %v951
  %953 = vmatmul.f32.gmra.mxu0 %v771
  %v954 = vpop.f32.mrf.mxu0
  %v955 = vadd.f32 %v863, %v954
  %956 = vmatmul.f32.gmra.mxu0 %v774
  %v957 = vpop.f32.mrf.mxu0
  %v958 = vadd.f32 %v866, %v957
  %959 = vmatmul.f32.gmra.mxu0 %v777
  %v960 = vpop.f32.mrf.mxu0
  %v961 = vadd.f32 %v869, %v960
  %962 = vmatmul.f32.gmra.mxu0 %v780
  %v963 = vpop.f32.mrf.mxu0
  %v964 = vadd.f32 %v872, %v963
  %965 = vmatmul.f32.gmra.mxu0 %v783
  %v966 = vpop.f32.mrf.mxu0
  %v967 = vadd.f32 %v875, %v966
  %968 = vmatmul.f32.gmra.mxu0 %v786
  %v969 = vpop.f32.mrf.mxu0
  %v970 = vadd.f32 %v878, %v969
  %971 = vmatmul.f32.gmra.mxu0 %v789
  %v972 = vpop.f32.mrf.mxu0
  %v973 = vadd.f32 %v881, %v972
  %974 = vmatmul.f32.gmra.mxu0 %v792
  %v975 = vpop.f32.mrf.mxu0
  %v976 = vadd.f32 %v884, %v975
  %977 = vmatmul.f32.gmra.mxu0 %v795
  %v978 = vpop.f32.mrf.mxu0
  %v979 = vadd.f32 %v887, %v978
  %980 = vmatmul.f32.gmra.mxu0 %v798
  %v981 = vpop.f32.mrf.mxu0
  %v982 = vadd.f32 %v890, %v981
  %983 = vmatmul.f32.gmra.mxu0 %v801
  %v984 = vpop.f32.mrf.mxu0
  %v985 = vadd.f32 %v893, %v984
  %986 = vmatmul.f32.gmra.mxu0 %v804
  %v987 = vpop.f32.mrf.mxu0
  %v988 = vadd.f32 %v896, %v987
  %989 = vmatmul.f32.gmra.mxu0 %v807
  %v990 = vpop.f32.mrf.mxu0
  %v991 = vadd.f32 %v899, %v990
  %992 = vmatmul.f32.gmra.mxu0 %v810
  %v993 = vpop.f32.mrf.mxu0
  %v994 = vadd.f32 %v902, %v993
  %995 = vmatmul.f32.gmra.mxu0 %v813
  %v996 = vpop.f32.mrf.mxu0
  %v997 = vadd.f32 %v905, %v996
  %998 = vmatmul.f32.gmra.mxu0 %v816
  %v999 = vpop.f32.mrf.mxu0
  %v1000 = vadd.f32 %v908, %v999
  %1001 = vmatmul.f32.gmra.mxu0 %v819
  %v1002 = vpop.f32.mrf.mxu0
  %v1003 = vadd.f32 %v911, %v1002
  %1004 = vmatmul.f32.gmra.mxu0 %v822
  %v1005 = vpop.f32.mrf.mxu0
  %v1006 = vadd.f32 %v914, %v1005
  %1007 = vmatmul.f32.gmra.mxu0 %v825
  %v1008 = vpop.f32.mrf.mxu0
  %v1009 = vadd.f32 %v917, %v1008
  %1010 = vdwg.mxu0
  %v1011 = vmax.f32 %v676, %v937
  %v1012 = vmax.f32 %v677, %v940
  %v1013 = vmax.f32 %v678, %v943
  %v1014 = vmax.f32 %v679, %v946
  %v1015 = vmax.f32 %v680, %v949
  %v1016 = vmax.f32 %v681, %v952
  %v1017 = vmax.f32 %v682, %v955
  %v1018 = vmax.f32 %v683, %v958
  %v1019 = vmax.f32 %v684, %v961
  %v1020 = vmax.f32 %v685, %v964
  %v1021 = vmax.f32 %v686, %v967
  %v1022 = vmax.f32 %v687, %v970
  %v1023 = vmax.f32 %v688, %v973
  %v1024 = vmax.f32 %v689, %v976
  %v1025 = vmax.f32 %v690, %v979
  %v1026 = vmax.f32 %v691, %v982
  %v1027 = vmax.f32 %v692, %v985
  %v1028 = vmax.f32 %v693, %v988
  %v1029 = vmax.f32 %v694, %v991
  %v1030 = vmax.f32 %v695, %v994
  %v1031 = vmax.f32 %v696, %v997
  %v1032 = vmax.f32 %v697, %v1000
  %v1033 = vmax.f32 %v698, %v1003
  %v1034 = vmax.f32 %v699, %v1006
  %v1035 = vmax.f32 %v700, %v1009
  %s1036 = scalar_lea.vmem %s0, 1200
  %v1037 = vld [vmem:[%s1036] sm:$0xff]
  %v1038 = vld [vmem:[%s1036 + $0x8] sm:$0xff]
  %v1039 = vld [vmem:[%s1036 + $0x10] sm:$0xff]
  %v1040 = vld [vmem:[%s1036 + $0x18] sm:$0xff]
  %v1041 = vld [vmem:[%s1036 + $0x20] sm:$0xff]
  %v1042 = vld [vmem:[%s1036 + $0x28] sm:$0xff]
  %v1043 = vld [vmem:[%s1036 + $0x30] sm:$0xff]
  %v1044 = vld [vmem:[%s1036 + $0x38] sm:$0xff]
  %v1045 = vld [vmem:[%s1036 + $0x40] sm:$0xff]
  %v1046 = vld [vmem:[%s1036 + $0x48] sm:$0xff]
  %v1047 = vld [vmem:[%s1036 + $0x50] sm:$0xff]
  %v1048 = vld [vmem:[%s1036 + $0x58] sm:$0xff]
  %v1049 = vld [vmem:[%s1036 + $0x60] sm:$0xff]
  %v1050 = vld [vmem:[%s1036 + $0x68] sm:$0xff]
  %v1051 = vld [vmem:[%s1036 + $0x70] sm:$0xff]
  %v1052 = vld [vmem:[%s1036 + $0x78] sm:$0xff]
  %v1053 = vld [vmem:[%s1036 + $0x80] sm:$0xff]
  %v1054 = vld [vmem:[%s1036 + $0x88] sm:$0xff]
  %v1055 = vld [vmem:[%s1036 + $0x90] sm:$0xff]
  %v1056 = vld [vmem:[%s1036 + $0x98] sm:$0xff]
  %v1057 = vld [vmem:[%s1036 + $0xa0] sm:$0xff]
  %v1058 = vld [vmem:[%s1036 + $0xa8] sm:$0xff]
  %v1059 = vld [vmem:[%s1036 + $0xb0] sm:$0xff]
  %v1060 = vld [vmem:[%s1036 + $0xb8] sm:$0xff]
  %v1061 = vld [vmem:[%s1036 + $0xc0] sm:$0xff]
  %v1062 = vld [vmem:[%s1036 + $0xc8] sm:$0xff]
  %v1063 = vld [vmem:[%s1036 + $0xd0] sm:$0xff]
  %v1064 = vld [vmem:[%s1036 + $0xd8] sm:$0xff]
  %v1065 = vld [vmem:[%s1036 + $0xe0] sm:$0xff]
  %v1066 = vld [vmem:[%s1036 + $0xe8] sm:$0xff]
  %v1067 = vld [vmem:[%s1036 + $0xf0] sm:$0xff]
  %v1068 = vld [vmem:[%s1036 + $0xf8] sm:$0xff]
  %v1069 = vld [vmem:[%s1036 + $0x100] sm:$0xff]
  %v1070 = vld [vmem:[%s1036 + $0x108] sm:$0xff]
  %v1071 = vld [vmem:[%s1036 + $0x110] sm:$0xff]
  %v1072 = vld [vmem:[%s1036 + $0x118] sm:$0xff]
  %v1073 = vld [vmem:[%s1036 + $0x120] sm:$0xff]
  %v1074 = vld [vmem:[%s1036 + $0x128] sm:$0xff]
  %v1075 = vld [vmem:[%s1036 + $0x130] sm:$0xff]
  %v1076 = vld [vmem:[%s1036 + $0x138] sm:$0xff]
  %v1077 = vld [vmem:[%s1036 + $0x140] sm:$0xff]
  %v1078 = vld [vmem:[%s1036 + $0x148] sm:$0xff]
  %v1079 = vld [vmem:[%s1036 + $0x150] sm:$0xff]
  %v1080 = vld [vmem:[%s1036 + $0x158] sm:$0xff]
  %v1081 = vld [vmem:[%s1036 + $0x160] sm:$0xff]
  %v1082 = vld [vmem:[%s1036 + $0x168] sm:$0xff]
  %v1083 = vld [vmem:[%s1036 + $0x170] sm:$0xff]
  %v1084 = vld [vmem:[%s1036 + $0x178] sm:$0xff]
  %v1085 = vld [vmem:[%s1036 + $0x180] sm:$0xff]
  %v1086 = vld [vmem:[%s1036 + $0x188] sm:$0xff]
  %v1088 = vsel %vm106, %v1038, 0
  %v1091 = vsel %vm106, %v1040, 0
  %v1094 = vsel %vm106, %v1042, 0
  %v1097 = vsel %vm106, %v1044, 0
  %v1100 = vsel %vm106, %v1046, 0
  %v1103 = vsel %vm106, %v1048, 0
  %v1106 = vsel %vm106, %v1050, 0
  %v1109 = vsel %vm106, %v1052, 0
  %v1112 = vsel %vm106, %v1054, 0
  %v1115 = vsel %vm106, %v1056, 0
  %v1118 = vsel %vm106, %v1058, 0
  %v1121 = vsel %vm106, %v1060, 0
  %v1124 = vsel %vm106, %v1062, 0
  %v1127 = vsel %vm106, %v1064, 0
  %v1130 = vsel %vm106, %v1066, 0
  %v1133 = vsel %vm106, %v1068, 0
  %v1136 = vsel %vm106, %v1070, 0
  %v1139 = vsel %vm106, %v1072, 0
  %v1142 = vsel %vm106, %v1074, 0
  %v1145 = vsel %vm106, %v1076, 0
  %v1148 = vsel %vm106, %v1078, 0
  %v1151 = vsel %vm106, %v1080, 0
  %v1154 = vsel %vm106, %v1082, 0
  %v1157 = vsel %vm106, %v1084, 0
  %v1160 = vsel %vm106, %v1086, 0
  %1162 = vmatpush.msra.mxu0 %v47
  %1163 = vmatpush.msra.mxu0 %v46
  %1164 = vmatpush.msra.mxu0 %v45
  %1165 = vmatpush.msra.mxu0 %v44
  %1166 = vmatpush.msra.mxu0 %v43
  %1167 = vmatpush.msra.mxu0 %v42
  %1168 = vmatpush.msra.mxu0 %v41
  %1169 = vmatpush.msra.mxu0 %v40
  %1170 = vmatpush.msra.mxu0 %v39
  %1171 = vmatpush.msra.mxu0 %v38
  %1172 = vmatpush.msra.mxu0 %v37
  %1173 = vmatpush.msra.mxu0 %v36
  %1174 = vmatpush.msra.mxu0 %v35
  %1175 = vmatpush.msra.mxu0 %v34
  %1176 = vmatpush.msra.mxu0 %v33
  %1177 = vmatpush.msra.mxu0 %v32
  %1178 = vmatmul.f32.gmra.mxu0 %v1037
  %v1179 = vpop.f32.mrf.mxu0
  %v1180 = vadd.f32 %v104, %v1179
  %1181 = vmatmul.f32.gmra.mxu0 %v1039
  %v1182 = vpop.f32.mrf.mxu0
  %v1183 = vadd.f32 %v104, %v1182
  %1184 = vmatmul.f32.gmra.mxu0 %v1041
  %v1185 = vpop.f32.mrf.mxu0
  %v1186 = vadd.f32 %v104, %v1185
  %1187 = vmatmul.f32.gmra.mxu0 %v1043
  %v1188 = vpop.f32.mrf.mxu0
  %v1189 = vadd.f32 %v104, %v1188
  %1190 = vmatmul.f32.gmra.mxu0 %v1045
  %v1191 = vpop.f32.mrf.mxu0
  %v1192 = vadd.f32 %v104, %v1191
  %1193 = vmatmul.f32.gmra.mxu0 %v1047
  %v1194 = vpop.f32.mrf.mxu0
  %v1195 = vadd.f32 %v104, %v1194
  %1196 = vmatmul.f32.gmra.mxu0 %v1049
  %v1197 = vpop.f32.mrf.mxu0
  %v1198 = vadd.f32 %v104, %v1197
  %1199 = vmatmul.f32.gmra.mxu0 %v1051
  %v1200 = vpop.f32.mrf.mxu0
  %v1201 = vadd.f32 %v104, %v1200
  %1202 = vmatmul.f32.gmra.mxu0 %v1053
  %v1203 = vpop.f32.mrf.mxu0
  %v1204 = vadd.f32 %v104, %v1203
  %1205 = vmatmul.f32.gmra.mxu0 %v1055
  %v1206 = vpop.f32.mrf.mxu0
  %v1207 = vadd.f32 %v104, %v1206
  %1208 = vmatmul.f32.gmra.mxu0 %v1057
  %v1209 = vpop.f32.mrf.mxu0
  %v1210 = vadd.f32 %v104, %v1209
  %1211 = vmatmul.f32.gmra.mxu0 %v1059
  %v1212 = vpop.f32.mrf.mxu0
  %v1213 = vadd.f32 %v104, %v1212
  %1214 = vmatmul.f32.gmra.mxu0 %v1061
  %v1215 = vpop.f32.mrf.mxu0
  %v1216 = vadd.f32 %v104, %v1215
  %1217 = vmatmul.f32.gmra.mxu0 %v1063
  %v1218 = vpop.f32.mrf.mxu0
  %v1219 = vadd.f32 %v104, %v1218
  %1220 = vmatmul.f32.gmra.mxu0 %v1065
  %v1221 = vpop.f32.mrf.mxu0
  %v1222 = vadd.f32 %v104, %v1221
  %1223 = vmatmul.f32.gmra.mxu0 %v1067
  %v1224 = vpop.f32.mrf.mxu0
  %v1225 = vadd.f32 %v104, %v1224
  %1226 = vmatmul.f32.gmra.mxu0 %v1069
  %v1227 = vpop.f32.mrf.mxu0
  %v1228 = vadd.f32 %v104, %v1227
  %1229 = vmatmul.f32.gmra.mxu0 %v1071
  %v1230 = vpop.f32.mrf.mxu0
  %v1231 = vadd.f32 %v104, %v1230
  %1232 = vmatmul.f32.gmra.mxu0 %v1073
  %v1233 = vpop.f32.mrf.mxu0
  %v1234 = vadd.f32 %v104, %v1233
  %1235 = vmatmul.f32.gmra.mxu0 %v1075
  %v1236 = vpop.f32.mrf.mxu0
  %v1237 = vadd.f32 %v104, %v1236
  %1238 = vmatmul.f32.gmra.mxu0 %v1077
  %v1239 = vpop.f32.mrf.mxu0
  %v1240 = vadd.f32 %v104, %v1239
  %1241 = vmatmul.f32.gmra.mxu0 %v1079
  %v1242 = vpop.f32.mrf.mxu0
  %v1243 = vadd.f32 %v104, %v1242
  %1244 = vmatmul.f32.gmra.mxu0 %v1081
  %v1245 = vpop.f32.mrf.mxu0
  %v1246 = vadd.f32 %v104, %v1245
  %1247 = vmatmul.f32.gmra.mxu0 %v1083
  %v1248 = vpop.f32.mrf.mxu0
  %v1249 = vadd.f32 %v104, %v1248
  %1250 = vmatmul.f32.gmra.mxu0 %v1085
  %v1251 = vpop.f32.mrf.mxu0
  %v1252 = vadd.f32 %v104, %v1251
  %1253 = vdwg.mxu0
  %1254 = vmatpush.msra.mxu0 0.0
  %1255 = vmatpush.msra.mxu0 0.0
  %1256 = vmatpush.msra.mxu0 0.0
  %1257 = vmatpush.msra.mxu0 0.0
  %1258 = vmatpush.msra.mxu0 0.0
  %1259 = vmatpush.msra.mxu0 0.0
  %1260 = vmatpush.msra.mxu0 0.0
  %1261 = vmatpush.msra.mxu0 0.0
  %1262 = vmatpush.msra.mxu0 0.0
  %1263 = vmatpush.msra.mxu0 0.0
  %1264 = vmatpush.msra.mxu0 0.0
  %1265 = vmatpush.msra.mxu0 0.0
  %1266 = vmatpush.msra.mxu0 %v51
  %1267 = vmatpush.msra.mxu0 %v50
  %1268 = vmatpush.msra.mxu0 %v49
  %1269 = vmatpush.msra.mxu0 %v48
  %1270 = vmatmul.f32.gmra.mxu0 %v1088
  %v1271 = vpop.f32.mrf.mxu0
  %v1272 = vadd.f32 %v1180, %v1271
  %1273 = vmatmul.f32.gmra.mxu0 %v1091
  %v1274 = vpop.f32.mrf.mxu0
  %v1275 = vadd.f32 %v1183, %v1274
  %1276 = vmatmul.f32.gmra.mxu0 %v1094
  %v1277 = vpop.f32.mrf.mxu0
  %v1278 = vadd.f32 %v1186, %v1277
  %1279 = vmatmul.f32.gmra.mxu0 %v1097
  %v1280 = vpop.f32.mrf.mxu0
  %v1281 = vadd.f32 %v1189, %v1280
  %1282 = vmatmul.f32.gmra.mxu0 %v1100
  %v1283 = vpop.f32.mrf.mxu0
  %v1284 = vadd.f32 %v1192, %v1283
  %1285 = vmatmul.f32.gmra.mxu0 %v1103
  %v1286 = vpop.f32.mrf.mxu0
  %v1287 = vadd.f32 %v1195, %v1286
  %1288 = vmatmul.f32.gmra.mxu0 %v1106
  %v1289 = vpop.f32.mrf.mxu0
  %v1290 = vadd.f32 %v1198, %v1289
  %1291 = vmatmul.f32.gmra.mxu0 %v1109
  %v1292 = vpop.f32.mrf.mxu0
  %v1293 = vadd.f32 %v1201, %v1292
  %1294 = vmatmul.f32.gmra.mxu0 %v1112
  %v1295 = vpop.f32.mrf.mxu0
  %v1296 = vadd.f32 %v1204, %v1295
  %1297 = vmatmul.f32.gmra.mxu0 %v1115
  %v1298 = vpop.f32.mrf.mxu0
  %v1299 = vadd.f32 %v1207, %v1298
  %1300 = vmatmul.f32.gmra.mxu0 %v1118
  %v1301 = vpop.f32.mrf.mxu0
  %v1302 = vadd.f32 %v1210, %v1301
  %1303 = vmatmul.f32.gmra.mxu0 %v1121
  %v1304 = vpop.f32.mrf.mxu0
  %v1305 = vadd.f32 %v1213, %v1304
  %1306 = vmatmul.f32.gmra.mxu0 %v1124
  %v1307 = vpop.f32.mrf.mxu0
  %v1308 = vadd.f32 %v1216, %v1307
  %1309 = vmatmul.f32.gmra.mxu0 %v1127
  %v1310 = vpop.f32.mrf.mxu0
  %v1311 = vadd.f32 %v1219, %v1310
  %1312 = vmatmul.f32.gmra.mxu0 %v1130
  %v1313 = vpop.f32.mrf.mxu0
  %v1314 = vadd.f32 %v1222, %v1313
  %1315 = vmatmul.f32.gmra.mxu0 %v1133
  %v1316 = vpop.f32.mrf.mxu0
  %v1317 = vadd.f32 %v1225, %v1316
  %1318 = vmatmul.f32.gmra.mxu0 %v1136
  %v1319 = vpop.f32.mrf.mxu0
  %v1320 = vadd.f32 %v1228, %v1319
  %1321 = vmatmul.f32.gmra.mxu0 %v1139
  %v1322 = vpop.f32.mrf.mxu0
  %v1323 = vadd.f32 %v1231, %v1322
  %1324 = vmatmul.f32.gmra.mxu0 %v1142
  %v1325 = vpop.f32.mrf.mxu0
  %v1326 = vadd.f32 %v1234, %v1325
  %1327 = vmatmul.f32.gmra.mxu0 %v1145
  %v1328 = vpop.f32.mrf.mxu0
  %v1329 = vadd.f32 %v1237, %v1328
  %1330 = vmatmul.f32.gmra.mxu0 %v1148
  %v1331 = vpop.f32.mrf.mxu0
  %v1332 = vadd.f32 %v1240, %v1331
  %1333 = vmatmul.f32.gmra.mxu0 %v1151
  %v1334 = vpop.f32.mrf.mxu0
  %v1335 = vadd.f32 %v1243, %v1334
  %1336 = vmatmul.f32.gmra.mxu0 %v1154
  %v1337 = vpop.f32.mrf.mxu0
  %v1338 = vadd.f32 %v1246, %v1337
  %1339 = vmatmul.f32.gmra.mxu0 %v1157
  %v1340 = vpop.f32.mrf.mxu0
  %v1341 = vadd.f32 %v1249, %v1340
  %1342 = vmatmul.f32.gmra.mxu0 %v1160
  %v1343 = vpop.f32.mrf.mxu0
  %v1344 = vadd.f32 %v1252, %v1343
  %1345 = vdwg.mxu0
  %v1346 = vmax.f32 %v1011, %v1272
  %v1347 = vmax.f32 %v1012, %v1275
  %v1348 = vmax.f32 %v1013, %v1278
  %v1349 = vmax.f32 %v1014, %v1281
  %v1350 = vmax.f32 %v1015, %v1284
  %v1351 = vmax.f32 %v1016, %v1287
  %v1352 = vmax.f32 %v1017, %v1290
  %v1353 = vmax.f32 %v1018, %v1293
  %v1354 = vmax.f32 %v1019, %v1296
  %v1355 = vmax.f32 %v1020, %v1299
  %v1356 = vmax.f32 %v1021, %v1302
  %v1357 = vmax.f32 %v1022, %v1305
  %v1358 = vmax.f32 %v1023, %v1308
  %v1359 = vmax.f32 %v1024, %v1311
  %v1360 = vmax.f32 %v1025, %v1314
  %v1361 = vmax.f32 %v1026, %v1317
  %v1362 = vmax.f32 %v1027, %v1320
  %v1363 = vmax.f32 %v1028, %v1323
  %v1364 = vmax.f32 %v1029, %v1326
  %v1365 = vmax.f32 %v1030, %v1329
  %v1366 = vmax.f32 %v1031, %v1332
  %v1367 = vmax.f32 %v1032, %v1335
  %v1368 = vmax.f32 %v1033, %v1338
  %v1369 = vmax.f32 %v1034, %v1341
  %v1370 = vmax.f32 %v1035, %v1344
  %v1371 = vmax.f32 %v1346, 0.0
  %v1372 = vmax.f32 %v1347, 0.0
  %v1373 = vmax.f32 %v1348, 0.0
  %v1374 = vmax.f32 %v1349, 0.0
  %v1375 = vmax.f32 %v1350, 0.0
  %v1376 = vmax.f32 %v1351, 0.0
  %v1377 = vmax.f32 %v1352, 0.0
  %v1378 = vmax.f32 %v1353, 0.0
  %v1379 = vmax.f32 %v1354, 0.0
  %v1380 = vmax.f32 %v1355, 0.0
  %v1381 = vmax.f32 %v1356, 0.0
  %v1382 = vmax.f32 %v1357, 0.0
  %v1383 = vmax.f32 %v1358, 0.0
  %v1384 = vmax.f32 %v1359, 0.0
  %v1385 = vmax.f32 %v1360, 0.0
  %v1386 = vmax.f32 %v1361, 0.0
  %v1387 = vmax.f32 %v1362, 0.0
  %v1388 = vmax.f32 %v1363, 0.0
  %v1389 = vmax.f32 %v1364, 0.0
  %v1390 = vmax.f32 %v1365, 0.0
  %v1391 = vmax.f32 %v1366, 0.0
  %v1392 = vmax.f32 %v1367, 0.0
  %v1393 = vmax.f32 %v1368, 0.0
  %v1394 = vmax.f32 %v1369, 0.0
  %v1395 = vmax.f32 %v1370, 0.0
  %1396 = vst [vmem:[#allocation2] sm:$0xff] %v1371
  %1397 = vst [vmem:[#allocation2 + $0x8] sm:$0xff] %v1372
  %1398 = vst [vmem:[#allocation2 + $0x10] sm:$0xff] %v1373
  %1399 = vst [vmem:[#allocation2 + $0x18] sm:$0xff] %v1374
  %1400 = vst [vmem:[#allocation2 + $0x20] sm:$0xff] %v1375
  %1401 = vst [vmem:[#allocation2 + $0x28] sm:$0xff] %v1376
  %1402 = vst [vmem:[#allocation2 + $0x30] sm:$0xff] %v1377
  %1403 = vst [vmem:[#allocation2 + $0x38] sm:$0xff] %v1378
  %1404 = vst [vmem:[#allocation2 + $0x40] sm:$0xff] %v1379
  %1405 = vst [vmem:[#allocation2 + $0x48] sm:$0xff] %v1380
  %1406 = vst [vmem:[#allocation2 + $0x50] sm:$0xff] %v1381
  %1407 = vst [vmem:[#allocation2 + $0x58] sm:$0xff] %v1382
  %1408 = vst [vmem:[#allocation2 + $0x60] sm:$0xff] %v1383
  %1409 = vst [vmem:[#allocation2 + $0x68] sm:$0xff] %v1384
  %1410 = vst [vmem:[#allocation2 + $0x70] sm:$0xff] %v1385
  %1411 = vst [vmem:[#allocation2 + $0x78] sm:$0xff] %v1386
  %1412 = vst [vmem:[#allocation2 + $0x80] sm:$0xff] %v1387
  %1413 = vst [vmem:[#allocation2 + $0x88] sm:$0xff] %v1388
  %1414 = vst [vmem:[#allocation2 + $0x90] sm:$0xff] %v1389
  %1415 = vst [vmem:[#allocation2 + $0x98] sm:$0xff] %v1390
  %1416 = vst [vmem:[#allocation2 + $0xa0] sm:$0xff] %v1391
  %1417 = vst [vmem:[#allocation2 + $0xa8] sm:$0xff] %v1392
  %1418 = vst [vmem:[#allocation2 + $0xb0] sm:$0xff] %v1393
  %1419 = vst [vmem:[#allocation2 + $0xb8] sm:$0xff] %v1394
  %1420 = vst [vmem:[#allocation2 + $0xc0] sm:$0xff] %v1395
  %v1421 = vld [vmem:[#allocation2] sm:$0xff]
  %v1422 = vld [vmem:[%s3] sm:$0xff]
  %v1423 = vld [vmem:[%s3 + $0x8] sm:$0xff]
  %v1424 = vld [vmem:[#allocation2 + $0x8] sm:$0xff]
  %v1425 = vld [vmem:[%s3 + $0x10] sm:$0xff]
  %v1426 = vld [vmem:[%s3 + $0x18] sm:$0xff]
  %vm1427 = vcmask 130048
  %v1429 = vsel %vm1427, %v1424, 0
  %1431 = vmatpush.msra.mxu0 0.0
  %1432 = vmatpush.msra.mxu0 0.0
  %1433 = vmatpush.msra.mxu0 0.0
  %1434 = vmatpush.msra.mxu0 0.0
  %1435 = vmatpush.msra.mxu0 0.0
  %1436 = vmatpush.msra.mxu0 0.0
  %1437 = vmatpush.msra.mxu0 0.0
  %1438 = vmatpush.msra.mxu0 0.0
  %1439 = vmatpush.msra.mxu0 0.0
  %1440 = vmatpush.msra.mxu0 0.0
  %1441 = vmatpush.msra.mxu0 0.0
  %1442 = vmatpush.msra.mxu0 0.0
  %1443 = vmatpush.msra.mxu0 0.0
  %1444 = vmatpush.msra.mxu0 0.0
  %1445 = vmatpush.msra.mxu0 %v1426
  %1446 = vmatpush.msra.mxu0 %v1425
  %1447 = vmatmul.f32.gmra.mxu0 %v1429
  %v1448 = vpop.f32.mrf.mxu0
  %v1449 = vadd.f32 0.0, %v1448
  %1450 = vdwg.mxu0
  %v1452 = vsel %vm1427, %v1421, 0
  %1454 = vmatpush.msra.mxu0 0.0
  %1455 = vmatpush.msra.mxu0 0.0
  %1456 = vmatpush.msra.mxu0 0.0
  %1457 = vmatpush.msra.mxu0 0.0
  %1458 = vmatpush.msra.mxu0 0.0
  %1459 = vmatpush.msra.mxu0 0.0
  %1460 = vmatpush.msra.mxu0 0.0
  %1461 = vmatpush.msra.mxu0 0.0
  %1462 = vmatpush.msra.mxu0 0.0
  %1463 = vmatpush.msra.mxu0 0.0
  %1464 = vmatpush.msra.mxu0 0.0
  %1465 = vmatpush.msra.mxu0 0.0
  %1466 = vmatpush.msra.mxu0 0.0
  %1467 = vmatpush.msra.mxu0 0.0
  %1468 = vmatpush.msra.mxu0 %v1423
  %1469 = vmatpush.msra.mxu0 %v1422
  %1470 = vmatmul.f32.gmra.mxu0 %v1452
  %v1471 = vpop.f32.mrf.mxu0
  %v1472 = vadd.f32 %v1449, %v1471
  %1473 = vdwg.mxu0
  %v1474 = vld [vmem:[#allocation2 + $0x10] sm:$0xff]
  %v1475 = vld [vmem:[%s3 + $0x20] sm:$0xff]
  %v1476 = vld [vmem:[%s3 + $0x28] sm:$0xff]
  %v1478 = vsel %vm1427, %v1474, 0
  %1480 = vmatpush.msra.mxu0 0.0
  %1481 = vmatpush.msra.mxu0 0.0
  %1482 = vmatpush.msra.mxu0 0.0
  %1483 = vmatpush.msra.mxu0 0.0
  %1484 = vmatpush.msra.mxu0 0.0
  %1485 = vmatpush.msra.mxu0 0.0
  %1486 = vmatpush.msra.mxu0 0.0
  %1487 = vmatpush.msra.mxu0 0.0
  %1488 = vmatpush.msra.mxu0 0.0
  %1489 = vmatpush.msra.mxu0 0.0
  %1490 = vmatpush.msra.mxu0 0.0
  %1491 = vmatpush.msra.mxu0 0.0
  %1492 = vmatpush.msra.mxu0 0.0
  %1493 = vmatpush.msra.mxu0 0.0
  %1494 = vmatpush.msra.mxu0 %v1476
  %1495 = vmatpush.msra.mxu0 %v1475
  %1496 = vmatmul.f32.gmra.mxu0 %v1478
  %v1497 = vpop.f32.mrf.mxu0
  %v1498 = vadd.f32 0.0, %v1497
  %1499 = vdwg.mxu0
  %v1500 = vadd.f32 %v1472, %v1498
  %v1501 = vld [vmem:[#allocation2 + $0x18] sm:$0xff]
  %v1502 = vld [vmem:[%s3 + $0x30] sm:$0xff]
  %v1503 = vld [vmem:[%s3 + $0x38] sm:$0xff]
  %v1505 = vsel %vm1427, %v1501, 0
  %1507 = vmatpush.msra.mxu0 0.0
  %1508 = vmatpush.msra.mxu0 0.0
  %1509 = vmatpush.msra.mxu0 0.0
  %1510 = vmatpush.msra.mxu0 0.0
  %1511 = vmatpush.msra.mxu0 0.0
  %1512 = vmatpush.msra.mxu0 0.0
  %1513 = vmatpush.msra.mxu0 0.0
  %1514 = vmatpush.msra.mxu0 0.0
  %1515 = vmatpush.msra.mxu0 0.0
  %1516 = vmatpush.msra.mxu0 0.0
  %1517 = vmatpush.msra.mxu0 0.0
  %1518 = vmatpush.msra.mxu0 0.0
  %1519 = vmatpush.msra.mxu0 0.0
  %1520 = vmatpush.msra.mxu0 0.0
  %1521 = vmatpush.msra.mxu0 %v1503
  %1522 = vmatpush.msra.mxu0 %v1502
  %1523 = vmatmul.f32.gmra.mxu0 %v1505
  %v1524 = vpop.f32.mrf.mxu0
  %v1525 = vadd.f32 0.0, %v1524
  %1526 = vdwg.mxu0
  %v1527 = vadd.f32 %v1500, %v1525
  %v1528 = vld [vmem:[#allocation2 + $0x20] sm:$0xff]
  %v1529 = vld [vmem:[%s3 + $0x40] sm:$0xff]
  %v1530 = vld [vmem:[%s3 + $0x48] sm:$0xff]
  %v1532 = vsel %vm1427, %v1528, 0
  %1534 = vmatpush.msra.mxu0 0.0
  %1535 = vmatpush.msra.mxu0 0.0
  %1536 = vmatpush.msra.mxu0 0.0
  %1537 = vmatpush.msra.mxu0 0.0
  %1538 = vmatpush.msra.mxu0 0.0
  %1539 = vmatpush.msra.mxu0 0.0
  %1540 = vmatpush.msra.mxu0 0.0
  %1541 = vmatpush.msra.mxu0 0.0
  %1542 = vmatpush.msra.mxu0 0.0
  %1543 = vmatpush.msra.mxu0 0.0
  %1544 = vmatpush.msra.mxu0 0.0
  %1545 = vmatpush.msra.mxu0 0.0
  %1546 = vmatpush.msra.mxu0 0.0
  %1547 = vmatpush.msra.mxu0 0.0
  %1548 = vmatpush.msra.mxu0 %v1530
  %1549 = vmatpush.msra.mxu0 %v1529
  %1550 = vmatmul.f32.gmra.mxu0 %v1532
  %v1551 = vpop.f32.mrf.mxu0
  %v1552 = vadd.f32 0.0, %v1551
  %1553 = vdwg.mxu0
  %v1554 = vadd.f32 %v1527, %v1552
  %v1555 = vld [vmem:[#allocation2 + $0x28] sm:$0xff]
  %v1556 = vld [vmem:[%s3 + $0x50] sm:$0xff]
  %v1557 = vld [vmem:[%s3 + $0x58] sm:$0xff]
  %v1559 = vsel %vm1427, %v1555, 0
  %1561 = vmatpush.msra.mxu0 0.0
  %1562 = vmatpush.msra.mxu0 0.0
  %1563 = vmatpush.msra.mxu0 0.0
  %1564 = vmatpush.msra.mxu0 0.0
  %1565 = vmatpush.msra.mxu0 0.0
  %1566 = vmatpush.msra.mxu0 0.0
  %1567 = vmatpush.msra.mxu0 0.0
  %1568 = vmatpush.msra.mxu0 0.0
  %1569 = vmatpush.msra.mxu0 0.0
  %1570 = vmatpush.msra.mxu0 0.0
  %1571 = vmatpush.msra.mxu0 0.0
  %1572 = vmatpush.msra.mxu0 0.0
  %1573 = vmatpush.msra.mxu0 0.0
  %1574 = vmatpush.msra.mxu0 0.0
  %1575 = vmatpush.msra.mxu0 %v1557
  %1576 = vmatpush.msra.mxu0 %v1556
  %1577 = vmatmul.f32.gmra.mxu0 %v1559
  %v1578 = vpop.f32.mrf.mxu0
  %v1579 = vadd.f32 0.0, %v1578
  %1580 = vdwg.mxu0
  %v1581 = vadd.f32 %v1554, %v1579
  %v1582 = vld [vmem:[#allocation2 + $0x30] sm:$0xff]
  %v1583 = vld [vmem:[%s3 + $0x60] sm:$0xff]
  %v1584 = vld [vmem:[%s3 + $0x68] sm:$0xff]
  %v1586 = vsel %vm1427, %v1582, 0
  %1588 = vmatpush.msra.mxu0 0.0
  %1589 = vmatpush.msra.mxu0 0.0
  %1590 = vmatpush.msra.mxu0 0.0
  %1591 = vmatpush.msra.mxu0 0.0
  %1592 = vmatpush.msra.mxu0 0.0
  %1593 = vmatpush.msra.mxu0 0.0
  %1594 = vmatpush.msra.mxu0 0.0
  %1595 = vmatpush.msra.mxu0 0.0
  %1596 = vmatpush.msra.mxu0 0.0
  %1597 = vmatpush.msra.mxu0 0.0
  %1598 = vmatpush.msra.mxu0 0.0
  %1599 = vmatpush.msra.mxu0 0.0
  %1600 = vmatpush.msra.mxu0 0.0
  %1601 = vmatpush.msra.mxu0 0.0
  %1602 = vmatpush.msra.mxu0 %v1584
  %1603 = vmatpush.msra.mxu0 %v1583
  %1604 = vmatmul.f32.gmra.mxu0 %v1586
  %v1605 = vpop.f32.mrf.mxu0
  %v1606 = vadd.f32 0.0, %v1605
  %1607 = vdwg.mxu0
  %v1608 = vadd.f32 %v1581, %v1606
  %v1609 = vld [vmem:[#allocation2 + $0x38] sm:$0xff]
  %v1610 = vld [vmem:[%s3 + $0x70] sm:$0xff]
  %v1611 = vld [vmem:[%s3 + $0x78] sm:$0xff]
  %v1613 = vsel %vm1427, %v1609, 0
  %1615 = vmatpush.msra.mxu0 0.0
  %1616 = vmatpush.msra.mxu0 0.0
  %1617 = vmatpush.msra.mxu0 0.0
  %1618 = vmatpush.msra.mxu0 0.0
  %1619 = vmatpush.msra.mxu0 0.0
  %1620 = vmatpush.msra.mxu0 0.0
  %1621 = vmatpush.msra.mxu0 0.0
  %1622 = vmatpush.msra.mxu0 0.0
  %1623 = vmatpush.msra.mxu0 0.0
  %1624 = vmatpush.msra.mxu0 0.0
  %1625 = vmatpush.msra.mxu0 0.0
  %1626 = vmatpush.msra.mxu0 0.0
  %1627 = vmatpush.msra.mxu0 0.0
  %1628 = vmatpush.msra.mxu0 0.0
  %1629 = vmatpush.msra.mxu0 %v1611
  %1630 = vmatpush.msra.mxu0 %v1610
  %1631 = vmatmul.f32.gmra.mxu0 %v1613
  %v1632 = vpop.f32.mrf.mxu0
  %v1633 = vadd.f32 0.0, %v1632
  %1634 = vdwg.mxu0
  %v1635 = vadd.f32 %v1608, %v1633
  %v1636 = vld [vmem:[#allocation2 + $0x40] sm:$0xff]
  %v1637 = vld [vmem:[%s3 + $0x80] sm:$0xff]
  %v1638 = vld [vmem:[%s3 + $0x88] sm:$0xff]
  %v1640 = vsel %vm1427, %v1636, 0
  %1642 = vmatpush.msra.mxu0 0.0
  %1643 = vmatpush.msra.mxu0 0.0
  %1644 = vmatpush.msra.mxu0 0.0
  %1645 = vmatpush.msra.mxu0 0.0
  %1646 = vmatpush.msra.mxu0 0.0
  %1647 = vmatpush.msra.mxu0 0.0
  %1648 = vmatpush.msra.mxu0 0.0
  %1649 = vmatpush.msra.mxu0 0.0
  %1650 = vmatpush.msra.mxu0 0.0
  %1651 = vmatpush.msra.mxu0 0.0
  %1652 = vmatpush.msra.mxu0 0.0
  %1653 = vmatpush.msra.mxu0 0.0
  %1654 = vmatpush.msra.mxu0 0.0
  %1655 = vmatpush.msra.mxu0 0.0
  %1656 = vmatpush.msra.mxu0 %v1638
  %1657 = vmatpush.msra.mxu0 %v1637
  %1658 = vmatmul.f32.gmra.mxu0 %v1640
  %v1659 = vpop.f32.mrf.mxu0
  %v1660 = vadd.f32 0.0, %v1659
  %1661 = vdwg.mxu0
  %v1662 = vadd.f32 %v1635, %v1660
  %v1663 = vld [vmem:[#allocation2 + $0x48] sm:$0xff]
  %v1664 = vld [vmem:[%s3 + $0x90] sm:$0xff]
  %v1665 = vld [vmem:[%s3 + $0x98] sm:$0xff]
  %v1667 = vsel %vm1427, %v1663, 0
  %1669 = vmatpush.msra.mxu0 0.0
  %1670 = vmatpush.msra.mxu0 0.0
  %1671 = vmatpush.msra.mxu0 0.0
  %1672 = vmatpush.msra.mxu0 0.0
  %1673 = vmatpush.msra.mxu0 0.0
  %1674 = vmatpush.msra.mxu0 0.0
  %1675 = vmatpush.msra.mxu0 0.0
  %1676 = vmatpush.msra.mxu0 0.0
  %1677 = vmatpush.msra.mxu0 0.0
  %1678 = vmatpush.msra.mxu0 0.0
  %1679 = vmatpush.msra.mxu0 0.0
  %1680 = vmatpush.msra.mxu0 0.0
  %1681 = vmatpush.msra.mxu0 0.0
  %1682 = vmatpush.msra.mxu0 0.0
  %1683 = vmatpush.msra.mxu0 %v1665
  %1684 = vmatpush.msra.mxu0 %v1664
  %1685 = vmatmul.f32.gmra.mxu0 %v1667
  %v1686 = vpop.f32.mrf.mxu0
  %v1687 = vadd.f32 0.0, %v1686
  %1688 = vdwg.mxu0
  %v1689 = vadd.f32 %v1662, %v1687
  %v1690 = vld [vmem:[#allocation2 + $0x50] sm:$0xff]
  %v1691 = vld [vmem:[%s3 + $0xa0] sm:$0xff]
  %v1692 = vld [vmem:[%s3 + $0xa8] sm:$0xff]
  %v1694 = vsel %vm1427, %v1690, 0
  %1696 = vmatpush.msra.mxu0 0.0
  %1697 = vmatpush.msra.mxu0 0.0
  %1698 = vmatpush.msra.mxu0 0.0
  %1699 = vmatpush.msra.mxu0 0.0
  %1700 = vmatpush.msra.mxu0 0.0
  %1701 = vmatpush.msra.mxu0 0.0
  %1702 = vmatpush.msra.mxu0 0.0
  %1703 = vmatpush.msra.mxu0 0.0
  %1704 = vmatpush.msra.mxu0 0.0
  %1705 = vmatpush.msra.mxu0 0.0
  %1706 = vmatpush.msra.mxu0 0.0
  %1707 = vmatpush.msra.mxu0 0.0
  %1708 = vmatpush.msra.mxu0 0.0
  %1709 = vmatpush.msra.mxu0 0.0
  %1710 = vmatpush.msra.mxu0 %v1692
  %1711 = vmatpush.msra.mxu0 %v1691
  %1712 = vmatmul.f32.gmra.mxu0 %v1694
  %v1713 = vpop.f32.mrf.mxu0
  %v1714 = vadd.f32 0.0, %v1713
  %1715 = vdwg.mxu0
  %v1716 = vadd.f32 %v1689, %v1714
  %v1717 = vld [vmem:[#allocation2 + $0x58] sm:$0xff]
  %v1718 = vld [vmem:[%s3 + $0xb0] sm:$0xff]
  %v1719 = vld [vmem:[%s3 + $0xb8] sm:$0xff]
  %v1721 = vsel %vm1427, %v1717, 0
  %1723 = vmatpush.msra.mxu0 0.0
  %1724 = vmatpush.msra.mxu0 0.0
  %1725 = vmatpush.msra.mxu0 0.0
  %1726 = vmatpush.msra.mxu0 0.0
  %1727 = vmatpush.msra.mxu0 0.0
  %1728 = vmatpush.msra.mxu0 0.0
  %1729 = vmatpush.msra.mxu0 0.0
  %1730 = vmatpush.msra.mxu0 0.0
  %1731 = vmatpush.msra.mxu0 0.0
  %1732 = vmatpush.msra.mxu0 0.0
  %1733 = vmatpush.msra.mxu0 0.0
  %1734 = vmatpush.msra.mxu0 0.0
  %1735 = vmatpush.msra.mxu0 0.0
  %1736 = vmatpush.msra.mxu0 0.0
  %1737 = vmatpush.msra.mxu0 %v1719
  %1738 = vmatpush.msra.mxu0 %v1718
  %1739 = vmatmul.f32.gmra.mxu0 %v1721
  %v1740 = vpop.f32.mrf.mxu0
  %v1741 = vadd.f32 0.0, %v1740
  %1742 = vdwg.mxu0
  %v1743 = vadd.f32 %v1716, %v1741
  %v1744 = vld [vmem:[#allocation2 + $0x60] sm:$0xff]
  %v1745 = vld [vmem:[%s3 + $0xc0] sm:$0xff]
  %v1746 = vld [vmem:[%s3 + $0xc8] sm:$0xff]
  %v1748 = vsel %vm1427, %v1744, 0
  %1750 = vmatpush.msra.mxu0 0.0
  %1751 = vmatpush.msra.mxu0 0.0
  %1752 = vmatpush.msra.mxu0 0.0
  %1753 = vmatpush.msra.mxu0 0.0
  %1754 = vmatpush.msra.mxu0 0.0
  %1755 = vmatpush.msra.mxu0 0.0
  %1756 = vmatpush.msra.mxu0 0.0
  %1757 = vmatpush.msra.mxu0 0.0
  %1758 = vmatpush.msra.mxu0 0.0
  %1759 = vmatpush.msra.mxu0 0.0
  %1760 = vmatpush.msra.mxu0 0.0
  %1761 = vmatpush.msra.mxu0 0.0
  %1762 = vmatpush.msra.mxu0 0.0
  %1763 = vmatpush.msra.mxu0 0.0
  %1764 = vmatpush.msra.mxu0 %v1746
  %1765 = vmatpush.msra.mxu0 %v1745
  %1766 = vmatmul.f32.gmra.mxu0 %v1748
  %v1767 = vpop.f32.mrf.mxu0
  %v1768 = vadd.f32 0.0, %v1767
  %1769 = vdwg.mxu0
  %v1770 = vadd.f32 %v1743, %v1768
  %v1771 = vld [vmem:[#allocation2 + $0x68] sm:$0xff]
  %v1772 = vld [vmem:[%s3 + $0xd0] sm:$0xff]
  %v1773 = vld [vmem:[%s3 + $0xd8] sm:$0xff]
  %v1775 = vsel %vm1427, %v1771, 0
  %1777 = vmatpush.msra.mxu0 0.0
  %1778 = vmatpush.msra.mxu0 0.0
  %1779 = vmatpush.msra.mxu0 0.0
  %1780 = vmatpush.msra.mxu0 0.0
  %1781 = vmatpush.msra.mxu0 0.0
  %1782 = vmatpush.msra.mxu0 0.0
  %1783 = vmatpush.msra.mxu0 0.0
  %1784 = vmatpush.msra.mxu0 0.0
  %1785 = vmatpush.msra.mxu0 0.0
  %1786 = vmatpush.msra.mxu0 0.0
  %1787 = vmatpush.msra.mxu0 0.0
  %1788 = vmatpush.msra.mxu0 0.0
  %1789 = vmatpush.msra.mxu0 0.0
  %1790 = vmatpush.msra.mxu0 0.0
  %1791 = vmatpush.msra.mxu0 %v1773
  %1792 = vmatpush.msra.mxu0 %v1772
  %1793 = vmatmul.f32.gmra.mxu0 %v1775
  %v1794 = vpop.f32.mrf.mxu0
  %v1795 = vadd.f32 0.0, %v1794
  %1796 = vdwg.mxu0
  %v1797 = vadd.f32 %v1770, %v1795
  %v1798 = vld [vmem:[#allocation2 + $0x70] sm:$0xff]
  %v1799 = vld [vmem:[%s3 + $0xe0] sm:$0xff]
  %v1800 = vld [vmem:[%s3 + $0xe8] sm:$0xff]
  %v1802 = vsel %vm1427, %v1798, 0
  %1804 = vmatpush.msra.mxu0 0.0
  %1805 = vmatpush.msra.mxu0 0.0
  %1806 = vmatpush.msra.mxu0 0.0
  %1807 = vmatpush.msra.mxu0 0.0
  %1808 = vmatpush.msra.mxu0 0.0
  %1809 = vmatpush.msra.mxu0 0.0
  %1810 = vmatpush.msra.mxu0 0.0
  %1811 = vmatpush.msra.mxu0 0.0
  %1812 = vmatpush.msra.mxu0 0.0
  %1813 = vmatpush.msra.mxu0 0.0
  %1814 = vmatpush.msra.mxu0 0.0
  %1815 = vmatpush.msra.mxu0 0.0
  %1816 = vmatpush.msra.mxu0 0.0
  %1817 = vmatpush.msra.mxu0 0.0
  %1818 = vmatpush.msra.mxu0 %v1800
  %1819 = vmatpush.msra.mxu0 %v1799
  %1820 = vmatmul.f32.gmra.mxu0 %v1802
  %v1821 = vpop.f32.mrf.mxu0
  %v1822 = vadd.f32 0.0, %v1821
  %1823 = vdwg.mxu0
  %v1824 = vadd.f32 %v1797, %v1822
  %v1825 = vld [vmem:[#allocation2 + $0x78] sm:$0xff]
  %v1826 = vld [vmem:[%s3 + $0xf0] sm:$0xff]
  %v1827 = vld [vmem:[%s3 + $0xf8] sm:$0xff]
  %v1829 = vsel %vm1427, %v1825, 0
  %1831 = vmatpush.msra.mxu0 0.0
  %1832 = vmatpush.msra.mxu0 0.0
  %1833 = vmatpush.msra.mxu0 0.0
  %1834 = vmatpush.msra.mxu0 0.0
  %1835 = vmatpush.msra.mxu0 0.0
  %1836 = vmatpush.msra.mxu0 0.0
  %1837 = vmatpush.msra.mxu0 0.0
  %1838 = vmatpush.msra.mxu0 0.0
  %1839 = vmatpush.msra.mxu0 0.0
  %1840 = vmatpush.msra.mxu0 0.0
  %1841 = vmatpush.msra.mxu0 0.0
  %1842 = vmatpush.msra.mxu0 0.0
  %1843 = vmatpush.msra.mxu0 0.0
  %1844 = vmatpush.msra.mxu0 0.0
  %1845 = vmatpush.msra.mxu0 %v1827
  %1846 = vmatpush.msra.mxu0 %v1826
  %1847 = vmatmul.f32.gmra.mxu0 %v1829
  %v1848 = vpop.f32.mrf.mxu0
  %v1849 = vadd.f32 0.0, %v1848
  %1850 = vdwg.mxu0
  %v1851 = vadd.f32 %v1824, %v1849
  %v1852 = vld [vmem:[#allocation2 + $0x80] sm:$0xff]
  %v1853 = vld [vmem:[%s3 + $0x100] sm:$0xff]
  %v1854 = vld [vmem:[%s3 + $0x108] sm:$0xff]
  %v1856 = vsel %vm1427, %v1852, 0
  %1858 = vmatpush.msra.mxu0 0.0
  %1859 = vmatpush.msra.mxu0 0.0
  %1860 = vmatpush.msra.mxu0 0.0
  %1861 = vmatpush.msra.mxu0 0.0
  %1862 = vmatpush.msra.mxu0 0.0
  %1863 = vmatpush.msra.mxu0 0.0
  %1864 = vmatpush.msra.mxu0 0.0
  %1865 = vmatpush.msra.mxu0 0.0
  %1866 = vmatpush.msra.mxu0 0.0
  %1867 = vmatpush.msra.mxu0 0.0
  %1868 = vmatpush.msra.mxu0 0.0
  %1869 = vmatpush.msra.mxu0 0.0
  %1870 = vmatpush.msra.mxu0 0.0
  %1871 = vmatpush.msra.mxu0 0.0
  %1872 = vmatpush.msra.mxu0 %v1854
  %1873 = vmatpush.msra.mxu0 %v1853
  %1874 = vmatmul.f32.gmra.mxu0 %v1856
  %v1875 = vpop.f32.mrf.mxu0
  %v1876 = vadd.f32 0.0, %v1875
  %1877 = vdwg.mxu0
  %v1878 = vadd.f32 %v1851, %v1876
  %v1879 = vld [vmem:[#allocation2 + $0x88] sm:$0xff]
  %v1880 = vld [vmem:[%s3 + $0x110] sm:$0xff]
  %v1881 = vld [vmem:[%s3 + $0x118] sm:$0xff]
  %v1883 = vsel %vm1427, %v1879, 0
  %1885 = vmatpush.msra.mxu0 0.0
  %1886 = vmatpush.msra.mxu0 0.0
  %1887 = vmatpush.msra.mxu0 0.0
  %1888 = vmatpush.msra.mxu0 0.0
  %1889 = vmatpush.msra.mxu0 0.0
  %1890 = vmatpush.msra.mxu0 0.0
  %1891 = vmatpush.msra.mxu0 0.0
  %1892 = vmatpush.msra.mxu0 0.0
  %1893 = vmatpush.msra.mxu0 0.0
  %1894 = vmatpush.msra.mxu0 0.0
  %1895 = vmatpush.msra.mxu0 0.0
  %1896 = vmatpush.msra.mxu0 0.0
  %1897 = vmatpush.msra.mxu0 0.0
  %1898 = vmatpush.msra.mxu0 0.0
  %1899 = vmatpush.msra.mxu0 %v1881
  %1900 = vmatpush.msra.mxu0 %v1880
  %1901 = vmatmul.f32.gmra.mxu0 %v1883
  %v1902 = vpop.f32.mrf.mxu0
  %v1903 = vadd.f32 0.0, %v1902
  %1904 = vdwg.mxu0
  %v1905 = vadd.f32 %v1878, %v1903
  %v1906 = vld [vmem:[#allocation2 + $0x90] sm:$0xff]
  %v1907 = vld [vmem:[%s3 + $0x120] sm:$0xff]
  %v1908 = vld [vmem:[%s3 + $0x128] sm:$0xff]
  %v1910 = vsel %vm1427, %v1906, 0
  %1912 = vmatpush.msra.mxu0 0.0
  %1913 = vmatpush.msra.mxu0 0.0
  %1914 = vmatpush.msra.mxu0 0.0
  %1915 = vmatpush.msra.mxu0 0.0
  %1916 = vmatpush.msra.mxu0 0.0
  %1917 = vmatpush.msra.mxu0 0.0
  %1918 = vmatpush.msra.mxu0 0.0
  %1919 = vmatpush.msra.mxu0 0.0
  %1920 = vmatpush.msra.mxu0 0.0
  %1921 = vmatpush.msra.mxu0 0.0
  %1922 = vmatpush.msra.mxu0 0.0
  %1923 = vmatpush.msra.mxu0 0.0
  %1924 = vmatpush.msra.mxu0 0.0
  %1925 = vmatpush.msra.mxu0 0.0
  %1926 = vmatpush.msra.mxu0 %v1908
  %1927 = vmatpush.msra.mxu0 %v1907
  %1928 = vmatmul.f32.gmra.mxu0 %v1910
  %v1929 = vpop.f32.mrf.mxu0
  %v1930 = vadd.f32 0.0, %v1929
  %1931 = vdwg.mxu0
  %v1932 = vadd.f32 %v1905, %v1930
  %v1933 = vld [vmem:[#allocation2 + $0x98] sm:$0xff]
  %v1934 = vld [vmem:[%s3 + $0x130] sm:$0xff]
  %v1935 = vld [vmem:[%s3 + $0x138] sm:$0xff]
  %v1937 = vsel %vm1427, %v1933, 0
  %1939 = vmatpush.msra.mxu0 0.0
  %1940 = vmatpush.msra.mxu0 0.0
  %1941 = vmatpush.msra.mxu0 0.0
  %1942 = vmatpush.msra.mxu0 0.0
  %1943 = vmatpush.msra.mxu0 0.0
  %1944 = vmatpush.msra.mxu0 0.0
  %1945 = vmatpush.msra.mxu0 0.0
  %1946 = vmatpush.msra.mxu0 0.0
  %1947 = vmatpush.msra.mxu0 0.0
  %1948 = vmatpush.msra.mxu0 0.0
  %1949 = vmatpush.msra.mxu0 0.0
  %1950 = vmatpush.msra.mxu0 0.0
  %1951 = vmatpush.msra.mxu0 0.0
  %1952 = vmatpush.msra.mxu0 0.0
  %1953 = vmatpush.msra.mxu0 %v1935
  %1954 = vmatpush.msra.mxu0 %v1934
  %1955 = vmatmul.f32.gmra.mxu0 %v1937
  %v1956 = vpop.f32.mrf.mxu0
  %v1957 = vadd.f32 0.0, %v1956
  %1958 = vdwg.mxu0
  %v1959 = vadd.f32 %v1932, %v1957
  %v1960 = vld [vmem:[#allocation2 + $0xa0] sm:$0xff]
  %v1961 = vld [vmem:[%s3 + $0x140] sm:$0xff]
  %v1962 = vld [vmem:[%s3 + $0x148] sm:$0xff]
  %v1964 = vsel %vm1427, %v1960, 0
  %1966 = vmatpush.msra.mxu0 0.0
  %1967 = vmatpush.msra.mxu0 0.0
  %1968 = vmatpush.msra.mxu0 0.0
  %1969 = vmatpush.msra.mxu0 0.0
  %1970 = vmatpush.msra.mxu0 0.0
  %1971 = vmatpush.msra.mxu0 0.0
  %1972 = vmatpush.msra.mxu0 0.0
  %1973 = vmatpush.msra.mxu0 0.0
  %1974 = vmatpush.msra.mxu0 0.0
  %1975 = vmatpush.msra.mxu0 0.0
  %1976 = vmatpush.msra.mxu0 0.0
  %1977 = vmatpush.msra.mxu0 0.0
  %1978 = vmatpush.msra.mxu0 0.0
  %1979 = vmatpush.msra.mxu0 0.0
  %1980 = vmatpush.msra.mxu0 %v1962
  %1981 = vmatpush.msra.mxu0 %v1961
  %1982 = vmatmul.f32.gmra.mxu0 %v1964
  %v1983 = vpop.f32.mrf.mxu0
  %v1984 = vadd.f32 0.0, %v1983
  %1985 = vdwg.mxu0
  %v1986 = vadd.f32 %v1959, %v1984
  %v1987 = vld [vmem:[#allocation2 + $0xa8] sm:$0xff]
  %v1988 = vld [vmem:[%s3 + $0x150] sm:$0xff]
  %v1989 = vld [vmem:[%s3 + $0x158] sm:$0xff]
  %v1991 = vsel %vm1427, %v1987, 0
  %1993 = vmatpush.msra.mxu0 0.0
  %1994 = vmatpush.msra.mxu0 0.0
  %1995 = vmatpush.msra.mxu0 0.0
  %1996 = vmatpush.msra.mxu0 0.0
  %1997 = vmatpush.msra.mxu0 0.0
  %1998 = vmatpush.msra.mxu0 0.0
  %1999 = vmatpush.msra.mxu0 0.0
  %2000 = vmatpush.msra.mxu0 0.0
  %2001 = vmatpush.msra.mxu0 0.0
  %2002 = vmatpush.msra.mxu0 0.0
  %2003 = vmatpush.msra.mxu0 0.0
  %2004 = vmatpush.msra.mxu0 0.0
  %2005 = vmatpush.msra.mxu0 0.0
  %2006 = vmatpush.msra.mxu0 0.0
  %2007 = vmatpush.msra.mxu0 %v1989
  %2008 = vmatpush.msra.mxu0 %v1988
  %2009 = vmatmul.f32.gmra.mxu0 %v1991
  %v2010 = vpop.f32.mrf.mxu0
  %v2011 = vadd.f32 0.0, %v2010
  %2012 = vdwg.mxu0
  %v2013 = vadd.f32 %v1986, %v2011
  %v2014 = vld [vmem:[#allocation2 + $0xb0] sm:$0xff]
  %v2015 = vld [vmem:[%s3 + $0x160] sm:$0xff]
  %v2016 = vld [vmem:[%s3 + $0x168] sm:$0xff]
  %v2018 = vsel %vm1427, %v2014, 0
  %2020 = vmatpush.msra.mxu0 0.0
  %2021 = vmatpush.msra.mxu0 0.0
  %2022 = vmatpush.msra.mxu0 0.0
  %2023 = vmatpush.msra.mxu0 0.0
  %2024 = vmatpush.msra.mxu0 0.0
  %2025 = vmatpush.msra.mxu0 0.0
  %2026 = vmatpush.msra.mxu0 0.0
  %2027 = vmatpush.msra.mxu0 0.0
  %2028 = vmatpush.msra.mxu0 0.0
  %2029 = vmatpush.msra.mxu0 0.0
  %2030 = vmatpush.msra.mxu0 0.0
  %2031 = vmatpush.msra.mxu0 0.0
  %2032 = vmatpush.msra.mxu0 0.0
  %2033 = vmatpush.msra.mxu0 0.0
  %2034 = vmatpush.msra.mxu0 %v2016
  %2035 = vmatpush.msra.mxu0 %v2015
  %2036 = vmatmul.f32.gmra.mxu0 %v2018
  %v2037 = vpop.f32.mrf.mxu0
  %v2038 = vadd.f32 0.0, %v2037
  %2039 = vdwg.mxu0
  %v2040 = vadd.f32 %v2013, %v2038
  %v2041 = vld [vmem:[#allocation2 + $0xb8] sm:$0xff]
  %v2042 = vld [vmem:[%s3 + $0x170] sm:$0xff]
  %v2043 = vld [vmem:[%s3 + $0x178] sm:$0xff]
  %v2045 = vsel %vm1427, %v2041, 0
  %2047 = vmatpush.msra.mxu0 0.0
  %2048 = vmatpush.msra.mxu0 0.0
  %2049 = vmatpush.msra.mxu0 0.0
  %2050 = vmatpush.msra.mxu0 0.0
  %2051 = vmatpush.msra.mxu0 0.0
  %2052 = vmatpush.msra.mxu0 0.0
  %2053 = vmatpush.msra.mxu0 0.0
  %2054 = vmatpush.msra.mxu0 0.0
  %2055 = vmatpush.msra.mxu0 0.0
  %2056 = vmatpush.msra.mxu0 0.0
  %2057 = vmatpush.msra.mxu0 0.0
  %2058 = vmatpush.msra.mxu0 0.0
  %2059 = vmatpush.msra.mxu0 0.0
  %2060 = vmatpush.msra.mxu0 0.0
  %2061 = vmatpush.msra.mxu0 %v2043
  %2062 = vmatpush.msra.mxu0 %v2042
  %2063 = vmatmul.f32.gmra.mxu0 %v2045
  %v2064 = vpop.f32.mrf.mxu0
  %v2065 = vadd.f32 0.0, %v2064
  %2066 = vdwg.mxu0
  %v2067 = vadd.f32 %v2040, %v2065
  %v2068 = vld [vmem:[#allocation2 + $0xc0] sm:$0xff]
  %v2069 = vld [vmem:[%s3 + $0x180] sm:$0xff]
  %v2070 = vld [vmem:[%s3 + $0x188] sm:$0xff]
  %v2072 = vsel %vm1427, %v2068, 0
  %2074 = vmatpush.msra.mxu0 0.0
  %2075 = vmatpush.msra.mxu0 0.0
  %2076 = vmatpush.msra.mxu0 0.0
  %2077 = vmatpush.msra.mxu0 0.0
  %2078 = vmatpush.msra.mxu0 0.0
  %2079 = vmatpush.msra.mxu0 0.0
  %2080 = vmatpush.msra.mxu0 0.0
  %2081 = vmatpush.msra.mxu0 0.0
  %2082 = vmatpush.msra.mxu0 0.0
  %2083 = vmatpush.msra.mxu0 0.0
  %2084 = vmatpush.msra.mxu0 0.0
  %2085 = vmatpush.msra.mxu0 0.0
  %2086 = vmatpush.msra.mxu0 0.0
  %2087 = vmatpush.msra.mxu0 0.0
  %2088 = vmatpush.msra.mxu0 %v2070
  %2089 = vmatpush.msra.mxu0 %v2069
  %2090 = vmatmul.f32.gmra.mxu0 %v2072
  %v2091 = vpop.f32.mrf.mxu0
  %v2092 = vadd.f32 0.0, %v2091
  %2093 = vdwg.mxu0
  %v2094 = vadd.f32 %v2067, %v2092
  %v2095 = vld [vmem:[%s4] sm:$0x1]
  %v2097 = vperm.slane %v2095, 0
  %v2099 = vadd.f32 %v2094, %v2097
  %v2100 = vmax.f32 %v2099, 0.0
  %v2101 = vld [vmem:[%s5] sm:$0xff]
  %v2102 = vld [vmem:[%s5 + $0x8] sm:$0xff]
  %v2103 = vld [vmem:[%s5 + $0x10] sm:$0xff]
  %v2104 = vld [vmem:[%s5 + $0x18] sm:$0xff]
  %v2105 = vld [vmem:[%s5 + $0x20] sm:$0xff]
  %v2106 = vld [vmem:[%s5 + $0x28] sm:$0xff]
  %v2107 = vld [vmem:[%s5 + $0x30] sm:$0xff]
  %v2108 = vld [vmem:[%s5 + $0x38] sm:$0xff]
  %v2109 = vld [vmem:[%s5 + $0x40] sm:$0xff]
  %v2110 = vld [vmem:[%s5 + $0x48] sm:$0xff]
  %v2111 = vld [vmem:[%s5 + $0x50] sm:$0xff]
  %v2112 = vld [vmem:[%s5 + $0x58] sm:$0xff]
  %v2113 = vld [vmem:[%s5 + $0x60] sm:$0xff]
  %v2114 = vld [vmem:[%s5 + $0x68] sm:$0xff]
  %v2115 = vld [vmem:[%s5 + $0x70] sm:$0xff]
  %v2116 = vld [vmem:[%s5 + $0x78] sm:$0xff]
  %v2117 = vld [vmem:[%s6] sm:$0x1]
  %v2119 = vperm.slane %v2117, 0
  %2121 = vmatpush.msra.mxu0 %v2116
  %2122 = vmatpush.msra.mxu0 %v2115
  %2123 = vmatpush.msra.mxu0 %v2114
  %2124 = vmatpush.msra.mxu0 %v2113
  %2125 = vmatpush.msra.mxu0 %v2112
  %2126 = vmatpush.msra.mxu0 %v2111
  %2127 = vmatpush.msra.mxu0 %v2110
  %2128 = vmatpush.msra.mxu0 %v2109
  %2129 = vmatpush.msra.mxu0 %v2108
  %2130 = vmatpush.msra.mxu0 %v2107
  %2131 = vmatpush.msra.mxu0 %v2106
  %2132 = vmatpush.msra.mxu0 %v2105
  %2133 = vmatpush.msra.mxu0 %v2104
  %2134 = vmatpush.msra.mxu0 %v2103
  %2135 = vmatpush.msra.mxu0 %v2102
  %2136 = vmatpush.msra.mxu0 %v2101
  %2137 = vmatmul.f32.gmra.mxu0 %v2100
  %v2138 = vpop.f32.mrf.mxu0
  %v2139 = vadd.f32 %v2119, %v2138
  %2140 = vdwg.mxu0
  %v2141 = vmax.f32 %v2139, 0.0
  %v2142 = vld [vmem:[%s7] sm:$0xff]
  %v2143 = vld [vmem:[%s7 + $0x8] sm:$0xff]
  %v2144 = vld [vmem:[%s7 + $0x10] sm:$0xff]
  %v2145 = vld [vmem:[%s7 + $0x18] sm:$0xff]
  %v2146 = vld [vmem:[%s7 + $0x20] sm:$0xff]
  %v2147 = vld [vmem:[%s7 + $0x28] sm:$0xff]
  %v2148 = vld [vmem:[%s7 + $0x30] sm:$0xff]
  %v2149 = vld [vmem:[%s7 + $0x38] sm:$0xff]
  %v2150 = vld [vmem:[%s7 + $0x40] sm:$0xff]
  %v2151 = vld [vmem:[%s7 + $0x48] sm:$0xff]
  %v2152 = vld [vmem:[%s7 + $0x50] sm:$0xff]
  %v2153 = vld [vmem:[%s7 + $0x58] sm:$0xff]
  %v2154 = vld [vmem:[%s7 + $0x60] sm:$0xff]
  %v2155 = vld [vmem:[%s7 + $0x68] sm:$0xff]
  %v2156 = vld [vmem:[%s7 + $0x70] sm:$0xff]
  %v2157 = vld [vmem:[%s7 + $0x78] sm:$0xff]
  %v2158 = vld [vmem:[%s8] sm:$0x1]
  %v2160 = vperm.slane %v2158, 0
  %2162 = vmatpush.msra.mxu0 %v2157
  %2163 = vmatpush.msra.mxu0 %v2156
  %2164 = vmatpush.msra.mxu0 %v2155
  %2165 = vmatpush.msra.mxu0 %v2154
  %2166 = vmatpush.msra.mxu0 %v2153
  %2167 = vmatpush.msra.mxu0 %v2152
  %2168 = vmatpush.msra.mxu0 %v2151
  %2169 = vmatpush.msra.mxu0 %v2150
  %2170 = vmatpush.msra.mxu0 %v2149
  %2171 = vmatpush.msra.mxu0 %v2148
  %2172 = vmatpush.msra.mxu0 %v2147
  %2173 = vmatpush.msra.mxu0 %v2146
  %2174 = vmatpush.msra.mxu0 %v2145
  %2175 = vmatpush.msra.mxu0 %v2144
  %2176 = vmatpush.msra.mxu0 %v2143
  %2177 = vmatpush.msra.mxu0 %v2142
  %2178 = vmatmul.f32.gmra.mxu0 %v2141
  %v2179 = vpop.f32.mrf.mxu0
  %v2180 = vadd.f32 %v2160, %v2179
  %2181 = vdwg.mxu0
  %2182 = vst [vmem:[%s9] sm:$0xff] %v2180
  // Predicated region
  $region38: #{_lenet_forward.3} parent=0 // pred_check
    _
  $region39: #{_lenet_forward.3} parent=0 // pred_check_branch
    %2184 = sbr.rel (0) target = $region41
  $region40: #{_lenet_forward.3} parent=0 // pred_region
    _
  $region41: #{_lenet_forward.3} parent=0 // pred_fallthru
    _
  // Predicated region
  $region42: #{_lenet_forward.3} parent=0 // pred_check
    _
  $region43: #{_lenet_forward.3} parent=0 // pred_check_branch
    %2186 = sbr.rel (0) target = $region45
  $region44: #{_lenet_forward.3} parent=0 // pred_region
    _
  $region45: #{_lenet_forward.3} parent=0 // pred_fallthru
    _

</llo_original>
